<compile_context>
chip_gen: v7x
topology: tpu7x:2x2x1
jax: 0.10.0
libtpu: 0.0.40
codegen_flags: <defaults>
</compile_context>

<pallas_src>
import functools
import math

import jax
import jax.numpy as jnp
from jax.experimental import pallas as pl
from jax.experimental.pallas import tpu as pltpu

VOCAB_SIZE = 128
EMBED_DIM = 256
NUM_HEADS = 4
NUM_LAYERS = 2
FFN_DIM = 2048
LN_EPS = 1e-5


# ----------------------------------------------------------------------------
# Helpers
# ----------------------------------------------------------------------------
def _spec(shape):
    """Full-array BlockSpec for a grid=(1,) call."""
    nd = len(shape)
    return pl.BlockSpec(shape, lambda i, _nd=nd: (0,) * _nd)


def _linear_t(x, w, b):
    """x @ w.T + b with w in PyTorch (out, in) layout (no materialized transpose)."""
    return jax.lax.dot_general(x, w, (((1,), (1,)), ((), ())),
                               preferred_element_type=jnp.float32) + b


# ----------------------------------------------------------------------------
# Conv-path kernels
# ----------------------------------------------------------------------------
def _conv_pool_kernel(cols_ref, w_ref, b_ref, o_ref):
    """Fused conv-as-matmul + bias + ReLU + 2x2 maxpool.

    cols_ref: (4, M, 9*Cin) — leading axis is the pool quadrant (pi*2+pj),
              rows ordered (b, ho, wo).  o_ref: (M, Cout).
    """
    w = w_ref[...]
    b = b_ref[...]

    def quadrant(i):
        y = jnp.dot(cols_ref[i], w, preferred_element_type=jnp.float32) + b
        return jnp.maximum(y, 0.0)

    o_ref[...] = jnp.maximum(jnp.maximum(quadrant(0), quadrant(1)),
                             jnp.maximum(quadrant(2), quadrant(3)))


def _conv_gap_proj_kernel(cols_ref, w_ref, b_ref, pw_ref, pb_ref, o_ref,
                          *, batch, hw):
    """Fused conv3-as-matmul + bias + ReLU + global average pool + memory_proj.

    cols_ref: (B*H*W, 9*Cin); pw_ref: (E, Cout) torch layout; o_ref: (B, E).
    One big GEMM over all B*H*W rows, then a reshape-mean per image.
    """
    y = jnp.dot(cols_ref[...], w_ref[...],
                preferred_element_type=jnp.float32) + b_ref[...]
    y = jnp.maximum(y, 0.0)                                  # (B*HW, Cout)
    cout = y.shape[1]
    m = jnp.mean(y.reshape(batch, hw, cout), axis=1)         # (B, Cout)
    o_ref[...] = _linear_t(m, pw_ref[...], pb_ref[...])      # (B, E)


# ----------------------------------------------------------------------------
# Fused decoder kernel: embedding gather + NUM_LAYERS decoder layers + fc_out
# ----------------------------------------------------------------------------
def _fused_decoder_kernel(seq_ref, emb_ref, mem_ref,
                          sa_in_w_ref, sa_in_b_ref, sa_out_w_ref, sa_out_b_ref,
                          ca_v_w_ref, ca_v_b_ref, ca_out_w_ref, ca_out_b_ref,
                          ff1_w_ref, ff1_b_ref, ff2_w_ref, ff2_b_ref,
                          n1_g_ref, n1_b_ref, n2_g_ref, n2_b_ref,
                          n3_g_ref, n3_b_ref,
                          fc_w_ref, fc_b_ref,
                          o_ref, x_ref, *, num_heads, batch, t_len):
    """One grid step == one nn.TransformerDecoderLayer (post-norm, ReLU FFN,
    no masks in the reference, dropout = identity).

    Row convention: x rows are flattened (b, t), i.e. row r = b*T + t.
    seq_ref: (T*B, 1) int32 token ids; emb_ref: (V, E); mem_ref: (B, E).
    Per-layer weight refs come in as (1, d0, d1) blocks of the stacked arrays.
    x_ref: persistent VMEM scratch carrying the activations across layers.
    """
    layer = pl.program_id(0)
    tb = batch * t_len
    emb = x_ref.shape[1]
    head_dim = emb // num_heads
    scale = 1.0 / math.sqrt(head_dim)

    # ---- layer 0 prologue: embedding lookup as one-hot @ table on the MXU ----
    @pl.when(layer == 0)
    def _():
        vocab = emb_ref.shape[0]
        ids = seq_ref[...]                                               # (TB, 1)
        lanes = jax.lax.broadcasted_iota(jnp.int32, (tb, vocab), 1)
        onehot = (lanes == ids).astype(jnp.float32)                      # (TB, V)
        x_ref[...] = jnp.dot(onehot, emb_ref[...],
                             preferred_element_type=jnp.float32)

    x = x_ref[...]

    def layer_norm(y, g, b):
        mu = jnp.mean(y, axis=-1, keepdims=True)
        var = jnp.mean((y - mu) ** 2, axis=-1, keepdims=True)
        return (y - mu) * jax.lax.rsqrt(var + LN_EPS) * g + b

    # ---- self-attention: packed QKV GEMM, head-batched score/context matmuls
    qkv = _linear_t(x, sa_in_w_ref[0], sa_in_b_ref[0])                   # (TB, 3E)

    qh = jnp.stack([qkv[:, h * head_dim:(h + 1) * head_dim]
                    for h in range(num_heads)], axis=0) * scale          # (H, TB, dh)
    kh = jnp.stack([qkv[:, emb + h * head_dim: emb + (h + 1) * head_dim]
                    for h in range(num_heads)], axis=0)
    vh = jnp.stack([qkv[:, 2 * emb + h * head_dim: 2 * emb + (h + 1) * head_dim]
                    for h in range(num_heads)], axis=0)

    # Rows are (b, t): only same-image rows attend to each other (exact; the
    # masked entries get probability 0).  No causal mask — matches PyTorch
    # nn.TransformerDecoder called with tgt_mask=None.
    rix = jax.lax.broadcasted_iota(jnp.int32, (tb, tb), 0)
    cix = jax.lax.broadcasted_iota(jnp.int32, (tb, tb), 1)
    rstart = rix - rix % t_len
    same = (cix >= rstart) & (cix < rstart + t_len)
    mask_bias = jnp.where(same, 0.0, -1e30)

    s = jnp.einsum('hqd,hkd->hqk', qh, kh,
                   preferred_element_type=jnp.float32)                   # (H, TB, TB)
    s = s + mask_bias[None, :, :]
    s = s - jnp.max(s, axis=-1, keepdims=True)
    p = jnp.exp(s)
    p = p / jnp.sum(p, axis=-1, keepdims=True)
    ctx = jnp.einsum('hqk,hkd->hqd', p, vh,
                     preferred_element_type=jnp.float32)                 # (H, TB, dh)
    attn = jnp.concatenate([ctx[h] for h in range(num_heads)], axis=-1)  # (TB, E)

    sa = _linear_t(attn, sa_out_w_ref[0], sa_out_b_ref[0])
    x = layer_norm(x + sa, n1_g_ref[0], n1_b_ref[0])

    # ---- cross-attention: memory length == 1 => softmax over one key == 1,
    #      so the output is exactly out_proj(V_proj(memory)), broadcast over T.
    mem_v = _linear_t(mem_ref[...], ca_v_w_ref[0], ca_v_b_ref[0])        # (B, E)
    ca_vec = _linear_t(mem_v, ca_out_w_ref[0], ca_out_b_ref[0])          # (B, E)
    ca = jnp.broadcast_to(ca_vec[:, None, :],
                          (batch, t_len, emb)).reshape(tb, emb)          # row b*T+t -> ca_vec[b]
    x = layer_norm(x + ca, n2_g_ref[0], n2_b_ref[0])

    # ---- feed-forward: ff1(relu)+ff2 fused, (TB, FFN) never leaves VMEM ----
    h1 = jnp.maximum(_linear_t(x, ff1_w_ref[0], ff1_b_ref[0]), 0.0)
    h2 = _linear_t(h1, ff2_w_ref[0], ff2_b_ref[0])
    x = layer_norm(x + h2, n3_g_ref[0], n3_b_ref[0])

    x_ref[...] = x

    # ---- final projection fused into the last layer ----
    @pl.when(layer == pl.num_programs(0) - 1)
    def _():
        o_ref[...] = _linear_t(x, fc_w_ref[...], fc_b_ref[...])


# ----------------------------------------------------------------------------
# Kernel wrappers
# ----------------------------------------------------------------------------
def conv_relu_pool(x, wcol, b):
    """x: (B, H, W, Cin) NHWC; wcol: (9*Cin, Cout); b: (1, Cout).
    Returns (B, H/2, W/2, Cout)."""
    bsz, hh, ww, cin = x.shape
    cout = wcol.shape[1]
    ho, wo = hh // 2, ww // 2
    xp = jnp.pad(x, ((0, 0), (1, 1), (1, 1), (0, 0)))
    patches = jnp.concatenate(
        [xp[:, kh:kh + hh, kw:kw + ww, :] for kh in range(3) for kw in range(3)],
        axis=-1)                                                   # (B, H, W, 9*Cin)
    patches = patches.reshape(bsz, ho, 2, wo, 2, 9 * cin)
    patches = jnp.transpose(patches, (2, 4, 0, 1, 3, 5))           # (pi, pj, B, Ho, Wo, 9*Cin)
    cols = patches.reshape(4, bsz * ho * wo, 9 * cin)
    out = pl.pallas_call(
        _conv_pool_kernel,
        out_shape=jax.ShapeDtypeStruct((bsz * ho * wo, cout), jnp.float32),
        grid=(1,),
        in_specs=[_spec(cols.shape), _spec(wcol.shape), _spec(b.shape)],
        out_specs=_spec((bsz * ho * wo, cout)),
    )(cols, wcol, b)
    return out.reshape(bsz, ho, wo, cout)


def conv_gap_proj(x, wcol, b, pw, pb):
    """conv3 + ReLU + AdaptiveAvgPool2d(1) + memory_proj fused. Returns (B, E)."""
    bsz, hh, ww, cin = x.shape
    cout = wcol.shape[1]
    e = pw.shape[0]
    xp = jnp.pad(x, ((0, 0), (1, 1), (1, 1), (0, 0)))
    cols = jnp.concatenate(
        [xp[:, kh:kh + hh, kw:kw + ww, :] for kh in range(3) for kw in range(3)],
        axis=-1).reshape(bsz * hh * ww, 9 * cin)
    kernel = functools.partial(_conv_gap_proj_kernel, batch=bsz, hw=hh * ww)
    return pl.pallas_call(
        kernel,
        out_shape=jax.ShapeDtypeStruct((bsz, e), jnp.float32),
        grid=(1,),
        in_specs=[_spec(cols.shape), _spec(wcol.shape), _spec(b.shape),
                  _spec(pw.shape), _spec(pb.shape)],
        out_specs=_spec((bsz, e)),
    )(cols, wcol, b, pw, pb)


def fused_decoder(seq2d, memory, fp, *, num_heads, batch, t_len):
    """Embedding gather + NUM_LAYERS decoder layers + fc_out in ONE pallas_call.

    seq2d: (T*B, 1) int32 (b-major flatten of tgt_seq); memory: (B, E).
    Per-layer weights in fp are stacked with a leading layer axis.
    """
    tb = batch * t_len
    e, v, num_layers = EMBED_DIM, VOCAB_SIZE, NUM_LAYERS

    consts_head = [seq2d, fp["emb"], memory]
    layer_inputs = [fp[k] for k in (
        "sa_in_w", "sa_in_b", "sa_out_w", "sa_out_b",
        "ca_v_w", "ca_v_b", "ca_out_w", "ca_out_b",
        "ff1_w", "ff1_b", "ff2_w", "ff2_b",
        "n1_g", "n1_b", "n2_g", "n2_b", "n3_g", "n3_b")]
    consts_tail = [fp["fc_w"], fp["fc_b"]]
    inputs = consts_head + layer_inputs + consts_tail

    def const_spec(a):
        nd = a.ndim
        return pl.BlockSpec(a.shape, lambda l, _nd=nd: (0,) * _nd)

    def layer_spec(a):
        nd = a.ndim
        blk = (1,) + tuple(a.shape[1:])
        return pl.BlockSpec(blk, lambda l, _nd=nd: (l,) + (0,) * (_nd - 1))

    in_specs = ([const_spec(a) for a in consts_head] +
                [layer_spec(a) for a in layer_inputs] +
                [const_spec(a) for a in consts_tail])

    kernel = functools.partial(_fused_decoder_kernel,
                               num_heads=num_heads, batch=batch, t_len=t_len)
    return pl.pallas_call(
        kernel,
        out_shape=jax.ShapeDtypeStruct((tb, v), jnp.float32),
        grid_spec=pltpu.PrefetchScalarGridSpec(
            num_scalar_prefetch=0,
            grid=(num_layers,),
            in_specs=in_specs,
            out_specs=pl.BlockSpec((tb, v), lambda l: (0, 0)),
            scratch_shapes=[pltpu.VMEM((tb, e), jnp.float32)]),
        compiler_params=pltpu.CompilerParams(
            # Sequential layer axis: activations carried in scratch.
            dimension_semantics=("arbitrary",),
            # ~5.8 MB weights/layer, double-buffered (~11.6 MB) + constants +
            # scratch — 32 MiB leaves headroom on v5e/v6e/v7x.
            vmem_limit_bytes=32 * 1024 * 1024),
    )(*inputs)


# ----------------------------------------------------------------------------
# Model forward
# ----------------------------------------------------------------------------
def ghost_forward(fp, img, tgt_seq):
    # img: (B, 1, H, W) NCHW (PyTorch convention); tgt_seq: (B, T) int32
    bsz = img.shape[0]
    t_len = tgt_seq.shape[1]

    x = jnp.transpose(img, (0, 2, 3, 1))                          # NCHW -> NHWC
    x = conv_relu_pool(x, fp["conv1_wcol"], fp["conv1_b"])
    x = conv_relu_pool(x, fp["conv2_wcol"], fp["conv2_b"])
    memory = conv_gap_proj(x, fp["conv3_wcol"], fp["conv3_b"],
                           fp["memory_proj_w"], fp["memory_proj_b"])      # (B, E)

    seq2d = tgt_seq.reshape(bsz * t_len, 1).astype(jnp.int32)             # b-major rows
    logits = fused_decoder(seq2d, memory, fp,
                           num_heads=NUM_HEADS, batch=bsz, t_len=t_len)   # (B*T, V)
    return logits.reshape(bsz, t_len, VOCAB_SIZE)                         # (B, T, vocab)


# ----------------------------------------------------------------------------
# Parameters: PyTorch-layout init + one-time packing into the kernel layout
# ----------------------------------------------------------------------------
def init_params(key):
    ks = iter(jax.random.split(key, 128))

    def w(shape, scale=0.02):
        return jax.random.normal(next(ks), shape, jnp.float32) * scale

    e, ff, v = EMBED_DIM, FFN_DIM, VOCAB_SIZE
    p = {
        "conv1_w": w((32, 1, 3, 3), 0.2), "conv1_b": w((32,), 0.1),
        "conv2_w": w((64, 32, 3, 3), 0.05), "conv2_b": w((64,), 0.05),
        "conv3_w": w((128, 64, 3, 3), 0.05), "conv3_b": w((128,), 0.05),
        "memory_proj_w": w((e, 128)), "memory_proj_b": jnp.zeros((e,), jnp.float32),
        "embedding": w((v, e)),
        "fc_out_w": w((v, e)), "fc_out_b": jnp.zeros((v,), jnp.float32),
        "layers": [],
    }
    for _ in range(NUM_LAYERS):
        p["layers"].append({
            "sa_in_w": w((3 * e, e)), "sa_in_b": jnp.zeros((3 * e,), jnp.float32),
            "sa_out_w": w((e, e)), "sa_out_b": jnp.zeros((e,), jnp.float32),
            "ca_in_w": w((3 * e, e)), "ca_in_b": jnp.zeros((3 * e,), jnp.float32),
            "ca_out_w": w((e, e)), "ca_out_b": jnp.zeros((e,), jnp.float32),
            "ff1_w": w((ff, e)), "ff1_b": jnp.zeros((ff,), jnp.float32),
            "ff2_w": w((e, ff)), "ff2_b": jnp.zeros((e,), jnp.float32),
            "n1_g": jnp.ones((e,), jnp.float32), "n1_b": jnp.zeros((e,), jnp.float32),
            "n2_g": jnp.ones((e,), jnp.float32), "n2_b": jnp.zeros((e,), jnp.float32),
            "n3_g": jnp.ones((e,), jnp.float32), "n3_b": jnp.zeros((e,), jnp.float32),
        })
    return p


def prepare_params(p):
    """One-time (outside jit) packing of PyTorch-layout weights into the
    kernel layout: stacked per-layer arrays, im2col conv weights, bias rows."""
    e, ff, v = EMBED_DIM, FFN_DIM, VOCAB_SIZE

    def conv_cols(w):
        cout, cin = w.shape[0], w.shape[1]
        return jnp.transpose(w, (2, 3, 1, 0)).reshape(9 * cin, cout)

    fp = {
        "conv1_wcol": conv_cols(p["conv1_w"]), "conv1_b": p["conv1_b"].reshape(1, -1),
        "conv2_wcol": conv_cols(p["conv2_w"]), "conv2_b": p["conv2_b"].reshape(1, -1),
        "conv3_wcol": conv_cols(p["conv3_w"]), "conv3_b": p["conv3_b"].reshape(1, -1),
        "memory_proj_w": p["memory_proj_w"],
        "memory_proj_b": p["memory_proj_b"].reshape(1, e),
        "emb": p["embedding"],
        "fc_w": p["fc_out_w"], "fc_b": p["fc_out_b"].reshape(1, v),
    }
    layers = p["layers"]

    def stack_w(name):
        return jnp.stack([l[name] for l in layers])

    def stack_b(name, d):
        return jnp.stack([l[name].reshape(1, d) for l in layers])

    fp["sa_in_w"] = stack_w("sa_in_w");  fp["sa_in_b"] = stack_b("sa_in_b", 3 * e)
    fp["sa_out_w"] = stack_w("sa_out_w"); fp["sa_out_b"] = stack_b("sa_out_b", e)
    # Only the V rows of the cross-attn in_proj are needed (memory length == 1).
    fp["ca_v_w"] = jnp.stack([l["ca_in_w"][2 * e:] for l in layers])
    fp["ca_v_b"] = jnp.stack([l["ca_in_b"][2 * e:].reshape(1, e) for l in layers])
    fp["ca_out_w"] = stack_w("ca_out_w"); fp["ca_out_b"] = stack_b("ca_out_b", e)
    fp["ff1_w"] = stack_w("ff1_w"); fp["ff1_b"] = stack_b("ff1_b", ff)
    fp["ff2_w"] = stack_w("ff2_w"); fp["ff2_b"] = stack_b("ff2_b", e)
    for n in ("n1_g", "n1_b", "n2_g", "n2_b", "n3_g", "n3_b"):
        fp[n] = stack_b(n, e)
    return fp


# ----------------------------------------------------------------------------
if __name__ == "__main__":
    B, H, W, T = 2, 16, 16, 8
    key = jax.random.PRNGKey(0)
    k_img, k_tgt = jax.random.split(key)
    img = jax.random.normal(k_img, (B, 1, H, W), jnp.float32)
    tgt_seq = jax.random.randint(k_tgt, (B, T), 0, VOCAB_SIZE, dtype=jnp.int32)

    params = init_params(jax.random.PRNGKey(1234))
    fp = prepare_params(params)          # one-time packing, outside jit

    out = jax.jit(ghost_forward)(fp, img, tgt_seq)
    out = jax.block_until_ready(out)
    assert out.shape == (B, T, VOCAB_SIZE), out.shape
    assert bool(jnp.all(jnp.isfinite(out)))
    print("KERNEL_OK")
</pallas_src>

<mosaic_0001>
module attributes {stable_mosaic.version = 11 : i64} {
  func.func @_conv_pool_kernel(%arg0: i32, %arg1: memref<4x128x9xf32, #tpu.memory_space<vmem>>, %arg2: memref<9x32xf32, #tpu.memory_space<vmem>>, %arg3: memref<1x32xf32, #tpu.memory_space<vmem>>, %arg4: memref<128x32xf32, #tpu.memory_space<vmem>>) attributes {dimension_semantics = [#tpu.dimension_semantics<arbitrary>], iteration_bounds = array<i64: 1>, scalar_prefetch = 0 : i64, scratch_operands = 0 : i64, tpu.core_type = #tpu.core_type<tc>, window_params = [{pipeline_mode = #tpu.pipeline_mode<synchronous>, transform_indices = @transform_0, window_bounds = array<i64: 4, 128, 9>}, {pipeline_mode = #tpu.pipeline_mode<synchronous>, transform_indices = @transform_1, window_bounds = array<i64: 9, 32>}, {pipeline_mode = #tpu.pipeline_mode<synchronous>, transform_indices = @transform_2, window_bounds = array<i64: 1, 32>}, {pipeline_mode = #tpu.pipeline_mode<synchronous>, transform_indices = @transform_3, window_bounds = array<i64: 128, 32>}]} {
    %c0 = arith.constant 0 : index
    %c0_0 = arith.constant 0 : index
    %0 = vector.load %arg2[%c0, %c0_0] : memref<9x32xf32, #tpu.memory_space<vmem>>, vector<9x32xf32>
    %c0_1 = arith.constant 0 : index
    %c0_2 = arith.constant 0 : index
    %1 = vector.load %arg3[%c0_1, %c0_2] : memref<1x32xf32, #tpu.memory_space<vmem>>, vector<1x32xf32>
    %c0_3 = arith.constant 0 : index
    %c0_4 = arith.constant 0 : index
    %c0_5 = arith.constant 0 : index
    %2 = vector.load %arg1[%c0_3, %c0_4, %c0_5] : memref<4x128x9xf32, #tpu.memory_space<vmem>>, vector<1x128x9xf32>
    %3 = vector.shape_cast %2 : vector<1x128x9xf32> to vector<128x9xf32>
    %cst = arith.constant dense<0.000000e+00> : vector<128x32xf32>
    %4 = tpu.matmul %3, %0, %cst {dimension_numbers = #tpu.dot_dimension_numbers<[1], [0], [0], [1], [0, 0, 1, 1], [], []>} : vector<128x9xf32>, vector<9x32xf32>, vector<128x32xf32> -> vector<128x32xf32>
    %5 = vector.broadcast %1 : vector<1x32xf32> to vector<128x32xf32>
    %6 = arith.addf %4, %5 : vector<128x32xf32>
    %cst_6 = arith.constant 0.000000e+00 : f32
    %7 = vector.broadcast %cst_6 : f32 to vector<128x32xf32>
    %8 = arith.maximumf %6, %7 : vector<128x32xf32>
    %c1 = arith.constant 1 : index
    %c0_7 = arith.constant 0 : index
    %c0_8 = arith.constant 0 : index
    %9 = vector.load %arg1[%c1, %c0_7, %c0_8] : memref<4x128x9xf32, #tpu.memory_space<vmem>>, vector<1x128x9xf32>
    %10 = vector.shape_cast %9 : vector<1x128x9xf32> to vector<128x9xf32>
    %cst_9 = arith.constant dense<0.000000e+00> : vector<128x32xf32>
    %11 = tpu.matmul %10, %0, %cst_9 {dimension_numbers = #tpu.dot_dimension_numbers<[1], [0], [0], [1], [0, 0, 1, 1], [], []>} : vector<128x9xf32>, vector<9x32xf32>, vector<128x32xf32> -> vector<128x32xf32>
    %12 = vector.broadcast %1 : vector<1x32xf32> to vector<128x32xf32>
    %13 = arith.addf %11, %12 : vector<128x32xf32>
    %cst_10 = arith.constant 0.000000e+00 : f32
    %14 = vector.broadcast %cst_10 : f32 to vector<128x32xf32>
    %15 = arith.maximumf %13, %14 : vector<128x32xf32>
    %16 = arith.maximumf %8, %15 : vector<128x32xf32>
    %c2 = arith.constant 2 : index
    %c0_11 = arith.constant 0 : index
    %c0_12 = arith.constant 0 : index
    %17 = vector.load %arg1[%c2, %c0_11, %c0_12] : memref<4x128x9xf32, #tpu.memory_space<vmem>>, vector<1x128x9xf32>
    %18 = vector.shape_cast %17 : vector<1x128x9xf32> to vector<128x9xf32>
    %cst_13 = arith.constant dense<0.000000e+00> : vector<128x32xf32>
    %19 = tpu.matmul %18, %0, %cst_13 {dimension_numbers = #tpu.dot_dimension_numbers<[1], [0], [0], [1], [0, 0, 1, 1], [], []>} : vector<128x9xf32>, vector<9x32xf32>, vector<128x32xf32> -> vector<128x32xf32>
    %20 = vector.broadcast %1 : vector<1x32xf32> to vector<128x32xf32>
    %21 = arith.addf %19, %20 : vector<128x32xf32>
    %cst_14 = arith.constant 0.000000e+00 : f32
    %22 = vector.broadcast %cst_14 : f32 to vector<128x32xf32>
    %23 = arith.maximumf %21, %22 : vector<128x32xf32>
    %c3 = arith.constant 3 : index
    %c0_15 = arith.constant 0 : index
    %c0_16 = arith.constant 0 : index
    %24 = vector.load %arg1[%c3, %c0_15, %c0_16] : memref<4x128x9xf32, #tpu.memory_space<vmem>>, vector<1x128x9xf32>
    %25 = vector.shape_cast %24 : vector<1x128x9xf32> to vector<128x9xf32>
    %cst_17 = arith.constant dense<0.000000e+00> : vector<128x32xf32>
    %26 = tpu.matmul %25, %0, %cst_17 {dimension_numbers = #tpu.dot_dimension_numbers<[1], [0], [0], [1], [0, 0, 1, 1], [], []>} : vector<128x9xf32>, vector<9x32xf32>, vector<128x32xf32> -> vector<128x32xf32>
    %27 = vector.broadcast %1 : vector<1x32xf32> to vector<128x32xf32>
    %28 = arith.addf %26, %27 : vector<128x32xf32>
    %cst_18 = arith.constant 0.000000e+00 : f32
    %29 = vector.broadcast %cst_18 : f32 to vector<128x32xf32>
    %30 = arith.maximumf %28, %29 : vector<128x32xf32>
    %31 = arith.maximumf %23, %30 : vector<128x32xf32>
    %32 = arith.maximumf %16, %31 : vector<128x32xf32>
    %c0_19 = arith.constant 0 : index
    %c0_20 = arith.constant 0 : index
    %33 = vector.load %arg4[%c0_19, %c0_20] : memref<128x32xf32, #tpu.memory_space<vmem>>, vector<128x32xf32>
    tpu.vector_store %arg4[%c0_19, %c0_20], %32 {strides = array<i32>} : memref<128x32xf32, #tpu.memory_space<vmem>>, vector<128x32xf32>,
    return
  }
  func.func @transform_0(%arg0: i32) -> (i32, i32, i32) {
    %c0_i32 = arith.constant 0 : i32
    %c0_i32_0 = arith.constant 0 : i32
    %c0_i32_1 = arith.constant 0 : i32
    %c0_i32_2 = arith.constant 0 : i32
    return %c0_i32, %c0_i32_0, %c0_i32_1 : i32, i32, i32
  }
  func.func @transform_1(%arg0: i32) -> (i32, i32) {
    %c0_i32 = arith.constant 0 : i32
    %c0_i32_0 = arith.constant 0 : i32
    %c0_i32_1 = arith.constant 0 : i32
    return %c0_i32, %c0_i32_0 : i32, i32
  }
  func.func @transform_2(%arg0: i32) -> (i32, i32) {
    %c0_i32 = arith.constant 0 : i32
    %c0_i32_0 = arith.constant 0 : i32
    %c0_i32_1 = arith.constant 0 : i32
    return %c0_i32, %c0_i32_0 : i32, i32
  }
  func.func @transform_3(%arg0: i32) -> (i32, i32) {
    %c0_i32 = arith.constant 0 : i32
    %c0_i32_0 = arith.constant 0 : i32
    %c0_i32_1 = arith.constant 0 : i32
    return %c0_i32, %c0_i32_0 : i32, i32
  }
}

module attributes {stable_mosaic.version = 11 : i64} {
  func.func @_conv_pool_kernel(%arg0: i32, %arg1: memref<4x32x288xf32, #tpu.memory_space<vmem>>, %arg2: memref<288x64xf32, #tpu.memory_space<vmem>>, %arg3: memref<1x64xf32, #tpu.memory_space<vmem>>, %arg4: memref<32x64xf32, #tpu.memory_space<vmem>>) attributes {dimension_semantics = [#tpu.dimension_semantics<arbitrary>], iteration_bounds = array<i64: 1>, scalar_prefetch = 0 : i64, scratch_operands = 0 : i64, tpu.core_type = #tpu.core_type<tc>, window_params = [{pipeline_mode = #tpu.pipeline_mode<synchronous>, transform_indices = @transform_0, window_bounds = array<i64: 4, 32, 288>}, {pipeline_mode = #tpu.pipeline_mode<synchronous>, transform_indices = @transform_1, window_bounds = array<i64: 288, 64>}, {pipeline_mode = #tpu.pipeline_mode<synchronous>, transform_indices = @transform_2, window_bounds = array<i64: 1, 64>}, {pipeline_mode = #tpu.pipeline_mode<synchronous>, transform_indices = @transform_3, window_bounds = array<i64: 32, 64>}]} {
    %c0 = arith.constant 0 : index
    %c0_0 = arith.constant 0 : index
    %0 = vector.load %arg2[%c0, %c0_0] : memref<288x64xf32, #tpu.memory_space<vmem>>, vector<288x64xf32>
    %c0_1 = arith.constant 0 : index
    %c0_2 = arith.constant 0 : index
    %1 = vector.load %arg3[%c0_1, %c0_2] : memref<1x64xf32, #tpu.memory_space<vmem>>, vector<1x64xf32>
    %c0_3 = arith.constant 0 : index
    %c0_4 = arith.constant 0 : index
    %c0_5 = arith.constant 0 : index
    %2 = vector.load %arg1[%c0_3, %c0_4, %c0_5] : memref<4x32x288xf32, #tpu.memory_space<vmem>>, vector<1x32x288xf32>
    %3 = vector.shape_cast %2 : vector<1x32x288xf32> to vector<32x288xf32>
    %cst = arith.constant dense<0.000000e+00> : vector<32x64xf32>
    %4 = tpu.matmul %3, %0, %cst {dimension_numbers = #tpu.dot_dimension_numbers<[1], [0], [0], [1], [0, 0, 1, 1], [], []>} : vector<32x288xf32>, vector<288x64xf32>, vector<32x64xf32> -> vector<32x64xf32>
    %5 = vector.broadcast %1 : vector<1x64xf32> to vector<32x64xf32>
    %6 = arith.addf %4, %5 : vector<32x64xf32>
    %cst_6 = arith.constant 0.000000e+00 : f32
    %7 = vector.broadcast %cst_6 : f32 to vector<32x64xf32>
    %8 = arith.maximumf %6, %7 : vector<32x64xf32>
    %c1 = arith.constant 1 : index
    %c0_7 = arith.constant 0 : index
    %c0_8 = arith.constant 0 : index
    %9 = vector.load %arg1[%c1, %c0_7, %c0_8] : memref<4x32x288xf32, #tpu.memory_space<vmem>>, vector<1x32x288xf32>
    %10 = vector.shape_cast %9 : vector<1x32x288xf32> to vector<32x288xf32>
    %cst_9 = arith.constant dense<0.000000e+00> : vector<32x64xf32>
    %11 = tpu.matmul %10, %0, %cst_9 {dimension_numbers = #tpu.dot_dimension_numbers<[1], [0], [0], [1], [0, 0, 1, 1], [], []>} : vector<32x288xf32>, vector<288x64xf32>, vector<32x64xf32> -> vector<32x64xf32>
    %12 = vector.broadcast %1 : vector<1x64xf32> to vector<32x64xf32>
    %13 = arith.addf %11, %12 : vector<32x64xf32>
    %cst_10 = arith.constant 0.000000e+00 : f32
    %14 = vector.broadcast %cst_10 : f32 to vector<32x64xf32>
    %15 = arith.maximumf %13, %14 : vector<32x64xf32>
    %16 = arith.maximumf %8, %15 : vector<32x64xf32>
    %c2 = arith.constant 2 : index
    %c0_11 = arith.constant 0 : index
    %c0_12 = arith.constant 0 : index
    %17 = vector.load %arg1[%c2, %c0_11, %c0_12] : memref<4x32x288xf32, #tpu.memory_space<vmem>>, vector<1x32x288xf32>
    %18 = vector.shape_cast %17 : vector<1x32x288xf32> to vector<32x288xf32>
    %cst_13 = arith.constant dense<0.000000e+00> : vector<32x64xf32>
    %19 = tpu.matmul %18, %0, %cst_13 {dimension_numbers = #tpu.dot_dimension_numbers<[1], [0], [0], [1], [0, 0, 1, 1], [], []>} : vector<32x288xf32>, vector<288x64xf32>, vector<32x64xf32> -> vector<32x64xf32>
    %20 = vector.broadcast %1 : vector<1x64xf32> to vector<32x64xf32>
    %21 = arith.addf %19, %20 : vector<32x64xf32>
    %cst_14 = arith.constant 0.000000e+00 : f32
    %22 = vector.broadcast %cst_14 : f32 to vector<32x64xf32>
    %23 = arith.maximumf %21, %22 : vector<32x64xf32>
    %c3 = arith.constant 3 : index
    %c0_15 = arith.constant 0 : index
    %c0_16 = arith.constant 0 : index
    %24 = vector.load %arg1[%c3, %c0_15, %c0_16] : memref<4x32x288xf32, #tpu.memory_space<vmem>>, vector<1x32x288xf32>
    %25 = vector.shape_cast %24 : vector<1x32x288xf32> to vector<32x288xf32>
    %cst_17 = arith.constant dense<0.000000e+00> : vector<32x64xf32>
    %26 = tpu.matmul %25, %0, %cst_17 {dimension_numbers = #tpu.dot_dimension_numbers<[1], [0], [0], [1], [0, 0, 1, 1], [], []>} : vector<32x288xf32>, vector<288x64xf32>, vector<32x64xf32> -> vector<32x64xf32>
    %27 = vector.broadcast %1 : vector<1x64xf32> to vector<32x64xf32>
    %28 = arith.addf %26, %27 : vector<32x64xf32>
    %cst_18 = arith.constant 0.000000e+00 : f32
    %29 = vector.broadcast %cst_18 : f32 to vector<32x64xf32>
    %30 = arith.maximumf %28, %29 : vector<32x64xf32>
    %31 = arith.maximumf %23, %30 : vector<32x64xf32>
    %32 = arith.maximumf %16, %31 : vector<32x64xf32>
    %c0_19 = arith.constant 0 : index
    %c0_20 = arith.constant 0 : index
    %33 = vector.load %arg4[%c0_19, %c0_20] : memref<32x64xf32, #tpu.memory_space<vmem>>, vector<32x64xf32>
    tpu.vector_store %arg4[%c0_19, %c0_20], %32 {strides = array<i32>} : memref<32x64xf32, #tpu.memory_space<vmem>>, vector<32x64xf32>,
    return
  }
  func.func @transform_0(%arg0: i32) -> (i32, i32, i32) {
    %c0_i32 = arith.constant 0 : i32
    %c0_i32_0 = arith.constant 0 : i32
    %c0_i32_1 = arith.constant 0 : i32
    %c0_i32_2 = arith.constant 0 : i32
    return %c0_i32, %c0_i32_0, %c0_i32_1 : i32, i32, i32
  }
  func.func @transform_1(%arg0: i32) -> (i32, i32) {
    %c0_i32 = arith.constant 0 : i32
    %c0_i32_0 = arith.constant 0 : i32
    %c0_i32_1 = arith.constant 0 : i32
    return %c0_i32, %c0_i32_0 : i32, i32
  }
  func.func @transform_2(%arg0: i32) -> (i32, i32) {
    %c0_i32 = arith.constant 0 : i32
    %c0_i32_0 = arith.constant 0 : i32
    %c0_i32_1 = arith.constant 0 : i32
    return %c0_i32, %c0_i32_0 : i32, i32
  }
  func.func @transform_3(%arg0: i32) -> (i32, i32) {
    %c0_i32 = arith.constant 0 : i32
    %c0_i32_0 = arith.constant 0 : i32
    %c0_i32_1 = arith.constant 0 : i32
    return %c0_i32, %c0_i32_0 : i32, i32
  }
}

module attributes {stable_mosaic.version = 11 : i64} {
  func.func @_conv_gap_proj_kernel(%arg0: i32, %arg1: memref<32x576xf32, #tpu.memory_space<vmem>>, %arg2: memref<576x128xf32, #tpu.memory_space<vmem>>, %arg3: memref<1x128xf32, #tpu.memory_space<vmem>>, %arg4: memref<256x128xf32, #tpu.memory_space<vmem>>, %arg5: memref<1x256xf32, #tpu.memory_space<vmem>>, %arg6: memref<2x256xf32, #tpu.memory_space<vmem>>) attributes {dimension_semantics = [#tpu.dimension_semantics<arbitrary>], iteration_bounds = array<i64: 1>, scalar_prefetch = 0 : i64, scratch_operands = 0 : i64, tpu.core_type = #tpu.core_type<tc>, window_params = [{pipeline_mode = #tpu.pipeline_mode<synchronous>, transform_indices = @transform_0, window_bounds = array<i64: 32, 576>}, {pipeline_mode = #tpu.pipeline_mode<synchronous>, transform_indices = @transform_1, window_bounds = array<i64: 576, 128>}, {pipeline_mode = #tpu.pipeline_mode<synchronous>, transform_indices = @transform_2, window_bounds = array<i64: 1, 128>}, {pipeline_mode = #tpu.pipeline_mode<synchronous>, transform_indices = @transform_3, window_bounds = array<i64: 256, 128>}, {pipeline_mode = #tpu.pipeline_mode<synchronous>, transform_indices = @transform_4, window_bounds = array<i64: 1, 256>}, {pipeline_mode = #tpu.pipeline_mode<synchronous>, transform_indices = @transform_5, window_bounds = array<i64: 2, 256>}]} {
    %c0 = arith.constant 0 : index
    %c0_0 = arith.constant 0 : index
    %0 = vector.load %arg1[%c0, %c0_0] : memref<32x576xf32, #tpu.memory_space<vmem>>, vector<32x576xf32>
    %c0_1 = arith.constant 0 : index
    %c0_2 = arith.constant 0 : index
    %1 = vector.load %arg2[%c0_1, %c0_2] : memref<576x128xf32, #tpu.memory_space<vmem>>, vector<576x128xf32>
    %cst = arith.constant dense<0.000000e+00> : vector<32x128xf32>
    %2 = tpu.matmul %0, %1, %cst {dimension_numbers = #tpu.dot_dimension_numbers<[1], [0], [0], [1], [0, 0, 1, 1], [], []>} : vector<32x576xf32>, vector<576x128xf32>, vector<32x128xf32> -> vector<32x128xf32>
    %c0_3 = arith.constant 0 : index
    %c0_4 = arith.constant 0 : index
    %3 = vector.load %arg3[%c0_3, %c0_4] : memref<1x128xf32, #tpu.memory_space<vmem>>, vector<1x128xf32>
    %4 = vector.broadcast %3 : vector<1x128xf32> to vector<32x128xf32>
    %5 = arith.addf %2, %4 : vector<32x128xf32>
    %cst_5 = arith.constant 0.000000e+00 : f32
    %6 = vector.broadcast %cst_5 : f32 to vector<32x128xf32>
    %7 = arith.maximumf %5, %6 : vector<32x128xf32>
    %8 = vector.shape_cast %7 : vector<32x128xf32> to vector<2x16x128xf32>
    %cst_6 = arith.constant dense<0.000000e+00> : vector<2x128xf32>
    %9 = vector.multi_reduction <add>, %8, %cst_6 [1] : vector<2x16x128xf32> to vector<2x128xf32>
    %cst_7 = arith.constant 1.600000e+01 : f32
    %10 = vector.broadcast %cst_7 : f32 to vector<2x128xf32>
    %11 = arith.divf %9, %10 : vector<2x128xf32>
    %c0_8 = arith.constant 0 : index
    %c0_9 = arith.constant 0 : index
    %12 = vector.load %arg4[%c0_8, %c0_9] : memref<256x128xf32, #tpu.memory_space<vmem>>, vector<256x128xf32>
    %c0_10 = arith.constant 0 : index
    %c0_11 = arith.constant 0 : index
    %13 = vector.load %arg5[%c0_10, %c0_11] : memref<1x256xf32, #tpu.memory_space<vmem>>, vector<1x256xf32>
    %cst_12 = arith.constant dense<0.000000e+00> : vector<2x256xf32>
    %14 = tpu.matmul %11, %12, %cst_12 {dimension_numbers = #tpu.dot_dimension_numbers<[1], [1], [0], [0], [0, 0, 1, 0], [], []>} : vector<2x128xf32>, vector<256x128xf32>, vector<2x256xf32> -> vector<2x256xf32>
    %15 = vector.broadcast %13 : vector<1x256xf32> to vector<2x256xf32>
    %16 = arith.addf %14, %15 : vector<2x256xf32>
    %c0_13 = arith.constant 0 : index
    %c0_14 = arith.constant 0 : index
    %17 = vector.load %arg6[%c0_13, %c0_14] : memref<2x256xf32, #tpu.memory_space<vmem>>, vector<2x256xf32>
    tpu.vector_store %arg6[%c0_13, %c0_14], %16 {strides = array<i32>} : memref<2x256xf32, #tpu.memory_space<vmem>>, vector<2x256xf32>,
    return
  }
  func.func @transform_0(%arg0: i32) -> (i32, i32) {
    %c0_i32 = arith.constant 0 : i32
    %c0_i32_0 = arith.constant 0 : i32
    %c0_i32_1 = arith.constant 0 : i32
    return %c0_i32, %c0_i32_0 : i32, i32
  }
  func.func @transform_1(%arg0: i32) -> (i32, i32) {
    %c0_i32 = arith.constant 0 : i32
    %c0_i32_0 = arith.constant 0 : i32
    %c0_i32_1 = arith.constant 0 : i32
    return %c0_i32, %c0_i32_0 : i32, i32
  }
  func.func @transform_2(%arg0: i32) -> (i32, i32) {
    %c0_i32 = arith.constant 0 : i32
    %c0_i32_0 = arith.constant 0 : i32
    %c0_i32_1 = arith.constant 0 : i32
    return %c0_i32, %c0_i32_0 : i32, i32
  }
  func.func @transform_3(%arg0: i32) -> (i32, i32) {
    %c0_i32 = arith.constant 0 : i32
    %c0_i32_0 = arith.constant 0 : i32
    %c0_i32_1 = arith.constant 0 : i32
    return %c0_i32, %c0_i32_0 : i32, i32
  }
  func.func @transform_4(%arg0: i32) -> (i32, i32) {
    %c0_i32 = arith.constant 0 : i32
    %c0_i32_0 = arith.constant 0 : i32
    %c0_i32_1 = arith.constant 0 : i32
    return %c0_i32, %c0_i32_0 : i32, i32
  }
  func.func @transform_5(%arg0: i32) -> (i32, i32) {
    %c0_i32 = arith.constant 0 : i32
    %c0_i32_0 = arith.constant 0 : i32
    %c0_i32_1 = arith.constant 0 : i32
    return %c0_i32, %c0_i32_0 : i32, i32
  }
}

module attributes {stable_mosaic.version = 11 : i64} {
  func.func @_fused_decoder_kernel(%arg0: i32, %arg1: memref<16x1xi32, #tpu.memory_space<vmem>>, %arg2: memref<128x256xf32, #tpu.memory_space<vmem>>, %arg3: memref<2x256xf32, #tpu.memory_space<vmem>>, %arg4: memref<1x768x256xf32, #tpu.memory_space<vmem>>, %arg5: memref<1x1x768xf32, #tpu.memory_space<vmem>>, %arg6: memref<1x256x256xf32, #tpu.memory_space<vmem>>, %arg7: memref<1x1x256xf32, #tpu.memory_space<vmem>>, %arg8: memref<1x256x256xf32, #tpu.memory_space<vmem>>, %arg9: memref<1x1x256xf32, #tpu.memory_space<vmem>>, %arg10: memref<1x256x256xf32, #tpu.memory_space<vmem>>, %arg11: memref<1x1x256xf32, #tpu.memory_space<vmem>>, %arg12: memref<1x2048x256xf32, #tpu.memory_space<vmem>>, %arg13: memref<1x1x2048xf32, #tpu.memory_space<vmem>>, %arg14: memref<1x256x2048xf32, #tpu.memory_space<vmem>>, %arg15: memref<1x1x256xf32, #tpu.memory_space<vmem>>, %arg16: memref<1x1x256xf32, #tpu.memory_space<vmem>>, %arg17: memref<1x1x256xf32, #tpu.memory_space<vmem>>, %arg18: memref<1x1x256xf32, #tpu.memory_space<vmem>>, %arg19: memref<1x1x256xf32, #tpu.memory_space<vmem>>, %arg20: memref<1x1x256xf32, #tpu.memory_space<vmem>>, %arg21: memref<1x1x256xf32, #tpu.memory_space<vmem>>, %arg22: memref<128x256xf32, #tpu.memory_space<vmem>>, %arg23: memref<1x128xf32, #tpu.memory_space<vmem>>, %arg24: memref<16x128xf32, #tpu.memory_space<vmem>>, %arg25: memref<16x256xf32, #tpu.memory_space<vmem>>) attributes {dimension_semantics = [#tpu.dimension_semantics<arbitrary>], iteration_bounds = array<i64: 2>, scalar_prefetch = 0 : i64, scratch_operands = 1 : i64, tpu.core_type = #tpu.core_type<tc>, window_params = [{pipeline_mode = #tpu.pipeline_mode<synchronous>, transform_indices = @transform_0, window_bounds = array<i64: 16, 1>}, {pipeline_mode = #tpu.pipeline_mode<synchronous>, transform_indices = @transform_1, window_bounds = array<i64: 128, 256>}, {pipeline_mode = #tpu.pipeline_mode<synchronous>, transform_indices = @transform_2, window_bounds = array<i64: 2, 256>}, {transform_indices = @transform_3, window_bounds = array<i64: 1, 768, 256>}, {transform_indices = @transform_4, window_bounds = array<i64: 1, 1, 768>}, {transform_indices = @transform_5, window_bounds = array<i64: 1, 256, 256>}, {transform_indices = @transform_6, window_bounds = array<i64: 1, 1, 256>}, {transform_indices = @transform_7, window_bounds = array<i64: 1, 256, 256>}, {transform_indices = @transform_8, window_bounds = array<i64: 1, 1, 256>}, {transform_indices = @transform_9, window_bounds = array<i64: 1, 256, 256>}, {transform_indices = @transform_10, window_bounds = array<i64: 1, 1, 256>}, {transform_indices = @transform_11, window_bounds = array<i64: 1, 2048, 256>}, {transform_indices = @transform_12, window_bounds = array<i64: 1, 1, 2048>}, {transform_indices = @transform_13, window_bounds = array<i64: 1, 256, 2048>}, {transform_indices = @transform_14, window_bounds = array<i64: 1, 1, 256>}, {transform_indices = @transform_15, window_bounds = array<i64: 1, 1, 256>}, {transform_indices = @transform_16, window_bounds = array<i64: 1, 1, 256>}, {transform_indices = @transform_17, window_bounds = array<i64: 1, 1, 256>}, {transform_indices = @transform_18, window_bounds = array<i64: 1, 1, 256>}, {transform_indices = @transform_19, window_bounds = array<i64: 1, 1, 256>}, {transform_indices = @transform_20, window_bounds = array<i64: 1, 1, 256>}, {pipeline_mode = #tpu.pipeline_mode<synchronous>, transform_indices = @transform_21, window_bounds = array<i64: 128, 256>}, {pipeline_mode = #tpu.pipeline_mode<synchronous>, transform_indices = @transform_22, window_bounds = array<i64: 1, 128>}, {pipeline_mode = #tpu.pipeline_mode<synchronous>, transform_indices = @transform_23, window_bounds = array<i64: 16, 128>}]} {
    %c0_i32 = arith.constant 0 : i32
    %0 = arith.cmpi eq, %arg0, %c0_i32 : i32
    %1 = arith.extui %0 : i1 to i32
    %c0_i32_0 = arith.constant 0 : i32
    %2 = arith.cmpi ne, %1, %c0_i32_0 : i32
    scf.if %2 {
      %c0_95 = arith.constant 0 : index
      %c0_96 = arith.constant 0 : index
      %217 = vector.load %arg1[%c0_95, %c0_96] : memref<16x1xi32, #tpu.memory_space<vmem>>, vector<16x1xi32>
      %218 = tpu.iota {dimensions = array<i32: 1>} : vector<16x128xi32>
      %219 = vector.broadcast %217 : vector<16x1xi32> to vector<16x128xi32>
      %220 = arith.cmpi eq, %218, %219 : vector<16x128xi32>
      %221 = arith.extui %220 : vector<16x128xi1> to vector<16x128xi32>
      %222 = arith.sitofp %221 : vector<16x128xi32> to vector<16x128xf32>
      %c0_97 = arith.constant 0 : index
      %c0_98 = arith.constant 0 : index
      %223 = vector.load %arg2[%c0_97, %c0_98] : memref<128x256xf32, #tpu.memory_space<vmem>>, vector<128x256xf32>
      %cst_99 = arith.constant dense<0.000000e+00> : vector<16x256xf32>
      %224 = tpu.matmul %222, %223, %cst_99 {dimension_numbers = #tpu.dot_dimension_numbers<[1], [0], [0], [1], [0, 0, 1, 1], [], []>} : vector<16x128xf32>, vector<128x256xf32>, vector<16x256xf32> -> vector<16x256xf32>
      %c0_100 = arith.constant 0 : index
      %c0_101 = arith.constant 0 : index
      %225 = vector.load %arg25[%c0_100, %c0_101] : memref<16x256xf32, #tpu.memory_space<vmem>>, vector<16x256xf32>
      tpu.vector_store %arg25[%c0_100, %c0_101], %224 {strides = array<i32>} : memref<16x256xf32, #tpu.memory_space<vmem>>, vector<16x256xf32>,
    } else {
    }
    %c0 = arith.constant 0 : index
    %c0_1 = arith.constant 0 : index
    %3 = vector.load %arg25[%c0, %c0_1] : memref<16x256xf32, #tpu.memory_space<vmem>>, vector<16x256xf32>
    %c0_2 = arith.constant 0 : index
    %c0_3 = arith.constant 0 : index
    %c0_4 = arith.constant 0 : index
    %4 = vector.load %arg4[%c0_2, %c0_3, %c0_4] : memref<1x768x256xf32, #tpu.memory_space<vmem>>, vector<1x768x256xf32>
    %5 = vector.shape_cast %4 : vector<1x768x256xf32> to vector<768x256xf32>
    %c0_5 = arith.constant 0 : index
    %c0_6 = arith.constant 0 : index
    %c0_7 = arith.constant 0 : index
    %6 = vector.load %arg5[%c0_5, %c0_6, %c0_7] : memref<1x1x768xf32, #tpu.memory_space<vmem>>, vector<1x1x768xf32>
    %7 = vector.shape_cast %6 : vector<1x1x768xf32> to vector<1x768xf32>
    %cst = arith.constant dense<0.000000e+00> : vector<16x768xf32>
    %8 = tpu.matmul %3, %5, %cst {dimension_numbers = #tpu.dot_dimension_numbers<[1], [1], [0], [0], [0, 0, 1, 0], [], []>} : vector<16x256xf32>, vector<768x256xf32>, vector<16x768xf32> -> vector<16x768xf32>
    %9 = vector.broadcast %7 : vector<1x768xf32> to vector<16x768xf32>
    %10 = arith.addf %8, %9 : vector<16x768xf32>
    %11 = vector.extract_strided_slice %10 {offsets = [0, 0], sizes = [16, 64], strides = [1, 1]} : vector<16x768xf32> to vector<16x64xf32>
    %12 = vector.extract_strided_slice %10 {offsets = [0, 64], sizes = [16, 64], strides = [1, 1]} : vector<16x768xf32> to vector<16x64xf32>
    %13 = vector.extract_strided_slice %10 {offsets = [0, 128], sizes = [16, 64], strides = [1, 1]} : vector<16x768xf32> to vector<16x64xf32>
    %14 = vector.extract_strided_slice %10 {offsets = [0, 192], sizes = [16, 64], strides = [1, 1]} : vector<16x768xf32> to vector<16x64xf32>
    %15 = vector.shape_cast %11 : vector<16x64xf32> to vector<1x16x64xf32>
    %16 = vector.shape_cast %12 : vector<16x64xf32> to vector<1x16x64xf32>
    %17 = vector.shape_cast %13 : vector<16x64xf32> to vector<1x16x64xf32>
    %18 = vector.shape_cast %14 : vector<16x64xf32> to vector<1x16x64xf32>
    %19 = tpu.concatenate %15, %16, %17, %18 in 0 : vector<1x16x64xf32>, vector<1x16x64xf32>, vector<1x16x64xf32>, vector<1x16x64xf32> -> vector<4x16x64xf32>
    %cst_8 = arith.constant 1.250000e-01 : f32
    %20 = vector.broadcast %cst_8 : f32 to vector<4x16x64xf32>
    %21 = arith.mulf %19, %20 : vector<4x16x64xf32>
    %22 = vector.extract_strided_slice %10 {offsets = [0, 256], sizes = [16, 64], strides = [1, 1]} : vector<16x768xf32> to vector<16x64xf32>
    %23 = vector.extract_strided_slice %10 {offsets = [0, 320], sizes = [16, 64], strides = [1, 1]} : vector<16x768xf32> to vector<16x64xf32>
    %24 = vector.extract_strided_slice %10 {offsets = [0, 384], sizes = [16, 64], strides = [1, 1]} : vector<16x768xf32> to vector<16x64xf32>
    %25 = vector.extract_strided_slice %10 {offsets = [0, 448], sizes = [16, 64], strides = [1, 1]} : vector<16x768xf32> to vector<16x64xf32>
    %26 = vector.shape_cast %22 : vector<16x64xf32> to vector<1x16x64xf32>
    %27 = vector.shape_cast %23 : vector<16x64xf32> to vector<1x16x64xf32>
    %28 = vector.shape_cast %24 : vector<16x64xf32> to vector<1x16x64xf32>
    %29 = vector.shape_cast %25 : vector<16x64xf32> to vector<1x16x64xf32>
    %30 = tpu.concatenate %26, %27, %28, %29 in 0 : vector<1x16x64xf32>, vector<1x16x64xf32>, vector<1x16x64xf32>, vector<1x16x64xf32> -> vector<4x16x64xf32>
    %31 = vector.extract_strided_slice %10 {offsets = [0, 512], sizes = [16, 64], strides = [1, 1]} : vector<16x768xf32> to vector<16x64xf32>
    %32 = vector.extract_strided_slice %10 {offsets = [0, 576], sizes = [16, 64], strides = [1, 1]} : vector<16x768xf32> to vector<16x64xf32>
    %33 = vector.extract_strided_slice %10 {offsets = [0, 640], sizes = [16, 64], strides = [1, 1]} : vector<16x768xf32> to vector<16x64xf32>
    %34 = vector.extract_strided_slice %10 {offsets = [0, 704], sizes = [16, 64], strides = [1, 1]} : vector<16x768xf32> to vector<16x64xf32>
    %35 = vector.shape_cast %31 : vector<16x64xf32> to vector<1x16x64xf32>
    %36 = vector.shape_cast %32 : vector<16x64xf32> to vector<1x16x64xf32>
    %37 = vector.shape_cast %33 : vector<16x64xf32> to vector<1x16x64xf32>
    %38 = vector.shape_cast %34 : vector<16x64xf32> to vector<1x16x64xf32>
    %39 = tpu.concatenate %35, %36, %37, %38 in 0 : vector<1x16x64xf32>, vector<1x16x64xf32>, vector<1x16x64xf32>, vector<1x16x64xf32> -> vector<4x16x64xf32>
    %40 = tpu.iota {dimensions = array<i32: 0>} : vector<16x16xi32>
    %41 = tpu.iota {dimensions = array<i32: 1>} : vector<16x16xi32>
    %c8_i32 = arith.constant 8 : i32
    %c0_i32_9 = arith.constant 0 : i32
    %42 = arith.cmpi eq, %c8_i32, %c0_i32_9 : i32
    %c1_i32 = arith.constant 1 : i32
    %43 = arith.select %42, %c1_i32, %c8_i32 : i32
    %44 = vector.broadcast %43 : i32 to vector<16x16xi32>
    %45 = arith.remsi %40, %44 : vector<16x16xi32>
    %c0_i32_10 = arith.constant 0 : i32
    %46 = vector.broadcast %c0_i32_10 : i32 to vector<16x16xi32>
    %47 = arith.cmpi ne, %45, %46 : vector<16x16xi32>
    %c0_i32_11 = arith.constant 0 : i32
    %48 = vector.broadcast %c0_i32_11 : i32 to vector<16x16xi32>
    %49 = arith.cmpi slt, %45, %48 : vector<16x16xi32>
    %c0_i32_12 = arith.constant 0 : i32
    %50 = arith.cmpi slt, %43, %c0_i32_12 : i32
    %51 = vector.broadcast %50 : i1 to vector<16x16xi1>
    %52 = vector.broadcast %51 : vector<16x16xi1> to vector<16x16xi1>
    %53 = arith.xori %49, %52 : vector<16x16xi1>
    %54 = arith.andi %53, %47 : vector<16x16xi1>
    %55 = vector.broadcast %43 : i32 to vector<16x16xi32>
    %56 = arith.addi %45, %55 : vector<16x16xi32>
    %57 = arith.select %54, %56, %45 : vector<16x16xi1>, vector<16x16xi32>
    %58 = arith.subi %40, %57 : vector<16x16xi32>
    %59 = arith.cmpi sge, %41, %58 : vector<16x16xi32>
    %c8_i32_13 = arith.constant 8 : i32
    %60 = vector.broadcast %c8_i32_13 : i32 to vector<16x16xi32>
    %61 = arith.addi %58, %60 : vector<16x16xi32>
    %62 = arith.cmpi slt, %41, %61 : vector<16x16xi32>
    %63 = arith.andi %59, %62 : vector<16x16xi1>
    %cst_14 = arith.constant 0.000000e+00 : f32
    %cst_15 = arith.constant -1.000000e+30 : f32
    %64 = vector.broadcast %cst_14 : f32 to vector<16x16xf32>
    %65 = vector.broadcast %cst_15 : f32 to vector<16x16xf32>
    %66 = arith.select %63, %64, %65 : vector<16x16xi1>, vector<16x16xf32>
    "tpu.trace_start"() <{level = 10 : i32, message = "hqd,hkd->hqk"}> : () -> ()
    %cst_16 = arith.constant dense<0.000000e+00> : vector<4x16x16xf32>
    %67 = tpu.matmul %21, %30, %cst_16 {dimension_numbers = #tpu.dot_dimension_numbers<[2], [2], [1], [1], [0, 0, 0, 1, 1, 1], [0], [0]>} : vector<4x16x64xf32>, vector<4x16x64xf32>, vector<4x16x16xf32> -> vector<4x16x16xf32>
    "tpu.trace_stop"() : () -> ()
    %68 = vector.shape_cast %66 : vector<16x16xf32> to vector<1x16x16xf32>
    %69 = vector.broadcast %68 : vector<1x16x16xf32> to vector<4x16x16xf32>
    %70 = arith.addf %67, %69 : vector<4x16x16xf32>
    %cst_17 = arith.constant dense<0xFF800000> : vector<4x16xf32>
    %71 = vector.multi_reduction <maximumf>, %70, %cst_17 [2] : vector<4x16x16xf32> to vector<4x16xf32>
    %72 = vector.shape_cast %71 : vector<4x16xf32> to vector<4x16x1xf32>
    %73 = vector.broadcast %72 : vector<4x16x1xf32> to vector<4x16x16xf32>
    %74 = arith.subf %70, %73 : vector<4x16x16xf32>
    %75 = math.exp %74 : vector<4x16x16xf32>
    %cst_18 = arith.constant dense<0.000000e+00> : vector<4x16xf32>
    %76 = vector.multi_reduction <add>, %75, %cst_18 [2] : vector<4x16x16xf32> to vector<4x16xf32>
    %77 = vector.shape_cast %76 : vector<4x16xf32> to vector<4x16x1xf32>
    %78 = vector.broadcast %77 : vector<4x16x1xf32> to vector<4x16x16xf32>
    %79 = arith.divf %75, %78 : vector<4x16x16xf32>
    "tpu.trace_start"() <{level = 10 : i32, message = "hqk,hkd->hqd"}> : () -> ()
    %cst_19 = arith.constant dense<0.000000e+00> : vector<4x16x64xf32>
    %80 = tpu.matmul %79, %39, %cst_19 {dimension_numbers = #tpu.dot_dimension_numbers<[2], [1], [1], [2], [0, 0, 0, 1, 1, 2], [0], [0]>} : vector<4x16x16xf32>, vector<4x16x64xf32>, vector<4x16x64xf32> -> vector<4x16x64xf32>
    "tpu.trace_stop"() : () -> ()
    %81 = vector.extract_strided_slice %80 {offsets = [0, 0, 0], sizes = [1, 16, 64], strides = [1, 1, 1]} : vector<4x16x64xf32> to vector<1x16x64xf32>
    %82 = vector.shape_cast %81 : vector<1x16x64xf32> to vector<16x64xf32>
    %83 = vector.extract_strided_slice %80 {offsets = [1, 0, 0], sizes = [1, 16, 64], strides = [1, 1, 1]} : vector<4x16x64xf32> to vector<1x16x64xf32>
    %84 = vector.shape_cast %83 : vector<1x16x64xf32> to vector<16x64xf32>
    %85 = vector.extract_strided_slice %80 {offsets = [2, 0, 0], sizes = [1, 16, 64], strides = [1, 1, 1]} : vector<4x16x64xf32> to vector<1x16x64xf32>
    %86 = vector.shape_cast %85 : vector<1x16x64xf32> to vector<16x64xf32>
    %87 = vector.extract_strided_slice %80 {offsets = [3, 0, 0], sizes = [1, 16, 64], strides = [1, 1, 1]} : vector<4x16x64xf32> to vector<1x16x64xf32>
    %88 = vector.shape_cast %87 : vector<1x16x64xf32> to vector<16x64xf32>
    %89 = tpu.concatenate %82, %84, %86, %88 in 1 : vector<16x64xf32>, vector<16x64xf32>, vector<16x64xf32>, vector<16x64xf32> -> vector<16x256xf32>
    %c0_20 = arith.constant 0 : index
    %c0_21 = arith.constant 0 : index
    %c0_22 = arith.constant 0 : index
    %90 = vector.load %arg6[%c0_20, %c0_21, %c0_22] : memref<1x256x256xf32, #tpu.memory_space<vmem>>, vector<1x256x256xf32>
    %91 = vector.shape_cast %90 : vector<1x256x256xf32> to vector<256x256xf32>
    %c0_23 = arith.constant 0 : index
    %c0_24 = arith.constant 0 : index
    %c0_25 = arith.constant 0 : index
    %92 = vector.load %arg7[%c0_23, %c0_24, %c0_25] : memref<1x1x256xf32, #tpu.memory_space<vmem>>, vector<1x1x256xf32>
    %93 = vector.shape_cast %92 : vector<1x1x256xf32> to vector<1x256xf32>
    %cst_26 = arith.constant dense<0.000000e+00> : vector<16x256xf32>
    %94 = tpu.matmul %89, %91, %cst_26 {dimension_numbers = #tpu.dot_dimension_numbers<[1], [1], [0], [0], [0, 0, 1, 0], [], []>} : vector<16x256xf32>, vector<256x256xf32>, vector<16x256xf32> -> vector<16x256xf32>
    %95 = vector.broadcast %93 : vector<1x256xf32> to vector<16x256xf32>
    %96 = arith.addf %94, %95 : vector<16x256xf32>
    %97 = arith.addf %3, %96 : vector<16x256xf32>
    %c0_27 = arith.constant 0 : index
    %c0_28 = arith.constant 0 : index
    %c0_29 = arith.constant 0 : index
    %98 = vector.load %arg16[%c0_27, %c0_28, %c0_29] : memref<1x1x256xf32, #tpu.memory_space<vmem>>, vector<1x1x256xf32>
    %99 = vector.shape_cast %98 : vector<1x1x256xf32> to vector<1x256xf32>
    %c0_30 = arith.constant 0 : index
    %c0_31 = arith.constant 0 : index
    %c0_32 = arith.constant 0 : index
    %100 = vector.load %arg17[%c0_30, %c0_31, %c0_32] : memref<1x1x256xf32, #tpu.memory_space<vmem>>, vector<1x1x256xf32>
    %101 = vector.shape_cast %100 : vector<1x1x256xf32> to vector<1x256xf32>
    %cst_33 = arith.constant dense<0.000000e+00> : vector<16xf32>
    %102 = vector.multi_reduction <add>, %97, %cst_33 [1] : vector<16x256xf32> to vector<16xf32>
    %103 = vector.shape_cast %102 : vector<16xf32> to vector<16x1xf32>
    %cst_34 = arith.constant 2.560000e+02 : f32
    %104 = vector.broadcast %cst_34 : f32 to vector<16x1xf32>
    %105 = arith.divf %103, %104 : vector<16x1xf32>
    %106 = vector.broadcast %105 : vector<16x1xf32> to vector<16x256xf32>
    %107 = arith.subf %97, %106 : vector<16x256xf32>
    %108 = arith.mulf %107, %107 : vector<16x256xf32>
    %cst_35 = arith.constant dense<0.000000e+00> : vector<16xf32>
    %109 = vector.multi_reduction <add>, %108, %cst_35 [1] : vector<16x256xf32> to vector<16xf32>
    %110 = vector.shape_cast %109 : vector<16xf32> to vector<16x1xf32>
    %cst_36 = arith.constant 2.560000e+02 : f32
    %111 = vector.broadcast %cst_36 : f32 to vector<16x1xf32>
    %112 = arith.divf %110, %111 : vector<16x1xf32>
    %113 = vector.broadcast %105 : vector<16x1xf32> to vector<16x256xf32>
    %114 = arith.subf %97, %113 : vector<16x256xf32>
    %cst_37 = arith.constant 9.99999974E-6 : f32
    %115 = vector.broadcast %cst_37 : f32 to vector<16x1xf32>
    %116 = arith.addf %112, %115 : vector<16x1xf32>
    %117 = math.rsqrt %116 : vector<16x1xf32>
    %118 = vector.broadcast %117 : vector<16x1xf32> to vector<16x256xf32>
    %119 = arith.mulf %114, %118 : vector<16x256xf32>
    %120 = vector.broadcast %99 : vector<1x256xf32> to vector<16x256xf32>
    %121 = arith.mulf %119, %120 : vector<16x256xf32>
    %122 = vector.broadcast %101 : vector<1x256xf32> to vector<16x256xf32>
    %123 = arith.addf %121, %122 : vector<16x256xf32>
    %c0_38 = arith.constant 0 : index
    %c0_39 = arith.constant 0 : index
    %124 = vector.load %arg3[%c0_38, %c0_39] : memref<2x256xf32, #tpu.memory_space<vmem>>, vector<2x256xf32>
    %c0_40 = arith.constant 0 : index
    %c0_41 = arith.constant 0 : index
    %c0_42 = arith.constant 0 : index
    %125 = vector.load %arg8[%c0_40, %c0_41, %c0_42] : memref<1x256x256xf32, #tpu.memory_space<vmem>>, vector<1x256x256xf32>
    %126 = vector.shape_cast %125 : vector<1x256x256xf32> to vector<256x256xf32>
    %c0_43 = arith.constant 0 : index
    %c0_44 = arith.constant 0 : index
    %c0_45 = arith.constant 0 : index
    %127 = vector.load %arg9[%c0_43, %c0_44, %c0_45] : memref<1x1x256xf32, #tpu.memory_space<vmem>>, vector<1x1x256xf32>
    %128 = vector.shape_cast %127 : vector<1x1x256xf32> to vector<1x256xf32>
    %cst_46 = arith.constant dense<0.000000e+00> : vector<2x256xf32>
    %129 = tpu.matmul %124, %126, %cst_46 {dimension_numbers = #tpu.dot_dimension_numbers<[1], [1], [0], [0], [0, 0, 1, 0], [], []>} : vector<2x256xf32>, vector<256x256xf32>, vector<2x256xf32> -> vector<2x256xf32>
    %130 = vector.broadcast %128 : vector<1x256xf32> to vector<2x256xf32>
    %131 = arith.addf %129, %130 : vector<2x256xf32>
    %c0_47 = arith.constant 0 : index
    %c0_48 = arith.constant 0 : index
    %c0_49 = arith.constant 0 : index
    %132 = vector.load %arg10[%c0_47, %c0_48, %c0_49] : memref<1x256x256xf32, #tpu.memory_space<vmem>>, vector<1x256x256xf32>
    %133 = vector.shape_cast %132 : vector<1x256x256xf32> to vector<256x256xf32>
    %c0_50 = arith.constant 0 : index
    %c0_51 = arith.constant 0 : index
    %c0_52 = arith.constant 0 : index
    %134 = vector.load %arg11[%c0_50, %c0_51, %c0_52] : memref<1x1x256xf32, #tpu.memory_space<vmem>>, vector<1x1x256xf32>
    %135 = vector.shape_cast %134 : vector<1x1x256xf32> to vector<1x256xf32>
    %cst_53 = arith.constant dense<0.000000e+00> : vector<2x256xf32>
    %136 = tpu.matmul %131, %133, %cst_53 {dimension_numbers = #tpu.dot_dimension_numbers<[1], [1], [0], [0], [0, 0, 1, 0], [], []>} : vector<2x256xf32>, vector<256x256xf32>, vector<2x256xf32> -> vector<2x256xf32>
    %137 = vector.broadcast %135 : vector<1x256xf32> to vector<2x256xf32>
    %138 = arith.addf %136, %137 : vector<2x256xf32>
    %139 = vector.shape_cast %138 : vector<2x256xf32> to vector<2x1x256xf32>
    %140 = vector.shape_cast %139 : vector<2x1x256xf32> to vector<2x1x256xf32>
    %141 = vector.broadcast %140 : vector<2x1x256xf32> to vector<2x8x256xf32>
    %142 = vector.shape_cast %141 : vector<2x8x256xf32> to vector<16x256xf32>
    %143 = arith.addf %123, %142 : vector<16x256xf32>
    %c0_54 = arith.constant 0 : index
    %c0_55 = arith.constant 0 : index
    %c0_56 = arith.constant 0 : index
    %144 = vector.load %arg18[%c0_54, %c0_55, %c0_56] : memref<1x1x256xf32, #tpu.memory_space<vmem>>, vector<1x1x256xf32>
    %145 = vector.shape_cast %144 : vector<1x1x256xf32> to vector<1x256xf32>
    %c0_57 = arith.constant 0 : index
    %c0_58 = arith.constant 0 : index
    %c0_59 = arith.constant 0 : index
    %146 = vector.load %arg19[%c0_57, %c0_58, %c0_59] : memref<1x1x256xf32, #tpu.memory_space<vmem>>, vector<1x1x256xf32>
    %147 = vector.shape_cast %146 : vector<1x1x256xf32> to vector<1x256xf32>
    %cst_60 = arith.constant dense<0.000000e+00> : vector<16xf32>
    %148 = vector.multi_reduction <add>, %143, %cst_60 [1] : vector<16x256xf32> to vector<16xf32>
    %149 = vector.shape_cast %148 : vector<16xf32> to vector<16x1xf32>
    %cst_61 = arith.constant 2.560000e+02 : f32
    %150 = vector.broadcast %cst_61 : f32 to vector<16x1xf32>
    %151 = arith.divf %149, %150 : vector<16x1xf32>
    %152 = vector.broadcast %151 : vector<16x1xf32> to vector<16x256xf32>
    %153 = arith.subf %143, %152 : vector<16x256xf32>
    %154 = arith.mulf %153, %153 : vector<16x256xf32>
    %cst_62 = arith.constant dense<0.000000e+00> : vector<16xf32>
    %155 = vector.multi_reduction <add>, %154, %cst_62 [1] : vector<16x256xf32> to vector<16xf32>
    %156 = vector.shape_cast %155 : vector<16xf32> to vector<16x1xf32>
    %cst_63 = arith.constant 2.560000e+02 : f32
    %157 = vector.broadcast %cst_63 : f32 to vector<16x1xf32>
    %158 = arith.divf %156, %157 : vector<16x1xf32>
    %159 = vector.broadcast %151 : vector<16x1xf32> to vector<16x256xf32>
    %160 = arith.subf %143, %159 : vector<16x256xf32>
    %cst_64 = arith.constant 9.99999974E-6 : f32
    %161 = vector.broadcast %cst_64 : f32 to vector<16x1xf32>
    %162 = arith.addf %158, %161 : vector<16x1xf32>
    %163 = math.rsqrt %162 : vector<16x1xf32>
    %164 = vector.broadcast %163 : vector<16x1xf32> to vector<16x256xf32>
    %165 = arith.mulf %160, %164 : vector<16x256xf32>
    %166 = vector.broadcast %145 : vector<1x256xf32> to vector<16x256xf32>
    %167 = arith.mulf %165, %166 : vector<16x256xf32>
    %168 = vector.broadcast %147 : vector<1x256xf32> to vector<16x256xf32>
    %169 = arith.addf %167, %168 : vector<16x256xf32>
    %c0_65 = arith.constant 0 : index
    %c0_66 = arith.constant 0 : index
    %c0_67 = arith.constant 0 : index
    %170 = vector.load %arg12[%c0_65, %c0_66, %c0_67] : memref<1x2048x256xf32, #tpu.memory_space<vmem>>, vector<1x2048x256xf32>
    %171 = vector.shape_cast %170 : vector<1x2048x256xf32> to vector<2048x256xf32>
    %c0_68 = arith.constant 0 : index
    %c0_69 = arith.constant 0 : index
    %c0_70 = arith.constant 0 : index
    %172 = vector.load %arg13[%c0_68, %c0_69, %c0_70] : memref<1x1x2048xf32, #tpu.memory_space<vmem>>, vector<1x1x2048xf32>
    %173 = vector.shape_cast %172 : vector<1x1x2048xf32> to vector<1x2048xf32>
    %cst_71 = arith.constant dense<0.000000e+00> : vector<16x2048xf32>
    %174 = tpu.matmul %169, %171, %cst_71 {dimension_numbers = #tpu.dot_dimension_numbers<[1], [1], [0], [0], [0, 0, 1, 0], [], []>} : vector<16x256xf32>, vector<2048x256xf32>, vector<16x2048xf32> -> vector<16x2048xf32>
    %175 = vector.broadcast %173 : vector<1x2048xf32> to vector<16x2048xf32>
    %176 = arith.addf %174, %175 : vector<16x2048xf32>
    %cst_72 = arith.constant 0.000000e+00 : f32
    %177 = vector.broadcast %cst_72 : f32 to vector<16x2048xf32>
    %178 = arith.maximumf %176, %177 : vector<16x2048xf32>
    %c0_73 = arith.constant 0 : index
    %c0_74 = arith.constant 0 : index
    %c0_75 = arith.constant 0 : index
    %179 = vector.load %arg14[%c0_73, %c0_74, %c0_75] : memref<1x256x2048xf32, #tpu.memory_space<vmem>>, vector<1x256x2048xf32>
    %180 = vector.shape_cast %179 : vector<1x256x2048xf32> to vector<256x2048xf32>
    %c0_76 = arith.constant 0 : index
    %c0_77 = arith.constant 0 : index
    %c0_78 = arith.constant 0 : index
    %181 = vector.load %arg15[%c0_76, %c0_77, %c0_78] : memref<1x1x256xf32, #tpu.memory_space<vmem>>, vector<1x1x256xf32>
    %182 = vector.shape_cast %181 : vector<1x1x256xf32> to vector<1x256xf32>
    %cst_79 = arith.constant dense<0.000000e+00> : vector<16x256xf32>
    %183 = tpu.matmul %178, %180, %cst_79 {dimension_numbers = #tpu.dot_dimension_numbers<[1], [1], [0], [0], [0, 0, 1, 0], [], []>} : vector<16x2048xf32>, vector<256x2048xf32>, vector<16x256xf32> -> vector<16x256xf32>
    %184 = vector.broadcast %182 : vector<1x256xf32> to vector<16x256xf32>
    %185 = arith.addf %183, %184 : vector<16x256xf32>
    %186 = arith.addf %169, %185 : vector<16x256xf32>
    %c0_80 = arith.constant 0 : index
    %c0_81 = arith.constant 0 : index
    %c0_82 = arith.constant 0 : index
    %187 = vector.load %arg20[%c0_80, %c0_81, %c0_82] : memref<1x1x256xf32, #tpu.memory_space<vmem>>, vector<1x1x256xf32>
    %188 = vector.shape_cast %187 : vector<1x1x256xf32> to vector<1x256xf32>
    %c0_83 = arith.constant 0 : index
    %c0_84 = arith.constant 0 : index
    %c0_85 = arith.constant 0 : index
    %189 = vector.load %arg21[%c0_83, %c0_84, %c0_85] : memref<1x1x256xf32, #tpu.memory_space<vmem>>, vector<1x1x256xf32>
    %190 = vector.shape_cast %189 : vector<1x1x256xf32> to vector<1x256xf32>
    %cst_86 = arith.constant dense<0.000000e+00> : vector<16xf32>
    %191 = vector.multi_reduction <add>, %186, %cst_86 [1] : vector<16x256xf32> to vector<16xf32>
    %192 = vector.shape_cast %191 : vector<16xf32> to vector<16x1xf32>
    %cst_87 = arith.constant 2.560000e+02 : f32
    %193 = vector.broadcast %cst_87 : f32 to vector<16x1xf32>
    %194 = arith.divf %192, %193 : vector<16x1xf32>
    %195 = vector.broadcast %194 : vector<16x1xf32> to vector<16x256xf32>
    %196 = arith.subf %186, %195 : vector<16x256xf32>
    %197 = arith.mulf %196, %196 : vector<16x256xf32>
    %cst_88 = arith.constant dense<0.000000e+00> : vector<16xf32>
    %198 = vector.multi_reduction <add>, %197, %cst_88 [1] : vector<16x256xf32> to vector<16xf32>
    %199 = vector.shape_cast %198 : vector<16xf32> to vector<16x1xf32>
    %cst_89 = arith.constant 2.560000e+02 : f32
    %200 = vector.broadcast %cst_89 : f32 to vector<16x1xf32>
    %201 = arith.divf %199, %200 : vector<16x1xf32>
    %202 = vector.broadcast %194 : vector<16x1xf32> to vector<16x256xf32>
    %203 = arith.subf %186, %202 : vector<16x256xf32>
    %cst_90 = arith.constant 9.99999974E-6 : f32
    %204 = vector.broadcast %cst_90 : f32 to vector<16x1xf32>
    %205 = arith.addf %201, %204 : vector<16x1xf32>
    %206 = math.rsqrt %205 : vector<16x1xf32>
    %207 = vector.broadcast %206 : vector<16x1xf32> to vector<16x256xf32>
    %208 = arith.mulf %203, %207 : vector<16x256xf32>
    %209 = vector.broadcast %188 : vector<1x256xf32> to vector<16x256xf32>
    %210 = arith.mulf %208, %209 : vector<16x256xf32>
    %211 = vector.broadcast %190 : vector<1x256xf32> to vector<16x256xf32>
    %212 = arith.addf %210, %211 : vector<16x256xf32>
    %c0_91 = arith.constant 0 : index
    %c0_92 = arith.constant 0 : index
    %213 = vector.load %arg25[%c0_91, %c0_92] : memref<16x256xf32, #tpu.memory_space<vmem>>, vector<16x256xf32>
    tpu.vector_store %arg25[%c0_91, %c0_92], %212 {strides = array<i32>} : memref<16x256xf32, #tpu.memory_space<vmem>>, vector<16x256xf32>,
    %c1_i32_93 = arith.constant 1 : i32
    %214 = arith.cmpi eq, %arg0, %c1_i32_93 : i32
    %215 = arith.extui %214 : i1 to i32
    %c0_i32_94 = arith.constant 0 : i32
    %216 = arith.cmpi ne, %215, %c0_i32_94 : i32
    scf.if %216 {
      %c0_95 = arith.constant 0 : index
      %c0_96 = arith.constant 0 : index
      %217 = vector.load %arg22[%c0_95, %c0_96] : memref<128x256xf32, #tpu.memory_space<vmem>>, vector<128x256xf32>
      %c0_97 = arith.constant 0 : index
      %c0_98 = arith.constant 0 : index
      %218 = vector.load %arg23[%c0_97, %c0_98] : memref<1x128xf32, #tpu.memory_space<vmem>>, vector<1x128xf32>
      %cst_99 = arith.constant dense<0.000000e+00> : vector<16x128xf32>
      %219 = tpu.matmul %212, %217, %cst_99 {dimension_numbers = #tpu.dot_dimension_numbers<[1], [1], [0], [0], [0, 0, 1, 0], [], []>} : vector<16x256xf32>, vector<128x256xf32>, vector<16x128xf32> -> vector<16x128xf32>
      %220 = vector.broadcast %218 : vector<1x128xf32> to vector<16x128xf32>
      %221 = arith.addf %219, %220 : vector<16x128xf32>
      %c0_100 = arith.constant 0 : index
      %c0_101 = arith.constant 0 : index
      %222 = vector.load %arg24[%c0_100, %c0_101] : memref<16x128xf32, #tpu.memory_space<vmem>>, vector<16x128xf32>
      tpu.vector_store %arg24[%c0_100, %c0_101], %221 {strides = array<i32>} : memref<16x128xf32, #tpu.memory_space<vmem>>, vector<16x128xf32>,
    } else {
    }
    return
  }
  func.func @transform_0(%arg0: i32) -> (i32, i32) {
    %c0_i32 = arith.constant 0 : i32
    %c0_i32_0 = arith.constant 0 : i32
    %c0_i32_1 = arith.constant 0 : i32
    return %c0_i32, %c0_i32_0 : i32, i32
  }
  func.func @transform_1(%arg0: i32) -> (i32, i32) {
    %c0_i32 = arith.constant 0 : i32
    %c0_i32_0 = arith.constant 0 : i32
    %c0_i32_1 = arith.constant 0 : i32
    return %c0_i32, %c0_i32_0 : i32, i32
  }
  func.func @transform_2(%arg0: i32) -> (i32, i32) {
    %c0_i32 = arith.constant 0 : i32
    %c0_i32_0 = arith.constant 0 : i32
    %c0_i32_1 = arith.constant 0 : i32
    return %c0_i32, %c0_i32_0 : i32, i32
  }
  func.func @transform_3(%arg0: i32) -> (i32, i32, i32) {
    %c0_i32 = arith.constant 0 : i32
    %c0_i32_0 = arith.constant 0 : i32
    %c0_i32_1 = arith.constant 0 : i32
    return %arg0, %c0_i32, %c0_i32_0 : i32, i32, i32
  }
  func.func @transform_4(%arg0: i32) -> (i32, i32, i32) {
    %c0_i32 = arith.constant 0 : i32
    %c0_i32_0 = arith.constant 0 : i32
    %c0_i32_1 = arith.constant 0 : i32
    return %arg0, %c0_i32, %c0_i32_0 : i32, i32, i32
  }
  func.func @transform_5(%arg0: i32) -> (i32, i32, i32) {
    %c0_i32 = arith.constant 0 : i32
    %c0_i32_0 = arith.constant 0 : i32
    %c0_i32_1 = arith.constant 0 : i32
    return %arg0, %c0_i32, %c0_i32_0 : i32, i32, i32
  }
  func.func @transform_6(%arg0: i32) -> (i32, i32, i32) {
    %c0_i32 = arith.constant 0 : i32
    %c0_i32_0 = arith.constant 0 : i32
    %c0_i32_1 = arith.constant 0 : i32
    return %arg0, %c0_i32, %c0_i32_0 : i32, i32, i32
  }
  func.func @transform_7(%arg0: i32) -> (i32, i32, i32) {
    %c0_i32 = arith.constant 0 : i32
    %c0_i32_0 = arith.constant 0 : i32
    %c0_i32_1 = arith.constant 0 : i32
    return %arg0, %c0_i32, %c0_i32_0 : i32, i32, i32
  }
  func.func @transform_8(%arg0: i32) -> (i32, i32, i32) {
    %c0_i32 = arith.constant 0 : i32
    %c0_i32_0 = arith.constant 0 : i32
    %c0_i32_1 = arith.constant 0 : i32
    return %arg0, %c0_i32, %c0_i32_0 : i32, i32, i32
  }
  func.func @transform_9(%arg0: i32) -> (i32, i32, i32) {
    %c0_i32 = arith.constant 0 : i32
    %c0_i32_0 = arith.constant 0 : i32
    %c0_i32_1 = arith.constant 0 : i32
    return %arg0, %c0_i32, %c0_i32_0 : i32, i32, i32
  }
  func.func @transform_10(%arg0: i32) -> (i32, i32, i32) {
    %c0_i32 = arith.constant 0 : i32
    %c0_i32_0 = arith.constant 0 : i32
    %c0_i32_1 = arith.constant 0 : i32
    return %arg0, %c0_i32, %c0_i32_0 : i32, i32, i32
  }
  func.func @transform_11(%arg0: i32) -> (i32, i32, i32) {
    %c0_i32 = arith.constant 0 : i32
    %c0_i32_0 = arith.constant 0 : i32
    %c0_i32_1 = arith.constant 0 : i32
    return %arg0, %c0_i32, %c0_i32_0 : i32, i32, i32
  }
  func.func @transform_12(%arg0: i32) -> (i32, i32, i32) {
    %c0_i32 = arith.constant 0 : i32
    %c0_i32_0 = arith.constant 0 : i32
    %c0_i32_1 = arith.constant 0 : i32
    return %arg0, %c0_i32, %c0_i32_0 : i32, i32, i32
  }
  func.func @transform_13(%arg0: i32) -> (i32, i32, i32) {
    %c0_i32 = arith.constant 0 : i32
    %c0_i32_0 = arith.constant 0 : i32
    %c0_i32_1 = arith.constant 0 : i32
    return %arg0, %c0_i32, %c0_i32_0 : i32, i32, i32
  }
  func.func @transform_14(%arg0: i32) -> (i32, i32, i32) {
    %c0_i32 = arith.constant 0 : i32
    %c0_i32_0 = arith.constant 0 : i32
    %c0_i32_1 = arith.constant 0 : i32
    return %arg0, %c0_i32, %c0_i32_0 : i32, i32, i32
  }
  func.func @transform_15(%arg0: i32) -> (i32, i32, i32) {
    %c0_i32 = arith.constant 0 : i32
    %c0_i32_0 = arith.constant 0 : i32
    %c0_i32_1 = arith.constant 0 : i32
    return %arg0, %c0_i32, %c0_i32_0 : i32, i32, i32
  }
  func.func @transform_16(%arg0: i32) -> (i32, i32, i32) {
    %c0_i32 = arith.constant 0 : i32
    %c0_i32_0 = arith.constant 0 : i32
    %c0_i32_1 = arith.constant 0 : i32
    return %arg0, %c0_i32, %c0_i32_0 : i32, i32, i32
  }
  func.func @transform_17(%arg0: i32) -> (i32, i32, i32) {
    %c0_i32 = arith.constant 0 : i32
    %c0_i32_0 = arith.constant 0 : i32
    %c0_i32_1 = arith.constant 0 : i32
    return %arg0, %c0_i32, %c0_i32_0 : i32, i32, i32
  }
  func.func @transform_18(%arg0: i32) -> (i32, i32, i32) {
    %c0_i32 = arith.constant 0 : i32
    %c0_i32_0 = arith.constant 0 : i32
    %c0_i32_1 = arith.constant 0 : i32
    return %arg0, %c0_i32, %c0_i32_0 : i32, i32, i32
  }
  func.func @transform_19(%arg0: i32) -> (i32, i32, i32) {
    %c0_i32 = arith.constant 0 : i32
    %c0_i32_0 = arith.constant 0 : i32
    %c0_i32_1 = arith.constant 0 : i32
    return %arg0, %c0_i32, %c0_i32_0 : i32, i32, i32
  }
  func.func @transform_20(%arg0: i32) -> (i32, i32, i32) {
    %c0_i32 = arith.constant 0 : i32
    %c0_i32_0 = arith.constant 0 : i32
    %c0_i32_1 = arith.constant 0 : i32
    return %arg0, %c0_i32, %c0_i32_0 : i32, i32, i32
  }
  func.func @transform_21(%arg0: i32) -> (i32, i32) {
    %c0_i32 = arith.constant 0 : i32
    %c0_i32_0 = arith.constant 0 : i32
    %c0_i32_1 = arith.constant 0 : i32
    return %c0_i32, %c0_i32_0 : i32, i32
  }
  func.func @transform_22(%arg0: i32) -> (i32, i32) {
    %c0_i32 = arith.constant 0 : i32
    %c0_i32_0 = arith.constant 0 : i32
    %c0_i32_1 = arith.constant 0 : i32
    return %c0_i32, %c0_i32_0 : i32, i32
  }
  func.func @transform_23(%arg0: i32) -> (i32, i32) {
    %c0_i32 = arith.constant 0 : i32
    %c0_i32_0 = arith.constant 0 : i32
    %c0_i32_1 = arith.constant 0 : i32
    return %c0_i32, %c0_i32_0 : i32, i32
  }
}

</mosaic_0001>

<llo_original>
// kernel: ghost_forward.4
$region0: #{ghost_forward.4}
  #allocation0 [shape = 'u32[]', space=smem, size = 0x4, offset = 0x4, fixed_abs, tag = 'smem constant byte address 0x4 - core index']
  #allocation1 [shape = 'u32[144,128]{1,0:T(1,128)}', space=vmem, size = 0x12000, scoped, tag = 'internal scratch']
  %s0 = inlined_call_operand.vmem [shape: f32[4,128,9], index: 0, kind: input, shape index: {}]
  %s1 = inlined_call_operand.vmem [shape: f32[9,32], index: 1, kind: input, shape index: {}]
  %s2 = inlined_call_operand.vmem [shape: f32[1,32], index: 2, kind: input, shape index: {}]
  %s3 = inlined_call_operand.vmem [shape: f32[128,32], index: 3, kind: output, shape index: {}]
  %s4 = sld [smem:[#allocation0]]
  $region22: #{ghost_forward.4} parent=0
    _
  %s6 = ssub.s32 1, %s4
  %s7 = scalar_select 0, %s6, %s4
  // Predicated region
  $region2: #{ghost_forward.4} parent=0 // pred_check
    _
  $region3: #{ghost_forward.4} parent=0 // pred_check_branch
    %9 = sbr.rel (0) target = $region5
  $region4: #{ghost_forward.4} parent=0 // pred_region
    _
  $region5: #{ghost_forward.4} parent=0 // pred_fallthru
    _
  // Predicated region
  $region6: #{ghost_forward.4} parent=0 // pred_check
    _
  $region7: #{ghost_forward.4} parent=0 // pred_check_branch
    %11 = sbr.rel (0) target = $region9
  $region8: #{ghost_forward.4} parent=0 // pred_region
    _
  $region9: #{ghost_forward.4} parent=0 // pred_fallthru
    _
  // Predicated region
  $region10: #{ghost_forward.4} parent=0 // pred_check
    _
  $region11: #{ghost_forward.4} parent=0 // pred_check_branch
    %13 = sbr.rel (0) target = $region13
  $region12: #{ghost_forward.4} parent=0 // pred_region
    _
  $region13: #{ghost_forward.4} parent=0 // pred_fallthru
    _
  %v14 = vld [vmem:[%s1] sm:$0xff]
  %v15 = vld [vmem:[%s1 + $0x8] sm:$0x1]
  %v16 = vld [vmem:[%s2] sm:$0x1]
  %v17 = vld [vmem:[%s0] sm:$0xff]
  %v18 = vld [vmem:[%s0 + $0x8] sm:$0xff]
  %v19 = vld [vmem:[%s0 + $0x10] sm:$0xff]
  %v20 = vld [vmem:[%s0 + $0x18] sm:$0xff]
  %v21 = vld [vmem:[%s0 + $0x20] sm:$0xff]
  %v22 = vld [vmem:[%s0 + $0x28] sm:$0xff]
  %v23 = vld [vmem:[%s0 + $0x30] sm:$0xff]
  %v24 = vld [vmem:[%s0 + $0x38] sm:$0xff]
  %v25 = vld [vmem:[%s0 + $0x40] sm:$0xff]
  %v26 = vld [vmem:[%s0 + $0x48] sm:$0xff]
  %v27 = vld [vmem:[%s0 + $0x50] sm:$0xff]
  %v28 = vld [vmem:[%s0 + $0x58] sm:$0xff]
  %v29 = vld [vmem:[%s0 + $0x60] sm:$0xff]
  %v30 = vld [vmem:[%s0 + $0x68] sm:$0xff]
  %v31 = vld [vmem:[%s0 + $0x70] sm:$0xff]
  %v32 = vld [vmem:[%s0 + $0x78] sm:$0xff]
  %v34 = vlaneseq
  %v35 = vshrl.u32 %v34, 7
  %v36 = vsub.s32 0, %v35
  %v37 = vrot.slane %v16, %v36
  %vm39 = vcmask 72704
  %v41 = vsel %vm39, %v17, 0
  %v44 = vsel %vm39, %v18, 0
  %v47 = vsel %vm39, %v19, 0
  %v50 = vsel %vm39, %v20, 0
  %v53 = vsel %vm39, %v21, 0
  %v56 = vsel %vm39, %v22, 0
  %v59 = vsel %vm39, %v23, 0
  %v62 = vsel %vm39, %v24, 0
  %v65 = vsel %vm39, %v25, 0
  %v68 = vsel %vm39, %v26, 0
  %v71 = vsel %vm39, %v27, 0
  %v74 = vsel %vm39, %v28, 0
  %v77 = vsel %vm39, %v29, 0
  %v80 = vsel %vm39, %v30, 0
  %v83 = vsel %vm39, %v31, 0
  %v86 = vsel %vm39, %v32, 0
  %vm88 = vcmask 1040384
  %v90 = vsel %vm88, %v15, 0
  %92 = vmatprep.subr.mxu0 0.0
  %93 = vmatpush1.msra.mxu0 %v14
  %94 = vmatprep.subr.mxu0 0.0
  %95 = vmatpush1.msra.mxu0 %v90
  %96 = vmatprep.subr.mxu0 0.0
  %97 = vmatpush1.msra.mxu0 0.0
  %98 = vmatprep.subr.mxu0 0.0
  %99 = vmatpush1.msra.mxu0 0.0
  %100 = vmatprep.subr.mxu0 0.0
  %101 = vmatpush1.msra.mxu0 0.0
  %102 = vmatprep.subr.mxu0 0.0
  %103 = vmatpush1.msra.mxu0 0.0
  %104 = vmatprep.subr.mxu0 0.0
  %105 = vmatpush1.msra.mxu0 0.0
  %106 = vmatprep.subr.mxu0 0.0
  %107 = vmatpush1.msra.mxu0 0.0
  %108 = vmatprep.subr.mxu0 0.0
  %109 = vmatpush1.msra.mxu0 0.0
  %110 = vmatprep.subr.mxu0 0.0
  %111 = vmatpush1.msra.mxu0 0.0
  %112 = vmatprep.subr.mxu0 0.0
  %113 = vmatpush1.msra.mxu0 0.0
  %114 = vmatprep.subr.mxu0 0.0
  %115 = vmatpush1.msra.mxu0 0.0
  %116 = vmatprep.subr.mxu0 0.0
  %117 = vmatpush1.msra.mxu0 0.0
  %118 = vmatprep.subr.mxu0 0.0
  %119 = vmatpush1.msra.mxu0 0.0
  %120 = vmatprep.subr.mxu0 0.0
  %121 = vmatpush1.msra.mxu0 0.0
  %122 = vmatprep.subr.mxu0 0.0
  %123 = vmatpush1.msra.mxu0 0.0
  %124 = vmatprep.subr.mxu0 0.0
  %125 = vmatpush1.msra.mxu0 0.0
  %126 = vmatprep.subr.mxu0 0.0
  %127 = vmatpush1.msra.mxu0 0.0
  %128 = vmatprep.subr.mxu0 0.0
  %129 = vmatpush1.msra.mxu0 0.0
  %130 = vmatprep.subr.mxu0 0.0
  %131 = vmatpush1.msra.mxu0 0.0
  %132 = vmatprep.subr.mxu0 0.0
  %133 = vmatpush1.msra.mxu0 0.0
  %134 = vmatprep.subr.mxu0 0.0
  %135 = vmatpush1.msra.mxu0 0.0
  %136 = vmatprep.subr.mxu0 0.0
  %137 = vmatpush1.msra.mxu0 0.0
  %138 = vmatprep.subr.mxu0 0.0
  %139 = vmatpush1.msra.mxu0 0.0
  %140 = vmatprep.subr.mxu0 0.0
  %141 = vmatpush1.msra.mxu0 0.0
  %142 = vmatprep.subr.mxu0 0.0
  %143 = vmatpush1.msra.mxu0 0.0
  %144 = vmatprep.subr.mxu0 0.0
  %145 = vmatpush1.msra.mxu0 0.0
  %146 = vmatprep.subr.mxu0 0.0
  %147 = vmatpush1.msra.mxu0 0.0
  %148 = vmatprep.subr.mxu0 0.0
  %149 = vmatpush1.msra.mxu0 0.0
  %150 = vmatprep.subr.mxu0 0.0
  %151 = vmatpush1.msra.mxu0 0.0
  %152 = vmatprep.subr.mxu0 0.0
  %153 = vmatpush1.msra.mxu0 0.0
  %154 = vmatprep.subr.mxu0 0.0
  %155 = vmatpush1.msra.mxu0 0.0
  %156 = vmatprep.mubr.f32.mxu0 0.0
  %157 = vmatmul.mubr.f32.gmra.mrb[0].mxu0 %v41
  %v158 = vpop.f32.mrb[0].mxu0
  %v159 = vadd.f32 %v37, %v158
  %v160 = vpop.f32.mrb[0].mxu0
  %161 = vmatprep.mubr.f32.mxu0 0.0
  %162 = vmatmul.mubr.f32.gmra.mrb[0].mxu0 %v44
  %v163 = vpop.f32.mrb[0].mxu0
  %v164 = vadd.f32 %v37, %v163
  %v165 = vpop.f32.mrb[0].mxu0
  %166 = vmatprep.mubr.f32.mxu0 0.0
  %167 = vmatmul.mubr.f32.gmra.mrb[0].mxu0 %v47
  %v168 = vpop.f32.mrb[0].mxu0
  %v169 = vadd.f32 %v37, %v168
  %v170 = vpop.f32.mrb[0].mxu0
  %171 = vmatprep.mubr.f32.mxu0 0.0
  %172 = vmatmul.mubr.f32.gmra.mrb[0].mxu0 %v50
  %v173 = vpop.f32.mrb[0].mxu0
  %v174 = vadd.f32 %v37, %v173
  %v175 = vpop.f32.mrb[0].mxu0
  %176 = vmatprep.mubr.f32.mxu0 0.0
  %177 = vmatmul.mubr.f32.gmra.mrb[0].mxu0 %v53
  %v178 = vpop.f32.mrb[0].mxu0
  %v179 = vadd.f32 %v37, %v178
  %v180 = vpop.f32.mrb[0].mxu0
  %181 = vmatprep.mubr.f32.mxu0 0.0
  %182 = vmatmul.mubr.f32.gmra.mrb[0].mxu0 %v56
  %v183 = vpop.f32.mrb[0].mxu0
  %v184 = vadd.f32 %v37, %v183
  %v185 = vpop.f32.mrb[0].mxu0
  %186 = vmatprep.mubr.f32.mxu0 0.0
  %187 = vmatmul.mubr.f32.gmra.mrb[0].mxu0 %v59
  %v188 = vpop.f32.mrb[0].mxu0
  %v189 = vadd.f32 %v37, %v188
  %v190 = vpop.f32.mrb[0].mxu0
  %191 = vmatprep.mubr.f32.mxu0 0.0
  %192 = vmatmul.mubr.f32.gmra.mrb[0].mxu0 %v62
  %v193 = vpop.f32.mrb[0].mxu0
  %v194 = vadd.f32 %v37, %v193
  %v195 = vpop.f32.mrb[0].mxu0
  %196 = vmatprep.mubr.f32.mxu0 0.0
  %197 = vmatmul.mubr.f32.gmra.mrb[0].mxu0 %v65
  %v198 = vpop.f32.mrb[0].mxu0
  %v199 = vadd.f32 %v37, %v198
  %v200 = vpop.f32.mrb[0].mxu0
  %201 = vmatprep.mubr.f32.mxu0 0.0
  %202 = vmatmul.mubr.f32.gmra.mrb[0].mxu0 %v68
  %v203 = vpop.f32.mrb[0].mxu0
  %v204 = vadd.f32 %v37, %v203
  %v205 = vpop.f32.mrb[0].mxu0
  %206 = vmatprep.mubr.f32.mxu0 0.0
  %207 = vmatmul.mubr.f32.gmra.mrb[0].mxu0 %v71
  %v208 = vpop.f32.mrb[0].mxu0
  %v209 = vadd.f32 %v37, %v208
  %v210 = vpop.f32.mrb[0].mxu0
  %211 = vmatprep.mubr.f32.mxu0 0.0
  %212 = vmatmul.mubr.f32.gmra.mrb[0].mxu0 %v74
  %v213 = vpop.f32.mrb[0].mxu0
  %v214 = vadd.f32 %v37, %v213
  %v215 = vpop.f32.mrb[0].mxu0
  %216 = vmatprep.mubr.f32.mxu0 0.0
  %217 = vmatmul.mubr.f32.gmra.mrb[0].mxu0 %v77
  %v218 = vpop.f32.mrb[0].mxu0
  %v219 = vadd.f32 %v37, %v218
  %v220 = vpop.f32.mrb[0].mxu0
  %221 = vmatprep.mubr.f32.mxu0 0.0
  %222 = vmatmul.mubr.f32.gmra.mrb[0].mxu0 %v80
  %v223 = vpop.f32.mrb[0].mxu0
  %v224 = vadd.f32 %v37, %v223
  %v225 = vpop.f32.mrb[0].mxu0
  %226 = vmatprep.mubr.f32.mxu0 0.0
  %227 = vmatmul.mubr.f32.gmra.mrb[0].mxu0 %v83
  %v228 = vpop.f32.mrb[0].mxu0
  %v229 = vadd.f32 %v37, %v228
  %v230 = vpop.f32.mrb[0].mxu0
  %231 = vmatprep.mubr.f32.mxu0 0.0
  %232 = vmatmul.mubr.f32.gmra.mrb[0].mxu0 %v86
  %v233 = vpop.f32.mrb[0].mxu0
  %v234 = vadd.f32 %v37, %v233
  %v235 = vpop.f32.mrb[0].mxu0
  %236 = vdwg.mxu0
  %v237 = vmax.f32 %v159, 0.0
  %v238 = vmax.f32 %v164, 0.0
  %v239 = vmax.f32 %v169, 0.0
  %v240 = vmax.f32 %v174, 0.0
  %v241 = vmax.f32 %v179, 0.0
  %v242 = vmax.f32 %v184, 0.0
  %v243 = vmax.f32 %v189, 0.0
  %v244 = vmax.f32 %v194, 0.0
  %v245 = vmax.f32 %v199, 0.0
  %v246 = vmax.f32 %v204, 0.0
  %v247 = vmax.f32 %v209, 0.0
  %v248 = vmax.f32 %v214, 0.0
  %v249 = vmax.f32 %v219, 0.0
  %v250 = vmax.f32 %v224, 0.0
  %v251 = vmax.f32 %v229, 0.0
  %v252 = vmax.f32 %v234, 0.0
  %s253 = scalar_lea.vmem %s0, 128
  %v254 = vld [vmem:[%s253] sm:$0xff]
  %v255 = vld [vmem:[%s253 + $0x8] sm:$0xff]
  %v256 = vld [vmem:[%s253 + $0x10] sm:$0xff]
  %v257 = vld [vmem:[%s253 + $0x18] sm:$0xff]
  %v258 = vld [vmem:[%s253 + $0x20] sm:$0xff]
  %v259 = vld [vmem:[%s253 + $0x28] sm:$0xff]
  %v260 = vld [vmem:[%s253 + $0x30] sm:$0xff]
  %v261 = vld [vmem:[%s253 + $0x38] sm:$0xff]
  %v262 = vld [vmem:[%s253 + $0x40] sm:$0xff]
  %v263 = vld [vmem:[%s253 + $0x48] sm:$0xff]
  %v264 = vld [vmem:[%s253 + $0x50] sm:$0xff]
  %v265 = vld [vmem:[%s253 + $0x58] sm:$0xff]
  %v266 = vld [vmem:[%s253 + $0x60] sm:$0xff]
  %v267 = vld [vmem:[%s253 + $0x68] sm:$0xff]
  %v268 = vld [vmem:[%s253 + $0x70] sm:$0xff]
  %v269 = vld [vmem:[%s253 + $0x78] sm:$0xff]
  %v271 = vsel %vm39, %v254, 0
  %v274 = vsel %vm39, %v255, 0
  %v277 = vsel %vm39, %v256, 0
  %v280 = vsel %vm39, %v257, 0
  %v283 = vsel %vm39, %v258, 0
  %v286 = vsel %vm39, %v259, 0
  %v289 = vsel %vm39, %v260, 0
  %v292 = vsel %vm39, %v261, 0
  %v295 = vsel %vm39, %v262, 0
  %v298 = vsel %vm39, %v263, 0
  %v301 = vsel %vm39, %v264, 0
  %v304 = vsel %vm39, %v265, 0
  %v307 = vsel %vm39, %v266, 0
  %v310 = vsel %vm39, %v267, 0
  %v313 = vsel %vm39, %v268, 0
  %v316 = vsel %vm39, %v269, 0
  %318 = vmatprep.subr.mxu0 0.0
  %319 = vmatpush1.msra.mxu0 %v14
  %320 = vmatprep.subr.mxu0 0.0
  %321 = vmatpush1.msra.mxu0 %v90
  %322 = vmatprep.subr.mxu0 0.0
  %323 = vmatpush1.msra.mxu0 0.0
  %324 = vmatprep.subr.mxu0 0.0
  %325 = vmatpush1.msra.mxu0 0.0
  %326 = vmatprep.subr.mxu0 0.0
  %327 = vmatpush1.msra.mxu0 0.0
  %328 = vmatprep.subr.mxu0 0.0
  %329 = vmatpush1.msra.mxu0 0.0
  %330 = vmatprep.subr.mxu0 0.0
  %331 = vmatpush1.msra.mxu0 0.0
  %332 = vmatprep.subr.mxu0 0.0
  %333 = vmatpush1.msra.mxu0 0.0
  %334 = vmatprep.subr.mxu0 0.0
  %335 = vmatpush1.msra.mxu0 0.0
  %336 = vmatprep.subr.mxu0 0.0
  %337 = vmatpush1.msra.mxu0 0.0
  %338 = vmatprep.subr.mxu0 0.0
  %339 = vmatpush1.msra.mxu0 0.0
  %340 = vmatprep.subr.mxu0 0.0
  %341 = vmatpush1.msra.mxu0 0.0
  %342 = vmatprep.subr.mxu0 0.0
  %343 = vmatpush1.msra.mxu0 0.0
  %344 = vmatprep.subr.mxu0 0.0
  %345 = vmatpush1.msra.mxu0 0.0
  %346 = vmatprep.subr.mxu0 0.0
  %347 = vmatpush1.msra.mxu0 0.0
  %348 = vmatprep.subr.mxu0 0.0
  %349 = vmatpush1.msra.mxu0 0.0
  %350 = vmatprep.subr.mxu0 0.0
  %351 = vmatpush1.msra.mxu0 0.0
  %352 = vmatprep.subr.mxu0 0.0
  %353 = vmatpush1.msra.mxu0 0.0
  %354 = vmatprep.subr.mxu0 0.0
  %355 = vmatpush1.msra.mxu0 0.0
  %356 = vmatprep.subr.mxu0 0.0
  %357 = vmatpush1.msra.mxu0 0.0
  %358 = vmatprep.subr.mxu0 0.0
  %359 = vmatpush1.msra.mxu0 0.0
  %360 = vmatprep.subr.mxu0 0.0
  %361 = vmatpush1.msra.mxu0 0.0
  %362 = vmatprep.subr.mxu0 0.0
  %363 = vmatpush1.msra.mxu0 0.0
  %364 = vmatprep.subr.mxu0 0.0
  %365 = vmatpush1.msra.mxu0 0.0
  %366 = vmatprep.subr.mxu0 0.0
  %367 = vmatpush1.msra.mxu0 0.0
  %368 = vmatprep.subr.mxu0 0.0
  %369 = vmatpush1.msra.mxu0 0.0
  %370 = vmatprep.subr.mxu0 0.0
  %371 = vmatpush1.msra.mxu0 0.0
  %372 = vmatprep.subr.mxu0 0.0
  %373 = vmatpush1.msra.mxu0 0.0
  %374 = vmatprep.subr.mxu0 0.0
  %375 = vmatpush1.msra.mxu0 0.0
  %376 = vmatprep.subr.mxu0 0.0
  %377 = vmatpush1.msra.mxu0 0.0
  %378 = vmatprep.subr.mxu0 0.0
  %379 = vmatpush1.msra.mxu0 0.0
  %380 = vmatprep.subr.mxu0 0.0
  %381 = vmatpush1.msra.mxu0 0.0
  %382 = vmatprep.mubr.f32.mxu0 0.0
  %383 = vmatmul.mubr.f32.gmra.mrb[0].mxu0 %v271
  %v384 = vpop.f32.mrb[0].mxu0
  %v385 = vadd.f32 %v37, %v384
  %v386 = vpop.f32.mrb[0].mxu0
  %387 = vmatprep.mubr.f32.mxu0 0.0
  %388 = vmatmul.mubr.f32.gmra.mrb[0].mxu0 %v274
  %v389 = vpop.f32.mrb[0].mxu0
  %v390 = vadd.f32 %v37, %v389
  %v391 = vpop.f32.mrb[0].mxu0
  %392 = vmatprep.mubr.f32.mxu0 0.0
  %393 = vmatmul.mubr.f32.gmra.mrb[0].mxu0 %v277
  %v394 = vpop.f32.mrb[0].mxu0
  %v395 = vadd.f32 %v37, %v394
  %v396 = vpop.f32.mrb[0].mxu0
  %397 = vmatprep.mubr.f32.mxu0 0.0
  %398 = vmatmul.mubr.f32.gmra.mrb[0].mxu0 %v280
  %v399 = vpop.f32.mrb[0].mxu0
  %v400 = vadd.f32 %v37, %v399
  %v401 = vpop.f32.mrb[0].mxu0
  %402 = vmatprep.mubr.f32.mxu0 0.0
  %403 = vmatmul.mubr.f32.gmra.mrb[0].mxu0 %v283
  %v404 = vpop.f32.mrb[0].mxu0
  %v405 = vadd.f32 %v37, %v404
  %v406 = vpop.f32.mrb[0].mxu0
  %407 = vmatprep.mubr.f32.mxu0 0.0
  %408 = vmatmul.mubr.f32.gmra.mrb[0].mxu0 %v286
  %v409 = vpop.f32.mrb[0].mxu0
  %v410 = vadd.f32 %v37, %v409
  %v411 = vpop.f32.mrb[0].mxu0
  %412 = vmatprep.mubr.f32.mxu0 0.0
  %413 = vmatmul.mubr.f32.gmra.mrb[0].mxu0 %v289
  %v414 = vpop.f32.mrb[0].mxu0
  %v415 = vadd.f32 %v37, %v414
  %v416 = vpop.f32.mrb[0].mxu0
  %417 = vmatprep.mubr.f32.mxu0 0.0
  %418 = vmatmul.mubr.f32.gmra.mrb[0].mxu0 %v292
  %v419 = vpop.f32.mrb[0].mxu0
  %v420 = vadd.f32 %v37, %v419
  %v421 = vpop.f32.mrb[0].mxu0
  %422 = vmatprep.mubr.f32.mxu0 0.0
  %423 = vmatmul.mubr.f32.gmra.mrb[0].mxu0 %v295
  %v424 = vpop.f32.mrb[0].mxu0
  %v425 = vadd.f32 %v37, %v424
  %v426 = vpop.f32.mrb[0].mxu0
  %427 = vmatprep.mubr.f32.mxu0 0.0
  %428 = vmatmul.mubr.f32.gmra.mrb[0].mxu0 %v298
  %v429 = vpop.f32.mrb[0].mxu0
  %v430 = vadd.f32 %v37, %v429
  %v431 = vpop.f32.mrb[0].mxu0
  %432 = vmatprep.mubr.f32.mxu0 0.0
  %433 = vmatmul.mubr.f32.gmra.mrb[0].mxu0 %v301
  %v434 = vpop.f32.mrb[0].mxu0
  %v435 = vadd.f32 %v37, %v434
  %v436 = vpop.f32.mrb[0].mxu0
  %437 = vmatprep.mubr.f32.mxu0 0.0
  %438 = vmatmul.mubr.f32.gmra.mrb[0].mxu0 %v304
  %v439 = vpop.f32.mrb[0].mxu0
  %v440 = vadd.f32 %v37, %v439
  %v441 = vpop.f32.mrb[0].mxu0
  %442 = vmatprep.mubr.f32.mxu0 0.0
  %443 = vmatmul.mubr.f32.gmra.mrb[0].mxu0 %v307
  %v444 = vpop.f32.mrb[0].mxu0
  %v445 = vadd.f32 %v37, %v444
  %v446 = vpop.f32.mrb[0].mxu0
  %447 = vmatprep.mubr.f32.mxu0 0.0
  %448 = vmatmul.mubr.f32.gmra.mrb[0].mxu0 %v310
  %v449 = vpop.f32.mrb[0].mxu0
  %v450 = vadd.f32 %v37, %v449
  %v451 = vpop.f32.mrb[0].mxu0
  %452 = vmatprep.mubr.f32.mxu0 0.0
  %453 = vmatmul.mubr.f32.gmra.mrb[0].mxu0 %v313
  %v454 = vpop.f32.mrb[0].mxu0
  %v455 = vadd.f32 %v37, %v454
  %v456 = vpop.f32.mrb[0].mxu0
  %457 = vmatprep.mubr.f32.mxu0 0.0
  %458 = vmatmul.mubr.f32.gmra.mrb[0].mxu0 %v316
  %v459 = vpop.f32.mrb[0].mxu0
  %v460 = vadd.f32 %v37, %v459
  %v461 = vpop.f32.mrb[0].mxu0
  %462 = vdwg.mxu0
  %v463 = vmax.f32 %v385, 0.0
  %v464 = vmax.f32 %v390, 0.0
  %v465 = vmax.f32 %v395, 0.0
  %v466 = vmax.f32 %v400, 0.0
  %v467 = vmax.f32 %v405, 0.0
  %v468 = vmax.f32 %v410, 0.0
  %v469 = vmax.f32 %v415, 0.0
  %v470 = vmax.f32 %v420, 0.0
  %v471 = vmax.f32 %v425, 0.0
  %v472 = vmax.f32 %v430, 0.0
  %v473 = vmax.f32 %v435, 0.0
  %v474 = vmax.f32 %v440, 0.0
  %v475 = vmax.f32 %v445, 0.0
  %v476 = vmax.f32 %v450, 0.0
  %v477 = vmax.f32 %v455, 0.0
  %v478 = vmax.f32 %v460, 0.0
  %v479 = vmax.f32 %v237, %v463
  %v480 = vmax.f32 %v238, %v464
  %v481 = vmax.f32 %v239, %v465
  %v482 = vmax.f32 %v240, %v466
  %v483 = vmax.f32 %v241, %v467
  %v484 = vmax.f32 %v242, %v468
  %v485 = vmax.f32 %v243, %v469
  %v486 = vmax.f32 %v244, %v470
  %v487 = vmax.f32 %v245, %v471
  %v488 = vmax.f32 %v246, %v472
  %v489 = vmax.f32 %v247, %v473
  %v490 = vmax.f32 %v248, %v474
  %v491 = vmax.f32 %v249, %v475
  %v492 = vmax.f32 %v250, %v476
  %v493 = vmax.f32 %v251, %v477
  %v494 = vmax.f32 %v252, %v478
  %s495 = scalar_lea.vmem %s0, 256
  %v496 = vld [vmem:[%s495] sm:$0xff]
  %v497 = vld [vmem:[%s495 + $0x8] sm:$0xff]
  %v498 = vld [vmem:[%s495 + $0x10] sm:$0xff]
  %v499 = vld [vmem:[%s495 + $0x18] sm:$0xff]
  %v500 = vld [vmem:[%s495 + $0x20] sm:$0xff]
  %v501 = vld [vmem:[%s495 + $0x28] sm:$0xff]
  %v502 = vld [vmem:[%s495 + $0x30] sm:$0xff]
  %v503 = vld [vmem:[%s495 + $0x38] sm:$0xff]
  %v504 = vld [vmem:[%s495 + $0x40] sm:$0xff]
  %v505 = vld [vmem:[%s495 + $0x48] sm:$0xff]
  %v506 = vld [vmem:[%s495 + $0x50] sm:$0xff]
  %v507 = vld [vmem:[%s495 + $0x58] sm:$0xff]
  %v508 = vld [vmem:[%s495 + $0x60] sm:$0xff]
  %v509 = vld [vmem:[%s495 + $0x68] sm:$0xff]
  %v510 = vld [vmem:[%s495 + $0x70] sm:$0xff]
  %v511 = vld [vmem:[%s495 + $0x78] sm:$0xff]
  %v513 = vsel %vm39, %v496, 0
  %v516 = vsel %vm39, %v497, 0
  %v519 = vsel %vm39, %v498, 0
  %v522 = vsel %vm39, %v499, 0
  %v525 = vsel %vm39, %v500, 0
  %v528 = vsel %vm39, %v501, 0
  %v531 = vsel %vm39, %v502, 0
  %v534 = vsel %vm39, %v503, 0
  %v537 = vsel %vm39, %v504, 0
  %v540 = vsel %vm39, %v505, 0
  %v543 = vsel %vm39, %v506, 0
  %v546 = vsel %vm39, %v507, 0
  %v549 = vsel %vm39, %v508, 0
  %v552 = vsel %vm39, %v509, 0
  %v555 = vsel %vm39, %v510, 0
  %v558 = vsel %vm39, %v511, 0
  %560 = vmatprep.subr.mxu0 0.0
  %561 = vmatpush1.msra.mxu0 %v14
  %562 = vmatprep.subr.mxu0 0.0
  %563 = vmatpush1.msra.mxu0 %v90
  %564 = vmatprep.subr.mxu0 0.0
  %565 = vmatpush1.msra.mxu0 0.0
  %566 = vmatprep.subr.mxu0 0.0
  %567 = vmatpush1.msra.mxu0 0.0
  %568 = vmatprep.subr.mxu0 0.0
  %569 = vmatpush1.msra.mxu0 0.0
  %570 = vmatprep.subr.mxu0 0.0
  %571 = vmatpush1.msra.mxu0 0.0
  %572 = vmatprep.subr.mxu0 0.0
  %573 = vmatpush1.msra.mxu0 0.0
  %574 = vmatprep.subr.mxu0 0.0
  %575 = vmatpush1.msra.mxu0 0.0
  %576 = vmatprep.subr.mxu0 0.0
  %577 = vmatpush1.msra.mxu0 0.0
  %578 = vmatprep.subr.mxu0 0.0
  %579 = vmatpush1.msra.mxu0 0.0
  %580 = vmatprep.subr.mxu0 0.0
  %581 = vmatpush1.msra.mxu0 0.0
  %582 = vmatprep.subr.mxu0 0.0
  %583 = vmatpush1.msra.mxu0 0.0
  %584 = vmatprep.subr.mxu0 0.0
  %585 = vmatpush1.msra.mxu0 0.0
  %586 = vmatprep.subr.mxu0 0.0
  %587 = vmatpush1.msra.mxu0 0.0
  %588 = vmatprep.subr.mxu0 0.0
  %589 = vmatpush1.msra.mxu0 0.0
  %590 = vmatprep.subr.mxu0 0.0
  %591 = vmatpush1.msra.mxu0 0.0
  %592 = vmatprep.subr.mxu0 0.0
  %593 = vmatpush1.msra.mxu0 0.0
  %594 = vmatprep.subr.mxu0 0.0
  %595 = vmatpush1.msra.mxu0 0.0
  %596 = vmatprep.subr.mxu0 0.0
  %597 = vmatpush1.msra.mxu0 0.0
  %598 = vmatprep.subr.mxu0 0.0
  %599 = vmatpush1.msra.mxu0 0.0
  %600 = vmatprep.subr.mxu0 0.0
  %601 = vmatpush1.msra.mxu0 0.0
  %602 = vmatprep.subr.mxu0 0.0
  %603 = vmatpush1.msra.mxu0 0.0
  %604 = vmatprep.subr.mxu0 0.0
  %605 = vmatpush1.msra.mxu0 0.0
  %606 = vmatprep.subr.mxu0 0.0
  %607 = vmatpush1.msra.mxu0 0.0
  %608 = vmatprep.subr.mxu0 0.0
  %609 = vmatpush1.msra.mxu0 0.0
  %610 = vmatprep.subr.mxu0 0.0
  %611 = vmatpush1.msra.mxu0 0.0
  %612 = vmatprep.subr.mxu0 0.0
  %613 = vmatpush1.msra.mxu0 0.0
  %614 = vmatprep.subr.mxu0 0.0
  %615 = vmatpush1.msra.mxu0 0.0
  %616 = vmatprep.subr.mxu0 0.0
  %617 = vmatpush1.msra.mxu0 0.0
  %618 = vmatprep.subr.mxu0 0.0
  %619 = vmatpush1.msra.mxu0 0.0
  %620 = vmatprep.subr.mxu0 0.0
  %621 = vmatpush1.msra.mxu0 0.0
  %622 = vmatprep.subr.mxu0 0.0
  %623 = vmatpush1.msra.mxu0 0.0
  %624 = vmatprep.mubr.f32.mxu0 0.0
  %625 = vmatmul.mubr.f32.gmra.mrb[0].mxu0 %v513
  %v626 = vpop.f32.mrb[0].mxu0
  %v627 = vadd.f32 %v37, %v626
  %v628 = vpop.f32.mrb[0].mxu0
  %629 = vmatprep.mubr.f32.mxu0 0.0
  %630 = vmatmul.mubr.f32.gmra.mrb[0].mxu0 %v516
  %v631 = vpop.f32.mrb[0].mxu0
  %v632 = vadd.f32 %v37, %v631
  %v633 = vpop.f32.mrb[0].mxu0
  %634 = vmatprep.mubr.f32.mxu0 0.0
  %635 = vmatmul.mubr.f32.gmra.mrb[0].mxu0 %v519
  %v636 = vpop.f32.mrb[0].mxu0
  %v637 = vadd.f32 %v37, %v636
  %v638 = vpop.f32.mrb[0].mxu0
  %639 = vmatprep.mubr.f32.mxu0 0.0
  %640 = vmatmul.mubr.f32.gmra.mrb[0].mxu0 %v522
  %v641 = vpop.f32.mrb[0].mxu0
  %v642 = vadd.f32 %v37, %v641
  %v643 = vpop.f32.mrb[0].mxu0
  %644 = vmatprep.mubr.f32.mxu0 0.0
  %645 = vmatmul.mubr.f32.gmra.mrb[0].mxu0 %v525
  %v646 = vpop.f32.mrb[0].mxu0
  %v647 = vadd.f32 %v37, %v646
  %v648 = vpop.f32.mrb[0].mxu0
  %649 = vmatprep.mubr.f32.mxu0 0.0
  %650 = vmatmul.mubr.f32.gmra.mrb[0].mxu0 %v528
  %v651 = vpop.f32.mrb[0].mxu0
  %v652 = vadd.f32 %v37, %v651
  %v653 = vpop.f32.mrb[0].mxu0
  %654 = vmatprep.mubr.f32.mxu0 0.0
  %655 = vmatmul.mubr.f32.gmra.mrb[0].mxu0 %v531
  %v656 = vpop.f32.mrb[0].mxu0
  %v657 = vadd.f32 %v37, %v656
  %v658 = vpop.f32.mrb[0].mxu0
  %659 = vmatprep.mubr.f32.mxu0 0.0
  %660 = vmatmul.mubr.f32.gmra.mrb[0].mxu0 %v534
  %v661 = vpop.f32.mrb[0].mxu0
  %v662 = vadd.f32 %v37, %v661
  %v663 = vpop.f32.mrb[0].mxu0
  %664 = vmatprep.mubr.f32.mxu0 0.0
  %665 = vmatmul.mubr.f32.gmra.mrb[0].mxu0 %v537
  %v666 = vpop.f32.mrb[0].mxu0
  %v667 = vadd.f32 %v37, %v666
  %v668 = vpop.f32.mrb[0].mxu0
  %669 = vmatprep.mubr.f32.mxu0 0.0
  %670 = vmatmul.mubr.f32.gmra.mrb[0].mxu0 %v540
  %v671 = vpop.f32.mrb[0].mxu0
  %v672 = vadd.f32 %v37, %v671
  %v673 = vpop.f32.mrb[0].mxu0
  %674 = vmatprep.mubr.f32.mxu0 0.0
  %675 = vmatmul.mubr.f32.gmra.mrb[0].mxu0 %v543
  %v676 = vpop.f32.mrb[0].mxu0
  %v677 = vadd.f32 %v37, %v676
  %v678 = vpop.f32.mrb[0].mxu0
  %679 = vmatprep.mubr.f32.mxu0 0.0
  %680 = vmatmul.mubr.f32.gmra.mrb[0].mxu0 %v546
  %v681 = vpop.f32.mrb[0].mxu0
  %v682 = vadd.f32 %v37, %v681
  %v683 = vpop.f32.mrb[0].mxu0
  %684 = vmatprep.mubr.f32.mxu0 0.0
  %685 = vmatmul.mubr.f32.gmra.mrb[0].mxu0 %v549
  %v686 = vpop.f32.mrb[0].mxu0
  %v687 = vadd.f32 %v37, %v686
  %v688 = vpop.f32.mrb[0].mxu0
  %689 = vmatprep.mubr.f32.mxu0 0.0
  %690 = vmatmul.mubr.f32.gmra.mrb[0].mxu0 %v552
  %v691 = vpop.f32.mrb[0].mxu0
  %v692 = vadd.f32 %v37, %v691
  %v693 = vpop.f32.mrb[0].mxu0
  %694 = vmatprep.mubr.f32.mxu0 0.0
  %695 = vmatmul.mubr.f32.gmra.mrb[0].mxu0 %v555
  %v696 = vpop.f32.mrb[0].mxu0
  %v697 = vadd.f32 %v37, %v696
  %v698 = vpop.f32.mrb[0].mxu0
  %699 = vmatprep.mubr.f32.mxu0 0.0
  %700 = vmatmul.mubr.f32.gmra.mrb[0].mxu0 %v558
  %v701 = vpop.f32.mrb[0].mxu0
  %v702 = vadd.f32 %v37, %v701
  %v703 = vpop.f32.mrb[0].mxu0
  %704 = vdwg.mxu0
  %v705 = vmax.f32 %v627, 0.0
  %v706 = vmax.f32 %v632, 0.0
  %v707 = vmax.f32 %v637, 0.0
  %v708 = vmax.f32 %v642, 0.0
  %v709 = vmax.f32 %v647, 0.0
  %v710 = vmax.f32 %v652, 0.0
  %v711 = vmax.f32 %v657, 0.0
  %v712 = vmax.f32 %v662, 0.0
  %v713 = vmax.f32 %v667, 0.0
  %v714 = vmax.f32 %v672, 0.0
  %v715 = vmax.f32 %v677, 0.0
  %v716 = vmax.f32 %v682, 0.0
  %v717 = vmax.f32 %v687, 0.0
  %v718 = vmax.f32 %v692, 0.0
  %v719 = vmax.f32 %v697, 0.0
  %v720 = vmax.f32 %v702, 0.0
  %s721 = scalar_lea.vmem %s0, 384
  %v722 = vld [vmem:[%s721] sm:$0xff]
  %v723 = vld [vmem:[%s721 + $0x8] sm:$0xff]
  %v724 = vld [vmem:[%s721 + $0x10] sm:$0xff]
  %v725 = vld [vmem:[%s721 + $0x18] sm:$0xff]
  %v726 = vld [vmem:[%s721 + $0x20] sm:$0xff]
  %v727 = vld [vmem:[%s721 + $0x28] sm:$0xff]
  %v728 = vld [vmem:[%s721 + $0x30] sm:$0xff]
  %v729 = vld [vmem:[%s721 + $0x38] sm:$0xff]
  %v730 = vld [vmem:[%s721 + $0x40] sm:$0xff]
  %v731 = vld [vmem:[%s721 + $0x48] sm:$0xff]
  %v732 = vld [vmem:[%s721 + $0x50] sm:$0xff]
  %v733 = vld [vmem:[%s721 + $0x58] sm:$0xff]
  %v734 = vld [vmem:[%s721 + $0x60] sm:$0xff]
  %v735 = vld [vmem:[%s721 + $0x68] sm:$0xff]
  %v736 = vld [vmem:[%s721 + $0x70] sm:$0xff]
  %v737 = vld [vmem:[%s721 + $0x78] sm:$0xff]
  %v739 = vsel %vm39, %v722, 0
  %v742 = vsel %vm39, %v723, 0
  %v745 = vsel %vm39, %v724, 0
  %v748 = vsel %vm39, %v725, 0
  %v751 = vsel %vm39, %v726, 0
  %v754 = vsel %vm39, %v727, 0
  %v757 = vsel %vm39, %v728, 0
  %v760 = vsel %vm39, %v729, 0
  %v763 = vsel %vm39, %v730, 0
  %v766 = vsel %vm39, %v731, 0
  %v769 = vsel %vm39, %v732, 0
  %v772 = vsel %vm39, %v733, 0
  %v775 = vsel %vm39, %v734, 0
  %v778 = vsel %vm39, %v735, 0
  %v781 = vsel %vm39, %v736, 0
  %v784 = vsel %vm39, %v737, 0
  %786 = vmatprep.subr.mxu0 0.0
  %787 = vmatpush1.msra.mxu0 %v14
  %788 = vmatprep.subr.mxu0 0.0
  %789 = vmatpush1.msra.mxu0 %v90
  %790 = vmatprep.subr.mxu0 0.0
  %791 = vmatpush1.msra.mxu0 0.0
  %792 = vmatprep.subr.mxu0 0.0
  %793 = vmatpush1.msra.mxu0 0.0
  %794 = vmatprep.subr.mxu0 0.0
  %795 = vmatpush1.msra.mxu0 0.0
  %796 = vmatprep.subr.mxu0 0.0
  %797 = vmatpush1.msra.mxu0 0.0
  %798 = vmatprep.subr.mxu0 0.0
  %799 = vmatpush1.msra.mxu0 0.0
  %800 = vmatprep.subr.mxu0 0.0
  %801 = vmatpush1.msra.mxu0 0.0
  %802 = vmatprep.subr.mxu0 0.0
  %803 = vmatpush1.msra.mxu0 0.0
  %804 = vmatprep.subr.mxu0 0.0
  %805 = vmatpush1.msra.mxu0 0.0
  %806 = vmatprep.subr.mxu0 0.0
  %807 = vmatpush1.msra.mxu0 0.0
  %808 = vmatprep.subr.mxu0 0.0
  %809 = vmatpush1.msra.mxu0 0.0
  %810 = vmatprep.subr.mxu0 0.0
  %811 = vmatpush1.msra.mxu0 0.0
  %812 = vmatprep.subr.mxu0 0.0
  %813 = vmatpush1.msra.mxu0 0.0
  %814 = vmatprep.subr.mxu0 0.0
  %815 = vmatpush1.msra.mxu0 0.0
  %816 = vmatprep.subr.mxu0 0.0
  %817 = vmatpush1.msra.mxu0 0.0
  %818 = vmatprep.subr.mxu0 0.0
  %819 = vmatpush1.msra.mxu0 0.0
  %820 = vmatprep.subr.mxu0 0.0
  %821 = vmatpush1.msra.mxu0 0.0
  %822 = vmatprep.subr.mxu0 0.0
  %823 = vmatpush1.msra.mxu0 0.0
  %824 = vmatprep.subr.mxu0 0.0
  %825 = vmatpush1.msra.mxu0 0.0
  %826 = vmatprep.subr.mxu0 0.0
  %827 = vmatpush1.msra.mxu0 0.0
  %828 = vmatprep.subr.mxu0 0.0
  %829 = vmatpush1.msra.mxu0 0.0
  %830 = vmatprep.subr.mxu0 0.0
  %831 = vmatpush1.msra.mxu0 0.0
  %832 = vmatprep.subr.mxu0 0.0
  %833 = vmatpush1.msra.mxu0 0.0
  %834 = vmatprep.subr.mxu0 0.0
  %835 = vmatpush1.msra.mxu0 0.0
  %836 = vmatprep.subr.mxu0 0.0
  %837 = vmatpush1.msra.mxu0 0.0
  %838 = vmatprep.subr.mxu0 0.0
  %839 = vmatpush1.msra.mxu0 0.0
  %840 = vmatprep.subr.mxu0 0.0
  %841 = vmatpush1.msra.mxu0 0.0
  %842 = vmatprep.subr.mxu0 0.0
  %843 = vmatpush1.msra.mxu0 0.0
  %844 = vmatprep.subr.mxu0 0.0
  %845 = vmatpush1.msra.mxu0 0.0
  %846 = vmatprep.subr.mxu0 0.0
  %847 = vmatpush1.msra.mxu0 0.0
  %848 = vmatprep.subr.mxu0 0.0
  %849 = vmatpush1.msra.mxu0 0.0
  %850 = vmatprep.mubr.f32.mxu0 0.0
  %851 = vmatmul.mubr.f32.gmra.mrb[0].mxu0 %v739
  %v852 = vpop.f32.mrb[0].mxu0
  %v853 = vadd.f32 %v37, %v852
  %v854 = vpop.f32.mrb[0].mxu0
  %855 = vmatprep.mubr.f32.mxu0 0.0
  %856 = vmatmul.mubr.f32.gmra.mrb[0].mxu0 %v742
  %v857 = vpop.f32.mrb[0].mxu0
  %v858 = vadd.f32 %v37, %v857
  %v859 = vpop.f32.mrb[0].mxu0
  %860 = vmatprep.mubr.f32.mxu0 0.0
  %861 = vmatmul.mubr.f32.gmra.mrb[0].mxu0 %v745
  %v862 = vpop.f32.mrb[0].mxu0
  %v863 = vadd.f32 %v37, %v862
  %v864 = vpop.f32.mrb[0].mxu0
  %865 = vmatprep.mubr.f32.mxu0 0.0
  %866 = vmatmul.mubr.f32.gmra.mrb[0].mxu0 %v748
  %v867 = vpop.f32.mrb[0].mxu0
  %v868 = vadd.f32 %v37, %v867
  %v869 = vpop.f32.mrb[0].mxu0
  %870 = vmatprep.mubr.f32.mxu0 0.0
  %871 = vmatmul.mubr.f32.gmra.mrb[0].mxu0 %v751
  %v872 = vpop.f32.mrb[0].mxu0
  %v873 = vadd.f32 %v37, %v872
  %v874 = vpop.f32.mrb[0].mxu0
  %875 = vmatprep.mubr.f32.mxu0 0.0
  %876 = vmatmul.mubr.f32.gmra.mrb[0].mxu0 %v754
  %v877 = vpop.f32.mrb[0].mxu0
  %v878 = vadd.f32 %v37, %v877
  %v879 = vpop.f32.mrb[0].mxu0
  %880 = vmatprep.mubr.f32.mxu0 0.0
  %881 = vmatmul.mubr.f32.gmra.mrb[0].mxu0 %v757
  %v882 = vpop.f32.mrb[0].mxu0
  %v883 = vadd.f32 %v37, %v882
  %v884 = vpop.f32.mrb[0].mxu0
  %885 = vmatprep.mubr.f32.mxu0 0.0
  %886 = vmatmul.mubr.f32.gmra.mrb[0].mxu0 %v760
  %v887 = vpop.f32.mrb[0].mxu0
  %v888 = vadd.f32 %v37, %v887
  %v889 = vpop.f32.mrb[0].mxu0
  %890 = vmatprep.mubr.f32.mxu0 0.0
  %891 = vmatmul.mubr.f32.gmra.mrb[0].mxu0 %v763
  %v892 = vpop.f32.mrb[0].mxu0
  %v893 = vadd.f32 %v37, %v892
  %v894 = vpop.f32.mrb[0].mxu0
  %895 = vmatprep.mubr.f32.mxu0 0.0
  %896 = vmatmul.mubr.f32.gmra.mrb[0].mxu0 %v766
  %v897 = vpop.f32.mrb[0].mxu0
  %v898 = vadd.f32 %v37, %v897
  %v899 = vpop.f32.mrb[0].mxu0
  %900 = vmatprep.mubr.f32.mxu0 0.0
  %901 = vmatmul.mubr.f32.gmra.mrb[0].mxu0 %v769
  %v902 = vpop.f32.mrb[0].mxu0
  %v903 = vadd.f32 %v37, %v902
  %v904 = vpop.f32.mrb[0].mxu0
  %905 = vmatprep.mubr.f32.mxu0 0.0
  %906 = vmatmul.mubr.f32.gmra.mrb[0].mxu0 %v772
  %v907 = vpop.f32.mrb[0].mxu0
  %v908 = vadd.f32 %v37, %v907
  %v909 = vpop.f32.mrb[0].mxu0
  %910 = vmatprep.mubr.f32.mxu0 0.0
  %911 = vmatmul.mubr.f32.gmra.mrb[0].mxu0 %v775
  %v912 = vpop.f32.mrb[0].mxu0
  %v913 = vadd.f32 %v37, %v912
  %v914 = vpop.f32.mrb[0].mxu0
  %915 = vmatprep.mubr.f32.mxu0 0.0
  %916 = vmatmul.mubr.f32.gmra.mrb[0].mxu0 %v778
  %v917 = vpop.f32.mrb[0].mxu0
  %v918 = vadd.f32 %v37, %v917
  %v919 = vpop.f32.mrb[0].mxu0
  %920 = vmatprep.mubr.f32.mxu0 0.0
  %921 = vmatmul.mubr.f32.gmra.mrb[0].mxu0 %v781
  %v922 = vpop.f32.mrb[0].mxu0
  %v923 = vadd.f32 %v37, %v922
  %v924 = vpop.f32.mrb[0].mxu0
  %925 = vmatprep.mubr.f32.mxu0 0.0
  %926 = vmatmul.mubr.f32.gmra.mrb[0].mxu0 %v784
  %v927 = vpop.f32.mrb[0].mxu0
  %v928 = vadd.f32 %v37, %v927
  %v929 = vpop.f32.mrb[0].mxu0
  %930 = vdwg.mxu0
  %v931 = vmax.f32 %v853, 0.0
  %v932 = vmax.f32 %v858, 0.0
  %v933 = vmax.f32 %v863, 0.0
  %v934 = vmax.f32 %v868, 0.0
  %v935 = vmax.f32 %v873, 0.0
  %v936 = vmax.f32 %v878, 0.0
  %v937 = vmax.f32 %v883, 0.0
  %v938 = vmax.f32 %v888, 0.0
  %v939 = vmax.f32 %v893, 0.0
  %v940 = vmax.f32 %v898, 0.0
  %v941 = vmax.f32 %v903, 0.0
  %v942 = vmax.f32 %v908, 0.0
  %v943 = vmax.f32 %v913, 0.0
  %v944 = vmax.f32 %v918, 0.0
  %v945 = vmax.f32 %v923, 0.0
  %v946 = vmax.f32 %v928, 0.0
  %v947 = vmax.f32 %v705, %v931
  %v948 = vmax.f32 %v706, %v932
  %v949 = vmax.f32 %v707, %v933
  %v950 = vmax.f32 %v708, %v934
  %v951 = vmax.f32 %v709, %v935
  %v952 = vmax.f32 %v710, %v936
  %v953 = vmax.f32 %v711, %v937
  %v954 = vmax.f32 %v712, %v938
  %v955 = vmax.f32 %v713, %v939
  %v956 = vmax.f32 %v714, %v940
  %v957 = vmax.f32 %v715, %v941
  %v958 = vmax.f32 %v716, %v942
  %v959 = vmax.f32 %v717, %v943
  %v960 = vmax.f32 %v718, %v944
  %v961 = vmax.f32 %v719, %v945
  %v962 = vmax.f32 %v720, %v946
  %v963 = vmax.f32 %v479, %v947
  %v964 = vmax.f32 %v480, %v948
  %v965 = vmax.f32 %v481, %v949
  %v966 = vmax.f32 %v482, %v950
  %v967 = vmax.f32 %v483, %v951
  %v968 = vmax.f32 %v484, %v952
  %v969 = vmax.f32 %v485, %v953
  %v970 = vmax.f32 %v486, %v954
  %v971 = vmax.f32 %v487, %v955
  %v972 = vmax.f32 %v488, %v956
  %v973 = vmax.f32 %v489, %v957
  %v974 = vmax.f32 %v490, %v958
  %v975 = vmax.f32 %v491, %v959
  %v976 = vmax.f32 %v492, %v960
  %v977 = vmax.f32 %v493, %v961
  %v978 = vmax.f32 %v494, %v962
  %vm979 = vcmask 261120
  %980 = vst.msk [vmem:[%s3] sm:$0xff] %vm979, %v963
  %981 = vst.msk [vmem:[%s3 + $0x8] sm:$0xff] %vm979, %v964
  %982 = vst.msk [vmem:[%s3 + $0x10] sm:$0xff] %vm979, %v965
  %983 = vst.msk [vmem:[%s3 + $0x18] sm:$0xff] %vm979, %v966
  %984 = vst.msk [vmem:[%s3 + $0x20] sm:$0xff] %vm979, %v967
  %985 = vst.msk [vmem:[%s3 + $0x28] sm:$0xff] %vm979, %v968
  %986 = vst.msk [vmem:[%s3 + $0x30] sm:$0xff] %vm979, %v969
  %987 = vst.msk [vmem:[%s3 + $0x38] sm:$0xff] %vm979, %v970
  %988 = vst.msk [vmem:[%s3 + $0x40] sm:$0xff] %vm979, %v971
  %989 = vst.msk [vmem:[%s3 + $0x48] sm:$0xff] %vm979, %v972
  %990 = vst.msk [vmem:[%s3 + $0x50] sm:$0xff] %vm979, %v973
  %991 = vst.msk [vmem:[%s3 + $0x58] sm:$0xff] %vm979, %v974
  %992 = vst.msk [vmem:[%s3 + $0x60] sm:$0xff] %vm979, %v975
  %993 = vst.msk [vmem:[%s3 + $0x68] sm:$0xff] %vm979, %v976
  %994 = vst.msk [vmem:[%s3 + $0x70] sm:$0xff] %vm979, %v977
  %995 = vst.msk [vmem:[%s3 + $0x78] sm:$0xff] %vm979, %v978
  // Predicated region
  $region14: #{ghost_forward.4} parent=0 // pred_check
    _
  $region15: #{ghost_forward.4} parent=0 // pred_check_branch
    %997 = sbr.rel (0) target = $region17
  $region16: #{ghost_forward.4} parent=0 // pred_region
    _
  $region17: #{ghost_forward.4} parent=0 // pred_fallthru
    _
  // Predicated region
  $region18: #{ghost_forward.4} parent=0 // pred_check
    _
  $region19: #{ghost_forward.4} parent=0 // pred_check_branch
    %999 = sbr.rel (0) target = $region21
  $region20: #{ghost_forward.4} parent=0 // pred_region
    _
  $region21: #{ghost_forward.4} parent=0 // pred_fallthru
    _

// kernel: ghost_forward.5
$region0: #{ghost_forward.5}
  #allocation0 [shape = 'u32[]', space=smem, size = 0x4, offset = 0x4, fixed_abs, tag = 'smem constant byte address 0x4 - core index']
  #allocation1 [shape = 'u32[144,128]{1,0:T(1,128)}', space=vmem, size = 0x12000, scoped, tag = 'internal scratch']
  %s0 = inlined_call_operand.vmem [shape: f32[4,32,288], index: 0, kind: input, shape index: {}]
  %s1 = inlined_call_operand.vmem [shape: f32[288,64], index: 1, kind: input, shape index: {}]
  %s2 = inlined_call_operand.vmem [shape: f32[1,64], index: 2, kind: input, shape index: {}]
  %s3 = inlined_call_operand.vmem [shape: f32[32,64], index: 3, kind: output, shape index: {}]
  %s4 = sld [smem:[#allocation0]]
  $region22: #{ghost_forward.5} parent=0
    _
  %s6 = ssub.s32 1, %s4
  %s7 = scalar_select 0, %s6, %s4
  // Predicated region
  $region2: #{ghost_forward.5} parent=0 // pred_check
    _
  $region3: #{ghost_forward.5} parent=0 // pred_check_branch
    %9 = sbr.rel (0) target = $region5
  $region4: #{ghost_forward.5} parent=0 // pred_region
    _
  $region5: #{ghost_forward.5} parent=0 // pred_fallthru
    _
  // Predicated region
  $region6: #{ghost_forward.5} parent=0 // pred_check
    _
  $region7: #{ghost_forward.5} parent=0 // pred_check_branch
    %11 = sbr.rel (0) target = $region9
  $region8: #{ghost_forward.5} parent=0 // pred_region
    _
  $region9: #{ghost_forward.5} parent=0 // pred_fallthru
    _
  // Predicated region
  $region10: #{ghost_forward.5} parent=0 // pred_check
    _
  $region11: #{ghost_forward.5} parent=0 // pred_check_branch
    %13 = sbr.rel (0) target = $region13
  $region12: #{ghost_forward.5} parent=0 // pred_region
    _
  $region13: #{ghost_forward.5} parent=0 // pred_fallthru
    _
  %v14 = vld [vmem:[%s1] sm:$0xff]
  %v15 = vld [vmem:[%s1 + $0x8] sm:$0xff]
  %v16 = vld [vmem:[%s1 + $0x10] sm:$0xff]
  %v17 = vld [vmem:[%s1 + $0x18] sm:$0xff]
  %v18 = vld [vmem:[%s1 + $0x20] sm:$0xff]
  %v19 = vld [vmem:[%s1 + $0x28] sm:$0xff]
  %v20 = vld [vmem:[%s1 + $0x30] sm:$0xff]
  %v21 = vld [vmem:[%s1 + $0x38] sm:$0xff]
  %v22 = vld [vmem:[%s1 + $0x40] sm:$0xff]
  %v23 = vld [vmem:[%s1 + $0x48] sm:$0xff]
  %v24 = vld [vmem:[%s1 + $0x50] sm:$0xff]
  %v25 = vld [vmem:[%s1 + $0x58] sm:$0xff]
  %v26 = vld [vmem:[%s1 + $0x60] sm:$0xff]
  %v27 = vld [vmem:[%s1 + $0x68] sm:$0xff]
  %v28 = vld [vmem:[%s1 + $0x70] sm:$0xff]
  %v29 = vld [vmem:[%s1 + $0x78] sm:$0xff]
  %v30 = vld [vmem:[%s1 + $0x80] sm:$0xff]
  %v31 = vld [vmem:[%s1 + $0x88] sm:$0xff]
  %v32 = vld [vmem:[%s1 + $0x90] sm:$0xff]
  %v33 = vld [vmem:[%s1 + $0x98] sm:$0xff]
  %v34 = vld [vmem:[%s1 + $0xa0] sm:$0xff]
  %v35 = vld [vmem:[%s1 + $0xa8] sm:$0xff]
  %v36 = vld [vmem:[%s1 + $0xb0] sm:$0xff]
  %v37 = vld [vmem:[%s1 + $0xb8] sm:$0xff]
  %v38 = vld [vmem:[%s1 + $0xc0] sm:$0xff]
  %v39 = vld [vmem:[%s1 + $0xc8] sm:$0xff]
  %v40 = vld [vmem:[%s1 + $0xd0] sm:$0xff]
  %v41 = vld [vmem:[%s1 + $0xd8] sm:$0xff]
  %v42 = vld [vmem:[%s1 + $0xe0] sm:$0xff]
  %v43 = vld [vmem:[%s1 + $0xe8] sm:$0xff]
  %v44 = vld [vmem:[%s1 + $0xf0] sm:$0xff]
  %v45 = vld [vmem:[%s1 + $0xf8] sm:$0xff]
  %v46 = vld [vmem:[%s1 + $0x100] sm:$0xff]
  %v47 = vld [vmem:[%s1 + $0x108] sm:$0xff]
  %v48 = vld [vmem:[%s1 + $0x110] sm:$0xff]
  %v49 = vld [vmem:[%s1 + $0x118] sm:$0xff]
  %v50 = vld [vmem:[%s2] sm:$0x1]
  %v51 = vld [vmem:[%s0] sm:$0xff]
  %v52 = vld [vmem:[%s0 + $0x8] sm:$0xff]
  %v53 = vld [vmem:[%s0 + $0x10] sm:$0xff]
  %v54 = vld [vmem:[%s0 + $0x18] sm:$0xff]
  %v55 = vld [vmem:[%s0 + $0x20] sm:$0xff]
  %v56 = vld [vmem:[%s0 + $0x28] sm:$0xff]
  %v57 = vld [vmem:[%s0 + $0x30] sm:$0xff]
  %v58 = vld [vmem:[%s0 + $0x38] sm:$0xff]
  %v59 = vld [vmem:[%s0 + $0x40] sm:$0xff]
  %v60 = vld [vmem:[%s0 + $0x48] sm:$0xff]
  %v61 = vld [vmem:[%s0 + $0x50] sm:$0xff]
  %v62 = vld [vmem:[%s0 + $0x58] sm:$0xff]
  %v64 = vlaneseq
  %v65 = vshrl.u32 %v64, 7
  %v66 = vsub.s32 0, %v65
  %v67 = vrot.slane %v50, %v66
  %vm69 = vcmask 261120
  %v71 = vsel %vm69, %v53, 0
  %v74 = vsel %vm69, %v56, 0
  %v77 = vsel %vm69, %v59, 0
  %v80 = vsel %vm69, %v62, 0
  %82 = vmatprep.subr.mxu0 0.0
  %83 = vmatpush1.msra.mxu0 %v14
  %84 = vmatprep.subr.mxu0 0.0
  %85 = vmatpush1.msra.mxu0 %v15
  %86 = vmatprep.subr.mxu0 0.0
  %87 = vmatpush1.msra.mxu0 %v16
  %88 = vmatprep.subr.mxu0 0.0
  %89 = vmatpush1.msra.mxu0 %v17
  %90 = vmatprep.subr.mxu0 0.0
  %91 = vmatpush1.msra.mxu0 %v18
  %92 = vmatprep.subr.mxu0 0.0
  %93 = vmatpush1.msra.mxu0 %v19
  %94 = vmatprep.subr.mxu0 0.0
  %95 = vmatpush1.msra.mxu0 %v20
  %96 = vmatprep.subr.mxu0 0.0
  %97 = vmatpush1.msra.mxu0 %v21
  %98 = vmatprep.subr.mxu0 0.0
  %99 = vmatpush1.msra.mxu0 %v22
  %100 = vmatprep.subr.mxu0 0.0
  %101 = vmatpush1.msra.mxu0 %v23
  %102 = vmatprep.subr.mxu0 0.0
  %103 = vmatpush1.msra.mxu0 %v24
  %104 = vmatprep.subr.mxu0 0.0
  %105 = vmatpush1.msra.mxu0 %v25
  %106 = vmatprep.subr.mxu0 0.0
  %107 = vmatpush1.msra.mxu0 %v26
  %108 = vmatprep.subr.mxu0 0.0
  %109 = vmatpush1.msra.mxu0 %v27
  %110 = vmatprep.subr.mxu0 0.0
  %111 = vmatpush1.msra.mxu0 %v28
  %112 = vmatprep.subr.mxu0 0.0
  %113 = vmatpush1.msra.mxu0 %v29
  %114 = vmatprep.subr.mxu0 0.0
  %115 = vmatpush1.msra.mxu0 %v30
  %116 = vmatprep.subr.mxu0 0.0
  %117 = vmatpush1.msra.mxu0 %v31
  %118 = vmatprep.subr.mxu0 0.0
  %119 = vmatpush1.msra.mxu0 %v32
  %120 = vmatprep.subr.mxu0 0.0
  %121 = vmatpush1.msra.mxu0 %v33
  %122 = vmatprep.subr.mxu0 0.0
  %123 = vmatpush1.msra.mxu0 %v34
  %124 = vmatprep.subr.mxu0 0.0
  %125 = vmatpush1.msra.mxu0 %v35
  %126 = vmatprep.subr.mxu0 0.0
  %127 = vmatpush1.msra.mxu0 %v36
  %128 = vmatprep.subr.mxu0 0.0
  %129 = vmatpush1.msra.mxu0 %v37
  %130 = vmatprep.subr.mxu0 0.0
  %131 = vmatpush1.msra.mxu0 %v38
  %132 = vmatprep.subr.mxu0 0.0
  %133 = vmatpush1.msra.mxu0 %v39
  %134 = vmatprep.subr.mxu0 0.0
  %135 = vmatpush1.msra.mxu0 %v40
  %136 = vmatprep.subr.mxu0 0.0
  %137 = vmatpush1.msra.mxu0 %v41
  %138 = vmatprep.subr.mxu0 0.0
  %139 = vmatpush1.msra.mxu0 %v42
  %140 = vmatprep.subr.mxu0 0.0
  %141 = vmatpush1.msra.mxu0 %v43
  %142 = vmatprep.subr.mxu0 0.0
  %143 = vmatpush1.msra.mxu0 %v44
  %144 = vmatprep.subr.mxu0 0.0
  %145 = vmatpush1.msra.mxu0 %v45
  %146 = vmatprep.mubr.f32.mxu0 %v52
  %147 = vmatmul.mubr.f32.gmra.mrb[0].mxu0 %v51
  %v148 = vpop.f32.mrb[0].mxu0
  %v149 = vadd.f32 %v67, %v148
  %v150 = vpop.f32.mrb[0].mxu0
  %151 = vmatprep.mubr.f32.mxu0 %v55
  %152 = vmatmul.mubr.f32.gmra.mrb[0].mxu0 %v54
  %v153 = vpop.f32.mrb[0].mxu0
  %v154 = vadd.f32 %v67, %v153
  %v155 = vpop.f32.mrb[0].mxu0
  %156 = vmatprep.mubr.f32.mxu0 %v58
  %157 = vmatmul.mubr.f32.gmra.mrb[0].mxu0 %v57
  %v158 = vpop.f32.mrb[0].mxu0
  %v159 = vadd.f32 %v67, %v158
  %v160 = vpop.f32.mrb[0].mxu0
  %161 = vmatprep.mubr.f32.mxu0 %v61
  %162 = vmatmul.mubr.f32.gmra.mrb[0].mxu0 %v60
  %v163 = vpop.f32.mrb[0].mxu0
  %v164 = vadd.f32 %v67, %v163
  %v165 = vpop.f32.mrb[0].mxu0
  %166 = vdwg.mxu0
  %167 = vmatprep.subr.mxu0 0.0
  %168 = vmatpush1.msra.mxu0 %v46
  %169 = vmatprep.subr.mxu0 0.0
  %170 = vmatpush1.msra.mxu0 %v47
  %171 = vmatprep.subr.mxu0 0.0
  %172 = vmatpush1.msra.mxu0 %v48
  %173 = vmatprep.subr.mxu0 0.0
  %174 = vmatpush1.msra.mxu0 %v49
  %175 = vmatprep.subr.mxu0 0.0
  %176 = vmatpush1.msra.mxu0 0.0
  %177 = vmatprep.subr.mxu0 0.0
  %178 = vmatpush1.msra.mxu0 0.0
  %179 = vmatprep.subr.mxu0 0.0
  %180 = vmatpush1.msra.mxu0 0.0
  %181 = vmatprep.subr.mxu0 0.0
  %182 = vmatpush1.msra.mxu0 0.0
  %183 = vmatprep.subr.mxu0 0.0
  %184 = vmatpush1.msra.mxu0 0.0
  %185 = vmatprep.subr.mxu0 0.0
  %186 = vmatpush1.msra.mxu0 0.0
  %187 = vmatprep.subr.mxu0 0.0
  %188 = vmatpush1.msra.mxu0 0.0
  %189 = vmatprep.subr.mxu0 0.0
  %190 = vmatpush1.msra.mxu0 0.0
  %191 = vmatprep.subr.mxu0 0.0
  %192 = vmatpush1.msra.mxu0 0.0
  %193 = vmatprep.subr.mxu0 0.0
  %194 = vmatpush1.msra.mxu0 0.0
  %195 = vmatprep.subr.mxu0 0.0
  %196 = vmatpush1.msra.mxu0 0.0
  %197 = vmatprep.subr.mxu0 0.0
  %198 = vmatpush1.msra.mxu0 0.0
  %199 = vmatprep.subr.mxu0 0.0
  %200 = vmatpush1.msra.mxu0 0.0
  %201 = vmatprep.subr.mxu0 0.0
  %202 = vmatpush1.msra.mxu0 0.0
  %203 = vmatprep.subr.mxu0 0.0
  %204 = vmatpush1.msra.mxu0 0.0
  %205 = vmatprep.subr.mxu0 0.0
  %206 = vmatpush1.msra.mxu0 0.0
  %207 = vmatprep.subr.mxu0 0.0
  %208 = vmatpush1.msra.mxu0 0.0
  %209 = vmatprep.subr.mxu0 0.0
  %210 = vmatpush1.msra.mxu0 0.0
  %211 = vmatprep.subr.mxu0 0.0
  %212 = vmatpush1.msra.mxu0 0.0
  %213 = vmatprep.subr.mxu0 0.0
  %214 = vmatpush1.msra.mxu0 0.0
  %215 = vmatprep.subr.mxu0 0.0
  %216 = vmatpush1.msra.mxu0 0.0
  %217 = vmatprep.subr.mxu0 0.0
  %218 = vmatpush1.msra.mxu0 0.0
  %219 = vmatprep.subr.mxu0 0.0
  %220 = vmatpush1.msra.mxu0 0.0
  %221 = vmatprep.subr.mxu0 0.0
  %222 = vmatpush1.msra.mxu0 0.0
  %223 = vmatprep.subr.mxu0 0.0
  %224 = vmatpush1.msra.mxu0 0.0
  %225 = vmatprep.subr.mxu0 0.0
  %226 = vmatpush1.msra.mxu0 0.0
  %227 = vmatprep.subr.mxu0 0.0
  %228 = vmatpush1.msra.mxu0 0.0
  %229 = vmatprep.subr.mxu0 0.0
  %230 = vmatpush1.msra.mxu0 0.0
  %231 = vmatprep.mubr.f32.mxu0 0.0
  %232 = vmatmul.mubr.f32.gmra.mrb[0].mxu0 %v71
  %v233 = vpop.f32.mrb[0].mxu0
  %v234 = vadd.f32 %v149, %v233
  %v235 = vpop.f32.mrb[0].mxu0
  %236 = vmatprep.mubr.f32.mxu0 0.0
  %237 = vmatmul.mubr.f32.gmra.mrb[0].mxu0 %v74
  %v238 = vpop.f32.mrb[0].mxu0
  %v239 = vadd.f32 %v154, %v238
  %v240 = vpop.f32.mrb[0].mxu0
  %241 = vmatprep.mubr.f32.mxu0 0.0
  %242 = vmatmul.mubr.f32.gmra.mrb[0].mxu0 %v77
  %v243 = vpop.f32.mrb[0].mxu0
  %v244 = vadd.f32 %v159, %v243
  %v245 = vpop.f32.mrb[0].mxu0
  %246 = vmatprep.mubr.f32.mxu0 0.0
  %247 = vmatmul.mubr.f32.gmra.mrb[0].mxu0 %v80
  %v248 = vpop.f32.mrb[0].mxu0
  %v249 = vadd.f32 %v164, %v248
  %v250 = vpop.f32.mrb[0].mxu0
  %251 = vdwg.mxu0
  %v252 = vmax.f32 %v234, 0.0
  %v253 = vmax.f32 %v239, 0.0
  %v254 = vmax.f32 %v244, 0.0
  %v255 = vmax.f32 %v249, 0.0
  %s256 = scalar_lea.vmem %s0, 96
  %v257 = vld [vmem:[%s256] sm:$0xff]
  %v258 = vld [vmem:[%s256 + $0x8] sm:$0xff]
  %v259 = vld [vmem:[%s256 + $0x10] sm:$0xff]
  %v260 = vld [vmem:[%s256 + $0x18] sm:$0xff]
  %v261 = vld [vmem:[%s256 + $0x20] sm:$0xff]
  %v262 = vld [vmem:[%s256 + $0x28] sm:$0xff]
  %v263 = vld [vmem:[%s256 + $0x30] sm:$0xff]
  %v264 = vld [vmem:[%s256 + $0x38] sm:$0xff]
  %v265 = vld [vmem:[%s256 + $0x40] sm:$0xff]
  %v266 = vld [vmem:[%s256 + $0x48] sm:$0xff]
  %v267 = vld [vmem:[%s256 + $0x50] sm:$0xff]
  %v268 = vld [vmem:[%s256 + $0x58] sm:$0xff]
  %v270 = vsel %vm69, %v259, 0
  %v273 = vsel %vm69, %v262, 0
  %v276 = vsel %vm69, %v265, 0
  %v279 = vsel %vm69, %v268, 0
  %281 = vmatprep.subr.mxu0 0.0
  %282 = vmatpush1.msra.mxu0 %v14
  %283 = vmatprep.subr.mxu0 0.0
  %284 = vmatpush1.msra.mxu0 %v15
  %285 = vmatprep.subr.mxu0 0.0
  %286 = vmatpush1.msra.mxu0 %v16
  %287 = vmatprep.subr.mxu0 0.0
  %288 = vmatpush1.msra.mxu0 %v17
  %289 = vmatprep.subr.mxu0 0.0
  %290 = vmatpush1.msra.mxu0 %v18
  %291 = vmatprep.subr.mxu0 0.0
  %292 = vmatpush1.msra.mxu0 %v19
  %293 = vmatprep.subr.mxu0 0.0
  %294 = vmatpush1.msra.mxu0 %v20
  %295 = vmatprep.subr.mxu0 0.0
  %296 = vmatpush1.msra.mxu0 %v21
  %297 = vmatprep.subr.mxu0 0.0
  %298 = vmatpush1.msra.mxu0 %v22
  %299 = vmatprep.subr.mxu0 0.0
  %300 = vmatpush1.msra.mxu0 %v23
  %301 = vmatprep.subr.mxu0 0.0
  %302 = vmatpush1.msra.mxu0 %v24
  %303 = vmatprep.subr.mxu0 0.0
  %304 = vmatpush1.msra.mxu0 %v25
  %305 = vmatprep.subr.mxu0 0.0
  %306 = vmatpush1.msra.mxu0 %v26
  %307 = vmatprep.subr.mxu0 0.0
  %308 = vmatpush1.msra.mxu0 %v27
  %309 = vmatprep.subr.mxu0 0.0
  %310 = vmatpush1.msra.mxu0 %v28
  %311 = vmatprep.subr.mxu0 0.0
  %312 = vmatpush1.msra.mxu0 %v29
  %313 = vmatprep.subr.mxu0 0.0
  %314 = vmatpush1.msra.mxu0 %v30
  %315 = vmatprep.subr.mxu0 0.0
  %316 = vmatpush1.msra.mxu0 %v31
  %317 = vmatprep.subr.mxu0 0.0
  %318 = vmatpush1.msra.mxu0 %v32
  %319 = vmatprep.subr.mxu0 0.0
  %320 = vmatpush1.msra.mxu0 %v33
  %321 = vmatprep.subr.mxu0 0.0
  %322 = vmatpush1.msra.mxu0 %v34
  %323 = vmatprep.subr.mxu0 0.0
  %324 = vmatpush1.msra.mxu0 %v35
  %325 = vmatprep.subr.mxu0 0.0
  %326 = vmatpush1.msra.mxu0 %v36
  %327 = vmatprep.subr.mxu0 0.0
  %328 = vmatpush1.msra.mxu0 %v37
  %329 = vmatprep.subr.mxu0 0.0
  %330 = vmatpush1.msra.mxu0 %v38
  %331 = vmatprep.subr.mxu0 0.0
  %332 = vmatpush1.msra.mxu0 %v39
  %333 = vmatprep.subr.mxu0 0.0
  %334 = vmatpush1.msra.mxu0 %v40
  %335 = vmatprep.subr.mxu0 0.0
  %336 = vmatpush1.msra.mxu0 %v41
  %337 = vmatprep.subr.mxu0 0.0
  %338 = vmatpush1.msra.mxu0 %v42
  %339 = vmatprep.subr.mxu0 0.0
  %340 = vmatpush1.msra.mxu0 %v43
  %341 = vmatprep.subr.mxu0 0.0
  %342 = vmatpush1.msra.mxu0 %v44
  %343 = vmatprep.subr.mxu0 0.0
  %344 = vmatpush1.msra.mxu0 %v45
  %345 = vmatprep.mubr.f32.mxu0 %v258
  %346 = vmatmul.mubr.f32.gmra.mrb[0].mxu0 %v257
  %v347 = vpop.f32.mrb[0].mxu0
  %v348 = vadd.f32 %v67, %v347
  %v349 = vpop.f32.mrb[0].mxu0
  %350 = vmatprep.mubr.f32.mxu0 %v261
  %351 = vmatmul.mubr.f32.gmra.mrb[0].mxu0 %v260
  %v352 = vpop.f32.mrb[0].mxu0
  %v353 = vadd.f32 %v67, %v352
  %v354 = vpop.f32.mrb[0].mxu0
  %355 = vmatprep.mubr.f32.mxu0 %v264
  %356 = vmatmul.mubr.f32.gmra.mrb[0].mxu0 %v263
  %v357 = vpop.f32.mrb[0].mxu0
  %v358 = vadd.f32 %v67, %v357
  %v359 = vpop.f32.mrb[0].mxu0
  %360 = vmatprep.mubr.f32.mxu0 %v267
  %361 = vmatmul.mubr.f32.gmra.mrb[0].mxu0 %v266
  %v362 = vpop.f32.mrb[0].mxu0
  %v363 = vadd.f32 %v67, %v362
  %v364 = vpop.f32.mrb[0].mxu0
  %365 = vdwg.mxu0
  %366 = vmatprep.subr.mxu0 0.0
  %367 = vmatpush1.msra.mxu0 %v46
  %368 = vmatprep.subr.mxu0 0.0
  %369 = vmatpush1.msra.mxu0 %v47
  %370 = vmatprep.subr.mxu0 0.0
  %371 = vmatpush1.msra.mxu0 %v48
  %372 = vmatprep.subr.mxu0 0.0
  %373 = vmatpush1.msra.mxu0 %v49
  %374 = vmatprep.subr.mxu0 0.0
  %375 = vmatpush1.msra.mxu0 0.0
  %376 = vmatprep.subr.mxu0 0.0
  %377 = vmatpush1.msra.mxu0 0.0
  %378 = vmatprep.subr.mxu0 0.0
  %379 = vmatpush1.msra.mxu0 0.0
  %380 = vmatprep.subr.mxu0 0.0
  %381 = vmatpush1.msra.mxu0 0.0
  %382 = vmatprep.subr.mxu0 0.0
  %383 = vmatpush1.msra.mxu0 0.0
  %384 = vmatprep.subr.mxu0 0.0
  %385 = vmatpush1.msra.mxu0 0.0
  %386 = vmatprep.subr.mxu0 0.0
  %387 = vmatpush1.msra.mxu0 0.0
  %388 = vmatprep.subr.mxu0 0.0
  %389 = vmatpush1.msra.mxu0 0.0
  %390 = vmatprep.subr.mxu0 0.0
  %391 = vmatpush1.msra.mxu0 0.0
  %392 = vmatprep.subr.mxu0 0.0
  %393 = vmatpush1.msra.mxu0 0.0
  %394 = vmatprep.subr.mxu0 0.0
  %395 = vmatpush1.msra.mxu0 0.0
  %396 = vmatprep.subr.mxu0 0.0
  %397 = vmatpush1.msra.mxu0 0.0
  %398 = vmatprep.subr.mxu0 0.0
  %399 = vmatpush1.msra.mxu0 0.0
  %400 = vmatprep.subr.mxu0 0.0
  %401 = vmatpush1.msra.mxu0 0.0
  %402 = vmatprep.subr.mxu0 0.0
  %403 = vmatpush1.msra.mxu0 0.0
  %404 = vmatprep.subr.mxu0 0.0
  %405 = vmatpush1.msra.mxu0 0.0
  %406 = vmatprep.subr.mxu0 0.0
  %407 = vmatpush1.msra.mxu0 0.0
  %408 = vmatprep.subr.mxu0 0.0
  %409 = vmatpush1.msra.mxu0 0.0
  %410 = vmatprep.subr.mxu0 0.0
  %411 = vmatpush1.msra.mxu0 0.0
  %412 = vmatprep.subr.mxu0 0.0
  %413 = vmatpush1.msra.mxu0 0.0
  %414 = vmatprep.subr.mxu0 0.0
  %415 = vmatpush1.msra.mxu0 0.0
  %416 = vmatprep.subr.mxu0 0.0
  %417 = vmatpush1.msra.mxu0 0.0
  %418 = vmatprep.subr.mxu0 0.0
  %419 = vmatpush1.msra.mxu0 0.0
  %420 = vmatprep.subr.mxu0 0.0
  %421 = vmatpush1.msra.mxu0 0.0
  %422 = vmatprep.subr.mxu0 0.0
  %423 = vmatpush1.msra.mxu0 0.0
  %424 = vmatprep.subr.mxu0 0.0
  %425 = vmatpush1.msra.mxu0 0.0
  %426 = vmatprep.subr.mxu0 0.0
  %427 = vmatpush1.msra.mxu0 0.0
  %428 = vmatprep.subr.mxu0 0.0
  %429 = vmatpush1.msra.mxu0 0.0
  %430 = vmatprep.mubr.f32.mxu0 0.0
  %431 = vmatmul.mubr.f32.gmra.mrb[0].mxu0 %v270
  %v432 = vpop.f32.mrb[0].mxu0
  %v433 = vadd.f32 %v348, %v432
  %v434 = vpop.f32.mrb[0].mxu0
  %435 = vmatprep.mubr.f32.mxu0 0.0
  %436 = vmatmul.mubr.f32.gmra.mrb[0].mxu0 %v273
  %v437 = vpop.f32.mrb[0].mxu0
  %v438 = vadd.f32 %v353, %v437
  %v439 = vpop.f32.mrb[0].mxu0
  %440 = vmatprep.mubr.f32.mxu0 0.0
  %441 = vmatmul.mubr.f32.gmra.mrb[0].mxu0 %v276
  %v442 = vpop.f32.mrb[0].mxu0
  %v443 = vadd.f32 %v358, %v442
  %v444 = vpop.f32.mrb[0].mxu0
  %445 = vmatprep.mubr.f32.mxu0 0.0
  %446 = vmatmul.mubr.f32.gmra.mrb[0].mxu0 %v279
  %v447 = vpop.f32.mrb[0].mxu0
  %v448 = vadd.f32 %v363, %v447
  %v449 = vpop.f32.mrb[0].mxu0
  %450 = vdwg.mxu0
  %v451 = vmax.f32 %v433, 0.0
  %v452 = vmax.f32 %v438, 0.0
  %v453 = vmax.f32 %v443, 0.0
  %v454 = vmax.f32 %v448, 0.0
  %v455 = vmax.f32 %v252, %v451
  %v456 = vmax.f32 %v253, %v452
  %v457 = vmax.f32 %v254, %v453
  %v458 = vmax.f32 %v255, %v454
  %s459 = scalar_lea.vmem %s0, 192
  %v460 = vld [vmem:[%s459] sm:$0xff]
  %v461 = vld [vmem:[%s459 + $0x8] sm:$0xff]
  %v462 = vld [vmem:[%s459 + $0x10] sm:$0xff]
  %v463 = vld [vmem:[%s459 + $0x18] sm:$0xff]
  %v464 = vld [vmem:[%s459 + $0x20] sm:$0xff]
  %v465 = vld [vmem:[%s459 + $0x28] sm:$0xff]
  %v466 = vld [vmem:[%s459 + $0x30] sm:$0xff]
  %v467 = vld [vmem:[%s459 + $0x38] sm:$0xff]
  %v468 = vld [vmem:[%s459 + $0x40] sm:$0xff]
  %v469 = vld [vmem:[%s459 + $0x48] sm:$0xff]
  %v470 = vld [vmem:[%s459 + $0x50] sm:$0xff]
  %v471 = vld [vmem:[%s459 + $0x58] sm:$0xff]
  %v473 = vsel %vm69, %v462, 0
  %v476 = vsel %vm69, %v465, 0
  %v479 = vsel %vm69, %v468, 0
  %v482 = vsel %vm69, %v471, 0
  %484 = vmatprep.subr.mxu0 0.0
  %485 = vmatpush1.msra.mxu0 %v14
  %486 = vmatprep.subr.mxu0 0.0
  %487 = vmatpush1.msra.mxu0 %v15
  %488 = vmatprep.subr.mxu0 0.0
  %489 = vmatpush1.msra.mxu0 %v16
  %490 = vmatprep.subr.mxu0 0.0
  %491 = vmatpush1.msra.mxu0 %v17
  %492 = vmatprep.subr.mxu0 0.0
  %493 = vmatpush1.msra.mxu0 %v18
  %494 = vmatprep.subr.mxu0 0.0
  %495 = vmatpush1.msra.mxu0 %v19
  %496 = vmatprep.subr.mxu0 0.0
  %497 = vmatpush1.msra.mxu0 %v20
  %498 = vmatprep.subr.mxu0 0.0
  %499 = vmatpush1.msra.mxu0 %v21
  %500 = vmatprep.subr.mxu0 0.0
  %501 = vmatpush1.msra.mxu0 %v22
  %502 = vmatprep.subr.mxu0 0.0
  %503 = vmatpush1.msra.mxu0 %v23
  %504 = vmatprep.subr.mxu0 0.0
  %505 = vmatpush1.msra.mxu0 %v24
  %506 = vmatprep.subr.mxu0 0.0
  %507 = vmatpush1.msra.mxu0 %v25
  %508 = vmatprep.subr.mxu0 0.0
  %509 = vmatpush1.msra.mxu0 %v26
  %510 = vmatprep.subr.mxu0 0.0
  %511 = vmatpush1.msra.mxu0 %v27
  %512 = vmatprep.subr.mxu0 0.0
  %513 = vmatpush1.msra.mxu0 %v28
  %514 = vmatprep.subr.mxu0 0.0
  %515 = vmatpush1.msra.mxu0 %v29
  %516 = vmatprep.subr.mxu0 0.0
  %517 = vmatpush1.msra.mxu0 %v30
  %518 = vmatprep.subr.mxu0 0.0
  %519 = vmatpush1.msra.mxu0 %v31
  %520 = vmatprep.subr.mxu0 0.0
  %521 = vmatpush1.msra.mxu0 %v32
  %522 = vmatprep.subr.mxu0 0.0
  %523 = vmatpush1.msra.mxu0 %v33
  %524 = vmatprep.subr.mxu0 0.0
  %525 = vmatpush1.msra.mxu0 %v34
  %526 = vmatprep.subr.mxu0 0.0
  %527 = vmatpush1.msra.mxu0 %v35
  %528 = vmatprep.subr.mxu0 0.0
  %529 = vmatpush1.msra.mxu0 %v36
  %530 = vmatprep.subr.mxu0 0.0
  %531 = vmatpush1.msra.mxu0 %v37
  %532 = vmatprep.subr.mxu0 0.0
  %533 = vmatpush1.msra.mxu0 %v38
  %534 = vmatprep.subr.mxu0 0.0
  %535 = vmatpush1.msra.mxu0 %v39
  %536 = vmatprep.subr.mxu0 0.0
  %537 = vmatpush1.msra.mxu0 %v40
  %538 = vmatprep.subr.mxu0 0.0
  %539 = vmatpush1.msra.mxu0 %v41
  %540 = vmatprep.subr.mxu0 0.0
  %541 = vmatpush1.msra.mxu0 %v42
  %542 = vmatprep.subr.mxu0 0.0
  %543 = vmatpush1.msra.mxu0 %v43
  %544 = vmatprep.subr.mxu0 0.0
  %545 = vmatpush1.msra.mxu0 %v44
  %546 = vmatprep.subr.mxu0 0.0
  %547 = vmatpush1.msra.mxu0 %v45
  %548 = vmatprep.mubr.f32.mxu0 %v461
  %549 = vmatmul.mubr.f32.gmra.mrb[0].mxu0 %v460
  %v550 = vpop.f32.mrb[0].mxu0
  %v551 = vadd.f32 %v67, %v550
  %v552 = vpop.f32.mrb[0].mxu0
  %553 = vmatprep.mubr.f32.mxu0 %v464
  %554 = vmatmul.mubr.f32.gmra.mrb[0].mxu0 %v463
  %v555 = vpop.f32.mrb[0].mxu0
  %v556 = vadd.f32 %v67, %v555
  %v557 = vpop.f32.mrb[0].mxu0
  %558 = vmatprep.mubr.f32.mxu0 %v467
  %559 = vmatmul.mubr.f32.gmra.mrb[0].mxu0 %v466
  %v560 = vpop.f32.mrb[0].mxu0
  %v561 = vadd.f32 %v67, %v560
  %v562 = vpop.f32.mrb[0].mxu0
  %563 = vmatprep.mubr.f32.mxu0 %v470
  %564 = vmatmul.mubr.f32.gmra.mrb[0].mxu0 %v469
  %v565 = vpop.f32.mrb[0].mxu0
  %v566 = vadd.f32 %v67, %v565
  %v567 = vpop.f32.mrb[0].mxu0
  %568 = vdwg.mxu0
  %569 = vmatprep.subr.mxu0 0.0
  %570 = vmatpush1.msra.mxu0 %v46
  %571 = vmatprep.subr.mxu0 0.0
  %572 = vmatpush1.msra.mxu0 %v47
  %573 = vmatprep.subr.mxu0 0.0
  %574 = vmatpush1.msra.mxu0 %v48
  %575 = vmatprep.subr.mxu0 0.0
  %576 = vmatpush1.msra.mxu0 %v49
  %577 = vmatprep.subr.mxu0 0.0
  %578 = vmatpush1.msra.mxu0 0.0
  %579 = vmatprep.subr.mxu0 0.0
  %580 = vmatpush1.msra.mxu0 0.0
  %581 = vmatprep.subr.mxu0 0.0
  %582 = vmatpush1.msra.mxu0 0.0
  %583 = vmatprep.subr.mxu0 0.0
  %584 = vmatpush1.msra.mxu0 0.0
  %585 = vmatprep.subr.mxu0 0.0
  %586 = vmatpush1.msra.mxu0 0.0
  %587 = vmatprep.subr.mxu0 0.0
  %588 = vmatpush1.msra.mxu0 0.0
  %589 = vmatprep.subr.mxu0 0.0
  %590 = vmatpush1.msra.mxu0 0.0
  %591 = vmatprep.subr.mxu0 0.0
  %592 = vmatpush1.msra.mxu0 0.0
  %593 = vmatprep.subr.mxu0 0.0
  %594 = vmatpush1.msra.mxu0 0.0
  %595 = vmatprep.subr.mxu0 0.0
  %596 = vmatpush1.msra.mxu0 0.0
  %597 = vmatprep.subr.mxu0 0.0
  %598 = vmatpush1.msra.mxu0 0.0
  %599 = vmatprep.subr.mxu0 0.0
  %600 = vmatpush1.msra.mxu0 0.0
  %601 = vmatprep.subr.mxu0 0.0
  %602 = vmatpush1.msra.mxu0 0.0
  %603 = vmatprep.subr.mxu0 0.0
  %604 = vmatpush1.msra.mxu0 0.0
  %605 = vmatprep.subr.mxu0 0.0
  %606 = vmatpush1.msra.mxu0 0.0
  %607 = vmatprep.subr.mxu0 0.0
  %608 = vmatpush1.msra.mxu0 0.0
  %609 = vmatprep.subr.mxu0 0.0
  %610 = vmatpush1.msra.mxu0 0.0
  %611 = vmatprep.subr.mxu0 0.0
  %612 = vmatpush1.msra.mxu0 0.0
  %613 = vmatprep.subr.mxu0 0.0
  %614 = vmatpush1.msra.mxu0 0.0
  %615 = vmatprep.subr.mxu0 0.0
  %616 = vmatpush1.msra.mxu0 0.0
  %617 = vmatprep.subr.mxu0 0.0
  %618 = vmatpush1.msra.mxu0 0.0
  %619 = vmatprep.subr.mxu0 0.0
  %620 = vmatpush1.msra.mxu0 0.0
  %621 = vmatprep.subr.mxu0 0.0
  %622 = vmatpush1.msra.mxu0 0.0
  %623 = vmatprep.subr.mxu0 0.0
  %624 = vmatpush1.msra.mxu0 0.0
  %625 = vmatprep.subr.mxu0 0.0
  %626 = vmatpush1.msra.mxu0 0.0
  %627 = vmatprep.subr.mxu0 0.0
  %628 = vmatpush1.msra.mxu0 0.0
  %629 = vmatprep.subr.mxu0 0.0
  %630 = vmatpush1.msra.mxu0 0.0
  %631 = vmatprep.subr.mxu0 0.0
  %632 = vmatpush1.msra.mxu0 0.0
  %633 = vmatprep.mubr.f32.mxu0 0.0
  %634 = vmatmul.mubr.f32.gmra.mrb[0].mxu0 %v473
  %v635 = vpop.f32.mrb[0].mxu0
  %v636 = vadd.f32 %v551, %v635
  %v637 = vpop.f32.mrb[0].mxu0
  %638 = vmatprep.mubr.f32.mxu0 0.0
  %639 = vmatmul.mubr.f32.gmra.mrb[0].mxu0 %v476
  %v640 = vpop.f32.mrb[0].mxu0
  %v641 = vadd.f32 %v556, %v640
  %v642 = vpop.f32.mrb[0].mxu0
  %643 = vmatprep.mubr.f32.mxu0 0.0
  %644 = vmatmul.mubr.f32.gmra.mrb[0].mxu0 %v479
  %v645 = vpop.f32.mrb[0].mxu0
  %v646 = vadd.f32 %v561, %v645
  %v647 = vpop.f32.mrb[0].mxu0
  %648 = vmatprep.mubr.f32.mxu0 0.0
  %649 = vmatmul.mubr.f32.gmra.mrb[0].mxu0 %v482
  %v650 = vpop.f32.mrb[0].mxu0
  %v651 = vadd.f32 %v566, %v650
  %v652 = vpop.f32.mrb[0].mxu0
  %653 = vdwg.mxu0
  %v654 = vmax.f32 %v636, 0.0
  %v655 = vmax.f32 %v641, 0.0
  %v656 = vmax.f32 %v646, 0.0
  %v657 = vmax.f32 %v651, 0.0
  %s658 = scalar_lea.vmem %s0, 288
  %v659 = vld [vmem:[%s658] sm:$0xff]
  %v660 = vld [vmem:[%s658 + $0x8] sm:$0xff]
  %v661 = vld [vmem:[%s658 + $0x10] sm:$0xff]
  %v662 = vld [vmem:[%s658 + $0x18] sm:$0xff]
  %v663 = vld [vmem:[%s658 + $0x20] sm:$0xff]
  %v664 = vld [vmem:[%s658 + $0x28] sm:$0xff]
  %v665 = vld [vmem:[%s658 + $0x30] sm:$0xff]
  %v666 = vld [vmem:[%s658 + $0x38] sm:$0xff]
  %v667 = vld [vmem:[%s658 + $0x40] sm:$0xff]
  %v668 = vld [vmem:[%s658 + $0x48] sm:$0xff]
  %v669 = vld [vmem:[%s658 + $0x50] sm:$0xff]
  %v670 = vld [vmem:[%s658 + $0x58] sm:$0xff]
  %v672 = vsel %vm69, %v661, 0
  %v675 = vsel %vm69, %v664, 0
  %v678 = vsel %vm69, %v667, 0
  %v681 = vsel %vm69, %v670, 0
  %683 = vmatprep.subr.mxu0 0.0
  %684 = vmatpush1.msra.mxu0 %v14
  %685 = vmatprep.subr.mxu0 0.0
  %686 = vmatpush1.msra.mxu0 %v15
  %687 = vmatprep.subr.mxu0 0.0
  %688 = vmatpush1.msra.mxu0 %v16
  %689 = vmatprep.subr.mxu0 0.0
  %690 = vmatpush1.msra.mxu0 %v17
  %691 = vmatprep.subr.mxu0 0.0
  %692 = vmatpush1.msra.mxu0 %v18
  %693 = vmatprep.subr.mxu0 0.0
  %694 = vmatpush1.msra.mxu0 %v19
  %695 = vmatprep.subr.mxu0 0.0
  %696 = vmatpush1.msra.mxu0 %v20
  %697 = vmatprep.subr.mxu0 0.0
  %698 = vmatpush1.msra.mxu0 %v21
  %699 = vmatprep.subr.mxu0 0.0
  %700 = vmatpush1.msra.mxu0 %v22
  %701 = vmatprep.subr.mxu0 0.0
  %702 = vmatpush1.msra.mxu0 %v23
  %703 = vmatprep.subr.mxu0 0.0
  %704 = vmatpush1.msra.mxu0 %v24
  %705 = vmatprep.subr.mxu0 0.0
  %706 = vmatpush1.msra.mxu0 %v25
  %707 = vmatprep.subr.mxu0 0.0
  %708 = vmatpush1.msra.mxu0 %v26
  %709 = vmatprep.subr.mxu0 0.0
  %710 = vmatpush1.msra.mxu0 %v27
  %711 = vmatprep.subr.mxu0 0.0
  %712 = vmatpush1.msra.mxu0 %v28
  %713 = vmatprep.subr.mxu0 0.0
  %714 = vmatpush1.msra.mxu0 %v29
  %715 = vmatprep.subr.mxu0 0.0
  %716 = vmatpush1.msra.mxu0 %v30
  %717 = vmatprep.subr.mxu0 0.0
  %718 = vmatpush1.msra.mxu0 %v31
  %719 = vmatprep.subr.mxu0 0.0
  %720 = vmatpush1.msra.mxu0 %v32
  %721 = vmatprep.subr.mxu0 0.0
  %722 = vmatpush1.msra.mxu0 %v33
  %723 = vmatprep.subr.mxu0 0.0
  %724 = vmatpush1.msra.mxu0 %v34
  %725 = vmatprep.subr.mxu0 0.0
  %726 = vmatpush1.msra.mxu0 %v35
  %727 = vmatprep.subr.mxu0 0.0
  %728 = vmatpush1.msra.mxu0 %v36
  %729 = vmatprep.subr.mxu0 0.0
  %730 = vmatpush1.msra.mxu0 %v37
  %731 = vmatprep.subr.mxu0 0.0
  %732 = vmatpush1.msra.mxu0 %v38
  %733 = vmatprep.subr.mxu0 0.0
  %734 = vmatpush1.msra.mxu0 %v39
  %735 = vmatprep.subr.mxu0 0.0
  %736 = vmatpush1.msra.mxu0 %v40
  %737 = vmatprep.subr.mxu0 0.0
  %738 = vmatpush1.msra.mxu0 %v41
  %739 = vmatprep.subr.mxu0 0.0
  %740 = vmatpush1.msra.mxu0 %v42
  %741 = vmatprep.subr.mxu0 0.0
  %742 = vmatpush1.msra.mxu0 %v43
  %743 = vmatprep.subr.mxu0 0.0
  %744 = vmatpush1.msra.mxu0 %v44
  %745 = vmatprep.subr.mxu0 0.0
  %746 = vmatpush1.msra.mxu0 %v45
  %747 = vmatprep.mubr.f32.mxu0 %v660
  %748 = vmatmul.mubr.f32.gmra.mrb[0].mxu0 %v659
  %v749 = vpop.f32.mrb[0].mxu0
  %v750 = vadd.f32 %v67, %v749
  %v751 = vpop.f32.mrb[0].mxu0
  %752 = vmatprep.mubr.f32.mxu0 %v663
  %753 = vmatmul.mubr.f32.gmra.mrb[0].mxu0 %v662
  %v754 = vpop.f32.mrb[0].mxu0
  %v755 = vadd.f32 %v67, %v754
  %v756 = vpop.f32.mrb[0].mxu0
  %757 = vmatprep.mubr.f32.mxu0 %v666
  %758 = vmatmul.mubr.f32.gmra.mrb[0].mxu0 %v665
  %v759 = vpop.f32.mrb[0].mxu0
  %v760 = vadd.f32 %v67, %v759
  %v761 = vpop.f32.mrb[0].mxu0
  %762 = vmatprep.mubr.f32.mxu0 %v669
  %763 = vmatmul.mubr.f32.gmra.mrb[0].mxu0 %v668
  %v764 = vpop.f32.mrb[0].mxu0
  %v765 = vadd.f32 %v67, %v764
  %v766 = vpop.f32.mrb[0].mxu0
  %767 = vdwg.mxu0
  %768 = vmatprep.subr.mxu0 0.0
  %769 = vmatpush1.msra.mxu0 %v46
  %770 = vmatprep.subr.mxu0 0.0
  %771 = vmatpush1.msra.mxu0 %v47
  %772 = vmatprep.subr.mxu0 0.0
  %773 = vmatpush1.msra.mxu0 %v48
  %774 = vmatprep.subr.mxu0 0.0
  %775 = vmatpush1.msra.mxu0 %v49
  %776 = vmatprep.subr.mxu0 0.0
  %777 = vmatpush1.msra.mxu0 0.0
  %778 = vmatprep.subr.mxu0 0.0
  %779 = vmatpush1.msra.mxu0 0.0
  %780 = vmatprep.subr.mxu0 0.0
  %781 = vmatpush1.msra.mxu0 0.0
  %782 = vmatprep.subr.mxu0 0.0
  %783 = vmatpush1.msra.mxu0 0.0
  %784 = vmatprep.subr.mxu0 0.0
  %785 = vmatpush1.msra.mxu0 0.0
  %786 = vmatprep.subr.mxu0 0.0
  %787 = vmatpush1.msra.mxu0 0.0
  %788 = vmatprep.subr.mxu0 0.0
  %789 = vmatpush1.msra.mxu0 0.0
  %790 = vmatprep.subr.mxu0 0.0
  %791 = vmatpush1.msra.mxu0 0.0
  %792 = vmatprep.subr.mxu0 0.0
  %793 = vmatpush1.msra.mxu0 0.0
  %794 = vmatprep.subr.mxu0 0.0
  %795 = vmatpush1.msra.mxu0 0.0
  %796 = vmatprep.subr.mxu0 0.0
  %797 = vmatpush1.msra.mxu0 0.0
  %798 = vmatprep.subr.mxu0 0.0
  %799 = vmatpush1.msra.mxu0 0.0
  %800 = vmatprep.subr.mxu0 0.0
  %801 = vmatpush1.msra.mxu0 0.0
  %802 = vmatprep.subr.mxu0 0.0
  %803 = vmatpush1.msra.mxu0 0.0
  %804 = vmatprep.subr.mxu0 0.0
  %805 = vmatpush1.msra.mxu0 0.0
  %806 = vmatprep.subr.mxu0 0.0
  %807 = vmatpush1.msra.mxu0 0.0
  %808 = vmatprep.subr.mxu0 0.0
  %809 = vmatpush1.msra.mxu0 0.0
  %810 = vmatprep.subr.mxu0 0.0
  %811 = vmatpush1.msra.mxu0 0.0
  %812 = vmatprep.subr.mxu0 0.0
  %813 = vmatpush1.msra.mxu0 0.0
  %814 = vmatprep.subr.mxu0 0.0
  %815 = vmatpush1.msra.mxu0 0.0
  %816 = vmatprep.subr.mxu0 0.0
  %817 = vmatpush1.msra.mxu0 0.0
  %818 = vmatprep.subr.mxu0 0.0
  %819 = vmatpush1.msra.mxu0 0.0
  %820 = vmatprep.subr.mxu0 0.0
  %821 = vmatpush1.msra.mxu0 0.0
  %822 = vmatprep.subr.mxu0 0.0
  %823 = vmatpush1.msra.mxu0 0.0
  %824 = vmatprep.subr.mxu0 0.0
  %825 = vmatpush1.msra.mxu0 0.0
  %826 = vmatprep.subr.mxu0 0.0
  %827 = vmatpush1.msra.mxu0 0.0
  %828 = vmatprep.subr.mxu0 0.0
  %829 = vmatpush1.msra.mxu0 0.0
  %830 = vmatprep.subr.mxu0 0.0
  %831 = vmatpush1.msra.mxu0 0.0
  %832 = vmatprep.mubr.f32.mxu0 0.0
  %833 = vmatmul.mubr.f32.gmra.mrb[0].mxu0 %v672
  %v834 = vpop.f32.mrb[0].mxu0
  %v835 = vadd.f32 %v750, %v834
  %v836 = vpop.f32.mrb[0].mxu0
  %837 = vmatprep.mubr.f32.mxu0 0.0
  %838 = vmatmul.mubr.f32.gmra.mrb[0].mxu0 %v675
  %v839 = vpop.f32.mrb[0].mxu0
  %v840 = vadd.f32 %v755, %v839
  %v841 = vpop.f32.mrb[0].mxu0
  %842 = vmatprep.mubr.f32.mxu0 0.0
  %843 = vmatmul.mubr.f32.gmra.mrb[0].mxu0 %v678
  %v844 = vpop.f32.mrb[0].mxu0
  %v845 = vadd.f32 %v760, %v844
  %v846 = vpop.f32.mrb[0].mxu0
  %847 = vmatprep.mubr.f32.mxu0 0.0
  %848 = vmatmul.mubr.f32.gmra.mrb[0].mxu0 %v681
  %v849 = vpop.f32.mrb[0].mxu0
  %v850 = vadd.f32 %v765, %v849
  %v851 = vpop.f32.mrb[0].mxu0
  %852 = vdwg.mxu0
  %v853 = vmax.f32 %v835, 0.0
  %v854 = vmax.f32 %v840, 0.0
  %v855 = vmax.f32 %v845, 0.0
  %v856 = vmax.f32 %v850, 0.0
  %v857 = vmax.f32 %v654, %v853
  %v858 = vmax.f32 %v655, %v854
  %v859 = vmax.f32 %v656, %v855
  %v860 = vmax.f32 %v657, %v856
  %v861 = vmax.f32 %v455, %v857
  %v862 = vmax.f32 %v456, %v858
  %v863 = vmax.f32 %v457, %v859
  %v864 = vmax.f32 %v458, %v860
  %vm865 = vcmask 523264
  %866 = vst.msk [vmem:[%s3] sm:$0xff] %vm865, %v861
  %867 = vst.msk [vmem:[%s3 + $0x8] sm:$0xff] %vm865, %v862
  %868 = vst.msk [vmem:[%s3 + $0x10] sm:$0xff] %vm865, %v863
  %869 = vst.msk [vmem:[%s3 + $0x18] sm:$0xff] %vm865, %v864
  // Predicated region
  $region14: #{ghost_forward.5} parent=0 // pred_check
    _
  $region15: #{ghost_forward.5} parent=0 // pred_check_branch
    %871 = sbr.rel (0) target = $region17
  $region16: #{ghost_forward.5} parent=0 // pred_region
    _
  $region17: #{ghost_forward.5} parent=0 // pred_fallthru
    _
  // Predicated region
  $region18: #{ghost_forward.5} parent=0 // pred_check
    _
  $region19: #{ghost_forward.5} parent=0 // pred_check_branch
    %873 = sbr.rel (0) target = $region21
  $region20: #{ghost_forward.5} parent=0 // pred_region
    _
  $region21: #{ghost_forward.5} parent=0 // pred_fallthru
    _

// kernel: ghost_forward.6
$region0: #{ghost_forward.6}
  #allocation0 [shape = 'u32[]', space=smem, size = 0x4, offset = 0x4, fixed_abs, tag = 'smem constant byte address 0x4 - core index']
  #allocation1 [shape = 'u32[144,128]{1,0:T(1,128)}', space=vmem, size = 0x12000, scoped, tag = 'internal scratch']
  %s0 = inlined_call_operand.vmem [shape: f32[32,576], index: 0, kind: input, shape index: {}]
  %s1 = inlined_call_operand.vmem [shape: f32[576,128], index: 1, kind: input, shape index: {}]
  %s2 = inlined_call_operand.hbm [shape: f32[1,128], index: 2, kind: input, shape index: {}]
  %s3 = inlined_call_operand.vmem [shape: f32[256,128], index: 3, kind: input, shape index: {}]
  %s4 = inlined_call_operand.hbm [shape: f32[1,256], index: 4, kind: input, shape index: {}]
  %s5 = inlined_call_operand.vmem [shape: f32[2,256], index: 5, kind: output, shape index: {}]
  %s6 = sld [smem:[#allocation0]]
  $region38: #{ghost_forward.6} parent=0
    _
  %s8 = ssub.s32 1, %s6
  %s9 = scalar_select 0, %s8, %s6
  $region1: #{ghost_forward.6} parent=0
    #allocation2 [shape = 'u8[512]{0}', space=vmem, size = 0x400, scoped, tag = 'input window, operand 2, single buffered']
    #allocation3 [shape = 's32[1]{0}', space=sflag, size = 0x4, scoped, tag = 'scoped memory for ghost_forward.6']
    #allocation4 [shape = 'u8[1024]{0}', space=vmem, size = 0x400, scoped, tag = 'input window, operand 4, single buffered']
    #allocation5 [shape = 's32[1]{0}', space=sflag, size = 0x4, scoped, tag = 'scoped memory for ghost_forward.6']
    %10 = vsyncpa [#allocation3], 0
    %11 = vsyncpa [#allocation5], 0
    // Predicated region
    $region2: #{ghost_forward.6} parent=1 // pred_check
      _
    $region3: #{ghost_forward.6} parent=1 // pred_check_branch
      %13 = sbr.rel (0) target = $region5
    $region4: #{ghost_forward.6} parent=1 // pred_region
      _
    $region5: #{ghost_forward.6} parent=1 // pred_fallthru
      _
    // Predicated region
    $region6: #{ghost_forward.6} parent=1 // pred_check
      _
    $region7: #{ghost_forward.6} parent=1 // pred_check_branch
      %15 = sbr.rel (0) target = $region9
    $region8: #{ghost_forward.6} parent=1 // pred_region
      _
    $region9: #{ghost_forward.6} parent=1 // pred_fallthru
      _
    // Predicated region
    $region10: #{ghost_forward.6} parent=1 // pred_check
      _
    $region11: #{ghost_forward.6} parent=1 // pred_check_branch
      %17 = sbr.rel (0) target = $region13
    $region12: #{ghost_forward.6} parent=1 // pred_region
      %s19 = ssub.s32 16, 16
      %20 = vsyncadd [#allocation3], %s19
      %s22 = sshll.u32 [#allocation2], 4
      %s23 = int_to_ptr.vmem [resolvable:$true] %s22
      %25 = dma.hbm_to_vmem [thread:$0]  %s2, 16, %s23, [#allocation3]
    $region13: #{ghost_forward.6} parent=1 // pred_fallthru
      _
    // Predicated region
    $region14: #{ghost_forward.6} parent=1 // pred_check
      _
    $region15: #{ghost_forward.6} parent=1 // pred_check_branch
      %27 = sbr.rel (0) target = $region17
    $region16: #{ghost_forward.6} parent=1 // pred_region
      _
    $region17: #{ghost_forward.6} parent=1 // pred_fallthru
      _
    // Predicated region
    $region18: #{ghost_forward.6} parent=1 // pred_check
      _
    $region19: #{ghost_forward.6} parent=1 // pred_check_branch
      %29 = sbr.rel (0) target = $region21
    $region20: #{ghost_forward.6} parent=1 // pred_region
      %s31 = ssub.s32 32, 32
      %32 = vsyncadd [#allocation5], %s31
      %s34 = sshll.u32 [#allocation4], 4
      %s35 = int_to_ptr.vmem [resolvable:$true] %s34
      %37 = dma.hbm_to_vmem [thread:$0]  %s4, 32, %s35, [#allocation5]
    $region21: #{ghost_forward.6} parent=1 // pred_fallthru
      _
    // Predicated region
    $region22: #{ghost_forward.6} parent=1 // pred_check
      _
    $region23: #{ghost_forward.6} parent=1 // pred_check_branch
      %39 = sbr.rel (0) target = $region25
    $region24: #{ghost_forward.6} parent=1 // pred_region
      %40 = dma.done [#allocation3], 16
    $region25: #{ghost_forward.6} parent=1 // pred_fallthru
      _
    // Predicated region
    $region26: #{ghost_forward.6} parent=1 // pred_check
      _
    $region27: #{ghost_forward.6} parent=1 // pred_check_branch
      %42 = sbr.rel (0) target = $region29
    $region28: #{ghost_forward.6} parent=1 // pred_region
      %43 = dma.done [#allocation5], 32
    $region29: #{ghost_forward.6} parent=1 // pred_fallthru
      _
    %v44 = vld [vmem:[%s0] sm:$0xff]
    %v45 = vld [vmem:[%s0 + $0x8] sm:$0xff]
    %v46 = vld [vmem:[%s0 + $0x10] sm:$0xff]
    %v47 = vld [vmem:[%s0 + $0x18] sm:$0xff]
    %v48 = vld [vmem:[%s0 + $0x20] sm:$0xff]
    %v49 = vld [vmem:[%s0 + $0x28] sm:$0xff]
    %v50 = vld [vmem:[%s0 + $0x30] sm:$0xff]
    %v51 = vld [vmem:[%s0 + $0x38] sm:$0xff]
    %v52 = vld [vmem:[%s0 + $0x40] sm:$0xff]
    %v53 = vld [vmem:[%s0 + $0x48] sm:$0xff]
    %v54 = vld [vmem:[%s0 + $0x50] sm:$0xff]
    %v55 = vld [vmem:[%s0 + $0x58] sm:$0xff]
    %v56 = vld [vmem:[%s0 + $0x60] sm:$0xff]
    %v57 = vld [vmem:[%s0 + $0x68] sm:$0xff]
    %v58 = vld [vmem:[%s0 + $0x70] sm:$0xff]
    %v59 = vld [vmem:[%s0 + $0x78] sm:$0xff]
    %v60 = vld [vmem:[%s0 + $0x80] sm:$0xff]
    %v61 = vld [vmem:[%s0 + $0x88] sm:$0xff]
    %v62 = vld [vmem:[%s0 + $0x90] sm:$0xff]
    %v63 = vld [vmem:[%s0 + $0x98] sm:$0xff]
    %v64 = vld [vmem:[%s1] sm:$0xff]
    %v65 = vld [vmem:[%s1 + $0x8] sm:$0xff]
    %v66 = vld [vmem:[%s1 + $0x10] sm:$0xff]
    %v67 = vld [vmem:[%s1 + $0x18] sm:$0xff]
    %v68 = vld [vmem:[%s1 + $0x20] sm:$0xff]
    %v69 = vld [vmem:[%s1 + $0x28] sm:$0xff]
    %v70 = vld [vmem:[%s1 + $0x30] sm:$0xff]
    %v71 = vld [vmem:[%s1 + $0x38] sm:$0xff]
    %v72 = vld [vmem:[%s1 + $0x40] sm:$0xff]
    %v73 = vld [vmem:[%s1 + $0x48] sm:$0xff]
    %v74 = vld [vmem:[%s1 + $0x50] sm:$0xff]
    %v75 = vld [vmem:[%s1 + $0x58] sm:$0xff]
    %v76 = vld [vmem:[%s1 + $0x60] sm:$0xff]
    %v77 = vld [vmem:[%s1 + $0x68] sm:$0xff]
    %v78 = vld [vmem:[%s1 + $0x70] sm:$0xff]
    %v79 = vld [vmem:[%s1 + $0x78] sm:$0xff]
    %v80 = vld [vmem:[%s1 + $0x80] sm:$0xff]
    %v81 = vld [vmem:[%s1 + $0x88] sm:$0xff]
    %v82 = vld [vmem:[%s1 + $0x90] sm:$0xff]
    %v83 = vld [vmem:[%s1 + $0x98] sm:$0xff]
    %v84 = vld [vmem:[%s1 + $0xa0] sm:$0xff]
    %v85 = vld [vmem:[%s1 + $0xa8] sm:$0xff]
    %v86 = vld [vmem:[%s1 + $0xb0] sm:$0xff]
    %v87 = vld [vmem:[%s1 + $0xb8] sm:$0xff]
    %v88 = vld [vmem:[%s1 + $0xc0] sm:$0xff]
    %v89 = vld [vmem:[%s1 + $0xc8] sm:$0xff]
    %v90 = vld [vmem:[%s1 + $0xd0] sm:$0xff]
    %v91 = vld [vmem:[%s1 + $0xd8] sm:$0xff]
    %v92 = vld [vmem:[%s1 + $0xe0] sm:$0xff]
    %v93 = vld [vmem:[%s1 + $0xe8] sm:$0xff]
    %v94 = vld [vmem:[%s1 + $0xf0] sm:$0xff]
    %v95 = vld [vmem:[%s1 + $0xf8] sm:$0xff]
    %v96 = vld [vmem:[%s1 + $0x100] sm:$0xff]
    %v97 = vld [vmem:[%s1 + $0x108] sm:$0xff]
    %v98 = vld [vmem:[%s1 + $0x110] sm:$0xff]
    %v99 = vld [vmem:[%s1 + $0x118] sm:$0xff]
    %v100 = vld [vmem:[%s1 + $0x120] sm:$0xff]
    %v101 = vld [vmem:[%s1 + $0x128] sm:$0xff]
    %v102 = vld [vmem:[%s1 + $0x130] sm:$0xff]
    %v103 = vld [vmem:[%s1 + $0x138] sm:$0xff]
    %v104 = vld [vmem:[%s1 + $0x140] sm:$0xff]
    %v105 = vld [vmem:[%s1 + $0x148] sm:$0xff]
    %v106 = vld [vmem:[%s1 + $0x150] sm:$0xff]
    %v107 = vld [vmem:[%s1 + $0x158] sm:$0xff]
    %v108 = vld [vmem:[%s1 + $0x160] sm:$0xff]
    %v109 = vld [vmem:[%s1 + $0x168] sm:$0xff]
    %v110 = vld [vmem:[%s1 + $0x170] sm:$0xff]
    %v111 = vld [vmem:[%s1 + $0x178] sm:$0xff]
    %v112 = vld [vmem:[%s1 + $0x180] sm:$0xff]
    %v113 = vld [vmem:[%s1 + $0x188] sm:$0xff]
    %v114 = vld [vmem:[%s1 + $0x190] sm:$0xff]
    %v115 = vld [vmem:[%s1 + $0x198] sm:$0xff]
    %v116 = vld [vmem:[%s1 + $0x1a0] sm:$0xff]
    %v117 = vld [vmem:[%s1 + $0x1a8] sm:$0xff]
    %v118 = vld [vmem:[%s1 + $0x1b0] sm:$0xff]
    %v119 = vld [vmem:[%s1 + $0x1b8] sm:$0xff]
    %v120 = vld [vmem:[%s1 + $0x1c0] sm:$0xff]
    %v121 = vld [vmem:[%s1 + $0x1c8] sm:$0xff]
    %v122 = vld [vmem:[%s1 + $0x1d0] sm:$0xff]
    %v123 = vld [vmem:[%s1 + $0x1d8] sm:$0xff]
    %v124 = vld [vmem:[%s1 + $0x1e0] sm:$0xff]
    %v125 = vld [vmem:[%s1 + $0x1e8] sm:$0xff]
    %v126 = vld [vmem:[%s1 + $0x1f0] sm:$0xff]
    %v127 = vld [vmem:[%s1 + $0x1f8] sm:$0xff]
    %v128 = vld [vmem:[%s1 + $0x200] sm:$0xff]
    %v129 = vld [vmem:[%s1 + $0x208] sm:$0xff]
    %v130 = vld [vmem:[%s1 + $0x210] sm:$0xff]
    %v131 = vld [vmem:[%s1 + $0x218] sm:$0xff]
    %v132 = vld [vmem:[%s1 + $0x220] sm:$0xff]
    %v133 = vld [vmem:[%s1 + $0x228] sm:$0xff]
    %v134 = vld [vmem:[%s1 + $0x230] sm:$0xff]
    %v135 = vld [vmem:[%s1 + $0x238] sm:$0xff]
    %v136 = vld [vmem:[#allocation2] sm:$0x1]
    %v138 = vlaneseq
    %v139 = vshrl.u32 %v138, 7
    %v140 = vsub.s32 0, %v139
    %v141 = vrot.slane %v136, %v140
    %vm143 = vcmask 523264
    %v145 = vsel %vm143, %v48, 0
    %v148 = vsel %vm143, %v53, 0
    %v151 = vsel %vm143, %v58, 0
    %v154 = vsel %vm143, %v63, 0
    %156 = vmatprep.subr.mxu0 0.0
    %157 = vmatpush1.msra.mxu0 %v64
    %158 = vmatprep.subr.mxu0 0.0
    %159 = vmatpush1.msra.mxu0 %v65
    %160 = vmatprep.subr.mxu0 0.0
    %161 = vmatpush1.msra.mxu0 %v66
    %162 = vmatprep.subr.mxu0 0.0
    %163 = vmatpush1.msra.mxu0 %v67
    %164 = vmatprep.subr.mxu0 0.0
    %165 = vmatpush1.msra.mxu0 %v68
    %166 = vmatprep.subr.mxu0 0.0
    %167 = vmatpush1.msra.mxu0 %v69
    %168 = vmatprep.subr.mxu0 0.0
    %169 = vmatpush1.msra.mxu0 %v70
    %170 = vmatprep.subr.mxu0 0.0
    %171 = vmatpush1.msra.mxu0 %v71
    %172 = vmatprep.subr.mxu0 0.0
    %173 = vmatpush1.msra.mxu0 %v72
    %174 = vmatprep.subr.mxu0 0.0
    %175 = vmatpush1.msra.mxu0 %v73
    %176 = vmatprep.subr.mxu0 0.0
    %177 = vmatpush1.msra.mxu0 %v74
    %178 = vmatprep.subr.mxu0 0.0
    %179 = vmatpush1.msra.mxu0 %v75
    %180 = vmatprep.subr.mxu0 0.0
    %181 = vmatpush1.msra.mxu0 %v76
    %182 = vmatprep.subr.mxu0 0.0
    %183 = vmatpush1.msra.mxu0 %v77
    %184 = vmatprep.subr.mxu0 0.0
    %185 = vmatpush1.msra.mxu0 %v78
    %186 = vmatprep.subr.mxu0 0.0
    %187 = vmatpush1.msra.mxu0 %v79
    %188 = vmatprep.subr.mxu0 0.0
    %189 = vmatpush1.msra.mxu0 %v80
    %190 = vmatprep.subr.mxu0 0.0
    %191 = vmatpush1.msra.mxu0 %v81
    %192 = vmatprep.subr.mxu0 0.0
    %193 = vmatpush1.msra.mxu0 %v82
    %194 = vmatprep.subr.mxu0 0.0
    %195 = vmatpush1.msra.mxu0 %v83
    %196 = vmatprep.subr.mxu0 0.0
    %197 = vmatpush1.msra.mxu0 %v84
    %198 = vmatprep.subr.mxu0 0.0
    %199 = vmatpush1.msra.mxu0 %v85
    %200 = vmatprep.subr.mxu0 0.0
    %201 = vmatpush1.msra.mxu0 %v86
    %202 = vmatprep.subr.mxu0 0.0
    %203 = vmatpush1.msra.mxu0 %v87
    %204 = vmatprep.subr.mxu0 0.0
    %205 = vmatpush1.msra.mxu0 %v88
    %206 = vmatprep.subr.mxu0 0.0
    %207 = vmatpush1.msra.mxu0 %v89
    %208 = vmatprep.subr.mxu0 0.0
    %209 = vmatpush1.msra.mxu0 %v90
    %210 = vmatprep.subr.mxu0 0.0
    %211 = vmatpush1.msra.mxu0 %v91
    %212 = vmatprep.subr.mxu0 0.0
    %213 = vmatpush1.msra.mxu0 %v92
    %214 = vmatprep.subr.mxu0 0.0
    %215 = vmatpush1.msra.mxu0 %v93
    %216 = vmatprep.subr.mxu0 0.0
    %217 = vmatpush1.msra.mxu0 %v94
    %218 = vmatprep.subr.mxu0 0.0
    %219 = vmatpush1.msra.mxu0 %v95
    %220 = vmatprep.mubr.f32.mxu0 %v45
    %221 = vmatmul.mubr.f32.gmra.mrb[0].mxu0 %v44
    %v222 = vpop.f32.mrb[0].mxu0
    %v223 = vadd.f32 %v141, %v222
    %v224 = vpop.f32.mrb[0].mxu0
    %225 = vmatprep.mubr.f32.mxu0 %v50
    %226 = vmatmul.mubr.f32.gmra.mrb[0].mxu0 %v49
    %v227 = vpop.f32.mrb[0].mxu0
    %v228 = vadd.f32 %v141, %v227
    %v229 = vpop.f32.mrb[0].mxu0
    %230 = vmatprep.mubr.f32.mxu0 %v55
    %231 = vmatmul.mubr.f32.gmra.mrb[0].mxu0 %v54
    %v232 = vpop.f32.mrb[0].mxu0
    %v233 = vadd.f32 %v141, %v232
    %v234 = vpop.f32.mrb[0].mxu0
    %235 = vmatprep.mubr.f32.mxu0 %v60
    %236 = vmatmul.mubr.f32.gmra.mrb[0].mxu0 %v59
    %v237 = vpop.f32.mrb[0].mxu0
    %v238 = vadd.f32 %v141, %v237
    %v239 = vpop.f32.mrb[0].mxu0
    %240 = vdwg.mxu0
    %241 = vmatprep.subr.mxu0 0.0
    %242 = vmatpush1.msra.mxu0 %v96
    %243 = vmatprep.subr.mxu0 0.0
    %244 = vmatpush1.msra.mxu0 %v97
    %245 = vmatprep.subr.mxu0 0.0
    %246 = vmatpush1.msra.mxu0 %v98
    %247 = vmatprep.subr.mxu0 0.0
    %248 = vmatpush1.msra.mxu0 %v99
    %249 = vmatprep.subr.mxu0 0.0
    %250 = vmatpush1.msra.mxu0 %v100
    %251 = vmatprep.subr.mxu0 0.0
    %252 = vmatpush1.msra.mxu0 %v101
    %253 = vmatprep.subr.mxu0 0.0
    %254 = vmatpush1.msra.mxu0 %v102
    %255 = vmatprep.subr.mxu0 0.0
    %256 = vmatpush1.msra.mxu0 %v103
    %257 = vmatprep.subr.mxu0 0.0
    %258 = vmatpush1.msra.mxu0 %v104
    %259 = vmatprep.subr.mxu0 0.0
    %260 = vmatpush1.msra.mxu0 %v105
    %261 = vmatprep.subr.mxu0 0.0
    %262 = vmatpush1.msra.mxu0 %v106
    %263 = vmatprep.subr.mxu0 0.0
    %264 = vmatpush1.msra.mxu0 %v107
    %265 = vmatprep.subr.mxu0 0.0
    %266 = vmatpush1.msra.mxu0 %v108
    %267 = vmatprep.subr.mxu0 0.0
    %268 = vmatpush1.msra.mxu0 %v109
    %269 = vmatprep.subr.mxu0 0.0
    %270 = vmatpush1.msra.mxu0 %v110
    %271 = vmatprep.subr.mxu0 0.0
    %272 = vmatpush1.msra.mxu0 %v111
    %273 = vmatprep.subr.mxu0 0.0
    %274 = vmatpush1.msra.mxu0 %v112
    %275 = vmatprep.subr.mxu0 0.0
    %276 = vmatpush1.msra.mxu0 %v113
    %277 = vmatprep.subr.mxu0 0.0
    %278 = vmatpush1.msra.mxu0 %v114
    %279 = vmatprep.subr.mxu0 0.0
    %280 = vmatpush1.msra.mxu0 %v115
    %281 = vmatprep.subr.mxu0 0.0
    %282 = vmatpush1.msra.mxu0 %v116
    %283 = vmatprep.subr.mxu0 0.0
    %284 = vmatpush1.msra.mxu0 %v117
    %285 = vmatprep.subr.mxu0 0.0
    %286 = vmatpush1.msra.mxu0 %v118
    %287 = vmatprep.subr.mxu0 0.0
    %288 = vmatpush1.msra.mxu0 %v119
    %289 = vmatprep.subr.mxu0 0.0
    %290 = vmatpush1.msra.mxu0 %v120
    %291 = vmatprep.subr.mxu0 0.0
    %292 = vmatpush1.msra.mxu0 %v121
    %293 = vmatprep.subr.mxu0 0.0
    %294 = vmatpush1.msra.mxu0 %v122
    %295 = vmatprep.subr.mxu0 0.0
    %296 = vmatpush1.msra.mxu0 %v123
    %297 = vmatprep.subr.mxu0 0.0
    %298 = vmatpush1.msra.mxu0 %v124
    %299 = vmatprep.subr.mxu0 0.0
    %300 = vmatpush1.msra.mxu0 %v125
    %301 = vmatprep.subr.mxu0 0.0
    %302 = vmatpush1.msra.mxu0 %v126
    %303 = vmatprep.subr.mxu0 0.0
    %304 = vmatpush1.msra.mxu0 %v127
    %305 = vmatprep.mubr.f32.mxu0 %v47
    %306 = vmatmul.mubr.f32.gmra.mrb[0].mxu0 %v46
    %v307 = vpop.f32.mrb[0].mxu0
    %v308 = vadd.f32 %v223, %v307
    %v309 = vpop.f32.mrb[0].mxu0
    %310 = vmatprep.mubr.f32.mxu0 %v52
    %311 = vmatmul.mubr.f32.gmra.mrb[0].mxu0 %v51
    %v312 = vpop.f32.mrb[0].mxu0
    %v313 = vadd.f32 %v228, %v312
    %v314 = vpop.f32.mrb[0].mxu0
    %315 = vmatprep.mubr.f32.mxu0 %v57
    %316 = vmatmul.mubr.f32.gmra.mrb[0].mxu0 %v56
    %v317 = vpop.f32.mrb[0].mxu0
    %v318 = vadd.f32 %v233, %v317
    %v319 = vpop.f32.mrb[0].mxu0
    %320 = vmatprep.mubr.f32.mxu0 %v62
    %321 = vmatmul.mubr.f32.gmra.mrb[0].mxu0 %v61
    %v322 = vpop.f32.mrb[0].mxu0
    %v323 = vadd.f32 %v238, %v322
    %v324 = vpop.f32.mrb[0].mxu0
    %325 = vdwg.mxu0
    %326 = vmatprep.subr.mxu0 0.0
    %327 = vmatpush1.msra.mxu0 %v128
    %328 = vmatprep.subr.mxu0 0.0
    %329 = vmatpush1.msra.mxu0 %v129
    %330 = vmatprep.subr.mxu0 0.0
    %331 = vmatpush1.msra.mxu0 %v130
    %332 = vmatprep.subr.mxu0 0.0
    %333 = vmatpush1.msra.mxu0 %v131
    %334 = vmatprep.subr.mxu0 0.0
    %335 = vmatpush1.msra.mxu0 %v132
    %336 = vmatprep.subr.mxu0 0.0
    %337 = vmatpush1.msra.mxu0 %v133
    %338 = vmatprep.subr.mxu0 0.0
    %339 = vmatpush1.msra.mxu0 %v134
    %340 = vmatprep.subr.mxu0 0.0
    %341 = vmatpush1.msra.mxu0 %v135
    %342 = vmatprep.subr.mxu0 0.0
    %343 = vmatpush1.msra.mxu0 0.0
    %344 = vmatprep.subr.mxu0 0.0
    %345 = vmatpush1.msra.mxu0 0.0
    %346 = vmatprep.subr.mxu0 0.0
    %347 = vmatpush1.msra.mxu0 0.0
    %348 = vmatprep.subr.mxu0 0.0
    %349 = vmatpush1.msra.mxu0 0.0
    %350 = vmatprep.subr.mxu0 0.0
    %351 = vmatpush1.msra.mxu0 0.0
    %352 = vmatprep.subr.mxu0 0.0
    %353 = vmatpush1.msra.mxu0 0.0
    %354 = vmatprep.subr.mxu0 0.0
    %355 = vmatpush1.msra.mxu0 0.0
    %356 = vmatprep.subr.mxu0 0.0
    %357 = vmatpush1.msra.mxu0 0.0
    %358 = vmatprep.subr.mxu0 0.0
    %359 = vmatpush1.msra.mxu0 0.0
    %360 = vmatprep.subr.mxu0 0.0
    %361 = vmatpush1.msra.mxu0 0.0
    %362 = vmatprep.subr.mxu0 0.0
    %363 = vmatpush1.msra.mxu0 0.0
    %364 = vmatprep.subr.mxu0 0.0
    %365 = vmatpush1.msra.mxu0 0.0
    %366 = vmatprep.subr.mxu0 0.0
    %367 = vmatpush1.msra.mxu0 0.0
    %368 = vmatprep.subr.mxu0 0.0
    %369 = vmatpush1.msra.mxu0 0.0
    %370 = vmatprep.subr.mxu0 0.0
    %371 = vmatpush1.msra.mxu0 0.0
    %372 = vmatprep.subr.mxu0 0.0
    %373 = vmatpush1.msra.mxu0 0.0
    %374 = vmatprep.subr.mxu0 0.0
    %375 = vmatpush1.msra.mxu0 0.0
    %376 = vmatprep.subr.mxu0 0.0
    %377 = vmatpush1.msra.mxu0 0.0
    %378 = vmatprep.subr.mxu0 0.0
    %379 = vmatpush1.msra.mxu0 0.0
    %380 = vmatprep.subr.mxu0 0.0
    %381 = vmatpush1.msra.mxu0 0.0
    %382 = vmatprep.subr.mxu0 0.0
    %383 = vmatpush1.msra.mxu0 0.0
    %384 = vmatprep.subr.mxu0 0.0
    %385 = vmatpush1.msra.mxu0 0.0
    %386 = vmatprep.subr.mxu0 0.0
    %387 = vmatpush1.msra.mxu0 0.0
    %388 = vmatprep.subr.mxu0 0.0
    %389 = vmatpush1.msra.mxu0 0.0
    %390 = vmatprep.mubr.f32.mxu0 0.0
    %391 = vmatmul.mubr.f32.gmra.mrb[0].mxu0 %v145
    %v392 = vpop.f32.mrb[0].mxu0
    %v393 = vadd.f32 %v308, %v392
    %v394 = vpop.f32.mrb[0].mxu0
    %395 = vmatprep.mubr.f32.mxu0 0.0
    %396 = vmatmul.mubr.f32.gmra.mrb[0].mxu0 %v148
    %v397 = vpop.f32.mrb[0].mxu0
    %v398 = vadd.f32 %v313, %v397
    %v399 = vpop.f32.mrb[0].mxu0
    %400 = vmatprep.mubr.f32.mxu0 0.0
    %401 = vmatmul.mubr.f32.gmra.mrb[0].mxu0 %v151
    %v402 = vpop.f32.mrb[0].mxu0
    %v403 = vadd.f32 %v318, %v402
    %v404 = vpop.f32.mrb[0].mxu0
    %405 = vmatprep.mubr.f32.mxu0 0.0
    %406 = vmatmul.mubr.f32.gmra.mrb[0].mxu0 %v154
    %v407 = vpop.f32.mrb[0].mxu0
    %v408 = vadd.f32 %v323, %v407
    %v409 = vpop.f32.mrb[0].mxu0
    %410 = vdwg.mxu0
    %v411 = vmax.f32 %v393, 0.0
    %v412 = vmax.f32 %v398, 0.0
    %v413 = vmax.f32 %v403, 0.0
    %v414 = vmax.f32 %v408, 0.0
    %v415 = vadd.f32 %v411, %v412
    %v416 = vrot.slane %v415, 4
    %v417 = vadd.f32 %v415, %v416
    %v418 = vrot.slane %v417, 2
    %v419 = vadd.f32 %v417, %v418
    %v420 = vrot.slane %v419, 1
    %v421 = vadd.f32 %v419, %v420
    %v422 = vadd.f32 %v413, %v414
    %v423 = vrot.slane %v422, 4
    %v424 = vadd.f32 %v422, %v423
    %v425 = vrot.slane %v424, 2
    %v426 = vadd.f32 %v424, %v425
    %v427 = vrot.slane %v426, 1
    %v428 = vadd.f32 %v426, %v427
    %v429 = vrcp.pop 16.0
    %v430 = vmul.f32 %v421, %v429
    %v431 = vmul.f32 %v428, %v429
    %v432 = vld [vmem:[%s3] sm:$0xff]
    %v433 = vld [vmem:[%s3 + $0x8] sm:$0xff]
    %v434 = vld [vmem:[%s3 + $0x10] sm:$0xff]
    %v435 = vld [vmem:[%s3 + $0x18] sm:$0xff]
    %v436 = vld [vmem:[%s3 + $0x20] sm:$0xff]
    %v437 = vld [vmem:[%s3 + $0x28] sm:$0xff]
    %v438 = vld [vmem:[%s3 + $0x30] sm:$0xff]
    %v439 = vld [vmem:[%s3 + $0x38] sm:$0xff]
    %v440 = vld [vmem:[%s3 + $0x40] sm:$0xff]
    %v441 = vld [vmem:[%s3 + $0x48] sm:$0xff]
    %v442 = vld [vmem:[%s3 + $0x50] sm:$0xff]
    %v443 = vld [vmem:[%s3 + $0x58] sm:$0xff]
    %v444 = vld [vmem:[%s3 + $0x60] sm:$0xff]
    %v445 = vld [vmem:[%s3 + $0x68] sm:$0xff]
    %v446 = vld [vmem:[%s3 + $0x70] sm:$0xff]
    %v447 = vld [vmem:[%s3 + $0x78] sm:$0xff]
    %v448 = vld [vmem:[%s3 + $0x80] sm:$0xff]
    %v449 = vld [vmem:[%s3 + $0x88] sm:$0xff]
    %v450 = vld [vmem:[%s3 + $0x90] sm:$0xff]
    %v451 = vld [vmem:[%s3 + $0x98] sm:$0xff]
    %v452 = vld [vmem:[%s3 + $0xa0] sm:$0xff]
    %v453 = vld [vmem:[%s3 + $0xa8] sm:$0xff]
    %v454 = vld [vmem:[%s3 + $0xb0] sm:$0xff]
    %v455 = vld [vmem:[%s3 + $0xb8] sm:$0xff]
    %v456 = vld [vmem:[%s3 + $0xc0] sm:$0xff]
    %v457 = vld [vmem:[%s3 + $0xc8] sm:$0xff]
    %v458 = vld [vmem:[%s3 + $0xd0] sm:$0xff]
    %v459 = vld [vmem:[%s3 + $0xd8] sm:$0xff]
    %v460 = vld [vmem:[%s3 + $0xe0] sm:$0xff]
    %v461 = vld [vmem:[%s3 + $0xe8] sm:$0xff]
    %v462 = vld [vmem:[%s3 + $0xf0] sm:$0xff]
    %v463 = vld [vmem:[%s3 + $0xf8] sm:$0xff]
    %v464 = vld [vmem:[#allocation4] sm:$0x3]
    %v466 = vlaneseq
    %v467 = vshrl.u32 %v466, 7
    %v468 = vsub.s32 0, %v467
    %v469 = vrot.slane %v464, %v468
    %v470 = vlaneseq
    %v471 = vshrl.u32 %v470, 7
    %v472 = vsub.s32 1, %v471
    %v473 = vrot.slane %v464, %v472
    %vm478 = vcmask 1041409
    %v479 = vsel %vm478, %v431, %v430
    %481 = vmatprep.subr.mxu0 0.0
    %482 = vmatpush1.xpose.msra.mxu0 %v432
    %483 = vmatprep.subr.mxu0 0.0
    %484 = vmatpush1.xpose.msra.mxu0 %v433
    %485 = vmatprep.subr.mxu0 0.0
    %486 = vmatpush1.xpose.msra.mxu0 %v434
    %487 = vmatprep.subr.mxu0 0.0
    %488 = vmatpush1.xpose.msra.mxu0 %v435
    %489 = vmatprep.subr.mxu0 0.0
    %490 = vmatpush1.xpose.msra.mxu0 %v436
    %491 = vmatprep.subr.mxu0 0.0
    %492 = vmatpush1.xpose.msra.mxu0 %v437
    %493 = vmatprep.subr.mxu0 0.0
    %494 = vmatpush1.xpose.msra.mxu0 %v438
    %495 = vmatprep.subr.mxu0 0.0
    %496 = vmatpush1.xpose.msra.mxu0 %v439
    %497 = vmatprep.subr.mxu0 0.0
    %498 = vmatpush1.xpose.msra.mxu0 %v440
    %499 = vmatprep.subr.mxu0 0.0
    %500 = vmatpush1.xpose.msra.mxu0 %v441
    %501 = vmatprep.subr.mxu0 0.0
    %502 = vmatpush1.xpose.msra.mxu0 %v442
    %503 = vmatprep.subr.mxu0 0.0
    %504 = vmatpush1.xpose.msra.mxu0 %v443
    %505 = vmatprep.subr.mxu0 0.0
    %506 = vmatpush1.xpose.msra.mxu0 %v444
    %507 = vmatprep.subr.mxu0 0.0
    %508 = vmatpush1.xpose.msra.mxu0 %v445
    %509 = vmatprep.subr.mxu0 0.0
    %510 = vmatpush1.xpose.msra.mxu0 %v446
    %511 = vmatprep.subr.mxu0 0.0
    %512 = vmatpush1.xpose.msra.mxu0 %v447
    %513 = vmatprep.subr.mxu0 0.0
    %514 = vmatpush1.xpose.msra.mxu0 %v448
    %515 = vmatprep.subr.mxu0 0.0
    %516 = vmatpush1.xpose.msra.mxu0 %v449
    %517 = vmatprep.subr.mxu0 0.0
    %518 = vmatpush1.xpose.msra.mxu0 %v450
    %519 = vmatprep.subr.mxu0 0.0
    %520 = vmatpush1.xpose.msra.mxu0 %v451
    %521 = vmatprep.subr.mxu0 0.0
    %522 = vmatpush1.xpose.msra.mxu0 %v452
    %523 = vmatprep.subr.mxu0 0.0
    %524 = vmatpush1.xpose.msra.mxu0 %v453
    %525 = vmatprep.subr.mxu0 0.0
    %526 = vmatpush1.xpose.msra.mxu0 %v454
    %527 = vmatprep.subr.mxu0 0.0
    %528 = vmatpush1.xpose.msra.mxu0 %v455
    %529 = vmatprep.subr.mxu0 0.0
    %530 = vmatpush1.xpose.msra.mxu0 %v456
    %531 = vmatprep.subr.mxu0 0.0
    %532 = vmatpush1.xpose.msra.mxu0 %v457
    %533 = vmatprep.subr.mxu0 0.0
    %534 = vmatpush1.xpose.msra.mxu0 %v458
    %535 = vmatprep.subr.mxu0 0.0
    %536 = vmatpush1.xpose.msra.mxu0 %v459
    %537 = vmatprep.subr.mxu0 0.0
    %538 = vmatpush1.xpose.msra.mxu0 %v460
    %539 = vmatprep.subr.mxu0 0.0
    %540 = vmatpush1.xpose.msra.mxu0 %v461
    %541 = vmatprep.subr.mxu0 0.0
    %542 = vmatpush1.xpose.msra.mxu0 %v462
    %543 = vmatprep.subr.mxu0 0.0
    %544 = vmatpush1.xpose.msra.mxu0 %v463
    %545 = vmatprep.mubr.f32.mxu0 0.0
    %546 = vmatmul.mubr.f32.gmra.mrb[0].mxu0 %v479
    %v547 = vpop.f32.mrb[0].mxu0
    %v548 = vadd.f32 %v469, %v547
    %v549 = vpop.f32.mrb[0].mxu0
    %v550 = vadd.f32 %v473, %v549
    %551 = vdwg.mxu0
    %v554 = vcombine.low %v548, %v550
    %v556 = vunpack.c.l.s4 1983009808
    %v557 = vunpack.c.0.s8 %v556
    %v558 = vlaneseq
    %v559 = vshrl.u32 %v558, 7
    %v560 = vsub.s32 %v557, %v559
    %v561 = vrot.slane %v554, %v560
    %563 = vst [vmem:[%s5] sm:$0xf] %v561
    // Predicated region
    $region30: #{ghost_forward.6} parent=1 // pred_check
      _
    $region31: #{ghost_forward.6} parent=1 // pred_check_branch
      %565 = sbr.rel (0) target = $region33
    $region32: #{ghost_forward.6} parent=1 // pred_region
      _
    $region33: #{ghost_forward.6} parent=1 // pred_fallthru
      _
    // Predicated region
    $region34: #{ghost_forward.6} parent=1 // pred_check
      _
    $region35: #{ghost_forward.6} parent=1 // pred_check_branch
      %567 = sbr.rel (0) target = $region37
    $region36: #{ghost_forward.6} parent=1 // pred_region
      _
    $region37: #{ghost_forward.6} parent=1 // pred_fallthru
      _
    %568 = vsyncpa [#allocation3], 1
    %569 = vsyncpa [#allocation5], 1

// kernel: ghost_forward.7
$region0: #{ghost_forward.7}
  #allocation0 [shape = 'u32[]', space=smem, size = 0x4, offset = 0x4, fixed_abs, tag = 'smem constant byte address 0x4 - core index']
  #allocation1 [shape = 'u32[144,128]{1,0:T(1,128)}', space=vmem, size = 0x12000, scoped, tag = 'internal scratch']
  #allocation2 [shape = 'f32[16,256]{1,0:T(8,128)}', space=vmem, size = 0x4000, scoped, tag = 'scratch operand']
  %s0 = inlined_call_operand.vmem [shape: s32[16,1], index: 0, kind: input, shape index: {}]
  %s1 = inlined_call_operand.vmem [shape: f32[128,256], index: 1, kind: input, shape index: {}]
  %s2 = inlined_call_operand.vmem [shape: f32[2,256], index: 2, kind: input, shape index: {}]
  %s3 = inlined_call_operand.vmem [shape: f32[2,768,256], index: 3, kind: input, shape index: {}]
  %s4 = inlined_call_operand.vmem [shape: f32[2,1,768], index: 4, kind: input, shape index: {}]
  %s5 = inlined_call_operand.vmem [shape: f32[2,256,256], index: 5, kind: input, shape index: {}]
  %s6 = inlined_call_operand.vmem [shape: f32[2,1,256], index: 6, kind: input, shape index: {}]
  %s7 = inlined_call_operand.vmem [shape: f32[2,256,256], index: 7, kind: input, shape index: {}]
  %s8 = inlined_call_operand.vmem [shape: f32[2,1,256], index: 8, kind: input, shape index: {}]
  %s9 = inlined_call_operand.vmem [shape: f32[2,256,256], index: 9, kind: input, shape index: {}]
  %s10 = inlined_call_operand.vmem [shape: f32[2,1,256], index: 10, kind: input, shape index: {}]
  %s11 = inlined_call_operand.vmem [shape: f32[2,2048,256], index: 11, kind: input, shape index: {}]
  %s12 = inlined_call_operand.vmem [shape: f32[2,1,2048], index: 12, kind: input, shape index: {}]
  %s13 = inlined_call_operand.vmem [shape: f32[2,256,2048], index: 13, kind: input, shape index: {}]
  %s14 = inlined_call_operand.hbm [shape: f32[2,1,256], index: 14, kind: input, shape index: {}]
  %s15 = inlined_call_operand.hbm [shape: f32[2,1,256], index: 15, kind: input, shape index: {}]
  %s16 = inlined_call_operand.hbm [shape: f32[2,1,256], index: 16, kind: input, shape index: {}]
  %s17 = inlined_call_operand.hbm [shape: f32[2,1,256], index: 17, kind: input, shape index: {}]
  %s18 = inlined_call_operand.hbm [shape: f32[2,1,256], index: 18, kind: input, shape index: {}]
  %s19 = inlined_call_operand.hbm [shape: f32[2,1,256], index: 19, kind: input, shape index: {}]
  %s20 = inlined_call_operand.hbm [shape: f32[2,1,256], index: 20, kind: input, shape index: {}]
  %s21 = inlined_call_operand.vmem [shape: f32[128,256], index: 21, kind: input, shape index: {}]
  %s22 = inlined_call_operand.hbm [shape: f32[1,128], index: 22, kind: input, shape index: {}]
  %s23 = inlined_call_operand.hbm [shape: f32[16,128], index: 23, kind: output, shape index: {}]
  %s24 = sld [smem:[#allocation0]]
  $region165: #{ghost_forward.7} parent=0
    _
  %s26 = ssub.s32 1, %s24
  %s27 = scalar_select 0, %s26, %s24
  $region1: #{ghost_forward.7} parent=0
    #allocation3 [shape = 'u8[2048]{0}', space=vmem, size = 0x800, scoped, tag = 'input window, operand 14']
    #allocation4 [shape = 's32[2]{0}', space=sflag, size = 0x8, scoped, tag = 'scoped memory for ghost_forward.7']
    #allocation5 [shape = 's32[2]{0}', space=sflag, size = 0x8, scoped, tag = 'scoped memory for ghost_forward.7']
    #allocation6 [shape = 'u8[2048]{0}', space=vmem, size = 0x800, scoped, tag = 'input window, operand 15']
    #allocation7 [shape = 's32[2]{0}', space=sflag, size = 0x8, scoped, tag = 'scoped memory for ghost_forward.7']
    #allocation8 [shape = 'u8[2048]{0}', space=vmem, size = 0x800, scoped, tag = 'input window, operand 16']
    #allocation9 [shape = 'u8[2048]{0}', space=vmem, size = 0x800, scoped, tag = 'input window, operand 17']
    #allocation10 [shape = 's32[2]{0}', space=sflag, size = 0x8, scoped, tag = 'scoped memory for ghost_forward.7']
    #allocation11 [shape = 'u8[2048]{0}', space=vmem, size = 0x800, scoped, tag = 'input window, operand 18']
    #allocation12 [shape = 'u8[2048]{0}', space=vmem, size = 0x800, scoped, tag = 'input window, operand 19']
    #allocation13 [shape = 's32[2]{0}', space=sflag, size = 0x8, scoped, tag = 'scoped memory for ghost_forward.7']
    #allocation14 [shape = 'u8[2048]{0}', space=vmem, size = 0x800, scoped, tag = 'input window, operand 20']
    #allocation15 [shape = 'u8[512]{0}', space=vmem, size = 0x400, scoped, tag = 'input window, operand 22, single buffered']
    #allocation16 [shape = 's32[1]{0}', space=sflag, size = 0x4, scoped, tag = 'scoped memory for ghost_forward.7']
    #allocation17 [shape = 'u8[8192]{0}', space=vmem, size = 0x2000, scoped, tag = 'output window, operand 0, single buffered']
    %28 = vsyncpa [#allocation4], 0
    %s29 = scalar_lea.sflag [#allocation4], 1
    %30 = vsyncpa %s29, 0
    %31 = vsyncpa [#allocation7], 0
    %s32 = scalar_lea.sflag [#allocation7], 1
    %33 = vsyncpa %s32, 0
    %34 = vsyncpa [#allocation10], 0
    %s35 = scalar_lea.sflag [#allocation10], 1
    %36 = vsyncpa %s35, 0
    %37 = vsyncpa [#allocation13], 0
    %s38 = scalar_lea.sflag [#allocation13], 1
    %39 = vsyncpa %s38, 0
    %40 = vsyncpa [#allocation16], 0
    %41 = vsyncpa [#allocation5], 0
    loop: start=0, step=1, limit=4
    $region2: #{ghost_forward.7} parent=1 // loop_pre_header
      _
    $region3: #{ghost_forward.7} parent=1 // loop_header
      %s43 = sphi 0, %s47
      %p44 = scmp.ge.s32.totalorder %s43, 4
      %s51 = sphi 0, %s51
      %s53 = sphi 0, %s51
      %s54 = sphi 0, %s53
      %s68 = sphi 0, %s54
      %s72 = sphi 0, %s72
      %s74 = sphi 0, %s72
      %s75 = sphi 0, %s74
      %s89 = sphi 0, %s75
      %s93 = sphi 0, %s93
      %s95 = sphi 0, %s93
      %s96 = sphi 0, %s95
      %s110 = sphi 0, %s96
      %s116 = sphi 0, %s118
      %s119 = sphi 0, %s116
      %s120 = sphi 0, %s119
      %s136 = sphi 0, %s120
      %s142 = sphi 0, %s144
      %s145 = sphi 0, %s142
      %s146 = sphi 0, %s145
      %s162 = sphi 0, %s146
      %s168 = sphi 0, %s170
      %s171 = sphi 0, %s168
      %s172 = sphi 0, %s171
      %s188 = sphi 0, %s172
      %s194 = sphi 0, %s196
      %s197 = sphi 0, %s194
      %s198 = sphi 0, %s197
      %s214 = sphi 0, %s198
      %s220 = sphi 0, %s222
      %s223 = sphi 0, %s220
      %s224 = sphi 0, %s223
      %s240 = sphi 0, %s224
      %s246 = sphi 0, %s248
      %s249 = sphi 0, %s246
      %s250 = sphi 0, %s249
      %s266 = sphi 0, %s250
      %s272 = sphi 0, %s274
      %s275 = sphi 0, %s272
      %s276 = sphi 0, %s275
      %s292 = sphi 0, %s276
      %s298 = sphi 0, %s300
      %s301 = sphi 0, %s298
      %s302 = sphi 0, %s301
      %s318 = sphi 0, %s302
      %s324 = sphi 0, %s326
      %s327 = sphi 0, %s324
      %s328 = sphi 0, %s327
      %s344 = sphi 0, %s328
      %s350 = sphi 0, %s352
      %s353 = sphi 0, %s350
      %s354 = sphi 0, %s353
      %s370 = sphi 0, %s354
      %s376 = sphi 0, %s378
      %s379 = sphi 0, %s376
      %s380 = sphi 0, %s379
      %s396 = sphi 0, %s380
      %s402 = sphi 0, %s404
      %s405 = sphi 0, %s402
      %s406 = sphi 0, %s405
      %s422 = sphi 0, %s406
      %s428 = sphi 0, %s430
      %s431 = sphi 0, %s428
      %s432 = sphi 0, %s431
      %s448 = sphi 0, %s432
      %s454 = sphi 0, %s456
      %s457 = sphi 0, %s454
      %s458 = sphi 0, %s457
      %s474 = sphi 0, %s458
      %s480 = sphi 0, %s482
      %s483 = sphi 0, %s480
      %s484 = sphi 0, %s483
      %s500 = sphi 0, %s484
      %s506 = sphi 0, %s508
      %s509 = sphi 0, %s506
      %s510 = sphi 0, %s509
      %s526 = sphi 0, %s510
      %s532 = sphi 0, %s534
      %s535 = sphi 0, %s532
      %s536 = sphi 0, %s535
      %s552 = sphi 0, %s536
      %s558 = sphi 0, %s560
      %s561 = sphi 0, %s558
      %s562 = sphi 0, %s561
      %s578 = sphi 0, %s562
      %s582 = sphi 0, %s582
      %s584 = sphi 0, %s582
      %s585 = sphi 0, %s584
      %s599 = sphi 0, %s585
      %s603 = sphi 0, %s603
      %s605 = sphi 0, %s603
      %s606 = sphi 0, %s605
      %s620 = sphi 0, %s606
      %s624 = sphi 0, %s624
      %s626 = sphi 0, %s624
      %s627 = sphi 0, %s626
      %s641 = sphi 0, %s627
    $region4: #{ghost_forward.7} parent=1 // loop_header_branch
      %46 = sbr.rel (%p44) target = $region8
    $region5: #{ghost_forward.7} parent=1 // loop_body
      %s48 = ssub.s32 %s43, 1
      %s49 = ssub.s32 %s43, 2
      %s50 = sadd.s32 %s43, 1
      %s52 = sadd.s32 %s51, 1
      %p55 = scmp.eq.s32.totalorder %s43, 1
      %p56 = scmp.ne.s32.totalorder %s51, %s53
      %p57 = scmp.eq.s32.totalorder %s43, 0
      %p58 = por %p56, %p57
      %p59 = scmp.ne.s32.totalorder %s51, %s53
      %p60 = scmp.eq.s32.totalorder %s48, 1
      %p61 = por %p59, %p60
      %p62 = scmp.ne.s32.totalorder %s53, %s54
      %p63 = scmp.eq.s32.totalorder %s48, 0
      %p64 = por %p62, %p63
      %p65 = scmp.ne.s32.totalorder %s53, %s54
      %p66 = scmp.eq.s32.totalorder %s49, 1
      %p67 = por %p65, %p66
      %p69 = scmp.ne.s32.totalorder %s54, %s68
      %p70 = scmp.eq.s32.totalorder %s49, 0
      %p71 = por %p69, %p70
      %s73 = sadd.s32 %s72, 1
      %p76 = scmp.eq.s32.totalorder %s43, 1
      %p77 = scmp.ne.s32.totalorder %s72, %s74
      %p78 = scmp.eq.s32.totalorder %s43, 0
      %p79 = por %p77, %p78
      %p80 = scmp.ne.s32.totalorder %s72, %s74
      %p81 = scmp.eq.s32.totalorder %s48, 1
      %p82 = por %p80, %p81
      %p83 = scmp.ne.s32.totalorder %s74, %s75
      %p84 = scmp.eq.s32.totalorder %s48, 0
      %p85 = por %p83, %p84
      %p86 = scmp.ne.s32.totalorder %s74, %s75
      %p87 = scmp.eq.s32.totalorder %s49, 1
      %p88 = por %p86, %p87
      %p90 = scmp.ne.s32.totalorder %s75, %s89
      %p91 = scmp.eq.s32.totalorder %s49, 0
      %p92 = por %p90, %p91
      %s94 = sadd.s32 %s93, 1
      %p97 = scmp.eq.s32.totalorder %s43, 1
      %p98 = scmp.ne.s32.totalorder %s93, %s95
      %p99 = scmp.eq.s32.totalorder %s43, 0
      %p100 = por %p98, %p99
      %p101 = scmp.ne.s32.totalorder %s93, %s95
      %p102 = scmp.eq.s32.totalorder %s48, 1
      %p103 = por %p101, %p102
      %p104 = scmp.ne.s32.totalorder %s95, %s96
      %p105 = scmp.eq.s32.totalorder %s48, 0
      %p106 = por %p104, %p105
      %p107 = scmp.ne.s32.totalorder %s95, %s96
      %p108 = scmp.eq.s32.totalorder %s49, 1
      %p109 = por %p107, %p108
      %p111 = scmp.ne.s32.totalorder %s96, %s110
      %p112 = scmp.eq.s32.totalorder %s49, 0
      %p113 = por %p111, %p112
      %s114 = ssub.s32 %s43, %s50
      %p115 = scmp.eq.s32.totalorder %s114, 0
      %s117 = sadd.s32 %s116, 1
      %s118 = scalar_select %p115, %s116, %s117
      %p121 = pneg %p115
      %p122 = scmp.eq.s32.totalorder %s43, 1
      %p123 = por %p121, %p122
      %p124 = scmp.ne.s32.totalorder %s116, %s119
      %p125 = scmp.eq.s32.totalorder %s43, 0
      %p126 = por %p124, %p125
      %p127 = scmp.ne.s32.totalorder %s116, %s119
      %p128 = scmp.eq.s32.totalorder %s48, 1
      %p129 = por %p127, %p128
      %p130 = scmp.ne.s32.totalorder %s119, %s120
      %p131 = scmp.eq.s32.totalorder %s48, 0
      %p132 = por %p130, %p131
      %p133 = scmp.ne.s32.totalorder %s119, %s120
      %p134 = scmp.eq.s32.totalorder %s49, 1
      %p135 = por %p133, %p134
      %p137 = scmp.ne.s32.totalorder %s120, %s136
      %p138 = scmp.eq.s32.totalorder %s49, 0
      %p139 = por %p137, %p138
      %s140 = ssub.s32 %s43, %s50
      %p141 = scmp.eq.s32.totalorder %s140, 0
      %s143 = sadd.s32 %s142, 1
      %s144 = scalar_select %p141, %s142, %s143
      %p147 = pneg %p141
      %p148 = scmp.eq.s32.totalorder %s43, 1
      %p149 = por %p147, %p148
      %p150 = scmp.ne.s32.totalorder %s142, %s145
      %p151 = scmp.eq.s32.totalorder %s43, 0
      %p152 = por %p150, %p151
      %p153 = scmp.ne.s32.totalorder %s142, %s145
      %p154 = scmp.eq.s32.totalorder %s48, 1
      %p155 = por %p153, %p154
      %p156 = scmp.ne.s32.totalorder %s145, %s146
      %p157 = scmp.eq.s32.totalorder %s48, 0
      %p158 = por %p156, %p157
      %p159 = scmp.ne.s32.totalorder %s145, %s146
      %p160 = scmp.eq.s32.totalorder %s49, 1
      %p161 = por %p159, %p160
      %p163 = scmp.ne.s32.totalorder %s146, %s162
      %p164 = scmp.eq.s32.totalorder %s49, 0
      %p165 = por %p163, %p164
      %s166 = ssub.s32 %s43, %s50
      %p167 = scmp.eq.s32.totalorder %s166, 0
      %s169 = sadd.s32 %s168, 1
      %s170 = scalar_select %p167, %s168, %s169
      %p173 = pneg %p167
      %p174 = scmp.eq.s32.totalorder %s43, 1
      %p175 = por %p173, %p174
      %p176 = scmp.ne.s32.totalorder %s168, %s171
      %p177 = scmp.eq.s32.totalorder %s43, 0
      %p178 = por %p176, %p177
      %p179 = scmp.ne.s32.totalorder %s168, %s171
      %p180 = scmp.eq.s32.totalorder %s48, 1
      %p181 = por %p179, %p180
      %p182 = scmp.ne.s32.totalorder %s171, %s172
      %p183 = scmp.eq.s32.totalorder %s48, 0
      %p184 = por %p182, %p183
      %p185 = scmp.ne.s32.totalorder %s171, %s172
      %p186 = scmp.eq.s32.totalorder %s49, 1
      %p187 = por %p185, %p186
      %p189 = scmp.ne.s32.totalorder %s172, %s188
      %p190 = scmp.eq.s32.totalorder %s49, 0
      %p191 = por %p189, %p190
      %s192 = ssub.s32 %s43, %s50
      %p193 = scmp.eq.s32.totalorder %s192, 0
      %s195 = sadd.s32 %s194, 1
      %s196 = scalar_select %p193, %s194, %s195
      %p199 = pneg %p193
      %p200 = scmp.eq.s32.totalorder %s43, 1
      %p201 = por %p199, %p200
      %p202 = scmp.ne.s32.totalorder %s194, %s197
      %p203 = scmp.eq.s32.totalorder %s43, 0
      %p204 = por %p202, %p203
      %p205 = scmp.ne.s32.totalorder %s194, %s197
      %p206 = scmp.eq.s32.totalorder %s48, 1
      %p207 = por %p205, %p206
      %p208 = scmp.ne.s32.totalorder %s197, %s198
      %p209 = scmp.eq.s32.totalorder %s48, 0
      %p210 = por %p208, %p209
      %p211 = scmp.ne.s32.totalorder %s197, %s198
      %p212 = scmp.eq.s32.totalorder %s49, 1
      %p213 = por %p211, %p212
      %p215 = scmp.ne.s32.totalorder %s198, %s214
      %p216 = scmp.eq.s32.totalorder %s49, 0
      %p217 = por %p215, %p216
      %s218 = ssub.s32 %s43, %s50
      %p219 = scmp.eq.s32.totalorder %s218, 0
      %s221 = sadd.s32 %s220, 1
      %s222 = scalar_select %p219, %s220, %s221
      %p225 = pneg %p219
      %p226 = scmp.eq.s32.totalorder %s43, 1
      %p227 = por %p225, %p226
      %p228 = scmp.ne.s32.totalorder %s220, %s223
      %p229 = scmp.eq.s32.totalorder %s43, 0
      %p230 = por %p228, %p229
      %p231 = scmp.ne.s32.totalorder %s220, %s223
      %p232 = scmp.eq.s32.totalorder %s48, 1
      %p233 = por %p231, %p232
      %p234 = scmp.ne.s32.totalorder %s223, %s224
      %p235 = scmp.eq.s32.totalorder %s48, 0
      %p236 = por %p234, %p235
      %p237 = scmp.ne.s32.totalorder %s223, %s224
      %p238 = scmp.eq.s32.totalorder %s49, 1
      %p239 = por %p237, %p238
      %p241 = scmp.ne.s32.totalorder %s224, %s240
      %p242 = scmp.eq.s32.totalorder %s49, 0
      %p243 = por %p241, %p242
      %s244 = ssub.s32 %s43, %s50
      %p245 = scmp.eq.s32.totalorder %s244, 0
      %s247 = sadd.s32 %s246, 1
      %s248 = scalar_select %p245, %s246, %s247
      %p251 = pneg %p245
      %p252 = scmp.eq.s32.totalorder %s43, 1
      %p253 = por %p251, %p252
      %p254 = scmp.ne.s32.totalorder %s246, %s249
      %p255 = scmp.eq.s32.totalorder %s43, 0
      %p256 = por %p254, %p255
      %p257 = scmp.ne.s32.totalorder %s246, %s249
      %p258 = scmp.eq.s32.totalorder %s48, 1
      %p259 = por %p257, %p258
      %p260 = scmp.ne.s32.totalorder %s249, %s250
      %p261 = scmp.eq.s32.totalorder %s48, 0
      %p262 = por %p260, %p261
      %p263 = scmp.ne.s32.totalorder %s249, %s250
      %p264 = scmp.eq.s32.totalorder %s49, 1
      %p265 = por %p263, %p264
      %p267 = scmp.ne.s32.totalorder %s250, %s266
      %p268 = scmp.eq.s32.totalorder %s49, 0
      %p269 = por %p267, %p268
      %s270 = ssub.s32 %s43, %s50
      %p271 = scmp.eq.s32.totalorder %s270, 0
      %s273 = sadd.s32 %s272, 1
      %s274 = scalar_select %p271, %s272, %s273
      %p277 = pneg %p271
      %p278 = scmp.eq.s32.totalorder %s43, 1
      %p279 = por %p277, %p278
      %p280 = scmp.ne.s32.totalorder %s272, %s275
      %p281 = scmp.eq.s32.totalorder %s43, 0
      %p282 = por %p280, %p281
      %p283 = scmp.ne.s32.totalorder %s272, %s275
      %p284 = scmp.eq.s32.totalorder %s48, 1
      %p285 = por %p283, %p284
      %p286 = scmp.ne.s32.totalorder %s275, %s276
      %p287 = scmp.eq.s32.totalorder %s48, 0
      %p288 = por %p286, %p287
      %p289 = scmp.ne.s32.totalorder %s275, %s276
      %p290 = scmp.eq.s32.totalorder %s49, 1
      %p291 = por %p289, %p290
      %p293 = scmp.ne.s32.totalorder %s276, %s292
      %p294 = scmp.eq.s32.totalorder %s49, 0
      %p295 = por %p293, %p294
      %s296 = ssub.s32 %s43, %s50
      %p297 = scmp.eq.s32.totalorder %s296, 0
      %s299 = sadd.s32 %s298, 1
      %s300 = scalar_select %p297, %s298, %s299
      %p303 = pneg %p297
      %p304 = scmp.eq.s32.totalorder %s43, 1
      %p305 = por %p303, %p304
      %p306 = scmp.ne.s32.totalorder %s298, %s301
      %p307 = scmp.eq.s32.totalorder %s43, 0
      %p308 = por %p306, %p307
      %p309 = scmp.ne.s32.totalorder %s298, %s301
      %p310 = scmp.eq.s32.totalorder %s48, 1
      %p311 = por %p309, %p310
      %p312 = scmp.ne.s32.totalorder %s301, %s302
      %p313 = scmp.eq.s32.totalorder %s48, 0
      %p314 = por %p312, %p313
      %p315 = scmp.ne.s32.totalorder %s301, %s302
      %p316 = scmp.eq.s32.totalorder %s49, 1
      %p317 = por %p315, %p316
      %p319 = scmp.ne.s32.totalorder %s302, %s318
      %p320 = scmp.eq.s32.totalorder %s49, 0
      %p321 = por %p319, %p320
      %s322 = ssub.s32 %s43, %s50
      %p323 = scmp.eq.s32.totalorder %s322, 0
      %s325 = sadd.s32 %s324, 1
      %s326 = scalar_select %p323, %s324, %s325
      %p329 = pneg %p323
      %p330 = scmp.eq.s32.totalorder %s43, 1
      %p331 = por %p329, %p330
      %p332 = scmp.ne.s32.totalorder %s324, %s327
      %p333 = scmp.eq.s32.totalorder %s43, 0
      %p334 = por %p332, %p333
      %p335 = scmp.ne.s32.totalorder %s324, %s327
      %p336 = scmp.eq.s32.totalorder %s48, 1
      %p337 = por %p335, %p336
      %p338 = scmp.ne.s32.totalorder %s327, %s328
      %p339 = scmp.eq.s32.totalorder %s48, 0
      %p340 = por %p338, %p339
      %p341 = scmp.ne.s32.totalorder %s327, %s328
      %p342 = scmp.eq.s32.totalorder %s49, 1
      %p343 = por %p341, %p342
      %p345 = scmp.ne.s32.totalorder %s328, %s344
      %p346 = scmp.eq.s32.totalorder %s49, 0
      %p347 = por %p345, %p346
      %s348 = ssub.s32 %s43, %s50
      %p349 = scmp.eq.s32.totalorder %s348, 0
      %s351 = sadd.s32 %s350, 1
      %s352 = scalar_select %p349, %s350, %s351
      %p355 = pneg %p349
      %p356 = scmp.eq.s32.totalorder %s43, 1
      %p357 = por %p355, %p356
      %p358 = scmp.ne.s32.totalorder %s350, %s353
      %p359 = scmp.eq.s32.totalorder %s43, 0
      %p360 = por %p358, %p359
      %p361 = scmp.ne.s32.totalorder %s350, %s353
      %p362 = scmp.eq.s32.totalorder %s48, 1
      %p363 = por %p361, %p362
      %p364 = scmp.ne.s32.totalorder %s353, %s354
      %p365 = scmp.eq.s32.totalorder %s48, 0
      %p366 = por %p364, %p365
      %p367 = scmp.ne.s32.totalorder %s353, %s354
      %p368 = scmp.eq.s32.totalorder %s49, 1
      %p369 = por %p367, %p368
      %p371 = scmp.ne.s32.totalorder %s354, %s370
      %p372 = scmp.eq.s32.totalorder %s49, 0
      %p373 = por %p371, %p372
      %s374 = ssub.s32 %s43, %s50
      %p375 = scmp.eq.s32.totalorder %s374, 0
      %s377 = sadd.s32 %s376, 1
      %s378 = scalar_select %p375, %s376, %s377
      %p381 = pneg %p375
      %p382 = scmp.eq.s32.totalorder %s43, 1
      %p383 = por %p381, %p382
      %p384 = scmp.ne.s32.totalorder %s376, %s379
      %p385 = scmp.eq.s32.totalorder %s43, 0
      %p386 = por %p384, %p385
      %p387 = scmp.ne.s32.totalorder %s376, %s379
      %p388 = scmp.eq.s32.totalorder %s48, 1
      %p389 = por %p387, %p388
      %p390 = scmp.ne.s32.totalorder %s379, %s380
      %p391 = scmp.eq.s32.totalorder %s48, 0
      %p392 = por %p390, %p391
      %p393 = scmp.ne.s32.totalorder %s379, %s380
      %p394 = scmp.eq.s32.totalorder %s49, 1
      %p395 = por %p393, %p394
      %p397 = scmp.ne.s32.totalorder %s380, %s396
      %p398 = scmp.eq.s32.totalorder %s49, 0
      %p399 = por %p397, %p398
      %s400 = ssub.s32 %s43, %s50
      %p401 = scmp.eq.s32.totalorder %s400, 0
      %s403 = sadd.s32 %s402, 1
      %s404 = scalar_select %p401, %s402, %s403
      %p407 = pneg %p401
      %p408 = scmp.eq.s32.totalorder %s43, 1
      %p409 = por %p407, %p408
      %p410 = scmp.ne.s32.totalorder %s402, %s405
      %p411 = scmp.eq.s32.totalorder %s43, 0
      %p412 = por %p410, %p411
      %p413 = scmp.ne.s32.totalorder %s402, %s405
      %p414 = scmp.eq.s32.totalorder %s48, 1
      %p415 = por %p413, %p414
      %p416 = scmp.ne.s32.totalorder %s405, %s406
      %p417 = scmp.eq.s32.totalorder %s48, 0
      %p418 = por %p416, %p417
      %p419 = scmp.ne.s32.totalorder %s405, %s406
      %p420 = scmp.eq.s32.totalorder %s49, 1
      %p421 = por %p419, %p420
      %p423 = scmp.ne.s32.totalorder %s406, %s422
      %p424 = scmp.eq.s32.totalorder %s49, 0
      %p425 = por %p423, %p424
      %s426 = ssub.s32 %s43, %s50
      %p427 = scmp.eq.s32.totalorder %s426, 0
      %s429 = sadd.s32 %s428, 1
      %s430 = scalar_select %p427, %s428, %s429
      %p433 = pneg %p427
      %p434 = scmp.eq.s32.totalorder %s43, 1
      %p435 = por %p433, %p434
      %p436 = scmp.ne.s32.totalorder %s428, %s431
      %p437 = scmp.eq.s32.totalorder %s43, 0
      %p438 = por %p436, %p437
      %p439 = scmp.ne.s32.totalorder %s428, %s431
      %p440 = scmp.eq.s32.totalorder %s48, 1
      %p441 = por %p439, %p440
      %p442 = scmp.ne.s32.totalorder %s431, %s432
      %p443 = scmp.eq.s32.totalorder %s48, 0
      %p444 = por %p442, %p443
      %p445 = scmp.ne.s32.totalorder %s431, %s432
      %p446 = scmp.eq.s32.totalorder %s49, 1
      %p447 = por %p445, %p446
      %p449 = scmp.ne.s32.totalorder %s432, %s448
      %p450 = scmp.eq.s32.totalorder %s49, 0
      %p451 = por %p449, %p450
      %s452 = ssub.s32 %s43, %s50
      %p453 = scmp.eq.s32.totalorder %s452, 0
      %s455 = sadd.s32 %s454, 1
      %s456 = scalar_select %p453, %s454, %s455
      %p459 = pneg %p453
      %p460 = scmp.eq.s32.totalorder %s43, 1
      %p461 = por %p459, %p460
      %p462 = scmp.ne.s32.totalorder %s454, %s457
      %p463 = scmp.eq.s32.totalorder %s43, 0
      %p464 = por %p462, %p463
      %p465 = scmp.ne.s32.totalorder %s454, %s457
      %p466 = scmp.eq.s32.totalorder %s48, 1
      %p467 = por %p465, %p466
      %p468 = scmp.ne.s32.totalorder %s457, %s458
      %p469 = scmp.eq.s32.totalorder %s48, 0
      %p470 = por %p468, %p469
      %p471 = scmp.ne.s32.totalorder %s457, %s458
      %p472 = scmp.eq.s32.totalorder %s49, 1
      %p473 = por %p471, %p472
      %p475 = scmp.ne.s32.totalorder %s458, %s474
      %p476 = scmp.eq.s32.totalorder %s49, 0
      %p477 = por %p475, %p476
      %s478 = ssub.s32 %s43, %s50
      %p479 = scmp.eq.s32.totalorder %s478, 0
      %s481 = sadd.s32 %s480, 1
      %s482 = scalar_select %p479, %s480, %s481
      %p485 = pneg %p479
      %p486 = scmp.eq.s32.totalorder %s43, 1
      %p487 = por %p485, %p486
      %p488 = scmp.ne.s32.totalorder %s480, %s483
      %p489 = scmp.eq.s32.totalorder %s43, 0
      %p490 = por %p488, %p489
      %p491 = scmp.ne.s32.totalorder %s480, %s483
      %p492 = scmp.eq.s32.totalorder %s48, 1
      %p493 = por %p491, %p492
      %p494 = scmp.ne.s32.totalorder %s483, %s484
      %p495 = scmp.eq.s32.totalorder %s48, 0
      %p496 = por %p494, %p495
      %p497 = scmp.ne.s32.totalorder %s483, %s484
      %p498 = scmp.eq.s32.totalorder %s49, 1
      %p499 = por %p497, %p498
      %p501 = scmp.ne.s32.totalorder %s484, %s500
      %p502 = scmp.eq.s32.totalorder %s49, 0
      %p503 = por %p501, %p502
      %s504 = ssub.s32 %s43, %s50
      %p505 = scmp.eq.s32.totalorder %s504, 0
      %s507 = sadd.s32 %s506, 1
      %s508 = scalar_select %p505, %s506, %s507
      %p511 = pneg %p505
      %p512 = scmp.eq.s32.totalorder %s43, 1
      %p513 = por %p511, %p512
      %p514 = scmp.ne.s32.totalorder %s506, %s509
      %p515 = scmp.eq.s32.totalorder %s43, 0
      %p516 = por %p514, %p515
      %p517 = scmp.ne.s32.totalorder %s506, %s509
      %p518 = scmp.eq.s32.totalorder %s48, 1
      %p519 = por %p517, %p518
      %p520 = scmp.ne.s32.totalorder %s509, %s510
      %p521 = scmp.eq.s32.totalorder %s48, 0
      %p522 = por %p520, %p521
      %p523 = scmp.ne.s32.totalorder %s509, %s510
      %p524 = scmp.eq.s32.totalorder %s49, 1
      %p525 = por %p523, %p524
      %p527 = scmp.ne.s32.totalorder %s510, %s526
      %p528 = scmp.eq.s32.totalorder %s49, 0
      %p529 = por %p527, %p528
      %s530 = ssub.s32 %s43, %s50
      %p531 = scmp.eq.s32.totalorder %s530, 0
      %s533 = sadd.s32 %s532, 1
      %s534 = scalar_select %p531, %s532, %s533
      %p537 = pneg %p531
      %p538 = scmp.eq.s32.totalorder %s43, 1
      %p539 = por %p537, %p538
      %p540 = scmp.ne.s32.totalorder %s532, %s535
      %p541 = scmp.eq.s32.totalorder %s43, 0
      %p542 = por %p540, %p541
      %p543 = scmp.ne.s32.totalorder %s532, %s535
      %p544 = scmp.eq.s32.totalorder %s48, 1
      %p545 = por %p543, %p544
      %p546 = scmp.ne.s32.totalorder %s535, %s536
      %p547 = scmp.eq.s32.totalorder %s48, 0
      %p548 = por %p546, %p547
      %p549 = scmp.ne.s32.totalorder %s535, %s536
      %p550 = scmp.eq.s32.totalorder %s49, 1
      %p551 = por %p549, %p550
      %p553 = scmp.ne.s32.totalorder %s536, %s552
      %p554 = scmp.eq.s32.totalorder %s49, 0
      %p555 = por %p553, %p554
      %s556 = ssub.s32 %s43, %s50
      %p557 = scmp.eq.s32.totalorder %s556, 0
      %s559 = sadd.s32 %s558, 1
      %s560 = scalar_select %p557, %s558, %s559
      %p563 = pneg %p557
      %p564 = scmp.eq.s32.totalorder %s43, 1
      %p565 = por %p563, %p564
      %p566 = scmp.ne.s32.totalorder %s558, %s561
      %p567 = scmp.eq.s32.totalorder %s43, 0
      %p568 = por %p566, %p567
      %p569 = scmp.ne.s32.totalorder %s558, %s561
      %p570 = scmp.eq.s32.totalorder %s48, 1
      %p571 = por %p569, %p570
      %p572 = scmp.ne.s32.totalorder %s561, %s562
      %p573 = scmp.eq.s32.totalorder %s48, 0
      %p574 = por %p572, %p573
      %p575 = scmp.ne.s32.totalorder %s561, %s562
      %p576 = scmp.eq.s32.totalorder %s49, 1
      %p577 = por %p575, %p576
      %p579 = scmp.ne.s32.totalorder %s562, %s578
      %p580 = scmp.eq.s32.totalorder %s49, 0
      %p581 = por %p579, %p580
      %s583 = sadd.s32 %s582, 1
      %p586 = scmp.eq.s32.totalorder %s43, 1
      %p587 = scmp.ne.s32.totalorder %s582, %s584
      %p588 = scmp.eq.s32.totalorder %s43, 0
      %p589 = por %p587, %p588
      %p590 = scmp.ne.s32.totalorder %s582, %s584
      %p591 = scmp.eq.s32.totalorder %s48, 1
      %p592 = por %p590, %p591
      %p593 = scmp.ne.s32.totalorder %s584, %s585
      %p594 = scmp.eq.s32.totalorder %s48, 0
      %p595 = por %p593, %p594
      %p596 = scmp.ne.s32.totalorder %s584, %s585
      %p597 = scmp.eq.s32.totalorder %s49, 1
      %p598 = por %p596, %p597
      %p600 = scmp.ne.s32.totalorder %s585, %s599
      %p601 = scmp.eq.s32.totalorder %s49, 0
      %p602 = por %p600, %p601
      %s604 = sadd.s32 %s603, 1
      %p607 = scmp.eq.s32.totalorder %s43, 1
      %p608 = scmp.ne.s32.totalorder %s603, %s605
      %p609 = scmp.eq.s32.totalorder %s43, 0
      %p610 = por %p608, %p609
      %p611 = scmp.ne.s32.totalorder %s603, %s605
      %p612 = scmp.eq.s32.totalorder %s48, 1
      %p613 = por %p611, %p612
      %p614 = scmp.ne.s32.totalorder %s605, %s606
      %p615 = scmp.eq.s32.totalorder %s48, 0
      %p616 = por %p614, %p615
      %p617 = scmp.ne.s32.totalorder %s605, %s606
      %p618 = scmp.eq.s32.totalorder %s49, 1
      %p619 = por %p617, %p618
      %p621 = scmp.ne.s32.totalorder %s606, %s620
      %p622 = scmp.eq.s32.totalorder %s49, 0
      %p623 = por %p621, %p622
      %s625 = sadd.s32 %s624, 1
      %p628 = scmp.eq.s32.totalorder %s43, 1
      %p629 = scmp.ne.s32.totalorder %s624, %s626
      %p630 = scmp.eq.s32.totalorder %s43, 0
      %p631 = por %p629, %p630
      %p632 = scmp.ne.s32.totalorder %s624, %s626
      %p633 = scmp.eq.s32.totalorder %s48, 1
      %p634 = por %p632, %p633
      %p635 = scmp.ne.s32.totalorder %s626, %s627
      %p636 = scmp.eq.s32.totalorder %s48, 0
      %p637 = por %p635, %p636
      %p638 = scmp.ne.s32.totalorder %s626, %s627
      %p639 = scmp.eq.s32.totalorder %s49, 1
      %p640 = por %p638, %p639
      %p642 = scmp.ne.s32.totalorder %s627, %s641
      %p643 = scmp.eq.s32.totalorder %s49, 0
      %p644 = por %p642, %p643
      %p645 = scmp.le.s32.totalorder 1, %s43
      %p646 = scmp.lt.s32.totalorder %s43, 3
      %p647 = pnand %p645, %p646
      %p648 = pneg %p647
      // Predicated region
      $region9: #{ghost_forward.7} parent=5 // pred_check
        _
      $region10: #{ghost_forward.7} parent=5 // pred_check_branch
        %650 = sbr.rel (%p647) target = $region12
      $region11: #{ghost_forward.7} parent=5 // pred_region
        %s651 = ssub.s32 %s43, 1
        // Predicated region
        $region13: #{ghost_forward.7} parent=11 // pred_check
          %p652 = pneg %p64
        $region14: #{ghost_forward.7} parent=11 // pred_check_branch
          %654 = sbr.rel (%p652) target = $region16
        $region15: #{ghost_forward.7} parent=11 // pred_region
          _
        $region16: #{ghost_forward.7} parent=11 // pred_fallthru
          _
        // Predicated region
        $region17: #{ghost_forward.7} parent=11 // pred_check
          %p655 = pneg %p85
        $region18: #{ghost_forward.7} parent=11 // pred_check_branch
          %657 = sbr.rel (%p655) target = $region20
        $region19: #{ghost_forward.7} parent=11 // pred_region
          _
        $region20: #{ghost_forward.7} parent=11 // pred_fallthru
          _
        // Predicated region
        $region21: #{ghost_forward.7} parent=11 // pred_check
          %p658 = pneg %p106
        $region22: #{ghost_forward.7} parent=11 // pred_check_branch
          %660 = sbr.rel (%p658) target = $region24
        $region23: #{ghost_forward.7} parent=11 // pred_region
          _
        $region24: #{ghost_forward.7} parent=11 // pred_fallthru
          _
        // Predicated region
        $region25: #{ghost_forward.7} parent=11 // pred_check
          %p661 = pneg %p595
        $region26: #{ghost_forward.7} parent=11 // pred_check_branch
          %663 = sbr.rel (%p661) target = $region28
        $region27: #{ghost_forward.7} parent=11 // pred_region
          _
        $region28: #{ghost_forward.7} parent=11 // pred_fallthru
          _
        // Predicated region
        $region29: #{ghost_forward.7} parent=11 // pred_check
          %p664 = pneg %p616
        $region30: #{ghost_forward.7} parent=11 // pred_check_branch
          %666 = sbr.rel (%p664) target = $region32
        $region31: #{ghost_forward.7} parent=11 // pred_region
          %s668 = ssub.s32 16, 16
          %669 = vsyncadd [#allocation16], %s668
          %s671 = sshll.u32 [#allocation15], 4
          %s672 = int_to_ptr.vmem [resolvable:$true] %s671
          %674 = dma.hbm_to_vmem [thread:$0]  %s22, 16, %s672, [#allocation16]
        $region32: #{ghost_forward.7} parent=11 // pred_fallthru
          _
      $region12: #{ghost_forward.7} parent=5 // pred_fallthru
        _
      %p675 = scmp.lt.s32.totalorder %s43, 2
      // Predicated region
      $region33: #{ghost_forward.7} parent=5 // pred_check
        %p676 = pneg %p675
      $region34: #{ghost_forward.7} parent=5 // pred_check_branch
        %678 = sbr.rel (%p676) target = $region36
      $region35: #{ghost_forward.7} parent=5 // pred_region
        // Predicated region
        $region37: #{ghost_forward.7} parent=35 // pred_check
          %p679 = pneg %p126
        $region38: #{ghost_forward.7} parent=35 // pred_check_branch
          %681 = sbr.rel (%p679) target = $region40
        $region39: #{ghost_forward.7} parent=35 // pred_region
          %p682 = scmp.lt.s32.totalorder %s43, 1
          %s683 = scalar_select %p682, %s43, 1
          %s684 = smul.addr %s683, 192
          %s685 = smul.addr %s684, 8
          %s686 = scalar_lea.vmem %s3, %s685
        $region40: #{ghost_forward.7} parent=35 // pred_fallthru
          _
        // Predicated region
        $region41: #{ghost_forward.7} parent=35 // pred_check
          %p687 = pneg %p152
        $region42: #{ghost_forward.7} parent=35 // pred_check_branch
          %689 = sbr.rel (%p687) target = $region44
        $region43: #{ghost_forward.7} parent=35 // pred_region
          %p690 = scmp.lt.s32.totalorder %s43, 1
          %s691 = scalar_select %p690, %s43, 1
          %s692 = smul.addr %s691, 6
          %s693 = scalar_lea.vmem %s4, %s692
        $region44: #{ghost_forward.7} parent=35 // pred_fallthru
          _
        // Predicated region
        $region45: #{ghost_forward.7} parent=35 // pred_check
          %p694 = pneg %p178
        $region46: #{ghost_forward.7} parent=35 // pred_check_branch
          %696 = sbr.rel (%p694) target = $region48
        $region47: #{ghost_forward.7} parent=35 // pred_region
          %p697 = scmp.lt.s32.totalorder %s43, 1
          %s698 = scalar_select %p697, %s43, 1
          %s699 = smul.addr %s698, 64
          %s700 = smul.addr %s699, 8
          %s701 = scalar_lea.vmem %s5, %s700
        $region48: #{ghost_forward.7} parent=35 // pred_fallthru
          _
        // Predicated region
        $region49: #{ghost_forward.7} parent=35 // pred_check
          %p702 = pneg %p204
        $region50: #{ghost_forward.7} parent=35 // pred_check_branch
          %704 = sbr.rel (%p702) target = $region52
        $region51: #{ghost_forward.7} parent=35 // pred_region
          %p705 = scmp.lt.s32.totalorder %s43, 1
          %s706 = scalar_select %p705, %s43, 1
          %s707 = smul.addr %s706, 2
          %s708 = scalar_lea.vmem %s6, %s707
        $region52: #{ghost_forward.7} parent=35 // pred_fallthru
          _
        // Predicated region
        $region53: #{ghost_forward.7} parent=35 // pred_check
          %p709 = pneg %p230
        $region54: #{ghost_forward.7} parent=35 // pred_check_branch
          %711 = sbr.rel (%p709) target = $region56
        $region55: #{ghost_forward.7} parent=35 // pred_region
          %p712 = scmp.lt.s32.totalorder %s43, 1
          %s713 = scalar_select %p712, %s43, 1
          %s714 = smul.addr %s713, 64
          %s715 = smul.addr %s714, 8
          %s716 = scalar_lea.vmem %s7, %s715
        $region56: #{ghost_forward.7} parent=35 // pred_fallthru
          _
        // Predicated region
        $region57: #{ghost_forward.7} parent=35 // pred_check
          %p717 = pneg %p256
        $region58: #{ghost_forward.7} parent=35 // pred_check_branch
          %719 = sbr.rel (%p717) target = $region60
        $region59: #{ghost_forward.7} parent=35 // pred_region
          %p720 = scmp.lt.s32.totalorder %s43, 1
          %s721 = scalar_select %p720, %s43, 1
          %s722 = smul.addr %s721, 2
          %s723 = scalar_lea.vmem %s8, %s722
        $region60: #{ghost_forward.7} parent=35 // pred_fallthru
          _
        // Predicated region
        $region61: #{ghost_forward.7} parent=35 // pred_check
          %p724 = pneg %p282
        $region62: #{ghost_forward.7} parent=35 // pred_check_branch
          %726 = sbr.rel (%p724) target = $region64
        $region63: #{ghost_forward.7} parent=35 // pred_region
          %p727 = scmp.lt.s32.totalorder %s43, 1
          %s728 = scalar_select %p727, %s43, 1
          %s729 = smul.addr %s728, 64
          %s730 = smul.addr %s729, 8
          %s731 = scalar_lea.vmem %s9, %s730
        $region64: #{ghost_forward.7} parent=35 // pred_fallthru
          _
        // Predicated region
        $region65: #{ghost_forward.7} parent=35 // pred_check
          %p732 = pneg %p308
        $region66: #{ghost_forward.7} parent=35 // pred_check_branch
          %734 = sbr.rel (%p732) target = $region68
        $region67: #{ghost_forward.7} parent=35 // pred_region
          %p735 = scmp.lt.s32.totalorder %s43, 1
          %s736 = scalar_select %p735, %s43, 1
          %s737 = smul.addr %s736, 2
          %s738 = scalar_lea.vmem %s10, %s737
        $region68: #{ghost_forward.7} parent=35 // pred_fallthru
          _
        // Predicated region
        $region69: #{ghost_forward.7} parent=35 // pred_check
          %p739 = pneg %p334
        $region70: #{ghost_forward.7} parent=35 // pred_check_branch
          %741 = sbr.rel (%p739) target = $region72
        $region71: #{ghost_forward.7} parent=35 // pred_region
          %p742 = scmp.lt.s32.totalorder %s43, 1
          %s743 = scalar_select %p742, %s43, 1
          %s744 = smul.addr %s743, 512
          %s745 = smul.addr %s744, 8
          %s746 = scalar_lea.vmem %s11, %s745
        $region72: #{ghost_forward.7} parent=35 // pred_fallthru
          _
        // Predicated region
        $region73: #{ghost_forward.7} parent=35 // pred_check
          %p747 = pneg %p360
        $region74: #{ghost_forward.7} parent=35 // pred_check_branch
          %749 = sbr.rel (%p747) target = $region76
        $region75: #{ghost_forward.7} parent=35 // pred_region
          %p750 = scmp.lt.s32.totalorder %s43, 1
          %s751 = scalar_select %p750, %s43, 1
          %s752 = smul.addr %s751, 16
          %s753 = scalar_lea.vmem %s12, %s752
        $region76: #{ghost_forward.7} parent=35 // pred_fallthru
          _
        // Predicated region
        $region77: #{ghost_forward.7} parent=35 // pred_check
          %p754 = pneg %p386
        $region78: #{ghost_forward.7} parent=35 // pred_check_branch
          %756 = sbr.rel (%p754) target = $region80
        $region79: #{ghost_forward.7} parent=35 // pred_region
          %p757 = scmp.lt.s32.totalorder %s43, 1
          %s758 = scalar_select %p757, %s43, 1
          %s759 = smul.addr %s758, 512
          %s760 = smul.addr %s759, 8
          %s761 = scalar_lea.vmem %s13, %s760
        $region80: #{ghost_forward.7} parent=35 // pred_fallthru
          _
        // Predicated region
        $region81: #{ghost_forward.7} parent=35 // pred_check
          %p762 = pneg %p412
        $region82: #{ghost_forward.7} parent=35 // pred_check_branch
          %764 = sbr.rel (%p762) target = $region84
        $region83: #{ghost_forward.7} parent=35 // pred_region
          %s765 = sand.u32 %s402, 1
          %s766 = scalar_lea.sflag [#allocation4], %s765
          %s767 = sand.u32 %s402, 1
          %s768 = smul.addr %s767, 2
          %s769 = scalar_lea.vmem [#allocation3], %s768
          %s771 = ssub.s32 32, 32
          %772 = vsyncadd %s766, %s771
          %s773 = smul.addr %s43, 2
          %s774 = smul.addr %s773, 16
          %s775 = scalar_lea.hbm %s14, %s774
          %s777 = sshll.u32 %s769, 4
          %s778 = int_to_ptr.vmem [resolvable:$true] %s777
          %780 = dma.hbm_to_vmem [thread:$0]  %s775, 32, %s778, %s766
        $region84: #{ghost_forward.7} parent=35 // pred_fallthru
          _
        // Predicated region
        $region85: #{ghost_forward.7} parent=35 // pred_check
          %p781 = pneg %p438
        $region86: #{ghost_forward.7} parent=35 // pred_check_branch
          %783 = sbr.rel (%p781) target = $region88
        $region87: #{ghost_forward.7} parent=35 // pred_region
          %s784 = sand.u32 %s43, 1
          %s785 = scalar_lea.sflag [#allocation7], %s784
          %s786 = sand.u32 %s428, 1
          %s787 = smul.addr %s786, 2
          %s788 = scalar_lea.vmem [#allocation6], %s787
          %s790 = ssub.s32 32, 32
          %791 = vsyncadd %s785, %s790
          %s792 = smul.addr %s43, 2
          %s793 = smul.addr %s792, 16
          %s794 = scalar_lea.hbm %s15, %s793
          %s796 = sshll.u32 %s788, 4
          %s797 = int_to_ptr.vmem [resolvable:$true] %s796
          %799 = dma.hbm_to_vmem [thread:$0]  %s794, 32, %s797, %s785
        $region88: #{ghost_forward.7} parent=35 // pred_fallthru
          _
        // Predicated region
        $region89: #{ghost_forward.7} parent=35 // pred_check
          %p800 = pneg %p464
        $region90: #{ghost_forward.7} parent=35 // pred_check_branch
          %802 = sbr.rel (%p800) target = $region92
        $region91: #{ghost_forward.7} parent=35 // pred_region
          %s803 = sand.u32 %s43, 1
          %s804 = scalar_lea.sflag [#allocation7], %s803
          %s805 = sand.u32 %s454, 1
          %s806 = smul.addr %s805, 2
          %s807 = scalar_lea.vmem [#allocation8], %s806
          %s809 = ssub.s32 32, 32
          %810 = vsyncadd %s804, %s809
          %s811 = smul.addr %s43, 2
          %s812 = smul.addr %s811, 16
          %s813 = scalar_lea.hbm %s16, %s812
          %s815 = sshll.u32 %s807, 4
          %s816 = int_to_ptr.vmem [resolvable:$true] %s815
          %818 = dma.hbm_to_vmem [thread:$0]  %s813, 32, %s816, %s804
        $region92: #{ghost_forward.7} parent=35 // pred_fallthru
          _
        // Predicated region
        $region93: #{ghost_forward.7} parent=35 // pred_check
          %p819 = pneg %p490
        $region94: #{ghost_forward.7} parent=35 // pred_check_branch
          %821 = sbr.rel (%p819) target = $region96
        $region95: #{ghost_forward.7} parent=35 // pred_region
          %s822 = sand.u32 %s43, 1
          %s823 = scalar_lea.sflag [#allocation10], %s822
          %s824 = sand.u32 %s480, 1
          %s825 = smul.addr %s824, 2
          %s826 = scalar_lea.vmem [#allocation9], %s825
          %s828 = ssub.s32 32, 32
          %829 = vsyncadd %s823, %s828
          %s830 = smul.addr %s43, 2
          %s831 = smul.addr %s830, 16
          %s832 = scalar_lea.hbm %s17, %s831
          %s834 = sshll.u32 %s826, 4
          %s835 = int_to_ptr.vmem [resolvable:$true] %s834
          %837 = dma.hbm_to_vmem [thread:$0]  %s832, 32, %s835, %s823
        $region96: #{ghost_forward.7} parent=35 // pred_fallthru
          _
        // Predicated region
        $region97: #{ghost_forward.7} parent=35 // pred_check
          %p838 = pneg %p516
        $region98: #{ghost_forward.7} parent=35 // pred_check_branch
          %840 = sbr.rel (%p838) target = $region100
        $region99: #{ghost_forward.7} parent=35 // pred_region
          %s841 = sand.u32 %s43, 1
          %s842 = scalar_lea.sflag [#allocation10], %s841
          %s843 = sand.u32 %s506, 1
          %s844 = smul.addr %s843, 2
          %s845 = scalar_lea.vmem [#allocation11], %s844
          %s847 = ssub.s32 32, 32
          %848 = vsyncadd %s842, %s847
          %s849 = smul.addr %s43, 2
          %s850 = smul.addr %s849, 16
          %s851 = scalar_lea.hbm %s18, %s850
          %s853 = sshll.u32 %s845, 4
          %s854 = int_to_ptr.vmem [resolvable:$true] %s853
          %856 = dma.hbm_to_vmem [thread:$0]  %s851, 32, %s854, %s842
        $region100: #{ghost_forward.7} parent=35 // pred_fallthru
          _
        // Predicated region
        $region101: #{ghost_forward.7} parent=35 // pred_check
          %p857 = pneg %p542
        $region102: #{ghost_forward.7} parent=35 // pred_check_branch
          %859 = sbr.rel (%p857) target = $region104
        $region103: #{ghost_forward.7} parent=35 // pred_region
          %s860 = sand.u32 %s43, 1
          %s861 = scalar_lea.sflag [#allocation13], %s860
          %s862 = sand.u32 %s532, 1
          %s863 = smul.addr %s862, 2
          %s864 = scalar_lea.vmem [#allocation12], %s863
          %s866 = ssub.s32 32, 32
          %867 = vsyncadd %s861, %s866
          %s868 = smul.addr %s43, 2
          %s869 = smul.addr %s868, 16
          %s870 = scalar_lea.hbm %s19, %s869
          %s872 = sshll.u32 %s864, 4
          %s873 = int_to_ptr.vmem [resolvable:$true] %s872
          %875 = dma.hbm_to_vmem [thread:$0]  %s870, 32, %s873, %s861
        $region104: #{ghost_forward.7} parent=35 // pred_fallthru
          _
        // Predicated region
        $region105: #{ghost_forward.7} parent=35 // pred_check
          %p876 = pneg %p568
        $region106: #{ghost_forward.7} parent=35 // pred_check_branch
          %878 = sbr.rel (%p876) target = $region108
        $region107: #{ghost_forward.7} parent=35 // pred_region
          %s879 = sand.u32 %s43, 1
          %s880 = scalar_lea.sflag [#allocation13], %s879
          %s881 = sand.u32 %s558, 1
          %s882 = smul.addr %s881, 2
          %s883 = scalar_lea.vmem [#allocation14], %s882
          %s885 = ssub.s32 32, 32
          %886 = vsyncadd %s880, %s885
          %s887 = smul.addr %s43, 2
          %s888 = smul.addr %s887, 16
          %s889 = scalar_lea.hbm %s20, %s888
          %s891 = sshll.u32 %s883, 4
          %s892 = int_to_ptr.vmem [resolvable:$true] %s891
          %894 = dma.hbm_to_vmem [thread:$0]  %s889, 32, %s892, %s880
        $region108: #{ghost_forward.7} parent=35 // pred_fallthru
          _
      $region36: #{ghost_forward.7} parent=5 // pred_fallthru
        _
      %p895 = scmp.le.s32.totalorder 1, %s43
      %p896 = scmp.lt.s32.totalorder %s43, 3
      %p897 = pnand %p895, %p896
      %p898 = pneg %p897
      // Predicated region
      $region109: #{ghost_forward.7} parent=5 // pred_check
        _
      $region110: #{ghost_forward.7} parent=5 // pred_check_branch
        %900 = sbr.rel (%p897) target = $region112
      $region111: #{ghost_forward.7} parent=5 // pred_region
        %s901 = ssub.s32 %s43, 1
        %s902 = sand.u32 %s405, 1
        %s903 = scalar_lea.sflag [#allocation4], %s902
        %s904 = sand.u32 %s405, 1
        %s905 = smul.addr %s904, 2
        %s906 = scalar_lea.vmem [#allocation3], %s905
        // Predicated region
        $region113: #{ghost_forward.7} parent=111 // pred_check
          %p907 = pneg %p418
        $region114: #{ghost_forward.7} parent=111 // pred_check_branch
          %909 = sbr.rel (%p907) target = $region116
        $region115: #{ghost_forward.7} parent=111 // pred_region
          %910 = dma.done %s903, 32
        $region116: #{ghost_forward.7} parent=111 // pred_fallthru
          _
        %s911 = sand.u32 %s48, 1
        %s912 = scalar_lea.sflag [#allocation7], %s911
        %s913 = sand.u32 %s431, 1
        %s914 = smul.addr %s913, 2
        %s915 = scalar_lea.vmem [#allocation6], %s914
        // Predicated region
        $region117: #{ghost_forward.7} parent=111 // pred_check
          %p916 = pneg %p444
        $region118: #{ghost_forward.7} parent=111 // pred_check_branch
          %918 = sbr.rel (%p916) target = $region120
        $region119: #{ghost_forward.7} parent=111 // pred_region
          %919 = dma.done %s912, 32
        $region120: #{ghost_forward.7} parent=111 // pred_fallthru
          _
        %s920 = sand.u32 %s48, 1
        %s921 = scalar_lea.sflag [#allocation7], %s920
        %s922 = sand.u32 %s457, 1
        %s923 = smul.addr %s922, 2
        %s924 = scalar_lea.vmem [#allocation8], %s923
        // Predicated region
        $region121: #{ghost_forward.7} parent=111 // pred_check
          %p925 = pneg %p470
        $region122: #{ghost_forward.7} parent=111 // pred_check_branch
          %927 = sbr.rel (%p925) target = $region124
        $region123: #{ghost_forward.7} parent=111 // pred_region
          %928 = dma.done %s921, 32
        $region124: #{ghost_forward.7} parent=111 // pred_fallthru
          _
        %s929 = sand.u32 %s48, 1
        %s930 = scalar_lea.sflag [#allocation10], %s929
        %s931 = sand.u32 %s483, 1
        %s932 = smul.addr %s931, 2
        %s933 = scalar_lea.vmem [#allocation9], %s932
        // Predicated region
        $region125: #{ghost_forward.7} parent=111 // pred_check
          %p934 = pneg %p496
        $region126: #{ghost_forward.7} parent=111 // pred_check_branch
          %936 = sbr.rel (%p934) target = $region128
        $region127: #{ghost_forward.7} parent=111 // pred_region
          %937 = dma.done %s930, 32
        $region128: #{ghost_forward.7} parent=111 // pred_fallthru
          _
        %s938 = sand.u32 %s48, 1
        %s939 = scalar_lea.sflag [#allocation10], %s938
        %s940 = sand.u32 %s509, 1
        %s941 = smul.addr %s940, 2
        %s942 = scalar_lea.vmem [#allocation11], %s941
        // Predicated region
        $region129: #{ghost_forward.7} parent=111 // pred_check
          %p943 = pneg %p522
        $region130: #{ghost_forward.7} parent=111 // pred_check_branch
          %945 = sbr.rel (%p943) target = $region132
        $region131: #{ghost_forward.7} parent=111 // pred_region
          %946 = dma.done %s939, 32
        $region132: #{ghost_forward.7} parent=111 // pred_fallthru
          _
        %s947 = sand.u32 %s48, 1
        %s948 = scalar_lea.sflag [#allocation13], %s947
        %s949 = sand.u32 %s535, 1
        %s950 = smul.addr %s949, 2
        %s951 = scalar_lea.vmem [#allocation12], %s950
        // Predicated region
        $region133: #{ghost_forward.7} parent=111 // pred_check
          %p952 = pneg %p548
        $region134: #{ghost_forward.7} parent=111 // pred_check_branch
          %954 = sbr.rel (%p952) target = $region136
        $region135: #{ghost_forward.7} parent=111 // pred_region
          %955 = dma.done %s948, 32
        $region136: #{ghost_forward.7} parent=111 // pred_fallthru
          _
        %s956 = sand.u32 %s48, 1
        %s957 = scalar_lea.sflag [#allocation13], %s956
        %s958 = sand.u32 %s561, 1
        %s959 = smul.addr %s958, 2
        %s960 = scalar_lea.vmem [#allocation14], %s959
        // Predicated region
        $region137: #{ghost_forward.7} parent=111 // pred_check
          %p961 = pneg %p574
        $region138: #{ghost_forward.7} parent=111 // pred_check_branch
          %963 = sbr.rel (%p961) target = $region140
        $region139: #{ghost_forward.7} parent=111 // pred_region
          %964 = dma.done %s957, 32
        $region140: #{ghost_forward.7} parent=111 // pred_fallthru
          _
        // Predicated region
        $region141: #{ghost_forward.7} parent=111 // pred_check
          %p965 = pneg %p616
        $region142: #{ghost_forward.7} parent=111 // pred_check_branch
          %967 = sbr.rel (%p965) target = $region144
        $region143: #{ghost_forward.7} parent=111 // pred_region
          %968 = dma.done [#allocation16], 16
        $region144: #{ghost_forward.7} parent=111 // pred_fallthru
          _
        %p969 = pneg %p64
        %p970 = pneg %p61
        %p971 = pneg %p85
        %p972 = pneg %p82
        %p973 = pneg %p106
        %p974 = pneg %p103
        %p975 = scmp.lt.s32.totalorder %s48, 1
        %s976 = scalar_select %p975, %s48, 1
        %s977 = smul.addr %s976, 192
        %s978 = smul.addr %s977, 8
        %s979 = scalar_lea.vmem %s3, %s978
        %p980 = pneg %p132
        %p981 = pneg %p129
        %p982 = scmp.lt.s32.totalorder %s48, 1
        %s983 = scalar_select %p982, %s48, 1
        %s984 = smul.addr %s983, 6
        %s985 = scalar_lea.vmem %s4, %s984
        %p986 = pneg %p158
        %p987 = pneg %p155
        %p988 = scmp.lt.s32.totalorder %s48, 1
        %s989 = scalar_select %p988, %s48, 1
        %s990 = smul.addr %s989, 64
        %s991 = smul.addr %s990, 8
        %s992 = scalar_lea.vmem %s5, %s991
        %p993 = pneg %p184
        %p994 = pneg %p181
        %p995 = scmp.lt.s32.totalorder %s48, 1
        %s996 = scalar_select %p995, %s48, 1
        %s997 = smul.addr %s996, 2
        %s998 = scalar_lea.vmem %s6, %s997
        %p999 = pneg %p210
        %p1000 = pneg %p207
        %p1001 = scmp.lt.s32.totalorder %s48, 1
        %s1002 = scalar_select %p1001, %s48, 1
        %s1003 = smul.addr %s1002, 64
        %s1004 = smul.addr %s1003, 8
        %s1005 = scalar_lea.vmem %s7, %s1004
        %p1006 = pneg %p236
        %p1007 = pneg %p233
        %p1008 = scmp.lt.s32.totalorder %s48, 1
        %s1009 = scalar_select %p1008, %s48, 1
        %s1010 = smul.addr %s1009, 2
        %s1011 = scalar_lea.vmem %s8, %s1010
        %p1012 = pneg %p262
        %p1013 = pneg %p259
        %p1014 = scmp.lt.s32.totalorder %s48, 1
        %s1015 = scalar_select %p1014, %s48, 1
        %s1016 = smul.addr %s1015, 64
        %s1017 = smul.addr %s1016, 8
        %s1018 = scalar_lea.vmem %s9, %s1017
        %p1019 = pneg %p288
        %p1020 = pneg %p285
        %p1021 = scmp.lt.s32.totalorder %s48, 1
        %s1022 = scalar_select %p1021, %s48, 1
        %s1023 = smul.addr %s1022, 2
        %s1024 = scalar_lea.vmem %s10, %s1023
        %p1025 = pneg %p314
        %p1026 = pneg %p311
        %p1027 = scmp.lt.s32.totalorder %s48, 1
        %s1028 = scalar_select %p1027, %s48, 1
        %s1029 = smul.addr %s1028, 512
        %s1030 = smul.addr %s1029, 8
        %s1031 = scalar_lea.vmem %s11, %s1030
        %p1032 = pneg %p340
        %p1033 = pneg %p337
        %p1034 = scmp.lt.s32.totalorder %s48, 1
        %s1035 = scalar_select %p1034, %s48, 1
        %s1036 = smul.addr %s1035, 16
        %s1037 = scalar_lea.vmem %s12, %s1036
        %p1038 = pneg %p366
        %p1039 = pneg %p363
        %p1040 = scmp.lt.s32.totalorder %s48, 1
        %s1041 = scalar_select %p1040, %s48, 1
        %s1042 = smul.addr %s1041, 512
        %s1043 = smul.addr %s1042, 8
        %s1044 = scalar_lea.vmem %s13, %s1043
        %p1045 = pneg %p392
        %p1046 = pneg %p389
        %s1047 = sand.u32 %s405, 1
        %s1048 = scalar_lea.sflag [#allocation4], %s1047
        %s1049 = sand.u32 %s405, 1
        %s1050 = smul.addr %s1049, 2
        %s1051 = scalar_lea.vmem [#allocation3], %s1050
        %p1052 = pneg %p418
        %p1053 = pneg %p415
        %s1054 = sand.u32 %s48, 1
        %s1055 = scalar_lea.sflag [#allocation7], %s1054
        %s1056 = sand.u32 %s431, 1
        %s1057 = smul.addr %s1056, 2
        %s1058 = scalar_lea.vmem [#allocation6], %s1057
        %p1059 = pneg %p444
        %p1060 = pneg %p441
        %s1061 = sand.u32 %s48, 1
        %s1062 = scalar_lea.sflag [#allocation7], %s1061
        %s1063 = sand.u32 %s457, 1
        %s1064 = smul.addr %s1063, 2
        %s1065 = scalar_lea.vmem [#allocation8], %s1064
        %p1066 = pneg %p470
        %p1067 = pneg %p467
        %s1068 = sand.u32 %s48, 1
        %s1069 = scalar_lea.sflag [#allocation10], %s1068
        %s1070 = sand.u32 %s483, 1
        %s1071 = smul.addr %s1070, 2
        %s1072 = scalar_lea.vmem [#allocation9], %s1071
        %p1073 = pneg %p496
        %p1074 = pneg %p493
        %s1075 = sand.u32 %s48, 1
        %s1076 = scalar_lea.sflag [#allocation10], %s1075
        %s1077 = sand.u32 %s509, 1
        %s1078 = smul.addr %s1077, 2
        %s1079 = scalar_lea.vmem [#allocation11], %s1078
        %p1080 = pneg %p522
        %p1081 = pneg %p519
        %s1082 = sand.u32 %s48, 1
        %s1083 = scalar_lea.sflag [#allocation13], %s1082
        %s1084 = sand.u32 %s535, 1
        %s1085 = smul.addr %s1084, 2
        %s1086 = scalar_lea.vmem [#allocation12], %s1085
        %p1087 = pneg %p548
        %p1088 = pneg %p545
        %s1089 = sand.u32 %s48, 1
        %s1090 = scalar_lea.sflag [#allocation13], %s1089
        %s1091 = sand.u32 %s561, 1
        %s1092 = smul.addr %s1091, 2
        %s1093 = scalar_lea.vmem [#allocation14], %s1092
        %p1094 = pneg %p574
        %p1095 = pneg %p571
        %p1096 = pneg %p595
        %p1097 = pneg %p592
        %p1098 = pneg %p616
        %p1099 = pneg %p613
        %p1100 = pneg %p637
        %p1101 = pneg %p634
        %p1102 = scmp.lt.s32.totalorder %s48, 1
        %s1103 = scalar_select %p1102, %s48, 1
        %s1104 = smul.addr %s1103, 192
        %s1105 = smul.addr %s1104, 8
        %s1106 = scalar_lea.vmem %s3, %s1105
        %p1107 = scmp.lt.s32.totalorder %s48, 1
        %s1108 = scalar_select %p1107, %s48, 1
        %s1109 = smul.addr %s1108, 6
        %s1110 = scalar_lea.vmem %s4, %s1109
        %p1111 = scmp.lt.s32.totalorder %s48, 1
        %s1112 = scalar_select %p1111, %s48, 1
        %s1113 = smul.addr %s1112, 64
        %s1114 = smul.addr %s1113, 8
        %s1115 = scalar_lea.vmem %s5, %s1114
        %p1116 = scmp.lt.s32.totalorder %s48, 1
        %s1117 = scalar_select %p1116, %s48, 1
        %s1118 = smul.addr %s1117, 2
        %s1119 = scalar_lea.vmem %s6, %s1118
        %p1120 = scmp.lt.s32.totalorder %s48, 1
        %s1121 = scalar_select %p1120, %s48, 1
        %s1122 = smul.addr %s1121, 64
        %s1123 = smul.addr %s1122, 8
        %s1124 = scalar_lea.vmem %s7, %s1123
        %p1125 = scmp.lt.s32.totalorder %s48, 1
        %s1126 = scalar_select %p1125, %s48, 1
        %s1127 = smul.addr %s1126, 2
        %s1128 = scalar_lea.vmem %s8, %s1127
        %p1129 = scmp.lt.s32.totalorder %s48, 1
        %s1130 = scalar_select %p1129, %s48, 1
        %s1131 = smul.addr %s1130, 64
        %s1132 = smul.addr %s1131, 8
        %s1133 = scalar_lea.vmem %s9, %s1132
        %p1134 = scmp.lt.s32.totalorder %s48, 1
        %s1135 = scalar_select %p1134, %s48, 1
        %s1136 = smul.addr %s1135, 2
        %s1137 = scalar_lea.vmem %s10, %s1136
        %p1138 = scmp.lt.s32.totalorder %s48, 1
        %s1139 = scalar_select %p1138, %s48, 1
        %s1140 = smul.addr %s1139, 512
        %s1141 = smul.addr %s1140, 8
        %s1142 = scalar_lea.vmem %s11, %s1141
        %p1143 = scmp.lt.s32.totalorder %s48, 1
        %s1144 = scalar_select %p1143, %s48, 1
        %s1145 = smul.addr %s1144, 16
        %s1146 = scalar_lea.vmem %s12, %s1145
        %p1147 = scmp.lt.s32.totalorder %s48, 1
        %s1148 = scalar_select %p1147, %s48, 1
        %s1149 = smul.addr %s1148, 512
        %s1150 = smul.addr %s1149, 8
        %s1151 = scalar_lea.vmem %s13, %s1150
        %p1152 = scmp.eq.s32.totalorder %s48, 0
        // Predicated region
        $region145: #{ghost_forward.7} parent=111 // pred_check
          %p1153 = pneg %p1152
        $region146: #{ghost_forward.7} parent=111 // pred_check_branch
          %1155 = sbr.rel (%p1153) target = $region148
        $region147: #{ghost_forward.7} parent=111 // pred_region
          %v1156 = vld [vmem:[%s0] sm:$0xff]
          %v1157 = vld [vmem:[%s0 + $0x8] sm:$0xff]
          %v1158 = vlaneseq
          %v1159 = vand.u32 %v1158, 127
          %1160 = vset.pattern.permute.xlu0 0
          %1161 = vperm.xlu0 %1160, %v1156
          %v1162 = vpop.permute.xlu0 %1161
          %1163 = vset.pattern.permute.xlu0 0
          %1164 = vperm.xlu0 %1163, %v1157
          %v1165 = vpop.permute.xlu0 %1164
          %vm1166 = vcmp.eq.s32.totalorder %v1159, %v1162
          %vm1167 = vcmp.eq.s32.totalorder %v1159, %v1165
          %v1168 = vsel %vm1166, 1, 0
          %v1169 = vsel %vm1167, 1, 0
          %v1170 = vcvt.s32.f32 %v1168
          %v1171 = vcvt.s32.f32 %v1169
          %v1172 = vld [vmem:[%s1] sm:$0xff]
          %v1173 = vld [vmem:[%s1 + $0x8] sm:$0xff]
          %v1174 = vld [vmem:[%s1 + $0x10] sm:$0xff]
          %v1175 = vld [vmem:[%s1 + $0x18] sm:$0xff]
          %v1176 = vld [vmem:[%s1 + $0x20] sm:$0xff]
          %v1177 = vld [vmem:[%s1 + $0x28] sm:$0xff]
          %v1178 = vld [vmem:[%s1 + $0x30] sm:$0xff]
          %v1179 = vld [vmem:[%s1 + $0x38] sm:$0xff]
          %v1180 = vld [vmem:[%s1 + $0x40] sm:$0xff]
          %v1181 = vld [vmem:[%s1 + $0x48] sm:$0xff]
          %v1182 = vld [vmem:[%s1 + $0x50] sm:$0xff]
          %v1183 = vld [vmem:[%s1 + $0x58] sm:$0xff]
          %v1184 = vld [vmem:[%s1 + $0x60] sm:$0xff]
          %v1185 = vld [vmem:[%s1 + $0x68] sm:$0xff]
          %v1186 = vld [vmem:[%s1 + $0x70] sm:$0xff]
          %v1187 = vld [vmem:[%s1 + $0x78] sm:$0xff]
          %v1188 = vld [vmem:[%s1 + $0x80] sm:$0xff]
          %v1189 = vld [vmem:[%s1 + $0x88] sm:$0xff]
          %v1190 = vld [vmem:[%s1 + $0x90] sm:$0xff]
          %v1191 = vld [vmem:[%s1 + $0x98] sm:$0xff]
          %v1192 = vld [vmem:[%s1 + $0xa0] sm:$0xff]
          %v1193 = vld [vmem:[%s1 + $0xa8] sm:$0xff]
          %v1194 = vld [vmem:[%s1 + $0xb0] sm:$0xff]
          %v1195 = vld [vmem:[%s1 + $0xb8] sm:$0xff]
          %v1196 = vld [vmem:[%s1 + $0xc0] sm:$0xff]
          %v1197 = vld [vmem:[%s1 + $0xc8] sm:$0xff]
          %v1198 = vld [vmem:[%s1 + $0xd0] sm:$0xff]
          %v1199 = vld [vmem:[%s1 + $0xd8] sm:$0xff]
          %v1200 = vld [vmem:[%s1 + $0xe0] sm:$0xff]
          %v1201 = vld [vmem:[%s1 + $0xe8] sm:$0xff]
          %v1202 = vld [vmem:[%s1 + $0xf0] sm:$0xff]
          %v1203 = vld [vmem:[%s1 + $0xf8] sm:$0xff]
          %1204 = vmatprep.subr.mxu0 %v1173
          %1205 = vmatpush1.msra.mxu0 %v1172
          %1206 = vmatprep.subr.mxu0 %v1175
          %1207 = vmatpush1.msra.mxu0 %v1174
          %1208 = vmatprep.subr.mxu0 %v1177
          %1209 = vmatpush1.msra.mxu0 %v1176
          %1210 = vmatprep.subr.mxu0 %v1179
          %1211 = vmatpush1.msra.mxu0 %v1178
          %1212 = vmatprep.subr.mxu0 %v1181
          %1213 = vmatpush1.msra.mxu0 %v1180
          %1214 = vmatprep.subr.mxu0 %v1183
          %1215 = vmatpush1.msra.mxu0 %v1182
          %1216 = vmatprep.subr.mxu0 %v1185
          %1217 = vmatpush1.msra.mxu0 %v1184
          %1218 = vmatprep.subr.mxu0 %v1187
          %1219 = vmatpush1.msra.mxu0 %v1186
          %1220 = vmatprep.subr.mxu0 %v1189
          %1221 = vmatpush1.msra.mxu0 %v1188
          %1222 = vmatprep.subr.mxu0 %v1191
          %1223 = vmatpush1.msra.mxu0 %v1190
          %1224 = vmatprep.subr.mxu0 %v1193
          %1225 = vmatpush1.msra.mxu0 %v1192
          %1226 = vmatprep.subr.mxu0 %v1195
          %1227 = vmatpush1.msra.mxu0 %v1194
          %1228 = vmatprep.subr.mxu0 %v1197
          %1229 = vmatpush1.msra.mxu0 %v1196
          %1230 = vmatprep.subr.mxu0 %v1199
          %1231 = vmatpush1.msra.mxu0 %v1198
          %1232 = vmatprep.subr.mxu0 %v1201
          %1233 = vmatpush1.msra.mxu0 %v1200
          %1234 = vmatprep.subr.mxu0 %v1203
          %1235 = vmatpush1.msra.mxu0 %v1202
          %1236 = vmatprep.subr.mxu0 0.0
          %1237 = vmatpush1.msra.mxu0 0.0
          %1238 = vmatprep.subr.mxu0 0.0
          %1239 = vmatpush1.msra.mxu0 0.0
          %1240 = vmatprep.subr.mxu0 0.0
          %1241 = vmatpush1.msra.mxu0 0.0
          %1242 = vmatprep.subr.mxu0 0.0
          %1243 = vmatpush1.msra.mxu0 0.0
          %1244 = vmatprep.subr.mxu0 0.0
          %1245 = vmatpush1.msra.mxu0 0.0
          %1246 = vmatprep.subr.mxu0 0.0
          %1247 = vmatpush1.msra.mxu0 0.0
          %1248 = vmatprep.subr.mxu0 0.0
          %1249 = vmatpush1.msra.mxu0 0.0
          %1250 = vmatprep.subr.mxu0 0.0
          %1251 = vmatpush1.msra.mxu0 0.0
          %1252 = vmatprep.subr.mxu0 0.0
          %1253 = vmatpush1.msra.mxu0 0.0
          %1254 = vmatprep.subr.mxu0 0.0
          %1255 = vmatpush1.msra.mxu0 0.0
          %1256 = vmatprep.subr.mxu0 0.0
          %1257 = vmatpush1.msra.mxu0 0.0
          %1258 = vmatprep.subr.mxu0 0.0
          %1259 = vmatpush1.msra.mxu0 0.0
          %1260 = vmatprep.subr.mxu0 0.0
          %1261 = vmatpush1.msra.mxu0 0.0
          %1262 = vmatprep.subr.mxu0 0.0
          %1263 = vmatpush1.msra.mxu0 0.0
          %1264 = vmatprep.subr.mxu0 0.0
          %1265 = vmatpush1.msra.mxu0 0.0
          %1266 = vmatprep.subr.mxu0 0.0
          %1267 = vmatpush1.msra.mxu0 0.0
          %1268 = vmatprep.mubr.f32.mxu0 0.0
          %1269 = vmatmul.mubr.f32.gmra.mrb[0].mxu0 %v1170
          %v1270 = vpop.f32.mrb[0].mxu0
          %v1271 = vadd.f32 0.0, %v1270
          %v1272 = vpop.f32.mrb[0].mxu0
          %v1273 = vadd.f32 0.0, %v1272
          %1274 = vmatprep.mubr.f32.mxu0 0.0
          %1275 = vmatmul.mubr.f32.gmra.mrb[0].mxu0 %v1171
          %v1276 = vpop.f32.mrb[0].mxu0
          %v1277 = vadd.f32 0.0, %v1276
          %v1278 = vpop.f32.mrb[0].mxu0
          %v1279 = vadd.f32 0.0, %v1278
          %1280 = vdwg.mxu0
          %1281 = vst [vmem:[#allocation2] sm:$0xff] %v1271
          %1282 = vst [vmem:[#allocation2 + $0x8] sm:$0xff] %v1273
          %1283 = vst [vmem:[#allocation2 + $0x10] sm:$0xff] %v1277
          %1284 = vst [vmem:[#allocation2 + $0x18] sm:$0xff] %v1279
        $region148: #{ghost_forward.7} parent=111 // pred_fallthru
          _
        %v1285 = vld [vmem:[#allocation2] sm:$0xff]
        %v1286 = vld [vmem:[#allocation2 + $0x8] sm:$0xff]
        %v1287 = vld [vmem:[#allocation2 + $0x10] sm:$0xff]
        %v1288 = vld [vmem:[#allocation2 + $0x18] sm:$0xff]
        %v1289 = vld [vmem:[%s1106] sm:$0xff]
        %v1290 = vld [vmem:[%s1106 + $0x8] sm:$0xff]
        %v1291 = vld [vmem:[%s1106 + $0x10] sm:$0xff]
        %v1292 = vld [vmem:[%s1106 + $0x18] sm:$0xff]
        %v1293 = vld [vmem:[%s1106 + $0x20] sm:$0xff]
        %v1294 = vld [vmem:[%s1106 + $0x28] sm:$0xff]
        %v1295 = vld [vmem:[%s1106 + $0x30] sm:$0xff]
        %v1296 = vld [vmem:[%s1106 + $0x38] sm:$0xff]
        %v1297 = vld [vmem:[%s1106 + $0x40] sm:$0xff]
        %v1298 = vld [vmem:[%s1106 + $0x48] sm:$0xff]
        %v1299 = vld [vmem:[%s1106 + $0x50] sm:$0xff]
        %v1300 = vld [vmem:[%s1106 + $0x58] sm:$0xff]
        %v1301 = vld [vmem:[%s1106 + $0x60] sm:$0xff]
        %v1302 = vld [vmem:[%s1106 + $0x68] sm:$0xff]
        %v1303 = vld [vmem:[%s1106 + $0x70] sm:$0xff]
        %v1304 = vld [vmem:[%s1106 + $0x78] sm:$0xff]
        %v1305 = vld [vmem:[%s1106 + $0x80] sm:$0xff]
        %v1306 = vld [vmem:[%s1106 + $0x88] sm:$0xff]
        %v1307 = vld [vmem:[%s1106 + $0x90] sm:$0xff]
        %v1308 = vld [vmem:[%s1106 + $0x98] sm:$0xff]
        %v1309 = vld [vmem:[%s1106 + $0xa0] sm:$0xff]
        %v1310 = vld [vmem:[%s1106 + $0xa8] sm:$0xff]
        %v1311 = vld [vmem:[%s1106 + $0xb0] sm:$0xff]
        %v1312 = vld [vmem:[%s1106 + $0xb8] sm:$0xff]
        %v1313 = vld [vmem:[%s1106 + $0xc0] sm:$0xff]
        %v1314 = vld [vmem:[%s1106 + $0xc8] sm:$0xff]
        %v1315 = vld [vmem:[%s1106 + $0xd0] sm:$0xff]
        %v1316 = vld [vmem:[%s1106 + $0xd8] sm:$0xff]
        %v1317 = vld [vmem:[%s1106 + $0xe0] sm:$0xff]
        %v1318 = vld [vmem:[%s1106 + $0xe8] sm:$0xff]
        %v1319 = vld [vmem:[%s1106 + $0xf0] sm:$0xff]
        %v1320 = vld [vmem:[%s1106 + $0xf8] sm:$0xff]
        %v1321 = vld [vmem:[%s1106 + $0x100] sm:$0xff]
        %v1322 = vld [vmem:[%s1106 + $0x108] sm:$0xff]
        %v1323 = vld [vmem:[%s1106 + $0x110] sm:$0xff]
        %v1324 = vld [vmem:[%s1106 + $0x118] sm:$0xff]
        %v1325 = vld [vmem:[%s1106 + $0x120] sm:$0xff]
        %v1326 = vld [vmem:[%s1106 + $0x128] sm:$0xff]
        %v1327 = vld [vmem:[%s1106 + $0x130] sm:$0xff]
        %v1328 = vld [vmem:[%s1106 + $0x138] sm:$0xff]
        %v1329 = vld [vmem:[%s1106 + $0x140] sm:$0xff]
        %v1330 = vld [vmem:[%s1106 + $0x148] sm:$0xff]
        %v1331 = vld [vmem:[%s1106 + $0x150] sm:$0xff]
        %v1332 = vld [vmem:[%s1106 + $0x158] sm:$0xff]
        %v1333 = vld [vmem:[%s1106 + $0x160] sm:$0xff]
        %v1334 = vld [vmem:[%s1106 + $0x168] sm:$0xff]
        %v1335 = vld [vmem:[%s1106 + $0x170] sm:$0xff]
        %v1336 = vld [vmem:[%s1106 + $0x178] sm:$0xff]
        %v1337 = vld [vmem:[%s1106 + $0x180] sm:$0xff]
        %v1338 = vld [vmem:[%s1106 + $0x188] sm:$0xff]
        %v1339 = vld [vmem:[%s1106 + $0x190] sm:$0xff]
        %v1340 = vld [vmem:[%s1106 + $0x198] sm:$0xff]
        %v1341 = vld [vmem:[%s1106 + $0x1a0] sm:$0xff]
        %v1342 = vld [vmem:[%s1106 + $0x1a8] sm:$0xff]
        %v1343 = vld [vmem:[%s1106 + $0x1b0] sm:$0xff]
        %v1344 = vld [vmem:[%s1106 + $0x1b8] sm:$0xff]
        %v1345 = vld [vmem:[%s1106 + $0x1c0] sm:$0xff]
        %v1346 = vld [vmem:[%s1106 + $0x1c8] sm:$0xff]
        %v1347 = vld [vmem:[%s1106 + $0x1d0] sm:$0xff]
        %v1348 = vld [vmem:[%s1106 + $0x1d8] sm:$0xff]
        %v1349 = vld [vmem:[%s1106 + $0x1e0] sm:$0xff]
        %v1350 = vld [vmem:[%s1106 + $0x1e8] sm:$0xff]
        %v1351 = vld [vmem:[%s1106 + $0x1f0] sm:$0xff]
        %v1352 = vld [vmem:[%s1106 + $0x1f8] sm:$0xff]
        %v1353 = vld [vmem:[%s1106 + $0x200] sm:$0xff]
        %v1354 = vld [vmem:[%s1106 + $0x208] sm:$0xff]
        %v1355 = vld [vmem:[%s1106 + $0x210] sm:$0xff]
        %v1356 = vld [vmem:[%s1106 + $0x218] sm:$0xff]
        %v1357 = vld [vmem:[%s1106 + $0x220] sm:$0xff]
        %v1358 = vld [vmem:[%s1106 + $0x228] sm:$0xff]
        %v1359 = vld [vmem:[%s1106 + $0x230] sm:$0xff]
        %v1360 = vld [vmem:[%s1106 + $0x238] sm:$0xff]
        %v1361 = vld [vmem:[%s1106 + $0x240] sm:$0xff]
        %v1362 = vld [vmem:[%s1106 + $0x248] sm:$0xff]
        %v1363 = vld [vmem:[%s1106 + $0x250] sm:$0xff]
        %v1364 = vld [vmem:[%s1106 + $0x258] sm:$0xff]
        %v1365 = vld [vmem:[%s1106 + $0x260] sm:$0xff]
        %v1366 = vld [vmem:[%s1106 + $0x268] sm:$0xff]
        %v1367 = vld [vmem:[%s1106 + $0x270] sm:$0xff]
        %v1368 = vld [vmem:[%s1106 + $0x278] sm:$0xff]
        %v1369 = vld [vmem:[%s1106 + $0x280] sm:$0xff]
        %v1370 = vld [vmem:[%s1106 + $0x288] sm:$0xff]
        %v1371 = vld [vmem:[%s1106 + $0x290] sm:$0xff]
        %v1372 = vld [vmem:[%s1106 + $0x298] sm:$0xff]
        %v1373 = vld [vmem:[%s1106 + $0x2a0] sm:$0xff]
        %v1374 = vld [vmem:[%s1106 + $0x2a8] sm:$0xff]
        %v1375 = vld [vmem:[%s1106 + $0x2b0] sm:$0xff]
        %v1376 = vld [vmem:[%s1106 + $0x2b8] sm:$0xff]
        %v1377 = vld [vmem:[%s1106 + $0x2c0] sm:$0xff]
        %v1378 = vld [vmem:[%s1106 + $0x2c8] sm:$0xff]
        %v1379 = vld [vmem:[%s1106 + $0x2d0] sm:$0xff]
        %v1380 = vld [vmem:[%s1106 + $0x2d8] sm:$0xff]
        %v1381 = vld [vmem:[%s1106 + $0x2e0] sm:$0xff]
        %v1382 = vld [vmem:[%s1106 + $0x2e8] sm:$0xff]
        %v1383 = vld [vmem:[%s1106 + $0x2f0] sm:$0xff]
        %v1384 = vld [vmem:[%s1106 + $0x2f8] sm:$0xff]
        %v1385 = vld [vmem:[%s1106 + $0x300] sm:$0xff]
        %v1386 = vld [vmem:[%s1106 + $0x308] sm:$0xff]
        %v1387 = vld [vmem:[%s1106 + $0x310] sm:$0xff]
        %v1388 = vld [vmem:[%s1106 + $0x318] sm:$0xff]
        %v1389 = vld [vmem:[%s1106 + $0x320] sm:$0xff]
        %v1390 = vld [vmem:[%s1106 + $0x328] sm:$0xff]
        %v1391 = vld [vmem:[%s1106 + $0x330] sm:$0xff]
        %v1392 = vld [vmem:[%s1106 + $0x338] sm:$0xff]
        %v1393 = vld [vmem:[%s1106 + $0x340] sm:$0xff]
        %v1394 = vld [vmem:[%s1106 + $0x348] sm:$0xff]
        %v1395 = vld [vmem:[%s1106 + $0x350] sm:$0xff]
        %v1396 = vld [vmem:[%s1106 + $0x358] sm:$0xff]
        %v1397 = vld [vmem:[%s1106 + $0x360] sm:$0xff]
        %v1398 = vld [vmem:[%s1106 + $0x368] sm:$0xff]
        %v1399 = vld [vmem:[%s1106 + $0x370] sm:$0xff]
        %v1400 = vld [vmem:[%s1106 + $0x378] sm:$0xff]
        %v1401 = vld [vmem:[%s1106 + $0x380] sm:$0xff]
        %v1402 = vld [vmem:[%s1106 + $0x388] sm:$0xff]
        %v1403 = vld [vmem:[%s1106 + $0x390] sm:$0xff]
        %v1404 = vld [vmem:[%s1106 + $0x398] sm:$0xff]
        %v1405 = vld [vmem:[%s1106 + $0x3a0] sm:$0xff]
        %v1406 = vld [vmem:[%s1106 + $0x3a8] sm:$0xff]
        %v1407 = vld [vmem:[%s1106 + $0x3b0] sm:$0xff]
        %v1408 = vld [vmem:[%s1106 + $0x3b8] sm:$0xff]
        %v1409 = vld [vmem:[%s1106 + $0x3c0] sm:$0xff]
        %v1410 = vld [vmem:[%s1106 + $0x3c8] sm:$0xff]
        %v1411 = vld [vmem:[%s1106 + $0x3d0] sm:$0xff]
        %v1412 = vld [vmem:[%s1106 + $0x3d8] sm:$0xff]
        %v1413 = vld [vmem:[%s1106 + $0x3e0] sm:$0xff]
        %v1414 = vld [vmem:[%s1106 + $0x3e8] sm:$0xff]
        %v1415 = vld [vmem:[%s1106 + $0x3f0] sm:$0xff]
        %v1416 = vld [vmem:[%s1106 + $0x3f8] sm:$0xff]
        %v1417 = vld [vmem:[%s1106 + $0x400] sm:$0xff]
        %v1418 = vld [vmem:[%s1106 + $0x408] sm:$0xff]
        %v1419 = vld [vmem:[%s1106 + $0x410] sm:$0xff]
        %v1420 = vld [vmem:[%s1106 + $0x418] sm:$0xff]
        %v1421 = vld [vmem:[%s1106 + $0x420] sm:$0xff]
        %v1422 = vld [vmem:[%s1106 + $0x428] sm:$0xff]
        %v1423 = vld [vmem:[%s1106 + $0x430] sm:$0xff]
        %v1424 = vld [vmem:[%s1106 + $0x438] sm:$0xff]
        %v1425 = vld [vmem:[%s1106 + $0x440] sm:$0xff]
        %v1426 = vld [vmem:[%s1106 + $0x448] sm:$0xff]
        %v1427 = vld [vmem:[%s1106 + $0x450] sm:$0xff]
        %v1428 = vld [vmem:[%s1106 + $0x458] sm:$0xff]
        %v1429 = vld [vmem:[%s1106 + $0x460] sm:$0xff]
        %v1430 = vld [vmem:[%s1106 + $0x468] sm:$0xff]
        %v1431 = vld [vmem:[%s1106 + $0x470] sm:$0xff]
        %v1432 = vld [vmem:[%s1106 + $0x478] sm:$0xff]
        %v1433 = vld [vmem:[%s1106 + $0x480] sm:$0xff]
        %v1434 = vld [vmem:[%s1106 + $0x488] sm:$0xff]
        %v1435 = vld [vmem:[%s1106 + $0x490] sm:$0xff]
        %v1436 = vld [vmem:[%s1106 + $0x498] sm:$0xff]
        %v1437 = vld [vmem:[%s1106 + $0x4a0] sm:$0xff]
        %v1438 = vld [vmem:[%s1106 + $0x4a8] sm:$0xff]
        %v1439 = vld [vmem:[%s1106 + $0x4b0] sm:$0xff]
        %v1440 = vld [vmem:[%s1106 + $0x4b8] sm:$0xff]
        %v1441 = vld [vmem:[%s1106 + $0x4c0] sm:$0xff]
        %v1442 = vld [vmem:[%s1106 + $0x4c8] sm:$0xff]
        %v1443 = vld [vmem:[%s1106 + $0x4d0] sm:$0xff]
        %v1444 = vld [vmem:[%s1106 + $0x4d8] sm:$0xff]
        %v1445 = vld [vmem:[%s1106 + $0x4e0] sm:$0xff]
        %v1446 = vld [vmem:[%s1106 + $0x4e8] sm:$0xff]
        %v1447 = vld [vmem:[%s1106 + $0x4f0] sm:$0xff]
        %v1448 = vld [vmem:[%s1106 + $0x4f8] sm:$0xff]
        %v1449 = vld [vmem:[%s1106 + $0x500] sm:$0xff]
        %v1450 = vld [vmem:[%s1106 + $0x508] sm:$0xff]
        %v1451 = vld [vmem:[%s1106 + $0x510] sm:$0xff]
        %v1452 = vld [vmem:[%s1106 + $0x518] sm:$0xff]
        %v1453 = vld [vmem:[%s1106 + $0x520] sm:$0xff]
        %v1454 = vld [vmem:[%s1106 + $0x528] sm:$0xff]
        %v1455 = vld [vmem:[%s1106 + $0x530] sm:$0xff]
        %v1456 = vld [vmem:[%s1106 + $0x538] sm:$0xff]
        %v1457 = vld [vmem:[%s1106 + $0x540] sm:$0xff]
        %v1458 = vld [vmem:[%s1106 + $0x548] sm:$0xff]
        %v1459 = vld [vmem:[%s1106 + $0x550] sm:$0xff]
        %v1460 = vld [vmem:[%s1106 + $0x558] sm:$0xff]
        %v1461 = vld [vmem:[%s1106 + $0x560] sm:$0xff]
        %v1462 = vld [vmem:[%s1106 + $0x568] sm:$0xff]
        %v1463 = vld [vmem:[%s1106 + $0x570] sm:$0xff]
        %v1464 = vld [vmem:[%s1106 + $0x578] sm:$0xff]
        %v1465 = vld [vmem:[%s1106 + $0x580] sm:$0xff]
        %v1466 = vld [vmem:[%s1106 + $0x588] sm:$0xff]
        %v1467 = vld [vmem:[%s1106 + $0x590] sm:$0xff]
        %v1468 = vld [vmem:[%s1106 + $0x598] sm:$0xff]
        %v1469 = vld [vmem:[%s1106 + $0x5a0] sm:$0xff]
        %v1470 = vld [vmem:[%s1106 + $0x5a8] sm:$0xff]
        %v1471 = vld [vmem:[%s1106 + $0x5b0] sm:$0xff]
        %v1472 = vld [vmem:[%s1106 + $0x5b8] sm:$0xff]
        %v1473 = vld [vmem:[%s1106 + $0x5c0] sm:$0xff]
        %v1474 = vld [vmem:[%s1106 + $0x5c8] sm:$0xff]
        %v1475 = vld [vmem:[%s1106 + $0x5d0] sm:$0xff]
        %v1476 = vld [vmem:[%s1106 + $0x5d8] sm:$0xff]
        %v1477 = vld [vmem:[%s1106 + $0x5e0] sm:$0xff]
        %v1478 = vld [vmem:[%s1106 + $0x5e8] sm:$0xff]
        %v1479 = vld [vmem:[%s1106 + $0x5f0] sm:$0xff]
        %v1480 = vld [vmem:[%s1106 + $0x5f8] sm:$0xff]
        %v1481 = vld [vmem:[%s1110] sm:$0x3f]
        %v1483 = vlaneseq
        %v1484 = vshrl.u32 %v1483, 7
        %v1485 = vsub.s32 0, %v1484
        %v1486 = vrot.slane %v1481, %v1485
        %v1487 = vlaneseq
        %v1488 = vshrl.u32 %v1487, 7
        %v1489 = vsub.s32 1, %v1488
        %v1490 = vrot.slane %v1481, %v1489
        %v1491 = vlaneseq
        %v1492 = vshrl.u32 %v1491, 7
        %v1493 = vsub.s32 2, %v1492
        %v1494 = vrot.slane %v1481, %v1493
        %v1495 = vlaneseq
        %v1496 = vshrl.u32 %v1495, 7
        %v1497 = vsub.s32 3, %v1496
        %v1498 = vrot.slane %v1481, %v1497
        %v1499 = vlaneseq
        %v1500 = vshrl.u32 %v1499, 7
        %v1501 = vsub.s32 4, %v1500
        %v1502 = vrot.slane %v1481, %v1501
        %v1503 = vlaneseq
        %v1504 = vshrl.u32 %v1503, 7
        %v1505 = vsub.s32 5, %v1504
        %v1506 = vrot.slane %v1481, %v1505
        %1513 = vmatprep.subr.mxu0 %v1290
        %1514 = vmatpush1.xpose.msra.mxu0 %v1289
        %1515 = vmatprep.subr.mxu0 %v1292
        %1516 = vmatpush1.xpose.msra.mxu0 %v1291
        %1517 = vmatprep.subr.mxu0 %v1294
        %1518 = vmatpush1.xpose.msra.mxu0 %v1293
        %1519 = vmatprep.subr.mxu0 %v1296
        %1520 = vmatpush1.xpose.msra.mxu0 %v1295
        %1521 = vmatprep.subr.mxu0 %v1298
        %1522 = vmatpush1.xpose.msra.mxu0 %v1297
        %1523 = vmatprep.subr.mxu0 %v1300
        %1524 = vmatpush1.xpose.msra.mxu0 %v1299
        %1525 = vmatprep.subr.mxu0 %v1302
        %1526 = vmatpush1.xpose.msra.mxu0 %v1301
        %1527 = vmatprep.subr.mxu0 %v1304
        %1528 = vmatpush1.xpose.msra.mxu0 %v1303
        %1529 = vmatprep.subr.mxu0 %v1306
        %1530 = vmatpush1.xpose.msra.mxu0 %v1305
        %1531 = vmatprep.subr.mxu0 %v1308
        %1532 = vmatpush1.xpose.msra.mxu0 %v1307
        %1533 = vmatprep.subr.mxu0 %v1310
        %1534 = vmatpush1.xpose.msra.mxu0 %v1309
        %1535 = vmatprep.subr.mxu0 %v1312
        %1536 = vmatpush1.xpose.msra.mxu0 %v1311
        %1537 = vmatprep.subr.mxu0 %v1314
        %1538 = vmatpush1.xpose.msra.mxu0 %v1313
        %1539 = vmatprep.subr.mxu0 %v1316
        %1540 = vmatpush1.xpose.msra.mxu0 %v1315
        %1541 = vmatprep.subr.mxu0 %v1318
        %1542 = vmatpush1.xpose.msra.mxu0 %v1317
        %1543 = vmatprep.subr.mxu0 %v1320
        %1544 = vmatpush1.xpose.msra.mxu0 %v1319
        %1545 = vmatprep.subr.mxu0 %v1322
        %1546 = vmatpush1.xpose.msra.mxu0 %v1321
        %1547 = vmatprep.subr.mxu0 %v1324
        %1548 = vmatpush1.xpose.msra.mxu0 %v1323
        %1549 = vmatprep.subr.mxu0 %v1326
        %1550 = vmatpush1.xpose.msra.mxu0 %v1325
        %1551 = vmatprep.subr.mxu0 %v1328
        %1552 = vmatpush1.xpose.msra.mxu0 %v1327
        %1553 = vmatprep.subr.mxu0 %v1330
        %1554 = vmatpush1.xpose.msra.mxu0 %v1329
        %1555 = vmatprep.subr.mxu0 %v1332
        %1556 = vmatpush1.xpose.msra.mxu0 %v1331
        %1557 = vmatprep.subr.mxu0 %v1334
        %1558 = vmatpush1.xpose.msra.mxu0 %v1333
        %1559 = vmatprep.subr.mxu0 %v1336
        %1560 = vmatpush1.xpose.msra.mxu0 %v1335
        %1561 = vmatprep.subr.mxu0 %v1338
        %1562 = vmatpush1.xpose.msra.mxu0 %v1337
        %1563 = vmatprep.subr.mxu0 %v1340
        %1564 = vmatpush1.xpose.msra.mxu0 %v1339
        %1565 = vmatprep.subr.mxu0 %v1342
        %1566 = vmatpush1.xpose.msra.mxu0 %v1341
        %1567 = vmatprep.subr.mxu0 %v1344
        %1568 = vmatpush1.xpose.msra.mxu0 %v1343
        %1569 = vmatprep.subr.mxu0 %v1346
        %1570 = vmatpush1.xpose.msra.mxu0 %v1345
        %1571 = vmatprep.subr.mxu0 %v1348
        %1572 = vmatpush1.xpose.msra.mxu0 %v1347
        %1573 = vmatprep.subr.mxu0 %v1350
        %1574 = vmatpush1.xpose.msra.mxu0 %v1349
        %1575 = vmatprep.subr.mxu0 %v1352
        %1576 = vmatpush1.xpose.msra.mxu0 %v1351
        %1577 = vmatprep.mubr.f32.mxu0 %v1286
        %1578 = vmatmul.mubr.f32.gmra.mrb[0].mxu0 %v1285
        %v1579 = vpop.f32.mrb[0].mxu0
        %v1580 = vadd.f32 %v1486, %v1579
        %v1581 = vpop.f32.mrb[0].mxu0
        %v1582 = vadd.f32 %v1490, %v1581
        %1583 = vmatprep.mubr.f32.mxu0 %v1288
        %1584 = vmatmul.mubr.f32.gmra.mrb[0].mxu0 %v1287
        %v1585 = vpop.f32.mrb[0].mxu0
        %v1586 = vadd.f32 %v1486, %v1585
        %v1587 = vpop.f32.mrb[0].mxu0
        %v1588 = vadd.f32 %v1490, %v1587
        %1589 = vdwg.mxu0
        %1590 = vmatprep.subr.mxu0 %v1354
        %1591 = vmatpush1.xpose.msra.mxu0 %v1353
        %1592 = vmatprep.subr.mxu0 %v1356
        %1593 = vmatpush1.xpose.msra.mxu0 %v1355
        %1594 = vmatprep.subr.mxu0 %v1358
        %1595 = vmatpush1.xpose.msra.mxu0 %v1357
        %1596 = vmatprep.subr.mxu0 %v1360
        %1597 = vmatpush1.xpose.msra.mxu0 %v1359
        %1598 = vmatprep.subr.mxu0 %v1362
        %1599 = vmatpush1.xpose.msra.mxu0 %v1361
        %1600 = vmatprep.subr.mxu0 %v1364
        %1601 = vmatpush1.xpose.msra.mxu0 %v1363
        %1602 = vmatprep.subr.mxu0 %v1366
        %1603 = vmatpush1.xpose.msra.mxu0 %v1365
        %1604 = vmatprep.subr.mxu0 %v1368
        %1605 = vmatpush1.xpose.msra.mxu0 %v1367
        %1606 = vmatprep.subr.mxu0 %v1370
        %1607 = vmatpush1.xpose.msra.mxu0 %v1369
        %1608 = vmatprep.subr.mxu0 %v1372
        %1609 = vmatpush1.xpose.msra.mxu0 %v1371
        %1610 = vmatprep.subr.mxu0 %v1374
        %1611 = vmatpush1.xpose.msra.mxu0 %v1373
        %1612 = vmatprep.subr.mxu0 %v1376
        %1613 = vmatpush1.xpose.msra.mxu0 %v1375
        %1614 = vmatprep.subr.mxu0 %v1378
        %1615 = vmatpush1.xpose.msra.mxu0 %v1377
        %1616 = vmatprep.subr.mxu0 %v1380
        %1617 = vmatpush1.xpose.msra.mxu0 %v1379
        %1618 = vmatprep.subr.mxu0 %v1382
        %1619 = vmatpush1.xpose.msra.mxu0 %v1381
        %1620 = vmatprep.subr.mxu0 %v1384
        %1621 = vmatpush1.xpose.msra.mxu0 %v1383
        %1622 = vmatprep.subr.mxu0 %v1386
        %1623 = vmatpush1.xpose.msra.mxu0 %v1385
        %1624 = vmatprep.subr.mxu0 %v1388
        %1625 = vmatpush1.xpose.msra.mxu0 %v1387
        %1626 = vmatprep.subr.mxu0 %v1390
        %1627 = vmatpush1.xpose.msra.mxu0 %v1389
        %1628 = vmatprep.subr.mxu0 %v1392
        %1629 = vmatpush1.xpose.msra.mxu0 %v1391
        %1630 = vmatprep.subr.mxu0 %v1394
        %1631 = vmatpush1.xpose.msra.mxu0 %v1393
        %1632 = vmatprep.subr.mxu0 %v1396
        %1633 = vmatpush1.xpose.msra.mxu0 %v1395
        %1634 = vmatprep.subr.mxu0 %v1398
        %1635 = vmatpush1.xpose.msra.mxu0 %v1397
        %1636 = vmatprep.subr.mxu0 %v1400
        %1637 = vmatpush1.xpose.msra.mxu0 %v1399
        %1638 = vmatprep.subr.mxu0 %v1402
        %1639 = vmatpush1.xpose.msra.mxu0 %v1401
        %1640 = vmatprep.subr.mxu0 %v1404
        %1641 = vmatpush1.xpose.msra.mxu0 %v1403
        %1642 = vmatprep.subr.mxu0 %v1406
        %1643 = vmatpush1.xpose.msra.mxu0 %v1405
        %1644 = vmatprep.subr.mxu0 %v1408
        %1645 = vmatpush1.xpose.msra.mxu0 %v1407
        %1646 = vmatprep.subr.mxu0 %v1410
        %1647 = vmatpush1.xpose.msra.mxu0 %v1409
        %1648 = vmatprep.subr.mxu0 %v1412
        %1649 = vmatpush1.xpose.msra.mxu0 %v1411
        %1650 = vmatprep.subr.mxu0 %v1414
        %1651 = vmatpush1.xpose.msra.mxu0 %v1413
        %1652 = vmatprep.subr.mxu0 %v1416
        %1653 = vmatpush1.xpose.msra.mxu0 %v1415
        %1654 = vmatprep.mubr.f32.mxu0 %v1286
        %1655 = vmatmul.mubr.f32.gmra.mrb[0].mxu0 %v1285
        %v1656 = vpop.f32.mrb[0].mxu0
        %v1657 = vadd.f32 %v1494, %v1656
        %v1658 = vpop.f32.mrb[0].mxu0
        %v1659 = vadd.f32 %v1498, %v1658
        %1660 = vmatprep.mubr.f32.mxu0 %v1288
        %1661 = vmatmul.mubr.f32.gmra.mrb[0].mxu0 %v1287
        %v1662 = vpop.f32.mrb[0].mxu0
        %v1663 = vadd.f32 %v1494, %v1662
        %v1664 = vpop.f32.mrb[0].mxu0
        %v1665 = vadd.f32 %v1498, %v1664
        %1666 = vdwg.mxu0
        %1667 = vmatprep.subr.mxu0 %v1418
        %1668 = vmatpush1.xpose.msra.mxu0 %v1417
        %1669 = vmatprep.subr.mxu0 %v1420
        %1670 = vmatpush1.xpose.msra.mxu0 %v1419
        %1671 = vmatprep.subr.mxu0 %v1422
        %1672 = vmatpush1.xpose.msra.mxu0 %v1421
        %1673 = vmatprep.subr.mxu0 %v1424
        %1674 = vmatpush1.xpose.msra.mxu0 %v1423
        %1675 = vmatprep.subr.mxu0 %v1426
        %1676 = vmatpush1.xpose.msra.mxu0 %v1425
        %1677 = vmatprep.subr.mxu0 %v1428
        %1678 = vmatpush1.xpose.msra.mxu0 %v1427
        %1679 = vmatprep.subr.mxu0 %v1430
        %1680 = vmatpush1.xpose.msra.mxu0 %v1429
        %1681 = vmatprep.subr.mxu0 %v1432
        %1682 = vmatpush1.xpose.msra.mxu0 %v1431
        %1683 = vmatprep.subr.mxu0 %v1434
        %1684 = vmatpush1.xpose.msra.mxu0 %v1433
        %1685 = vmatprep.subr.mxu0 %v1436
        %1686 = vmatpush1.xpose.msra.mxu0 %v1435
        %1687 = vmatprep.subr.mxu0 %v1438
        %1688 = vmatpush1.xpose.msra.mxu0 %v1437
        %1689 = vmatprep.subr.mxu0 %v1440
        %1690 = vmatpush1.xpose.msra.mxu0 %v1439
        %1691 = vmatprep.subr.mxu0 %v1442
        %1692 = vmatpush1.xpose.msra.mxu0 %v1441
        %1693 = vmatprep.subr.mxu0 %v1444
        %1694 = vmatpush1.xpose.msra.mxu0 %v1443
        %1695 = vmatprep.subr.mxu0 %v1446
        %1696 = vmatpush1.xpose.msra.mxu0 %v1445
        %1697 = vmatprep.subr.mxu0 %v1448
        %1698 = vmatpush1.xpose.msra.mxu0 %v1447
        %1699 = vmatprep.subr.mxu0 %v1450
        %1700 = vmatpush1.xpose.msra.mxu0 %v1449
        %1701 = vmatprep.subr.mxu0 %v1452
        %1702 = vmatpush1.xpose.msra.mxu0 %v1451
        %1703 = vmatprep.subr.mxu0 %v1454
        %1704 = vmatpush1.xpose.msra.mxu0 %v1453
        %1705 = vmatprep.subr.mxu0 %v1456
        %1706 = vmatpush1.xpose.msra.mxu0 %v1455
        %1707 = vmatprep.subr.mxu0 %v1458
        %1708 = vmatpush1.xpose.msra.mxu0 %v1457
        %1709 = vmatprep.subr.mxu0 %v1460
        %1710 = vmatpush1.xpose.msra.mxu0 %v1459
        %1711 = vmatprep.subr.mxu0 %v1462
        %1712 = vmatpush1.xpose.msra.mxu0 %v1461
        %1713 = vmatprep.subr.mxu0 %v1464
        %1714 = vmatpush1.xpose.msra.mxu0 %v1463
        %1715 = vmatprep.subr.mxu0 %v1466
        %1716 = vmatpush1.xpose.msra.mxu0 %v1465
        %1717 = vmatprep.subr.mxu0 %v1468
        %1718 = vmatpush1.xpose.msra.mxu0 %v1467
        %1719 = vmatprep.subr.mxu0 %v1470
        %1720 = vmatpush1.xpose.msra.mxu0 %v1469
        %1721 = vmatprep.subr.mxu0 %v1472
        %1722 = vmatpush1.xpose.msra.mxu0 %v1471
        %1723 = vmatprep.subr.mxu0 %v1474
        %1724 = vmatpush1.xpose.msra.mxu0 %v1473
        %1725 = vmatprep.subr.mxu0 %v1476
        %1726 = vmatpush1.xpose.msra.mxu0 %v1475
        %1727 = vmatprep.subr.mxu0 %v1478
        %1728 = vmatpush1.xpose.msra.mxu0 %v1477
        %1729 = vmatprep.subr.mxu0 %v1480
        %1730 = vmatpush1.xpose.msra.mxu0 %v1479
        %1731 = vmatprep.mubr.f32.mxu0 %v1286
        %1732 = vmatmul.mubr.f32.gmra.mrb[0].mxu0 %v1285
        %v1733 = vpop.f32.mrb[0].mxu0
        %v1734 = vadd.f32 %v1502, %v1733
        %v1735 = vpop.f32.mrb[0].mxu0
        %v1736 = vadd.f32 %v1506, %v1735
        %1737 = vmatprep.mubr.f32.mxu0 %v1288
        %1738 = vmatmul.mubr.f32.gmra.mrb[0].mxu0 %v1287
        %v1739 = vpop.f32.mrb[0].mxu0
        %v1740 = vadd.f32 %v1502, %v1739
        %v1741 = vpop.f32.mrb[0].mxu0
        %v1742 = vadd.f32 %v1506, %v1741
        %1743 = vdwg.mxu0
        %1746 = vrot.lane.b32.xlu0 %v1580, 64
        %v1747 = vpop.permute.xlu0 %1746
        %1748 = vrot.lane.b32.xlu0 %v1586, 64
        %v1749 = vpop.permute.xlu0 %1748
        %1754 = vrot.lane.b32.xlu0 %v1582, 64
        %v1755 = vpop.permute.xlu0 %1754
        %1756 = vrot.lane.b32.xlu0 %v1588, 64
        %v1757 = vpop.permute.xlu0 %1756
        %v1760 = vmul.f32 %v1580, 0.125
        %v1761 = vmul.f32 %v1586, 0.125
        %v1762 = vmul.f32 %v1747, 0.125
        %v1763 = vmul.f32 %v1749, 0.125
        %v1764 = vmul.f32 %v1582, 0.125
        %v1765 = vmul.f32 %v1588, 0.125
        %v1766 = vmul.f32 %v1755, 0.125
        %v1767 = vmul.f32 %v1757, 0.125
        %1770 = vrot.lane.b32.xlu0 %v1657, 64
        %v1771 = vpop.permute.xlu0 %1770
        %1772 = vrot.lane.b32.xlu0 %v1663, 64
        %v1773 = vpop.permute.xlu0 %1772
        %1776 = vrot.lane.b32.xlu0 %v1659, 64
        %v1777 = vpop.permute.xlu0 %1776
        %1778 = vrot.lane.b32.xlu0 %v1665, 64
        %v1779 = vpop.permute.xlu0 %1778
        %1782 = vrot.lane.b32.xlu0 %v1734, 64
        %v1783 = vpop.permute.xlu0 %1782
        %1784 = vrot.lane.b32.xlu0 %v1740, 64
        %v1785 = vpop.permute.xlu0 %1784
        %1790 = vrot.lane.b32.xlu0 %v1736, 64
        %v1791 = vpop.permute.xlu0 %1790
        %1792 = vrot.lane.b32.xlu0 %v1742, 64
        %v1793 = vpop.permute.xlu0 %1792
        %v1796 = vlaneseq
        %v1797 = vshrl.u32 %v1796, 7
        %v1798 = vadd.s32 %v1797, 8
        %v1799 = vlaneseq
        %v1800 = vand.u32 %v1799, 127
        %vm1801 = vcmp.lt.s32.totalorder %v1797, 0
        %v1802 = vsub.s32 0, %v1797
        %v1803 = vsel %vm1801, %v1802, %v1797
        %v1804 = vshrl.u32 %v1803, 3
        %v1805 = vand.u32 %v1803, 7
        %v1806 = vsub.s32 0, %v1805
        %v1807 = vsel %vm1801, %v1806, %v1805
        %vm1808 = vcmp.lt.s32.totalorder %v1798, 0
        %v1809 = vsub.s32 0, %v1798
        %v1810 = vsel %vm1808, %v1809, %v1798
        %v1811 = vshrl.u32 %v1810, 3
        %v1812 = vand.u32 %v1810, 7
        %v1813 = vsub.s32 0, %v1812
        %v1814 = vsel %vm1808, %v1813, %v1812
        %vm1815 = vcmp.ne.s32.totalorder %v1807, 0
        %vm1816 = vcmp.ne.s32.totalorder %v1814, 0
        %vm1817 = vcmp.lt.s32.totalorder %v1807, 0
        %vm1818 = vcmp.lt.s32.totalorder %v1814, 0
        %vm1819 = vmand %vm1817, %vm1815
        %vm1820 = vmand %vm1818, %vm1816
        %v1821 = vadd.s32 %v1807, 8
        %v1822 = vadd.s32 %v1814, 8
        %v1823 = vsel %vm1819, %v1821, %v1807
        %v1824 = vsel %vm1820, %v1822, %v1814
        %v1825 = vsub.s32 %v1797, %v1823
        %v1826 = vsub.s32 %v1798, %v1824
        %vm1827 = vcmp.ge.s32.totalorder %v1800, %v1825
        %vm1828 = vcmp.ge.s32.totalorder %v1800, %v1826
        %v1829 = vadd.s32 %v1825, 8
        %v1830 = vadd.s32 %v1826, 8
        %vm1831 = vcmp.lt.s32.totalorder %v1800, %v1829
        %vm1832 = vcmp.lt.s32.totalorder %v1800, %v1830
        %vm1833 = vmand %vm1827, %vm1831
        %vm1834 = vmand %vm1828, %vm1832
        %v1835 = vsel %vm1833, 0.0, -1e+30
        %v1836 = vsel %vm1834, 0.0, -1e+30
        %vm1837 = vcmask 523264
        %v1839 = vsel %vm1837, %v1760, 0
        %v1842 = vsel %vm1837, %v1761, 0
        %v1844 = vsel %vm1837, %v1657, 0
        %v1846 = vsel %vm1837, %v1663, 0
        %1848 = vmatprep.subr.mxu0 0.0
        %1849 = vmatpush1.xpose.msra.mxu0 %v1844
        %1850 = vmatprep.subr.mxu0 0.0
        %1851 = vmatpush1.xpose.msra.mxu0 %v1846
        %1852 = vmatprep.subr.mxu0 0.0
        %1853 = vmatpush1.xpose.msra.mxu0 0.0
        %1854 = vmatprep.subr.mxu0 0.0
        %1855 = vmatpush1.xpose.msra.mxu0 0.0
        %1856 = vmatprep.subr.mxu0 0.0
        %1857 = vmatpush1.xpose.msra.mxu0 0.0
        %1858 = vmatprep.subr.mxu0 0.0
        %1859 = vmatpush1.xpose.msra.mxu0 0.0
        %1860 = vmatprep.subr.mxu0 0.0
        %1861 = vmatpush1.xpose.msra.mxu0 0.0
        %1862 = vmatprep.subr.mxu0 0.0
        %1863 = vmatpush1.xpose.msra.mxu0 0.0
        %1864 = vmatprep.subr.mxu0 0.0
        %1865 = vmatpush1.xpose.msra.mxu0 0.0
        %1866 = vmatprep.subr.mxu0 0.0
        %1867 = vmatpush1.xpose.msra.mxu0 0.0
        %1868 = vmatprep.subr.mxu0 0.0
        %1869 = vmatpush1.xpose.msra.mxu0 0.0
        %1870 = vmatprep.subr.mxu0 0.0
        %1871 = vmatpush1.xpose.msra.mxu0 0.0
        %1872 = vmatprep.subr.mxu0 0.0
        %1873 = vmatpush1.xpose.msra.mxu0 0.0
        %1874 = vmatprep.subr.mxu0 0.0
        %1875 = vmatpush1.xpose.msra.mxu0 0.0
        %1876 = vmatprep.subr.mxu0 0.0
        %1877 = vmatpush1.xpose.msra.mxu0 0.0
        %1878 = vmatprep.subr.mxu0 0.0
        %1879 = vmatpush1.xpose.msra.mxu0 0.0
        %1880 = vmatprep.subr.mxu0 0.0
        %1881 = vmatpush1.xpose.msra.mxu0 0.0
        %1882 = vmatprep.subr.mxu0 0.0
        %1883 = vmatpush1.xpose.msra.mxu0 0.0
        %1884 = vmatprep.subr.mxu0 0.0
        %1885 = vmatpush1.xpose.msra.mxu0 0.0
        %1886 = vmatprep.subr.mxu0 0.0
        %1887 = vmatpush1.xpose.msra.mxu0 0.0
        %1888 = vmatprep.subr.mxu0 0.0
        %1889 = vmatpush1.xpose.msra.mxu0 0.0
        %1890 = vmatprep.subr.mxu0 0.0
        %1891 = vmatpush1.xpose.msra.mxu0 0.0
        %1892 = vmatprep.subr.mxu0 0.0
        %1893 = vmatpush1.xpose.msra.mxu0 0.0
        %1894 = vmatprep.subr.mxu0 0.0
        %1895 = vmatpush1.xpose.msra.mxu0 0.0
        %1896 = vmatprep.subr.mxu0 0.0
        %1897 = vmatpush1.xpose.msra.mxu0 0.0
        %1898 = vmatprep.subr.mxu0 0.0
        %1899 = vmatpush1.xpose.msra.mxu0 0.0
        %1900 = vmatprep.subr.mxu0 0.0
        %1901 = vmatpush1.xpose.msra.mxu0 0.0
        %1902 = vmatprep.subr.mxu0 0.0
        %1903 = vmatpush1.xpose.msra.mxu0 0.0
        %1904 = vmatprep.subr.mxu0 0.0
        %1905 = vmatpush1.xpose.msra.mxu0 0.0
        %1906 = vmatprep.subr.mxu0 0.0
        %1907 = vmatpush1.xpose.msra.mxu0 0.0
        %1908 = vmatprep.subr.mxu0 0.0
        %1909 = vmatpush1.xpose.msra.mxu0 0.0
        %1910 = vmatprep.subr.mxu0 0.0
        %1911 = vmatpush1.xpose.msra.mxu0 0.0
        %1912 = vmatprep.mubr.f32.mxu0 0.0
        %1913 = vmatmul.mubr.f32.gmra.mrb[0].mxu0 %v1839
        %v1914 = vpop.f32.mrb[0].mxu0
        %v1915 = vadd.f32 %v1835, %v1914
        %v1916 = vpop.f32.mrb[0].mxu0
        %1917 = vmatprep.mubr.f32.mxu0 0.0
        %1918 = vmatmul.mubr.f32.gmra.mrb[0].mxu0 %v1842
        %v1919 = vpop.f32.mrb[0].mxu0
        %v1920 = vadd.f32 %v1836, %v1919
        %v1921 = vpop.f32.mrb[0].mxu0
        %1922 = vdwg.mxu0
        %v1924 = vsel %vm1837, %v1762, 0
        %v1927 = vsel %vm1837, %v1763, 0
        %v1929 = vsel %vm1837, %v1771, 0
        %v1931 = vsel %vm1837, %v1773, 0
        %1933 = vmatprep.subr.mxu0 0.0
        %1934 = vmatpush1.xpose.msra.mxu0 %v1929
        %1935 = vmatprep.subr.mxu0 0.0
        %1936 = vmatpush1.xpose.msra.mxu0 %v1931
        %1937 = vmatprep.subr.mxu0 0.0
        %1938 = vmatpush1.xpose.msra.mxu0 0.0
        %1939 = vmatprep.subr.mxu0 0.0
        %1940 = vmatpush1.xpose.msra.mxu0 0.0
        %1941 = vmatprep.subr.mxu0 0.0
        %1942 = vmatpush1.xpose.msra.mxu0 0.0
        %1943 = vmatprep.subr.mxu0 0.0
        %1944 = vmatpush1.xpose.msra.mxu0 0.0
        %1945 = vmatprep.subr.mxu0 0.0
        %1946 = vmatpush1.xpose.msra.mxu0 0.0
        %1947 = vmatprep.subr.mxu0 0.0
        %1948 = vmatpush1.xpose.msra.mxu0 0.0
        %1949 = vmatprep.subr.mxu0 0.0
        %1950 = vmatpush1.xpose.msra.mxu0 0.0
        %1951 = vmatprep.subr.mxu0 0.0
        %1952 = vmatpush1.xpose.msra.mxu0 0.0
        %1953 = vmatprep.subr.mxu0 0.0
        %1954 = vmatpush1.xpose.msra.mxu0 0.0
        %1955 = vmatprep.subr.mxu0 0.0
        %1956 = vmatpush1.xpose.msra.mxu0 0.0
        %1957 = vmatprep.subr.mxu0 0.0
        %1958 = vmatpush1.xpose.msra.mxu0 0.0
        %1959 = vmatprep.subr.mxu0 0.0
        %1960 = vmatpush1.xpose.msra.mxu0 0.0
        %1961 = vmatprep.subr.mxu0 0.0
        %1962 = vmatpush1.xpose.msra.mxu0 0.0
        %1963 = vmatprep.subr.mxu0 0.0
        %1964 = vmatpush1.xpose.msra.mxu0 0.0
        %1965 = vmatprep.subr.mxu0 0.0
        %1966 = vmatpush1.xpose.msra.mxu0 0.0
        %1967 = vmatprep.subr.mxu0 0.0
        %1968 = vmatpush1.xpose.msra.mxu0 0.0
        %1969 = vmatprep.subr.mxu0 0.0
        %1970 = vmatpush1.xpose.msra.mxu0 0.0
        %1971 = vmatprep.subr.mxu0 0.0
        %1972 = vmatpush1.xpose.msra.mxu0 0.0
        %1973 = vmatprep.subr.mxu0 0.0
        %1974 = vmatpush1.xpose.msra.mxu0 0.0
        %1975 = vmatprep.subr.mxu0 0.0
        %1976 = vmatpush1.xpose.msra.mxu0 0.0
        %1977 = vmatprep.subr.mxu0 0.0
        %1978 = vmatpush1.xpose.msra.mxu0 0.0
        %1979 = vmatprep.subr.mxu0 0.0
        %1980 = vmatpush1.xpose.msra.mxu0 0.0
        %1981 = vmatprep.subr.mxu0 0.0
        %1982 = vmatpush1.xpose.msra.mxu0 0.0
        %1983 = vmatprep.subr.mxu0 0.0
        %1984 = vmatpush1.xpose.msra.mxu0 0.0
        %1985 = vmatprep.subr.mxu0 0.0
        %1986 = vmatpush1.xpose.msra.mxu0 0.0
        %1987 = vmatprep.subr.mxu0 0.0
        %1988 = vmatpush1.xpose.msra.mxu0 0.0
        %1989 = vmatprep.subr.mxu0 0.0
        %1990 = vmatpush1.xpose.msra.mxu0 0.0
        %1991 = vmatprep.subr.mxu0 0.0
        %1992 = vmatpush1.xpose.msra.mxu0 0.0
        %1993 = vmatprep.subr.mxu0 0.0
        %1994 = vmatpush1.xpose.msra.mxu0 0.0
        %1995 = vmatprep.subr.mxu0 0.0
        %1996 = vmatpush1.xpose.msra.mxu0 0.0
        %1997 = vmatprep.mubr.f32.mxu0 0.0
        %1998 = vmatmul.mubr.f32.gmra.mrb[0].mxu0 %v1924
        %v1999 = vpop.f32.mrb[0].mxu0
        %v2000 = vadd.f32 %v1835, %v1999
        %v2001 = vpop.f32.mrb[0].mxu0
        %2002 = vmatprep.mubr.f32.mxu0 0.0
        %2003 = vmatmul.mubr.f32.gmra.mrb[0].mxu0 %v1927
        %v2004 = vpop.f32.mrb[0].mxu0
        %v2005 = vadd.f32 %v1836, %v2004
        %v2006 = vpop.f32.mrb[0].mxu0
        %2007 = vdwg.mxu0
        %v2009 = vsel %vm1837, %v1764, 0
        %v2012 = vsel %vm1837, %v1765, 0
        %v2014 = vsel %vm1837, %v1659, 0
        %v2016 = vsel %vm1837, %v1665, 0
        %2018 = vmatprep.subr.mxu0 0.0
        %2019 = vmatpush1.xpose.msra.mxu0 %v2014
        %2020 = vmatprep.subr.mxu0 0.0
        %2021 = vmatpush1.xpose.msra.mxu0 %v2016
        %2022 = vmatprep.subr.mxu0 0.0
        %2023 = vmatpush1.xpose.msra.mxu0 0.0
        %2024 = vmatprep.subr.mxu0 0.0
        %2025 = vmatpush1.xpose.msra.mxu0 0.0
        %2026 = vmatprep.subr.mxu0 0.0
        %2027 = vmatpush1.xpose.msra.mxu0 0.0
        %2028 = vmatprep.subr.mxu0 0.0
        %2029 = vmatpush1.xpose.msra.mxu0 0.0
        %2030 = vmatprep.subr.mxu0 0.0
        %2031 = vmatpush1.xpose.msra.mxu0 0.0
        %2032 = vmatprep.subr.mxu0 0.0
        %2033 = vmatpush1.xpose.msra.mxu0 0.0
        %2034 = vmatprep.subr.mxu0 0.0
        %2035 = vmatpush1.xpose.msra.mxu0 0.0
        %2036 = vmatprep.subr.mxu0 0.0
        %2037 = vmatpush1.xpose.msra.mxu0 0.0
        %2038 = vmatprep.subr.mxu0 0.0
        %2039 = vmatpush1.xpose.msra.mxu0 0.0
        %2040 = vmatprep.subr.mxu0 0.0
        %2041 = vmatpush1.xpose.msra.mxu0 0.0
        %2042 = vmatprep.subr.mxu0 0.0
        %2043 = vmatpush1.xpose.msra.mxu0 0.0
        %2044 = vmatprep.subr.mxu0 0.0
        %2045 = vmatpush1.xpose.msra.mxu0 0.0
        %2046 = vmatprep.subr.mxu0 0.0
        %2047 = vmatpush1.xpose.msra.mxu0 0.0
        %2048 = vmatprep.subr.mxu0 0.0
        %2049 = vmatpush1.xpose.msra.mxu0 0.0
        %2050 = vmatprep.subr.mxu0 0.0
        %2051 = vmatpush1.xpose.msra.mxu0 0.0
        %2052 = vmatprep.subr.mxu0 0.0
        %2053 = vmatpush1.xpose.msra.mxu0 0.0
        %2054 = vmatprep.subr.mxu0 0.0
        %2055 = vmatpush1.xpose.msra.mxu0 0.0
        %2056 = vmatprep.subr.mxu0 0.0
        %2057 = vmatpush1.xpose.msra.mxu0 0.0
        %2058 = vmatprep.subr.mxu0 0.0
        %2059 = vmatpush1.xpose.msra.mxu0 0.0
        %2060 = vmatprep.subr.mxu0 0.0
        %2061 = vmatpush1.xpose.msra.mxu0 0.0
        %2062 = vmatprep.subr.mxu0 0.0
        %2063 = vmatpush1.xpose.msra.mxu0 0.0
        %2064 = vmatprep.subr.mxu0 0.0
        %2065 = vmatpush1.xpose.msra.mxu0 0.0
        %2066 = vmatprep.subr.mxu0 0.0
        %2067 = vmatpush1.xpose.msra.mxu0 0.0
        %2068 = vmatprep.subr.mxu0 0.0
        %2069 = vmatpush1.xpose.msra.mxu0 0.0
        %2070 = vmatprep.subr.mxu0 0.0
        %2071 = vmatpush1.xpose.msra.mxu0 0.0
        %2072 = vmatprep.subr.mxu0 0.0
        %2073 = vmatpush1.xpose.msra.mxu0 0.0
        %2074 = vmatprep.subr.mxu0 0.0
        %2075 = vmatpush1.xpose.msra.mxu0 0.0
        %2076 = vmatprep.subr.mxu0 0.0
        %2077 = vmatpush1.xpose.msra.mxu0 0.0
        %2078 = vmatprep.subr.mxu0 0.0
        %2079 = vmatpush1.xpose.msra.mxu0 0.0
        %2080 = vmatprep.subr.mxu0 0.0
        %2081 = vmatpush1.xpose.msra.mxu0 0.0
        %2082 = vmatprep.mubr.f32.mxu0 0.0
        %2083 = vmatmul.mubr.f32.gmra.mrb[0].mxu0 %v2009
        %v2084 = vpop.f32.mrb[0].mxu0
        %v2085 = vadd.f32 %v1835, %v2084
        %v2086 = vpop.f32.mrb[0].mxu0
        %2087 = vmatprep.mubr.f32.mxu0 0.0
        %2088 = vmatmul.mubr.f32.gmra.mrb[0].mxu0 %v2012
        %v2089 = vpop.f32.mrb[0].mxu0
        %v2090 = vadd.f32 %v1836, %v2089
        %v2091 = vpop.f32.mrb[0].mxu0
        %2092 = vdwg.mxu0
        %v2094 = vsel %vm1837, %v1766, 0
        %v2097 = vsel %vm1837, %v1767, 0
        %v2099 = vsel %vm1837, %v1777, 0
        %v2101 = vsel %vm1837, %v1779, 0
        %2103 = vmatprep.subr.mxu0 0.0
        %2104 = vmatpush1.xpose.msra.mxu0 %v2099
        %2105 = vmatprep.subr.mxu0 0.0
        %2106 = vmatpush1.xpose.msra.mxu0 %v2101
        %2107 = vmatprep.subr.mxu0 0.0
        %2108 = vmatpush1.xpose.msra.mxu0 0.0
        %2109 = vmatprep.subr.mxu0 0.0
        %2110 = vmatpush1.xpose.msra.mxu0 0.0
        %2111 = vmatprep.subr.mxu0 0.0
        %2112 = vmatpush1.xpose.msra.mxu0 0.0
        %2113 = vmatprep.subr.mxu0 0.0
        %2114 = vmatpush1.xpose.msra.mxu0 0.0
        %2115 = vmatprep.subr.mxu0 0.0
        %2116 = vmatpush1.xpose.msra.mxu0 0.0
        %2117 = vmatprep.subr.mxu0 0.0
        %2118 = vmatpush1.xpose.msra.mxu0 0.0
        %2119 = vmatprep.subr.mxu0 0.0
        %2120 = vmatpush1.xpose.msra.mxu0 0.0
        %2121 = vmatprep.subr.mxu0 0.0
        %2122 = vmatpush1.xpose.msra.mxu0 0.0
        %2123 = vmatprep.subr.mxu0 0.0
        %2124 = vmatpush1.xpose.msra.mxu0 0.0
        %2125 = vmatprep.subr.mxu0 0.0
        %2126 = vmatpush1.xpose.msra.mxu0 0.0
        %2127 = vmatprep.subr.mxu0 0.0
        %2128 = vmatpush1.xpose.msra.mxu0 0.0
        %2129 = vmatprep.subr.mxu0 0.0
        %2130 = vmatpush1.xpose.msra.mxu0 0.0
        %2131 = vmatprep.subr.mxu0 0.0
        %2132 = vmatpush1.xpose.msra.mxu0 0.0
        %2133 = vmatprep.subr.mxu0 0.0
        %2134 = vmatpush1.xpose.msra.mxu0 0.0
        %2135 = vmatprep.subr.mxu0 0.0
        %2136 = vmatpush1.xpose.msra.mxu0 0.0
        %2137 = vmatprep.subr.mxu0 0.0
        %2138 = vmatpush1.xpose.msra.mxu0 0.0
        %2139 = vmatprep.subr.mxu0 0.0
        %2140 = vmatpush1.xpose.msra.mxu0 0.0
        %2141 = vmatprep.subr.mxu0 0.0
        %2142 = vmatpush1.xpose.msra.mxu0 0.0
        %2143 = vmatprep.subr.mxu0 0.0
        %2144 = vmatpush1.xpose.msra.mxu0 0.0
        %2145 = vmatprep.subr.mxu0 0.0
        %2146 = vmatpush1.xpose.msra.mxu0 0.0
        %2147 = vmatprep.subr.mxu0 0.0
        %2148 = vmatpush1.xpose.msra.mxu0 0.0
        %2149 = vmatprep.subr.mxu0 0.0
        %2150 = vmatpush1.xpose.msra.mxu0 0.0
        %2151 = vmatprep.subr.mxu0 0.0
        %2152 = vmatpush1.xpose.msra.mxu0 0.0
        %2153 = vmatprep.subr.mxu0 0.0
        %2154 = vmatpush1.xpose.msra.mxu0 0.0
        %2155 = vmatprep.subr.mxu0 0.0
        %2156 = vmatpush1.xpose.msra.mxu0 0.0
        %2157 = vmatprep.subr.mxu0 0.0
        %2158 = vmatpush1.xpose.msra.mxu0 0.0
        %2159 = vmatprep.subr.mxu0 0.0
        %2160 = vmatpush1.xpose.msra.mxu0 0.0
        %2161 = vmatprep.subr.mxu0 0.0
        %2162 = vmatpush1.xpose.msra.mxu0 0.0
        %2163 = vmatprep.subr.mxu0 0.0
        %2164 = vmatpush1.xpose.msra.mxu0 0.0
        %2165 = vmatprep.subr.mxu0 0.0
        %2166 = vmatpush1.xpose.msra.mxu0 0.0
        %2167 = vmatprep.mubr.f32.mxu0 0.0
        %2168 = vmatmul.mubr.f32.gmra.mrb[0].mxu0 %v2094
        %v2169 = vpop.f32.mrb[0].mxu0
        %v2170 = vadd.f32 %v1835, %v2169
        %v2171 = vpop.f32.mrb[0].mxu0
        %2172 = vmatprep.mubr.f32.mxu0 0.0
        %2173 = vmatmul.mubr.f32.gmra.mrb[0].mxu0 %v2097
        %v2174 = vpop.f32.mrb[0].mxu0
        %v2175 = vadd.f32 %v1836, %v2174
        %v2176 = vpop.f32.mrb[0].mxu0
        %2177 = vdwg.mxu0
        %vm2178 = vcmask 130048
        %v2179 = vsel %vm2178, %v1915, -inf
        %2180 = vmax.xlane.f32.xlu0 %v2179
        %v2181 = vpop.xlane.xlu0 %2180
        %v2182 = vsel %vm2178, %v1920, -inf
        %2183 = vmax.xlane.f32.xlu0 %v2182
        %v2184 = vpop.xlane.xlu0 %2183
        %v2185 = vsel %vm2178, %v2000, -inf
        %2186 = vmax.xlane.f32.xlu0 %v2185
        %v2187 = vpop.xlane.xlu0 %2186
        %v2188 = vsel %vm2178, %v2005, -inf
        %2189 = vmax.xlane.f32.xlu0 %v2188
        %v2190 = vpop.xlane.xlu0 %2189
        %v2191 = vsel %vm2178, %v2085, -inf
        %2192 = vmax.xlane.f32.xlu0 %v2191
        %v2193 = vpop.xlane.xlu0 %2192
        %v2194 = vsel %vm2178, %v2090, -inf
        %2195 = vmax.xlane.f32.xlu0 %v2194
        %v2196 = vpop.xlane.xlu0 %2195
        %v2197 = vsel %vm2178, %v2170, -inf
        %2198 = vmax.xlane.f32.xlu0 %v2197
        %v2199 = vpop.xlane.xlu0 %2198
        %v2200 = vsel %vm2178, %v2175, -inf
        %2201 = vmax.xlane.f32.xlu0 %v2200
        %v2202 = vpop.xlane.xlu0 %2201
        %v2203 = vsub.f32 %v1915, %v2181
        %v2204 = vsub.f32 %v1920, %v2184
        %v2205 = vsub.f32 %v2000, %v2187
        %v2206 = vsub.f32 %v2005, %v2190
        %v2207 = vsub.f32 %v2085, %v2193
        %v2208 = vsub.f32 %v2090, %v2196
        %v2209 = vsub.f32 %v2170, %v2199
        %v2210 = vsub.f32 %v2175, %v2202
        %v2211 = vmul.f32 %v2203, 1.442695
        %v2212 = vpow.pop %v2211
        %v2213 = vmul.f32 %v2204, 1.442695
        %v2214 = vpow.pop %v2213
        %v2215 = vmul.f32 %v2205, 1.442695
        %v2216 = vpow.pop %v2215
        %v2217 = vmul.f32 %v2206, 1.442695
        %v2218 = vpow.pop %v2217
        %v2219 = vmul.f32 %v2207, 1.442695
        %v2220 = vpow.pop %v2219
        %v2221 = vmul.f32 %v2208, 1.442695
        %v2222 = vpow.pop %v2221
        %v2223 = vmul.f32 %v2209, 1.442695
        %v2224 = vpow.pop %v2223
        %v2225 = vmul.f32 %v2210, 1.442695
        %v2226 = vpow.pop %v2225
        %v2227 = vsel %vm2178, %v2212, 0.0
        %2228 = vadd.xlane.f32.xlu0 %v2227
        %v2229 = vpop.xlane.xlu0 %2228
        %v2230 = vsel %vm2178, %v2214, 0.0
        %2231 = vadd.xlane.f32.xlu0 %v2230
        %v2232 = vpop.xlane.xlu0 %2231
        %v2233 = vsel %vm2178, %v2216, 0.0
        %2234 = vadd.xlane.f32.xlu0 %v2233
        %v2235 = vpop.xlane.xlu0 %2234
        %v2236 = vsel %vm2178, %v2218, 0.0
        %2237 = vadd.xlane.f32.xlu0 %v2236
        %v2238 = vpop.xlane.xlu0 %2237
        %v2239 = vsel %vm2178, %v2220, 0.0
        %2240 = vadd.xlane.f32.xlu0 %v2239
        %v2241 = vpop.xlane.xlu0 %2240
        %v2242 = vsel %vm2178, %v2222, 0.0
        %2243 = vadd.xlane.f32.xlu0 %v2242
        %v2244 = vpop.xlane.xlu0 %2243
        %v2245 = vsel %vm2178, %v2224, 0.0
        %2246 = vadd.xlane.f32.xlu0 %v2245
        %v2247 = vpop.xlane.xlu0 %2246
        %v2248 = vsel %vm2178, %v2226, 0.0
        %2249 = vadd.xlane.f32.xlu0 %v2248
        %v2250 = vpop.xlane.xlu0 %2249
        %v2251 = vrcp.pop %v2229
        %v2252 = vmul.f32 %v2212, %v2251
        %v2253 = vrcp.pop %v2232
        %v2254 = vmul.f32 %v2214, %v2253
        %v2255 = vrcp.pop %v2235
        %v2256 = vmul.f32 %v2216, %v2255
        %v2257 = vrcp.pop %v2238
        %v2258 = vmul.f32 %v2218, %v2257
        %v2259 = vrcp.pop %v2241
        %v2260 = vmul.f32 %v2220, %v2259
        %v2261 = vrcp.pop %v2244
        %v2262 = vmul.f32 %v2222, %v2261
        %v2263 = vrcp.pop %v2247
        %v2264 = vmul.f32 %v2224, %v2263
        %v2265 = vrcp.pop %v2250
        %v2266 = vmul.f32 %v2226, %v2265
        %v2268 = vsel %vm2178, %v2252, 0
        %v2271 = vsel %vm2178, %v2254, 0
        %2273 = vmatprep.subr.mxu0 0.0
        %2274 = vmatpush1.msra.mxu0 %v1734
        %2275 = vmatprep.subr.mxu0 0.0
        %2276 = vmatpush1.msra.mxu0 %v1740
        %2277 = vmatprep.subr.mxu0 0.0
        %2278 = vmatpush1.msra.mxu0 0.0
        %2279 = vmatprep.subr.mxu0 0.0
        %2280 = vmatpush1.msra.mxu0 0.0
        %2281 = vmatprep.subr.mxu0 0.0
        %2282 = vmatpush1.msra.mxu0 0.0
        %2283 = vmatprep.subr.mxu0 0.0
        %2284 = vmatpush1.msra.mxu0 0.0
        %2285 = vmatprep.subr.mxu0 0.0
        %2286 = vmatpush1.msra.mxu0 0.0
        %2287 = vmatprep.subr.mxu0 0.0
        %2288 = vmatpush1.msra.mxu0 0.0
        %2289 = vmatprep.subr.mxu0 0.0
        %2290 = vmatpush1.msra.mxu0 0.0
        %2291 = vmatprep.subr.mxu0 0.0
        %2292 = vmatpush1.msra.mxu0 0.0
        %2293 = vmatprep.subr.mxu0 0.0
        %2294 = vmatpush1.msra.mxu0 0.0
        %2295 = vmatprep.subr.mxu0 0.0
        %2296 = vmatpush1.msra.mxu0 0.0
        %2297 = vmatprep.subr.mxu0 0.0
        %2298 = vmatpush1.msra.mxu0 0.0
        %2299 = vmatprep.subr.mxu0 0.0
        %2300 = vmatpush1.msra.mxu0 0.0
        %2301 = vmatprep.subr.mxu0 0.0
        %2302 = vmatpush1.msra.mxu0 0.0
        %2303 = vmatprep.subr.mxu0 0.0
        %2304 = vmatpush1.msra.mxu0 0.0
        %2305 = vmatprep.subr.mxu0 0.0
        %2306 = vmatpush1.msra.mxu0 0.0
        %2307 = vmatprep.subr.mxu0 0.0
        %2308 = vmatpush1.msra.mxu0 0.0
        %2309 = vmatprep.subr.mxu0 0.0
        %2310 = vmatpush1.msra.mxu0 0.0
        %2311 = vmatprep.subr.mxu0 0.0
        %2312 = vmatpush1.msra.mxu0 0.0
        %2313 = vmatprep.subr.mxu0 0.0
        %2314 = vmatpush1.msra.mxu0 0.0
        %2315 = vmatprep.subr.mxu0 0.0
        %2316 = vmatpush1.msra.mxu0 0.0
        %2317 = vmatprep.subr.mxu0 0.0
        %2318 = vmatpush1.msra.mxu0 0.0
        %2319 = vmatprep.subr.mxu0 0.0
        %2320 = vmatpush1.msra.mxu0 0.0
        %2321 = vmatprep.subr.mxu0 0.0
        %2322 = vmatpush1.msra.mxu0 0.0
        %2323 = vmatprep.subr.mxu0 0.0
        %2324 = vmatpush1.msra.mxu0 0.0
        %2325 = vmatprep.subr.mxu0 0.0
        %2326 = vmatpush1.msra.mxu0 0.0
        %2327 = vmatprep.subr.mxu0 0.0
        %2328 = vmatpush1.msra.mxu0 0.0
        %2329 = vmatprep.subr.mxu0 0.0
        %2330 = vmatpush1.msra.mxu0 0.0
        %2331 = vmatprep.subr.mxu0 0.0
        %2332 = vmatpush1.msra.mxu0 0.0
        %2333 = vmatprep.subr.mxu0 0.0
        %2334 = vmatpush1.msra.mxu0 0.0
        %2335 = vmatprep.subr.mxu0 0.0
        %2336 = vmatpush1.msra.mxu0 0.0
        %2337 = vmatprep.mubr.f32.mxu0 0.0
        %2338 = vmatmul.mubr.f32.gmra.mrb[0].mxu0 %v2268
        %v2339 = vpop.f32.mrb[0].mxu0
        %v2340 = vadd.f32 0.0, %v2339
        %v2341 = vpop.f32.mrb[0].mxu0
        %2342 = vmatprep.mubr.f32.mxu0 0.0
        %2343 = vmatmul.mubr.f32.gmra.mrb[0].mxu0 %v2271
        %v2344 = vpop.f32.mrb[0].mxu0
        %v2345 = vadd.f32 0.0, %v2344
        %v2346 = vpop.f32.mrb[0].mxu0
        %2347 = vdwg.mxu0
        %v2349 = vsel %vm2178, %v2256, 0
        %v2352 = vsel %vm2178, %v2258, 0
        %2354 = vmatprep.subr.mxu0 0.0
        %2355 = vmatpush1.msra.mxu0 %v1783
        %2356 = vmatprep.subr.mxu0 0.0
        %2357 = vmatpush1.msra.mxu0 %v1785
        %2358 = vmatprep.subr.mxu0 0.0
        %2359 = vmatpush1.msra.mxu0 0.0
        %2360 = vmatprep.subr.mxu0 0.0
        %2361 = vmatpush1.msra.mxu0 0.0
        %2362 = vmatprep.subr.mxu0 0.0
        %2363 = vmatpush1.msra.mxu0 0.0
        %2364 = vmatprep.subr.mxu0 0.0
        %2365 = vmatpush1.msra.mxu0 0.0
        %2366 = vmatprep.subr.mxu0 0.0
        %2367 = vmatpush1.msra.mxu0 0.0
        %2368 = vmatprep.subr.mxu0 0.0
        %2369 = vmatpush1.msra.mxu0 0.0
        %2370 = vmatprep.subr.mxu0 0.0
        %2371 = vmatpush1.msra.mxu0 0.0
        %2372 = vmatprep.subr.mxu0 0.0
        %2373 = vmatpush1.msra.mxu0 0.0
        %2374 = vmatprep.subr.mxu0 0.0
        %2375 = vmatpush1.msra.mxu0 0.0
        %2376 = vmatprep.subr.mxu0 0.0
        %2377 = vmatpush1.msra.mxu0 0.0
        %2378 = vmatprep.subr.mxu0 0.0
        %2379 = vmatpush1.msra.mxu0 0.0
        %2380 = vmatprep.subr.mxu0 0.0
        %2381 = vmatpush1.msra.mxu0 0.0
        %2382 = vmatprep.subr.mxu0 0.0
        %2383 = vmatpush1.msra.mxu0 0.0
        %2384 = vmatprep.subr.mxu0 0.0
        %2385 = vmatpush1.msra.mxu0 0.0
        %2386 = vmatprep.subr.mxu0 0.0
        %2387 = vmatpush1.msra.mxu0 0.0
        %2388 = vmatprep.subr.mxu0 0.0
        %2389 = vmatpush1.msra.mxu0 0.0
        %2390 = vmatprep.subr.mxu0 0.0
        %2391 = vmatpush1.msra.mxu0 0.0
        %2392 = vmatprep.subr.mxu0 0.0
        %2393 = vmatpush1.msra.mxu0 0.0
        %2394 = vmatprep.subr.mxu0 0.0
        %2395 = vmatpush1.msra.mxu0 0.0
        %2396 = vmatprep.subr.mxu0 0.0
        %2397 = vmatpush1.msra.mxu0 0.0
        %2398 = vmatprep.subr.mxu0 0.0
        %2399 = vmatpush1.msra.mxu0 0.0
        %2400 = vmatprep.subr.mxu0 0.0
        %2401 = vmatpush1.msra.mxu0 0.0
        %2402 = vmatprep.subr.mxu0 0.0
        %2403 = vmatpush1.msra.mxu0 0.0
        %2404 = vmatprep.subr.mxu0 0.0
        %2405 = vmatpush1.msra.mxu0 0.0
        %2406 = vmatprep.subr.mxu0 0.0
        %2407 = vmatpush1.msra.mxu0 0.0
        %2408 = vmatprep.subr.mxu0 0.0
        %2409 = vmatpush1.msra.mxu0 0.0
        %2410 = vmatprep.subr.mxu0 0.0
        %2411 = vmatpush1.msra.mxu0 0.0
        %2412 = vmatprep.subr.mxu0 0.0
        %2413 = vmatpush1.msra.mxu0 0.0
        %2414 = vmatprep.subr.mxu0 0.0
        %2415 = vmatpush1.msra.mxu0 0.0
        %2416 = vmatprep.subr.mxu0 0.0
        %2417 = vmatpush1.msra.mxu0 0.0
        %2418 = vmatprep.mubr.f32.mxu0 0.0
        %2419 = vmatmul.mubr.f32.gmra.mrb[0].mxu0 %v2349
        %v2420 = vpop.f32.mrb[0].mxu0
        %v2421 = vadd.f32 0.0, %v2420
        %v2422 = vpop.f32.mrb[0].mxu0
        %2423 = vmatprep.mubr.f32.mxu0 0.0
        %2424 = vmatmul.mubr.f32.gmra.mrb[0].mxu0 %v2352
        %v2425 = vpop.f32.mrb[0].mxu0
        %v2426 = vadd.f32 0.0, %v2425
        %v2427 = vpop.f32.mrb[0].mxu0
        %2428 = vdwg.mxu0
        %v2430 = vsel %vm2178, %v2260, 0
        %v2433 = vsel %vm2178, %v2262, 0
        %2435 = vmatprep.subr.mxu0 0.0
        %2436 = vmatpush1.msra.mxu0 %v1736
        %2437 = vmatprep.subr.mxu0 0.0
        %2438 = vmatpush1.msra.mxu0 %v1742
        %2439 = vmatprep.subr.mxu0 0.0
        %2440 = vmatpush1.msra.mxu0 0.0
        %2441 = vmatprep.subr.mxu0 0.0
        %2442 = vmatpush1.msra.mxu0 0.0
        %2443 = vmatprep.subr.mxu0 0.0
        %2444 = vmatpush1.msra.mxu0 0.0
        %2445 = vmatprep.subr.mxu0 0.0
        %2446 = vmatpush1.msra.mxu0 0.0
        %2447 = vmatprep.subr.mxu0 0.0
        %2448 = vmatpush1.msra.mxu0 0.0
        %2449 = vmatprep.subr.mxu0 0.0
        %2450 = vmatpush1.msra.mxu0 0.0
        %2451 = vmatprep.subr.mxu0 0.0
        %2452 = vmatpush1.msra.mxu0 0.0
        %2453 = vmatprep.subr.mxu0 0.0
        %2454 = vmatpush1.msra.mxu0 0.0
        %2455 = vmatprep.subr.mxu0 0.0
        %2456 = vmatpush1.msra.mxu0 0.0
        %2457 = vmatprep.subr.mxu0 0.0
        %2458 = vmatpush1.msra.mxu0 0.0
        %2459 = vmatprep.subr.mxu0 0.0
        %2460 = vmatpush1.msra.mxu0 0.0
        %2461 = vmatprep.subr.mxu0 0.0
        %2462 = vmatpush1.msra.mxu0 0.0
        %2463 = vmatprep.subr.mxu0 0.0
        %2464 = vmatpush1.msra.mxu0 0.0
        %2465 = vmatprep.subr.mxu0 0.0
        %2466 = vmatpush1.msra.mxu0 0.0
        %2467 = vmatprep.subr.mxu0 0.0
        %2468 = vmatpush1.msra.mxu0 0.0
        %2469 = vmatprep.subr.mxu0 0.0
        %2470 = vmatpush1.msra.mxu0 0.0
        %2471 = vmatprep.subr.mxu0 0.0
        %2472 = vmatpush1.msra.mxu0 0.0
        %2473 = vmatprep.subr.mxu0 0.0
        %2474 = vmatpush1.msra.mxu0 0.0
        %2475 = vmatprep.subr.mxu0 0.0
        %2476 = vmatpush1.msra.mxu0 0.0
        %2477 = vmatprep.subr.mxu0 0.0
        %2478 = vmatpush1.msra.mxu0 0.0
        %2479 = vmatprep.subr.mxu0 0.0
        %2480 = vmatpush1.msra.mxu0 0.0
        %2481 = vmatprep.subr.mxu0 0.0
        %2482 = vmatpush1.msra.mxu0 0.0
        %2483 = vmatprep.subr.mxu0 0.0
        %2484 = vmatpush1.msra.mxu0 0.0
        %2485 = vmatprep.subr.mxu0 0.0
        %2486 = vmatpush1.msra.mxu0 0.0
        %2487 = vmatprep.subr.mxu0 0.0
        %2488 = vmatpush1.msra.mxu0 0.0
        %2489 = vmatprep.subr.mxu0 0.0
        %2490 = vmatpush1.msra.mxu0 0.0
        %2491 = vmatprep.subr.mxu0 0.0
        %2492 = vmatpush1.msra.mxu0 0.0
        %2493 = vmatprep.subr.mxu0 0.0
        %2494 = vmatpush1.msra.mxu0 0.0
        %2495 = vmatprep.subr.mxu0 0.0
        %2496 = vmatpush1.msra.mxu0 0.0
        %2497 = vmatprep.subr.mxu0 0.0
        %2498 = vmatpush1.msra.mxu0 0.0
        %2499 = vmatprep.mubr.f32.mxu0 0.0
        %2500 = vmatmul.mubr.f32.gmra.mrb[0].mxu0 %v2430
        %v2501 = vpop.f32.mrb[0].mxu0
        %v2502 = vadd.f32 0.0, %v2501
        %v2503 = vpop.f32.mrb[0].mxu0
        %2504 = vmatprep.mubr.f32.mxu0 0.0
        %2505 = vmatmul.mubr.f32.gmra.mrb[0].mxu0 %v2433
        %v2506 = vpop.f32.mrb[0].mxu0
        %v2507 = vadd.f32 0.0, %v2506
        %v2508 = vpop.f32.mrb[0].mxu0
        %2509 = vdwg.mxu0
        %v2511 = vsel %vm2178, %v2264, 0
        %v2514 = vsel %vm2178, %v2266, 0
        %2516 = vmatprep.subr.mxu0 0.0
        %2517 = vmatpush1.msra.mxu0 %v1791
        %2518 = vmatprep.subr.mxu0 0.0
        %2519 = vmatpush1.msra.mxu0 %v1793
        %2520 = vmatprep.subr.mxu0 0.0
        %2521 = vmatpush1.msra.mxu0 0.0
        %2522 = vmatprep.subr.mxu0 0.0
        %2523 = vmatpush1.msra.mxu0 0.0
        %2524 = vmatprep.subr.mxu0 0.0
        %2525 = vmatpush1.msra.mxu0 0.0
        %2526 = vmatprep.subr.mxu0 0.0
        %2527 = vmatpush1.msra.mxu0 0.0
        %2528 = vmatprep.subr.mxu0 0.0
        %2529 = vmatpush1.msra.mxu0 0.0
        %2530 = vmatprep.subr.mxu0 0.0
        %2531 = vmatpush1.msra.mxu0 0.0
        %2532 = vmatprep.subr.mxu0 0.0
        %2533 = vmatpush1.msra.mxu0 0.0
        %2534 = vmatprep.subr.mxu0 0.0
        %2535 = vmatpush1.msra.mxu0 0.0
        %2536 = vmatprep.subr.mxu0 0.0
        %2537 = vmatpush1.msra.mxu0 0.0
        %2538 = vmatprep.subr.mxu0 0.0
        %2539 = vmatpush1.msra.mxu0 0.0
        %2540 = vmatprep.subr.mxu0 0.0
        %2541 = vmatpush1.msra.mxu0 0.0
        %2542 = vmatprep.subr.mxu0 0.0
        %2543 = vmatpush1.msra.mxu0 0.0
        %2544 = vmatprep.subr.mxu0 0.0
        %2545 = vmatpush1.msra.mxu0 0.0
        %2546 = vmatprep.subr.mxu0 0.0
        %2547 = vmatpush1.msra.mxu0 0.0
        %2548 = vmatprep.subr.mxu0 0.0
        %2549 = vmatpush1.msra.mxu0 0.0
        %2550 = vmatprep.subr.mxu0 0.0
        %2551 = vmatpush1.msra.mxu0 0.0
        %2552 = vmatprep.subr.mxu0 0.0
        %2553 = vmatpush1.msra.mxu0 0.0
        %2554 = vmatprep.subr.mxu0 0.0
        %2555 = vmatpush1.msra.mxu0 0.0
        %2556 = vmatprep.subr.mxu0 0.0
        %2557 = vmatpush1.msra.mxu0 0.0
        %2558 = vmatprep.subr.mxu0 0.0
        %2559 = vmatpush1.msra.mxu0 0.0
        %2560 = vmatprep.subr.mxu0 0.0
        %2561 = vmatpush1.msra.mxu0 0.0
        %2562 = vmatprep.subr.mxu0 0.0
        %2563 = vmatpush1.msra.mxu0 0.0
        %2564 = vmatprep.subr.mxu0 0.0
        %2565 = vmatpush1.msra.mxu0 0.0
        %2566 = vmatprep.subr.mxu0 0.0
        %2567 = vmatpush1.msra.mxu0 0.0
        %2568 = vmatprep.subr.mxu0 0.0
        %2569 = vmatpush1.msra.mxu0 0.0
        %2570 = vmatprep.subr.mxu0 0.0
        %2571 = vmatpush1.msra.mxu0 0.0
        %2572 = vmatprep.subr.mxu0 0.0
        %2573 = vmatpush1.msra.mxu0 0.0
        %2574 = vmatprep.subr.mxu0 0.0
        %2575 = vmatpush1.msra.mxu0 0.0
        %2576 = vmatprep.subr.mxu0 0.0
        %2577 = vmatpush1.msra.mxu0 0.0
        %2578 = vmatprep.subr.mxu0 0.0
        %2579 = vmatpush1.msra.mxu0 0.0
        %2580 = vmatprep.mubr.f32.mxu0 0.0
        %2581 = vmatmul.mubr.f32.gmra.mrb[0].mxu0 %v2511
        %v2582 = vpop.f32.mrb[0].mxu0
        %v2583 = vadd.f32 0.0, %v2582
        %v2584 = vpop.f32.mrb[0].mxu0
        %2585 = vmatprep.mubr.f32.mxu0 0.0
        %2586 = vmatmul.mubr.f32.gmra.mrb[0].mxu0 %v2514
        %v2587 = vpop.f32.mrb[0].mxu0
        %v2588 = vadd.f32 0.0, %v2587
        %v2589 = vpop.f32.mrb[0].mxu0
        %2590 = vdwg.mxu0
        %2593 = vrot.lane.b32.xlu0 %v2421, 64
        %v2594 = vpop.permute.xlu0 %2593
        %2595 = vrot.lane.b32.xlu0 %v2426, 64
        %v2596 = vpop.permute.xlu0 %2595
        %2601 = vrot.lane.b32.xlu0 %v2583, 64
        %v2602 = vpop.permute.xlu0 %2601
        %2603 = vrot.lane.b32.xlu0 %v2588, 64
        %v2604 = vpop.permute.xlu0 %2603
        %v2607 = vsel %vm1837, %v2340, %v2594
        %v2608 = vsel %vm1837, %v2345, %v2596
        %v2609 = vsel %vm1837, %v2502, %v2602
        %v2610 = vsel %vm1837, %v2507, %v2604
        %v2611 = vld [vmem:[%s1115] sm:$0xff]
        %v2612 = vld [vmem:[%s1115 + $0x8] sm:$0xff]
        %v2613 = vld [vmem:[%s1115 + $0x10] sm:$0xff]
        %v2614 = vld [vmem:[%s1115 + $0x18] sm:$0xff]
        %v2615 = vld [vmem:[%s1115 + $0x20] sm:$0xff]
        %v2616 = vld [vmem:[%s1115 + $0x28] sm:$0xff]
        %v2617 = vld [vmem:[%s1115 + $0x30] sm:$0xff]
        %v2618 = vld [vmem:[%s1115 + $0x38] sm:$0xff]
        %v2619 = vld [vmem:[%s1115 + $0x40] sm:$0xff]
        %v2620 = vld [vmem:[%s1115 + $0x48] sm:$0xff]
        %v2621 = vld [vmem:[%s1115 + $0x50] sm:$0xff]
        %v2622 = vld [vmem:[%s1115 + $0x58] sm:$0xff]
        %v2623 = vld [vmem:[%s1115 + $0x60] sm:$0xff]
        %v2624 = vld [vmem:[%s1115 + $0x68] sm:$0xff]
        %v2625 = vld [vmem:[%s1115 + $0x70] sm:$0xff]
        %v2626 = vld [vmem:[%s1115 + $0x78] sm:$0xff]
        %v2627 = vld [vmem:[%s1115 + $0x80] sm:$0xff]
        %v2628 = vld [vmem:[%s1115 + $0x88] sm:$0xff]
        %v2629 = vld [vmem:[%s1115 + $0x90] sm:$0xff]
        %v2630 = vld [vmem:[%s1115 + $0x98] sm:$0xff]
        %v2631 = vld [vmem:[%s1115 + $0xa0] sm:$0xff]
        %v2632 = vld [vmem:[%s1115 + $0xa8] sm:$0xff]
        %v2633 = vld [vmem:[%s1115 + $0xb0] sm:$0xff]
        %v2634 = vld [vmem:[%s1115 + $0xb8] sm:$0xff]
        %v2635 = vld [vmem:[%s1115 + $0xc0] sm:$0xff]
        %v2636 = vld [vmem:[%s1115 + $0xc8] sm:$0xff]
        %v2637 = vld [vmem:[%s1115 + $0xd0] sm:$0xff]
        %v2638 = vld [vmem:[%s1115 + $0xd8] sm:$0xff]
        %v2639 = vld [vmem:[%s1115 + $0xe0] sm:$0xff]
        %v2640 = vld [vmem:[%s1115 + $0xe8] sm:$0xff]
        %v2641 = vld [vmem:[%s1115 + $0xf0] sm:$0xff]
        %v2642 = vld [vmem:[%s1115 + $0xf8] sm:$0xff]
        %v2643 = vld [vmem:[%s1115 + $0x100] sm:$0xff]
        %v2644 = vld [vmem:[%s1115 + $0x108] sm:$0xff]
        %v2645 = vld [vmem:[%s1115 + $0x110] sm:$0xff]
        %v2646 = vld [vmem:[%s1115 + $0x118] sm:$0xff]
        %v2647 = vld [vmem:[%s1115 + $0x120] sm:$0xff]
        %v2648 = vld [vmem:[%s1115 + $0x128] sm:$0xff]
        %v2649 = vld [vmem:[%s1115 + $0x130] sm:$0xff]
        %v2650 = vld [vmem:[%s1115 + $0x138] sm:$0xff]
        %v2651 = vld [vmem:[%s1115 + $0x140] sm:$0xff]
        %v2652 = vld [vmem:[%s1115 + $0x148] sm:$0xff]
        %v2653 = vld [vmem:[%s1115 + $0x150] sm:$0xff]
        %v2654 = vld [vmem:[%s1115 + $0x158] sm:$0xff]
        %v2655 = vld [vmem:[%s1115 + $0x160] sm:$0xff]
        %v2656 = vld [vmem:[%s1115 + $0x168] sm:$0xff]
        %v2657 = vld [vmem:[%s1115 + $0x170] sm:$0xff]
        %v2658 = vld [vmem:[%s1115 + $0x178] sm:$0xff]
        %v2659 = vld [vmem:[%s1115 + $0x180] sm:$0xff]
        %v2660 = vld [vmem:[%s1115 + $0x188] sm:$0xff]
        %v2661 = vld [vmem:[%s1115 + $0x190] sm:$0xff]
        %v2662 = vld [vmem:[%s1115 + $0x198] sm:$0xff]
        %v2663 = vld [vmem:[%s1115 + $0x1a0] sm:$0xff]
        %v2664 = vld [vmem:[%s1115 + $0x1a8] sm:$0xff]
        %v2665 = vld [vmem:[%s1115 + $0x1b0] sm:$0xff]
        %v2666 = vld [vmem:[%s1115 + $0x1b8] sm:$0xff]
        %v2667 = vld [vmem:[%s1115 + $0x1c0] sm:$0xff]
        %v2668 = vld [vmem:[%s1115 + $0x1c8] sm:$0xff]
        %v2669 = vld [vmem:[%s1115 + $0x1d0] sm:$0xff]
        %v2670 = vld [vmem:[%s1115 + $0x1d8] sm:$0xff]
        %v2671 = vld [vmem:[%s1115 + $0x1e0] sm:$0xff]
        %v2672 = vld [vmem:[%s1115 + $0x1e8] sm:$0xff]
        %v2673 = vld [vmem:[%s1115 + $0x1f0] sm:$0xff]
        %v2674 = vld [vmem:[%s1115 + $0x1f8] sm:$0xff]
        %v2675 = vld [vmem:[%s1119] sm:$0x3]
        %v2677 = vlaneseq
        %v2678 = vshrl.u32 %v2677, 7
        %v2679 = vsub.s32 0, %v2678
        %v2680 = vrot.slane %v2675, %v2679
        %v2681 = vlaneseq
        %v2682 = vshrl.u32 %v2681, 7
        %v2683 = vsub.s32 1, %v2682
        %v2684 = vrot.slane %v2675, %v2683
        %2687 = vmatprep.subr.mxu0 %v2612
        %2688 = vmatpush1.xpose.msra.mxu0 %v2611
        %2689 = vmatprep.subr.mxu0 %v2614
        %2690 = vmatpush1.xpose.msra.mxu0 %v2613
        %2691 = vmatprep.subr.mxu0 %v2616
        %2692 = vmatpush1.xpose.msra.mxu0 %v2615
        %2693 = vmatprep.subr.mxu0 %v2618
        %2694 = vmatpush1.xpose.msra.mxu0 %v2617
        %2695 = vmatprep.subr.mxu0 %v2620
        %2696 = vmatpush1.xpose.msra.mxu0 %v2619
        %2697 = vmatprep.subr.mxu0 %v2622
        %2698 = vmatpush1.xpose.msra.mxu0 %v2621
        %2699 = vmatprep.subr.mxu0 %v2624
        %2700 = vmatpush1.xpose.msra.mxu0 %v2623
        %2701 = vmatprep.subr.mxu0 %v2626
        %2702 = vmatpush1.xpose.msra.mxu0 %v2625
        %2703 = vmatprep.subr.mxu0 %v2628
        %2704 = vmatpush1.xpose.msra.mxu0 %v2627
        %2705 = vmatprep.subr.mxu0 %v2630
        %2706 = vmatpush1.xpose.msra.mxu0 %v2629
        %2707 = vmatprep.subr.mxu0 %v2632
        %2708 = vmatpush1.xpose.msra.mxu0 %v2631
        %2709 = vmatprep.subr.mxu0 %v2634
        %2710 = vmatpush1.xpose.msra.mxu0 %v2633
        %2711 = vmatprep.subr.mxu0 %v2636
        %2712 = vmatpush1.xpose.msra.mxu0 %v2635
        %2713 = vmatprep.subr.mxu0 %v2638
        %2714 = vmatpush1.xpose.msra.mxu0 %v2637
        %2715 = vmatprep.subr.mxu0 %v2640
        %2716 = vmatpush1.xpose.msra.mxu0 %v2639
        %2717 = vmatprep.subr.mxu0 %v2642
        %2718 = vmatpush1.xpose.msra.mxu0 %v2641
        %2719 = vmatprep.subr.mxu0 %v2644
        %2720 = vmatpush1.xpose.msra.mxu0 %v2643
        %2721 = vmatprep.subr.mxu0 %v2646
        %2722 = vmatpush1.xpose.msra.mxu0 %v2645
        %2723 = vmatprep.subr.mxu0 %v2648
        %2724 = vmatpush1.xpose.msra.mxu0 %v2647
        %2725 = vmatprep.subr.mxu0 %v2650
        %2726 = vmatpush1.xpose.msra.mxu0 %v2649
        %2727 = vmatprep.subr.mxu0 %v2652
        %2728 = vmatpush1.xpose.msra.mxu0 %v2651
        %2729 = vmatprep.subr.mxu0 %v2654
        %2730 = vmatpush1.xpose.msra.mxu0 %v2653
        %2731 = vmatprep.subr.mxu0 %v2656
        %2732 = vmatpush1.xpose.msra.mxu0 %v2655
        %2733 = vmatprep.subr.mxu0 %v2658
        %2734 = vmatpush1.xpose.msra.mxu0 %v2657
        %2735 = vmatprep.subr.mxu0 %v2660
        %2736 = vmatpush1.xpose.msra.mxu0 %v2659
        %2737 = vmatprep.subr.mxu0 %v2662
        %2738 = vmatpush1.xpose.msra.mxu0 %v2661
        %2739 = vmatprep.subr.mxu0 %v2664
        %2740 = vmatpush1.xpose.msra.mxu0 %v2663
        %2741 = vmatprep.subr.mxu0 %v2666
        %2742 = vmatpush1.xpose.msra.mxu0 %v2665
        %2743 = vmatprep.subr.mxu0 %v2668
        %2744 = vmatpush1.xpose.msra.mxu0 %v2667
        %2745 = vmatprep.subr.mxu0 %v2670
        %2746 = vmatpush1.xpose.msra.mxu0 %v2669
        %2747 = vmatprep.subr.mxu0 %v2672
        %2748 = vmatpush1.xpose.msra.mxu0 %v2671
        %2749 = vmatprep.subr.mxu0 %v2674
        %2750 = vmatpush1.xpose.msra.mxu0 %v2673
        %2751 = vmatprep.mubr.f32.mxu0 %v2609
        %2752 = vmatmul.mubr.f32.gmra.mrb[0].mxu0 %v2607
        %v2753 = vpop.f32.mrb[0].mxu0
        %v2754 = vadd.f32 %v2680, %v2753
        %v2755 = vpop.f32.mrb[0].mxu0
        %v2756 = vadd.f32 %v2684, %v2755
        %2757 = vmatprep.mubr.f32.mxu0 %v2610
        %2758 = vmatmul.mubr.f32.gmra.mrb[0].mxu0 %v2608
        %v2759 = vpop.f32.mrb[0].mxu0
        %v2760 = vadd.f32 %v2680, %v2759
        %v2761 = vpop.f32.mrb[0].mxu0
        %v2762 = vadd.f32 %v2684, %v2761
        %2763 = vdwg.mxu0
        %v2764 = vadd.f32 %v1285, %v2754
        %v2765 = vadd.f32 %v1286, %v2756
        %v2766 = vadd.f32 %v1287, %v2760
        %v2767 = vadd.f32 %v1288, %v2762
        %v2768 = vld [vmem:[%s915] sm:$0x3]
        %v2769 = vld [vmem:[%s924] sm:$0x3]
        %v2770 = vadd.f32 %v2764, %v2765
        %2771 = vadd.xlane.f32.xlu0 %v2770
        %v2772 = vpop.xlane.xlu0 %2771
        %v2773 = vadd.f32 %v2766, %v2767
        %2774 = vadd.xlane.f32.xlu0 %v2773
        %v2775 = vpop.xlane.xlu0 %2774
        %v2776 = vrcp.pop 256.0
        %v2777 = vmul.f32 %v2772, %v2776
        %v2778 = vmul.f32 %v2775, %v2776
        %v2779 = vsub.f32 %v2764, %v2777
        %v2780 = vsub.f32 %v2765, %v2777
        %v2781 = vsub.f32 %v2766, %v2778
        %v2782 = vsub.f32 %v2767, %v2778
        %v2783 = vmul.f32 %v2779, %v2779
        %v2784 = vmul.f32 %v2780, %v2780
        %v2785 = vmul.f32 %v2781, %v2781
        %v2786 = vmul.f32 %v2782, %v2782
        %v2787 = vadd.f32 %v2783, %v2784
        %2788 = vadd.xlane.f32.xlu0 %v2787
        %v2789 = vpop.xlane.xlu0 %2788
        %v2790 = vadd.f32 %v2785, %v2786
        %2791 = vadd.xlane.f32.xlu0 %v2790
        %v2792 = vpop.xlane.xlu0 %2791
        %v2793 = vmul.f32 %v2789, %v2776
        %v2794 = vmul.f32 %v2792, %v2776
        %v2795 = vadd.f32 %v2793, 1e-05
        %v2796 = vadd.f32 %v2794, 1e-05
        %v2797 = vrsqrt.pop %v2795
        %v2798 = vrsqrt.pop %v2796
        %v2799 = vmul.f32 %v2779, %v2797
        %v2800 = vmul.f32 %v2780, %v2797
        %v2801 = vmul.f32 %v2781, %v2798
        %v2802 = vmul.f32 %v2782, %v2798
        %v2804 = vlaneseq
        %v2805 = vshrl.u32 %v2804, 7
        %v2806 = vsub.s32 0, %v2805
        %v2807 = vrot.slane %v2768, %v2806
        %v2808 = vlaneseq
        %v2809 = vshrl.u32 %v2808, 7
        %v2810 = vsub.s32 1, %v2809
        %v2811 = vrot.slane %v2768, %v2810
        %v2814 = vmul.f32 %v2799, %v2807
        %v2815 = vmul.f32 %v2800, %v2811
        %v2816 = vmul.f32 %v2801, %v2807
        %v2817 = vmul.f32 %v2802, %v2811
        %v2819 = vlaneseq
        %v2820 = vshrl.u32 %v2819, 7
        %v2821 = vsub.s32 0, %v2820
        %v2822 = vrot.slane %v2769, %v2821
        %v2823 = vlaneseq
        %v2824 = vshrl.u32 %v2823, 7
        %v2825 = vsub.s32 1, %v2824
        %v2826 = vrot.slane %v2769, %v2825
        %v2829 = vadd.f32 %v2814, %v2822
        %v2830 = vadd.f32 %v2815, %v2826
        %v2831 = vadd.f32 %v2816, %v2822
        %v2832 = vadd.f32 %v2817, %v2826
        %v2833 = vld [vmem:[%s2] sm:$0xf]
        %v2834 = vld [vmem:[%s1124] sm:$0xff]
        %v2835 = vld [vmem:[%s1124 + $0x8] sm:$0xff]
        %v2836 = vld [vmem:[%s1124 + $0x10] sm:$0xff]
        %v2837 = vld [vmem:[%s1124 + $0x18] sm:$0xff]
        %v2838 = vld [vmem:[%s1124 + $0x20] sm:$0xff]
        %v2839 = vld [vmem:[%s1124 + $0x28] sm:$0xff]
        %v2840 = vld [vmem:[%s1124 + $0x30] sm:$0xff]
        %v2841 = vld [vmem:[%s1124 + $0x38] sm:$0xff]
        %v2842 = vld [vmem:[%s1124 + $0x40] sm:$0xff]
        %v2843 = vld [vmem:[%s1124 + $0x48] sm:$0xff]
        %v2844 = vld [vmem:[%s1124 + $0x50] sm:$0xff]
        %v2845 = vld [vmem:[%s1124 + $0x58] sm:$0xff]
        %v2846 = vld [vmem:[%s1124 + $0x60] sm:$0xff]
        %v2847 = vld [vmem:[%s1124 + $0x68] sm:$0xff]
        %v2848 = vld [vmem:[%s1124 + $0x70] sm:$0xff]
        %v2849 = vld [vmem:[%s1124 + $0x78] sm:$0xff]
        %v2850 = vld [vmem:[%s1124 + $0x80] sm:$0xff]
        %v2851 = vld [vmem:[%s1124 + $0x88] sm:$0xff]
        %v2852 = vld [vmem:[%s1124 + $0x90] sm:$0xff]
        %v2853 = vld [vmem:[%s1124 + $0x98] sm:$0xff]
        %v2854 = vld [vmem:[%s1124 + $0xa0] sm:$0xff]
        %v2855 = vld [vmem:[%s1124 + $0xa8] sm:$0xff]
        %v2856 = vld [vmem:[%s1124 + $0xb0] sm:$0xff]
        %v2857 = vld [vmem:[%s1124 + $0xb8] sm:$0xff]
        %v2858 = vld [vmem:[%s1124 + $0xc0] sm:$0xff]
        %v2859 = vld [vmem:[%s1124 + $0xc8] sm:$0xff]
        %v2860 = vld [vmem:[%s1124 + $0xd0] sm:$0xff]
        %v2861 = vld [vmem:[%s1124 + $0xd8] sm:$0xff]
        %v2862 = vld [vmem:[%s1124 + $0xe0] sm:$0xff]
        %v2863 = vld [vmem:[%s1124 + $0xe8] sm:$0xff]
        %v2864 = vld [vmem:[%s1124 + $0xf0] sm:$0xff]
        %v2865 = vld [vmem:[%s1124 + $0xf8] sm:$0xff]
        %v2866 = vld [vmem:[%s1124 + $0x100] sm:$0xff]
        %v2867 = vld [vmem:[%s1124 + $0x108] sm:$0xff]
        %v2868 = vld [vmem:[%s1124 + $0x110] sm:$0xff]
        %v2869 = vld [vmem:[%s1124 + $0x118] sm:$0xff]
        %v2870 = vld [vmem:[%s1124 + $0x120] sm:$0xff]
        %v2871 = vld [vmem:[%s1124 + $0x128] sm:$0xff]
        %v2872 = vld [vmem:[%s1124 + $0x130] sm:$0xff]
        %v2873 = vld [vmem:[%s1124 + $0x138] sm:$0xff]
        %v2874 = vld [vmem:[%s1124 + $0x140] sm:$0xff]
        %v2875 = vld [vmem:[%s1124 + $0x148] sm:$0xff]
        %v2876 = vld [vmem:[%s1124 + $0x150] sm:$0xff]
        %v2877 = vld [vmem:[%s1124 + $0x158] sm:$0xff]
        %v2878 = vld [vmem:[%s1124 + $0x160] sm:$0xff]
        %v2879 = vld [vmem:[%s1124 + $0x168] sm:$0xff]
        %v2880 = vld [vmem:[%s1124 + $0x170] sm:$0xff]
        %v2881 = vld [vmem:[%s1124 + $0x178] sm:$0xff]
        %v2882 = vld [vmem:[%s1124 + $0x180] sm:$0xff]
        %v2883 = vld [vmem:[%s1124 + $0x188] sm:$0xff]
        %v2884 = vld [vmem:[%s1124 + $0x190] sm:$0xff]
        %v2885 = vld [vmem:[%s1124 + $0x198] sm:$0xff]
        %v2886 = vld [vmem:[%s1124 + $0x1a0] sm:$0xff]
        %v2887 = vld [vmem:[%s1124 + $0x1a8] sm:$0xff]
        %v2888 = vld [vmem:[%s1124 + $0x1b0] sm:$0xff]
        %v2889 = vld [vmem:[%s1124 + $0x1b8] sm:$0xff]
        %v2890 = vld [vmem:[%s1124 + $0x1c0] sm:$0xff]
        %v2891 = vld [vmem:[%s1124 + $0x1c8] sm:$0xff]
        %v2892 = vld [vmem:[%s1124 + $0x1d0] sm:$0xff]
        %v2893 = vld [vmem:[%s1124 + $0x1d8] sm:$0xff]
        %v2894 = vld [vmem:[%s1124 + $0x1e0] sm:$0xff]
        %v2895 = vld [vmem:[%s1124 + $0x1e8] sm:$0xff]
        %v2896 = vld [vmem:[%s1124 + $0x1f0] sm:$0xff]
        %v2897 = vld [vmem:[%s1124 + $0x1f8] sm:$0xff]
        %v2898 = vld [vmem:[%s1128] sm:$0x3]
        %v2900 = vlaneseq
        %v2901 = vshrl.u32 %v2900, 7
        %v2902 = vsub.s32 0, %v2901
        %v2903 = vrot.slane %v2898, %v2902
        %v2904 = vlaneseq
        %v2905 = vshrl.u32 %v2904, 7
        %v2906 = vsub.s32 1, %v2905
        %v2907 = vrot.slane %v2898, %v2906
        %v2912 = vunpack.c.l.s4 1983009808
        %v2913 = vunpack.c.0.s8 %v2912
        %v2914 = vlaneseq
        %v2915 = vshrl.u32 %v2914, 7
        %v2916 = vsub.s32 %v2913, %v2915
        %v2917 = vrot.slane %v2833, %v2916
        %v2918 = vcombine.high %v2917, %v2917
        %2921 = vmatprep.subr.mxu0 %v2835
        %2922 = vmatpush1.xpose.msra.mxu0 %v2834
        %2923 = vmatprep.subr.mxu0 %v2837
        %2924 = vmatpush1.xpose.msra.mxu0 %v2836
        %2925 = vmatprep.subr.mxu0 %v2839
        %2926 = vmatpush1.xpose.msra.mxu0 %v2838
        %2927 = vmatprep.subr.mxu0 %v2841
        %2928 = vmatpush1.xpose.msra.mxu0 %v2840
        %2929 = vmatprep.subr.mxu0 %v2843
        %2930 = vmatpush1.xpose.msra.mxu0 %v2842
        %2931 = vmatprep.subr.mxu0 %v2845
        %2932 = vmatpush1.xpose.msra.mxu0 %v2844
        %2933 = vmatprep.subr.mxu0 %v2847
        %2934 = vmatpush1.xpose.msra.mxu0 %v2846
        %2935 = vmatprep.subr.mxu0 %v2849
        %2936 = vmatpush1.xpose.msra.mxu0 %v2848
        %2937 = vmatprep.subr.mxu0 %v2851
        %2938 = vmatpush1.xpose.msra.mxu0 %v2850
        %2939 = vmatprep.subr.mxu0 %v2853
        %2940 = vmatpush1.xpose.msra.mxu0 %v2852
        %2941 = vmatprep.subr.mxu0 %v2855
        %2942 = vmatpush1.xpose.msra.mxu0 %v2854
        %2943 = vmatprep.subr.mxu0 %v2857
        %2944 = vmatpush1.xpose.msra.mxu0 %v2856
        %2945 = vmatprep.subr.mxu0 %v2859
        %2946 = vmatpush1.xpose.msra.mxu0 %v2858
        %2947 = vmatprep.subr.mxu0 %v2861
        %2948 = vmatpush1.xpose.msra.mxu0 %v2860
        %2949 = vmatprep.subr.mxu0 %v2863
        %2950 = vmatpush1.xpose.msra.mxu0 %v2862
        %2951 = vmatprep.subr.mxu0 %v2865
        %2952 = vmatpush1.xpose.msra.mxu0 %v2864
        %2953 = vmatprep.subr.mxu0 %v2867
        %2954 = vmatpush1.xpose.msra.mxu0 %v2866
        %2955 = vmatprep.subr.mxu0 %v2869
        %2956 = vmatpush1.xpose.msra.mxu0 %v2868
        %2957 = vmatprep.subr.mxu0 %v2871
        %2958 = vmatpush1.xpose.msra.mxu0 %v2870
        %2959 = vmatprep.subr.mxu0 %v2873
        %2960 = vmatpush1.xpose.msra.mxu0 %v2872
        %2961 = vmatprep.subr.mxu0 %v2875
        %2962 = vmatpush1.xpose.msra.mxu0 %v2874
        %2963 = vmatprep.subr.mxu0 %v2877
        %2964 = vmatpush1.xpose.msra.mxu0 %v2876
        %2965 = vmatprep.subr.mxu0 %v2879
        %2966 = vmatpush1.xpose.msra.mxu0 %v2878
        %2967 = vmatprep.subr.mxu0 %v2881
        %2968 = vmatpush1.xpose.msra.mxu0 %v2880
        %2969 = vmatprep.subr.mxu0 %v2883
        %2970 = vmatpush1.xpose.msra.mxu0 %v2882
        %2971 = vmatprep.subr.mxu0 %v2885
        %2972 = vmatpush1.xpose.msra.mxu0 %v2884
        %2973 = vmatprep.subr.mxu0 %v2887
        %2974 = vmatpush1.xpose.msra.mxu0 %v2886
        %2975 = vmatprep.subr.mxu0 %v2889
        %2976 = vmatpush1.xpose.msra.mxu0 %v2888
        %2977 = vmatprep.subr.mxu0 %v2891
        %2978 = vmatpush1.xpose.msra.mxu0 %v2890
        %2979 = vmatprep.subr.mxu0 %v2893
        %2980 = vmatpush1.xpose.msra.mxu0 %v2892
        %2981 = vmatprep.subr.mxu0 %v2895
        %2982 = vmatpush1.xpose.msra.mxu0 %v2894
        %2983 = vmatprep.subr.mxu0 %v2897
        %2984 = vmatpush1.xpose.msra.mxu0 %v2896
        %2985 = vmatprep.mubr.f32.mxu0 %v2918
        %2986 = vmatmul.mubr.f32.gmra.mrb[0].mxu0 %v2917
        %v2987 = vpop.f32.mrb[0].mxu0
        %v2988 = vadd.f32 %v2903, %v2987
        %v2989 = vpop.f32.mrb[0].mxu0
        %v2990 = vadd.f32 %v2907, %v2989
        %2991 = vdwg.mxu0
        %v2992 = vld [vmem:[%s1133] sm:$0xff]
        %v2993 = vld [vmem:[%s1133 + $0x8] sm:$0xff]
        %v2994 = vld [vmem:[%s1133 + $0x10] sm:$0xff]
        %v2995 = vld [vmem:[%s1133 + $0x18] sm:$0xff]
        %v2996 = vld [vmem:[%s1133 + $0x20] sm:$0xff]
        %v2997 = vld [vmem:[%s1133 + $0x28] sm:$0xff]
        %v2998 = vld [vmem:[%s1133 + $0x30] sm:$0xff]
        %v2999 = vld [vmem:[%s1133 + $0x38] sm:$0xff]
        %v3000 = vld [vmem:[%s1133 + $0x40] sm:$0xff]
        %v3001 = vld [vmem:[%s1133 + $0x48] sm:$0xff]
        %v3002 = vld [vmem:[%s1133 + $0x50] sm:$0xff]
        %v3003 = vld [vmem:[%s1133 + $0x58] sm:$0xff]
        %v3004 = vld [vmem:[%s1133 + $0x60] sm:$0xff]
        %v3005 = vld [vmem:[%s1133 + $0x68] sm:$0xff]
        %v3006 = vld [vmem:[%s1133 + $0x70] sm:$0xff]
        %v3007 = vld [vmem:[%s1133 + $0x78] sm:$0xff]
        %v3008 = vld [vmem:[%s1133 + $0x80] sm:$0xff]
        %v3009 = vld [vmem:[%s1133 + $0x88] sm:$0xff]
        %v3010 = vld [vmem:[%s1133 + $0x90] sm:$0xff]
        %v3011 = vld [vmem:[%s1133 + $0x98] sm:$0xff]
        %v3012 = vld [vmem:[%s1133 + $0xa0] sm:$0xff]
        %v3013 = vld [vmem:[%s1133 + $0xa8] sm:$0xff]
        %v3014 = vld [vmem:[%s1133 + $0xb0] sm:$0xff]
        %v3015 = vld [vmem:[%s1133 + $0xb8] sm:$0xff]
        %v3016 = vld [vmem:[%s1133 + $0xc0] sm:$0xff]
        %v3017 = vld [vmem:[%s1133 + $0xc8] sm:$0xff]
        %v3018 = vld [vmem:[%s1133 + $0xd0] sm:$0xff]
        %v3019 = vld [vmem:[%s1133 + $0xd8] sm:$0xff]
        %v3020 = vld [vmem:[%s1133 + $0xe0] sm:$0xff]
        %v3021 = vld [vmem:[%s1133 + $0xe8] sm:$0xff]
        %v3022 = vld [vmem:[%s1133 + $0xf0] sm:$0xff]
        %v3023 = vld [vmem:[%s1133 + $0xf8] sm:$0xff]
        %v3024 = vld [vmem:[%s1133 + $0x100] sm:$0xff]
        %v3025 = vld [vmem:[%s1133 + $0x108] sm:$0xff]
        %v3026 = vld [vmem:[%s1133 + $0x110] sm:$0xff]
        %v3027 = vld [vmem:[%s1133 + $0x118] sm:$0xff]
        %v3028 = vld [vmem:[%s1133 + $0x120] sm:$0xff]
        %v3029 = vld [vmem:[%s1133 + $0x128] sm:$0xff]
        %v3030 = vld [vmem:[%s1133 + $0x130] sm:$0xff]
        %v3031 = vld [vmem:[%s1133 + $0x138] sm:$0xff]
        %v3032 = vld [vmem:[%s1133 + $0x140] sm:$0xff]
        %v3033 = vld [vmem:[%s1133 + $0x148] sm:$0xff]
        %v3034 = vld [vmem:[%s1133 + $0x150] sm:$0xff]
        %v3035 = vld [vmem:[%s1133 + $0x158] sm:$0xff]
        %v3036 = vld [vmem:[%s1133 + $0x160] sm:$0xff]
        %v3037 = vld [vmem:[%s1133 + $0x168] sm:$0xff]
        %v3038 = vld [vmem:[%s1133 + $0x170] sm:$0xff]
        %v3039 = vld [vmem:[%s1133 + $0x178] sm:$0xff]
        %v3040 = vld [vmem:[%s1133 + $0x180] sm:$0xff]
        %v3041 = vld [vmem:[%s1133 + $0x188] sm:$0xff]
        %v3042 = vld [vmem:[%s1133 + $0x190] sm:$0xff]
        %v3043 = vld [vmem:[%s1133 + $0x198] sm:$0xff]
        %v3044 = vld [vmem:[%s1133 + $0x1a0] sm:$0xff]
        %v3045 = vld [vmem:[%s1133 + $0x1a8] sm:$0xff]
        %v3046 = vld [vmem:[%s1133 + $0x1b0] sm:$0xff]
        %v3047 = vld [vmem:[%s1133 + $0x1b8] sm:$0xff]
        %v3048 = vld [vmem:[%s1133 + $0x1c0] sm:$0xff]
        %v3049 = vld [vmem:[%s1133 + $0x1c8] sm:$0xff]
        %v3050 = vld [vmem:[%s1133 + $0x1d0] sm:$0xff]
        %v3051 = vld [vmem:[%s1133 + $0x1d8] sm:$0xff]
        %v3052 = vld [vmem:[%s1133 + $0x1e0] sm:$0xff]
        %v3053 = vld [vmem:[%s1133 + $0x1e8] sm:$0xff]
        %v3054 = vld [vmem:[%s1133 + $0x1f0] sm:$0xff]
        %v3055 = vld [vmem:[%s1133 + $0x1f8] sm:$0xff]
        %v3056 = vld [vmem:[%s1137] sm:$0x3]
        %v3058 = vlaneseq
        %v3059 = vshrl.u32 %v3058, 7
        %v3060 = vsub.s32 0, %v3059
        %v3061 = vrot.slane %v3056, %v3060
        %v3062 = vlaneseq
        %v3063 = vshrl.u32 %v3062, 7
        %v3064 = vsub.s32 1, %v3063
        %v3065 = vrot.slane %v3056, %v3064
        %3068 = vmatprep.subr.mxu0 %v2993
        %3069 = vmatpush1.xpose.msra.mxu0 %v2992
        %3070 = vmatprep.subr.mxu0 %v2995
        %3071 = vmatpush1.xpose.msra.mxu0 %v2994
        %3072 = vmatprep.subr.mxu0 %v2997
        %3073 = vmatpush1.xpose.msra.mxu0 %v2996
        %3074 = vmatprep.subr.mxu0 %v2999
        %3075 = vmatpush1.xpose.msra.mxu0 %v2998
        %3076 = vmatprep.subr.mxu0 %v3001
        %3077 = vmatpush1.xpose.msra.mxu0 %v3000
        %3078 = vmatprep.subr.mxu0 %v3003
        %3079 = vmatpush1.xpose.msra.mxu0 %v3002
        %3080 = vmatprep.subr.mxu0 %v3005
        %3081 = vmatpush1.xpose.msra.mxu0 %v3004
        %3082 = vmatprep.subr.mxu0 %v3007
        %3083 = vmatpush1.xpose.msra.mxu0 %v3006
        %3084 = vmatprep.subr.mxu0 %v3009
        %3085 = vmatpush1.xpose.msra.mxu0 %v3008
        %3086 = vmatprep.subr.mxu0 %v3011
        %3087 = vmatpush1.xpose.msra.mxu0 %v3010
        %3088 = vmatprep.subr.mxu0 %v3013
        %3089 = vmatpush1.xpose.msra.mxu0 %v3012
        %3090 = vmatprep.subr.mxu0 %v3015
        %3091 = vmatpush1.xpose.msra.mxu0 %v3014
        %3092 = vmatprep.subr.mxu0 %v3017
        %3093 = vmatpush1.xpose.msra.mxu0 %v3016
        %3094 = vmatprep.subr.mxu0 %v3019
        %3095 = vmatpush1.xpose.msra.mxu0 %v3018
        %3096 = vmatprep.subr.mxu0 %v3021
        %3097 = vmatpush1.xpose.msra.mxu0 %v3020
        %3098 = vmatprep.subr.mxu0 %v3023
        %3099 = vmatpush1.xpose.msra.mxu0 %v3022
        %3100 = vmatprep.subr.mxu0 %v3025
        %3101 = vmatpush1.xpose.msra.mxu0 %v3024
        %3102 = vmatprep.subr.mxu0 %v3027
        %3103 = vmatpush1.xpose.msra.mxu0 %v3026
        %3104 = vmatprep.subr.mxu0 %v3029
        %3105 = vmatpush1.xpose.msra.mxu0 %v3028
        %3106 = vmatprep.subr.mxu0 %v3031
        %3107 = vmatpush1.xpose.msra.mxu0 %v3030
        %3108 = vmatprep.subr.mxu0 %v3033
        %3109 = vmatpush1.xpose.msra.mxu0 %v3032
        %3110 = vmatprep.subr.mxu0 %v3035
        %3111 = vmatpush1.xpose.msra.mxu0 %v3034
        %3112 = vmatprep.subr.mxu0 %v3037
        %3113 = vmatpush1.xpose.msra.mxu0 %v3036
        %3114 = vmatprep.subr.mxu0 %v3039
        %3115 = vmatpush1.xpose.msra.mxu0 %v3038
        %3116 = vmatprep.subr.mxu0 %v3041
        %3117 = vmatpush1.xpose.msra.mxu0 %v3040
        %3118 = vmatprep.subr.mxu0 %v3043
        %3119 = vmatpush1.xpose.msra.mxu0 %v3042
        %3120 = vmatprep.subr.mxu0 %v3045
        %3121 = vmatpush1.xpose.msra.mxu0 %v3044
        %3122 = vmatprep.subr.mxu0 %v3047
        %3123 = vmatpush1.xpose.msra.mxu0 %v3046
        %3124 = vmatprep.subr.mxu0 %v3049
        %3125 = vmatpush1.xpose.msra.mxu0 %v3048
        %3126 = vmatprep.subr.mxu0 %v3051
        %3127 = vmatpush1.xpose.msra.mxu0 %v3050
        %3128 = vmatprep.subr.mxu0 %v3053
        %3129 = vmatpush1.xpose.msra.mxu0 %v3052
        %3130 = vmatprep.subr.mxu0 %v3055
        %3131 = vmatpush1.xpose.msra.mxu0 %v3054
        %3132 = vmatprep.mubr.f32.mxu0 %v2990
        %3133 = vmatmul.mubr.f32.gmra.mrb[0].mxu0 %v2988
        %v3134 = vpop.f32.mrb[0].mxu0
        %v3135 = vadd.f32 %v3061, %v3134
        %v3136 = vpop.f32.mrb[0].mxu0
        %v3137 = vadd.f32 %v3065, %v3136
        %3138 = vdwg.mxu0
        %v3141 = vcombine.low %v3135, %v3137
        %v3143 = vunpack.c.l.s4 1966171168
        %v3144 = vunpack.c.0.s8 %v3143
        %v3145 = vlaneseq
        %v3146 = vshrl.u32 %v3145, 7
        %v3147 = vsub.s32 %v3144, %v3146
        %v3148 = vrot.slane %v3141, %v3147
        %v3149 = vcombine.high %v3148, %v3148
        %v3151 = vunpack.c.l.s4 1966171168
        %v3152 = vunpack.c.0.s8 %v3151
        %v3153 = vlaneseq
        %v3154 = vshrl.u32 %v3153, 7
        %v3155 = vsub.s32 %v3152, %v3154
        %v3156 = vrot.slane %v3148, %v3155
        %v3158 = vunpack.c.l.s4 1966171168
        %v3159 = vunpack.c.0.s8 %v3158
        %v3160 = vlaneseq
        %v3161 = vshrl.u32 %v3160, 7
        %v3162 = vsub.s32 %v3159, %v3161
        %v3163 = vrot.slane %v3149, %v3162
        %v3164 = vlaneseq
        %v3165 = vshrl.u32 %v3164, 7
        %v3166 = vsub.s32 0, %v3165
        %v3167 = vrot.slane %v3156, %v3166
        %v3168 = vlaneseq
        %v3169 = vshrl.u32 %v3168, 7
        %v3170 = vsub.s32 1, %v3169
        %v3171 = vrot.slane %v3156, %v3170
        %v3172 = vlaneseq
        %v3173 = vshrl.u32 %v3172, 7
        %v3174 = vsub.s32 0, %v3173
        %v3175 = vrot.slane %v3163, %v3174
        %v3176 = vlaneseq
        %v3177 = vshrl.u32 %v3176, 7
        %v3178 = vsub.s32 1, %v3177
        %v3179 = vrot.slane %v3163, %v3178
        %v3184 = vadd.f32 %v2829, %v3167
        %v3185 = vadd.f32 %v2830, %v3171
        %v3186 = vadd.f32 %v2831, %v3175
        %v3187 = vadd.f32 %v2832, %v3179
        %v3188 = vld [vmem:[%s933] sm:$0x3]
        %v3189 = vld [vmem:[%s942] sm:$0x3]
        %v3190 = vadd.f32 %v3184, %v3185
        %3191 = vadd.xlane.f32.xlu0 %v3190
        %v3192 = vpop.xlane.xlu0 %3191
        %v3193 = vadd.f32 %v3186, %v3187
        %3194 = vadd.xlane.f32.xlu0 %v3193
        %v3195 = vpop.xlane.xlu0 %3194
        %v3196 = vmul.f32 %v3192, %v2776
        %v3197 = vmul.f32 %v3195, %v2776
        %v3198 = vsub.f32 %v3184, %v3196
        %v3199 = vsub.f32 %v3185, %v3196
        %v3200 = vsub.f32 %v3186, %v3197
        %v3201 = vsub.f32 %v3187, %v3197
        %v3202 = vmul.f32 %v3198, %v3198
        %v3203 = vmul.f32 %v3199, %v3199
        %v3204 = vmul.f32 %v3200, %v3200
        %v3205 = vmul.f32 %v3201, %v3201
        %v3206 = vadd.f32 %v3202, %v3203
        %3207 = vadd.xlane.f32.xlu0 %v3206
        %v3208 = vpop.xlane.xlu0 %3207
        %v3209 = vadd.f32 %v3204, %v3205
        %3210 = vadd.xlane.f32.xlu0 %v3209
        %v3211 = vpop.xlane.xlu0 %3210
        %v3212 = vmul.f32 %v3208, %v2776
        %v3213 = vmul.f32 %v3211, %v2776
        %v3214 = vadd.f32 %v3212, 1e-05
        %v3215 = vadd.f32 %v3213, 1e-05
        %v3216 = vrsqrt.pop %v3214
        %v3217 = vrsqrt.pop %v3215
        %v3218 = vmul.f32 %v3198, %v3216
        %v3219 = vmul.f32 %v3199, %v3216
        %v3220 = vmul.f32 %v3200, %v3217
        %v3221 = vmul.f32 %v3201, %v3217
        %v3223 = vlaneseq
        %v3224 = vshrl.u32 %v3223, 7
        %v3225 = vsub.s32 0, %v3224
        %v3226 = vrot.slane %v3188, %v3225
        %v3227 = vlaneseq
        %v3228 = vshrl.u32 %v3227, 7
        %v3229 = vsub.s32 1, %v3228
        %v3230 = vrot.slane %v3188, %v3229
        %v3233 = vmul.f32 %v3218, %v3226
        %v3234 = vmul.f32 %v3219, %v3230
        %v3235 = vmul.f32 %v3220, %v3226
        %v3236 = vmul.f32 %v3221, %v3230
        %v3238 = vlaneseq
        %v3239 = vshrl.u32 %v3238, 7
        %v3240 = vsub.s32 0, %v3239
        %v3241 = vrot.slane %v3189, %v3240
        %v3242 = vlaneseq
        %v3243 = vshrl.u32 %v3242, 7
        %v3244 = vsub.s32 1, %v3243
        %v3245 = vrot.slane %v3189, %v3244
        %v3248 = vadd.f32 %v3233, %v3241
        %v3249 = vadd.f32 %v3234, %v3245
        %v3250 = vadd.f32 %v3235, %v3241
        %v3251 = vadd.f32 %v3236, %v3245
        %v3252 = vld [vmem:[%s1142] sm:$0xff]
        %v3253 = vld [vmem:[%s1142 + $0x8] sm:$0xff]
        %v3254 = vld [vmem:[%s1142 + $0x10] sm:$0xff]
        %v3255 = vld [vmem:[%s1142 + $0x18] sm:$0xff]
        %v3256 = vld [vmem:[%s1142 + $0x20] sm:$0xff]
        %v3257 = vld [vmem:[%s1142 + $0x28] sm:$0xff]
        %v3258 = vld [vmem:[%s1142 + $0x30] sm:$0xff]
        %v3259 = vld [vmem:[%s1142 + $0x38] sm:$0xff]
        %v3260 = vld [vmem:[%s1142 + $0x40] sm:$0xff]
        %v3261 = vld [vmem:[%s1142 + $0x48] sm:$0xff]
        %v3262 = vld [vmem:[%s1142 + $0x50] sm:$0xff]
        %v3263 = vld [vmem:[%s1142 + $0x58] sm:$0xff]
        %v3264 = vld [vmem:[%s1142 + $0x60] sm:$0xff]
        %v3265 = vld [vmem:[%s1142 + $0x68] sm:$0xff]
        %v3266 = vld [vmem:[%s1142 + $0x70] sm:$0xff]
        %v3267 = vld [vmem:[%s1142 + $0x78] sm:$0xff]
        %v3268 = vld [vmem:[%s1142 + $0x80] sm:$0xff]
        %v3269 = vld [vmem:[%s1142 + $0x88] sm:$0xff]
        %v3270 = vld [vmem:[%s1142 + $0x90] sm:$0xff]
        %v3271 = vld [vmem:[%s1142 + $0x98] sm:$0xff]
        %v3272 = vld [vmem:[%s1142 + $0xa0] sm:$0xff]
        %v3273 = vld [vmem:[%s1142 + $0xa8] sm:$0xff]
        %v3274 = vld [vmem:[%s1142 + $0xb0] sm:$0xff]
        %v3275 = vld [vmem:[%s1142 + $0xb8] sm:$0xff]
        %v3276 = vld [vmem:[%s1142 + $0xc0] sm:$0xff]
        %v3277 = vld [vmem:[%s1142 + $0xc8] sm:$0xff]
        %v3278 = vld [vmem:[%s1142 + $0xd0] sm:$0xff]
        %v3279 = vld [vmem:[%s1142 + $0xd8] sm:$0xff]
        %v3280 = vld [vmem:[%s1142 + $0xe0] sm:$0xff]
        %v3281 = vld [vmem:[%s1142 + $0xe8] sm:$0xff]
        %v3282 = vld [vmem:[%s1142 + $0xf0] sm:$0xff]
        %v3283 = vld [vmem:[%s1142 + $0xf8] sm:$0xff]
        %v3284 = vld [vmem:[%s1142 + $0x100] sm:$0xff]
        %v3285 = vld [vmem:[%s1142 + $0x108] sm:$0xff]
        %v3286 = vld [vmem:[%s1142 + $0x110] sm:$0xff]
        %v3287 = vld [vmem:[%s1142 + $0x118] sm:$0xff]
        %v3288 = vld [vmem:[%s1142 + $0x120] sm:$0xff]
        %v3289 = vld [vmem:[%s1142 + $0x128] sm:$0xff]
        %v3290 = vld [vmem:[%s1142 + $0x130] sm:$0xff]
        %v3291 = vld [vmem:[%s1142 + $0x138] sm:$0xff]
        %v3292 = vld [vmem:[%s1142 + $0x140] sm:$0xff]
        %v3293 = vld [vmem:[%s1142 + $0x148] sm:$0xff]
        %v3294 = vld [vmem:[%s1142 + $0x150] sm:$0xff]
        %v3295 = vld [vmem:[%s1142 + $0x158] sm:$0xff]
        %v3296 = vld [vmem:[%s1142 + $0x160] sm:$0xff]
        %v3297 = vld [vmem:[%s1142 + $0x168] sm:$0xff]
        %v3298 = vld [vmem:[%s1142 + $0x170] sm:$0xff]
        %v3299 = vld [vmem:[%s1142 + $0x178] sm:$0xff]
        %v3300 = vld [vmem:[%s1142 + $0x180] sm:$0xff]
        %v3301 = vld [vmem:[%s1142 + $0x188] sm:$0xff]
        %v3302 = vld [vmem:[%s1142 + $0x190] sm:$0xff]
        %v3303 = vld [vmem:[%s1142 + $0x198] sm:$0xff]
        %v3304 = vld [vmem:[%s1142 + $0x1a0] sm:$0xff]
        %v3305 = vld [vmem:[%s1142 + $0x1a8] sm:$0xff]
        %v3306 = vld [vmem:[%s1142 + $0x1b0] sm:$0xff]
        %v3307 = vld [vmem:[%s1142 + $0x1b8] sm:$0xff]
        %v3308 = vld [vmem:[%s1142 + $0x1c0] sm:$0xff]
        %v3309 = vld [vmem:[%s1142 + $0x1c8] sm:$0xff]
        %v3310 = vld [vmem:[%s1142 + $0x1d0] sm:$0xff]
        %v3311 = vld [vmem:[%s1142 + $0x1d8] sm:$0xff]
        %v3312 = vld [vmem:[%s1142 + $0x1e0] sm:$0xff]
        %v3313 = vld [vmem:[%s1142 + $0x1e8] sm:$0xff]
        %v3314 = vld [vmem:[%s1142 + $0x1f0] sm:$0xff]
        %v3315 = vld [vmem:[%s1142 + $0x1f8] sm:$0xff]
        %v3316 = vld [vmem:[%s1142 + $0x200] sm:$0xff]
        %v3317 = vld [vmem:[%s1142 + $0x208] sm:$0xff]
        %v3318 = vld [vmem:[%s1142 + $0x210] sm:$0xff]
        %v3319 = vld [vmem:[%s1142 + $0x218] sm:$0xff]
        %v3320 = vld [vmem:[%s1142 + $0x220] sm:$0xff]
        %v3321 = vld [vmem:[%s1142 + $0x228] sm:$0xff]
        %v3322 = vld [vmem:[%s1142 + $0x230] sm:$0xff]
        %v3323 = vld [vmem:[%s1142 + $0x238] sm:$0xff]
        %v3324 = vld [vmem:[%s1142 + $0x240] sm:$0xff]
        %v3325 = vld [vmem:[%s1142 + $0x248] sm:$0xff]
        %v3326 = vld [vmem:[%s1142 + $0x250] sm:$0xff]
        %v3327 = vld [vmem:[%s1142 + $0x258] sm:$0xff]
        %v3328 = vld [vmem:[%s1142 + $0x260] sm:$0xff]
        %v3329 = vld [vmem:[%s1142 + $0x268] sm:$0xff]
        %v3330 = vld [vmem:[%s1142 + $0x270] sm:$0xff]
        %v3331 = vld [vmem:[%s1142 + $0x278] sm:$0xff]
        %v3332 = vld [vmem:[%s1142 + $0x280] sm:$0xff]
        %v3333 = vld [vmem:[%s1142 + $0x288] sm:$0xff]
        %v3334 = vld [vmem:[%s1142 + $0x290] sm:$0xff]
        %v3335 = vld [vmem:[%s1142 + $0x298] sm:$0xff]
        %v3336 = vld [vmem:[%s1142 + $0x2a0] sm:$0xff]
        %v3337 = vld [vmem:[%s1142 + $0x2a8] sm:$0xff]
        %v3338 = vld [vmem:[%s1142 + $0x2b0] sm:$0xff]
        %v3339 = vld [vmem:[%s1142 + $0x2b8] sm:$0xff]
        %v3340 = vld [vmem:[%s1142 + $0x2c0] sm:$0xff]
        %v3341 = vld [vmem:[%s1142 + $0x2c8] sm:$0xff]
        %v3342 = vld [vmem:[%s1142 + $0x2d0] sm:$0xff]
        %v3343 = vld [vmem:[%s1142 + $0x2d8] sm:$0xff]
        %v3344 = vld [vmem:[%s1142 + $0x2e0] sm:$0xff]
        %v3345 = vld [vmem:[%s1142 + $0x2e8] sm:$0xff]
        %v3346 = vld [vmem:[%s1142 + $0x2f0] sm:$0xff]
        %v3347 = vld [vmem:[%s1142 + $0x2f8] sm:$0xff]
        %v3348 = vld [vmem:[%s1142 + $0x300] sm:$0xff]
        %v3349 = vld [vmem:[%s1142 + $0x308] sm:$0xff]
        %v3350 = vld [vmem:[%s1142 + $0x310] sm:$0xff]
        %v3351 = vld [vmem:[%s1142 + $0x318] sm:$0xff]
        %v3352 = vld [vmem:[%s1142 + $0x320] sm:$0xff]
        %v3353 = vld [vmem:[%s1142 + $0x328] sm:$0xff]
        %v3354 = vld [vmem:[%s1142 + $0x330] sm:$0xff]
        %v3355 = vld [vmem:[%s1142 + $0x338] sm:$0xff]
        %v3356 = vld [vmem:[%s1142 + $0x340] sm:$0xff]
        %v3357 = vld [vmem:[%s1142 + $0x348] sm:$0xff]
        %v3358 = vld [vmem:[%s1142 + $0x350] sm:$0xff]
        %v3359 = vld [vmem:[%s1142 + $0x358] sm:$0xff]
        %v3360 = vld [vmem:[%s1142 + $0x360] sm:$0xff]
        %v3361 = vld [vmem:[%s1142 + $0x368] sm:$0xff]
        %v3362 = vld [vmem:[%s1142 + $0x370] sm:$0xff]
        %v3363 = vld [vmem:[%s1142 + $0x378] sm:$0xff]
        %v3364 = vld [vmem:[%s1142 + $0x380] sm:$0xff]
        %v3365 = vld [vmem:[%s1142 + $0x388] sm:$0xff]
        %v3366 = vld [vmem:[%s1142 + $0x390] sm:$0xff]
        %v3367 = vld [vmem:[%s1142 + $0x398] sm:$0xff]
        %v3368 = vld [vmem:[%s1142 + $0x3a0] sm:$0xff]
        %v3369 = vld [vmem:[%s1142 + $0x3a8] sm:$0xff]
        %v3370 = vld [vmem:[%s1142 + $0x3b0] sm:$0xff]
        %v3371 = vld [vmem:[%s1142 + $0x3b8] sm:$0xff]
        %v3372 = vld [vmem:[%s1142 + $0x3c0] sm:$0xff]
        %v3373 = vld [vmem:[%s1142 + $0x3c8] sm:$0xff]
        %v3374 = vld [vmem:[%s1142 + $0x3d0] sm:$0xff]
        %v3375 = vld [vmem:[%s1142 + $0x3d8] sm:$0xff]
        %v3376 = vld [vmem:[%s1142 + $0x3e0] sm:$0xff]
        %v3377 = vld [vmem:[%s1142 + $0x3e8] sm:$0xff]
        %v3378 = vld [vmem:[%s1142 + $0x3f0] sm:$0xff]
        %v3379 = vld [vmem:[%s1142 + $0x3f8] sm:$0xff]
        %v3380 = vld [vmem:[%s1142 + $0x400] sm:$0xff]
        %v3381 = vld [vmem:[%s1142 + $0x408] sm:$0xff]
        %v3382 = vld [vmem:[%s1142 + $0x410] sm:$0xff]
        %v3383 = vld [vmem:[%s1142 + $0x418] sm:$0xff]
        %v3384 = vld [vmem:[%s1142 + $0x420] sm:$0xff]
        %v3385 = vld [vmem:[%s1142 + $0x428] sm:$0xff]
        %v3386 = vld [vmem:[%s1142 + $0x430] sm:$0xff]
        %v3387 = vld [vmem:[%s1142 + $0x438] sm:$0xff]
        %v3388 = vld [vmem:[%s1142 + $0x440] sm:$0xff]
        %v3389 = vld [vmem:[%s1142 + $0x448] sm:$0xff]
        %v3390 = vld [vmem:[%s1142 + $0x450] sm:$0xff]
        %v3391 = vld [vmem:[%s1142 + $0x458] sm:$0xff]
        %v3392 = vld [vmem:[%s1142 + $0x460] sm:$0xff]
        %v3393 = vld [vmem:[%s1142 + $0x468] sm:$0xff]
        %v3394 = vld [vmem:[%s1142 + $0x470] sm:$0xff]
        %v3395 = vld [vmem:[%s1142 + $0x478] sm:$0xff]
        %v3396 = vld [vmem:[%s1142 + $0x480] sm:$0xff]
        %v3397 = vld [vmem:[%s1142 + $0x488] sm:$0xff]
        %v3398 = vld [vmem:[%s1142 + $0x490] sm:$0xff]
        %v3399 = vld [vmem:[%s1142 + $0x498] sm:$0xff]
        %v3400 = vld [vmem:[%s1142 + $0x4a0] sm:$0xff]
        %v3401 = vld [vmem:[%s1142 + $0x4a8] sm:$0xff]
        %v3402 = vld [vmem:[%s1142 + $0x4b0] sm:$0xff]
        %v3403 = vld [vmem:[%s1142 + $0x4b8] sm:$0xff]
        %v3404 = vld [vmem:[%s1142 + $0x4c0] sm:$0xff]
        %v3405 = vld [vmem:[%s1142 + $0x4c8] sm:$0xff]
        %v3406 = vld [vmem:[%s1142 + $0x4d0] sm:$0xff]
        %v3407 = vld [vmem:[%s1142 + $0x4d8] sm:$0xff]
        %v3408 = vld [vmem:[%s1142 + $0x4e0] sm:$0xff]
        %v3409 = vld [vmem:[%s1142 + $0x4e8] sm:$0xff]
        %v3410 = vld [vmem:[%s1142 + $0x4f0] sm:$0xff]
        %v3411 = vld [vmem:[%s1142 + $0x4f8] sm:$0xff]
        %v3412 = vld [vmem:[%s1142 + $0x500] sm:$0xff]
        %v3413 = vld [vmem:[%s1142 + $0x508] sm:$0xff]
        %v3414 = vld [vmem:[%s1142 + $0x510] sm:$0xff]
        %v3415 = vld [vmem:[%s1142 + $0x518] sm:$0xff]
        %v3416 = vld [vmem:[%s1142 + $0x520] sm:$0xff]
        %v3417 = vld [vmem:[%s1142 + $0x528] sm:$0xff]
        %v3418 = vld [vmem:[%s1142 + $0x530] sm:$0xff]
        %v3419 = vld [vmem:[%s1142 + $0x538] sm:$0xff]
        %v3420 = vld [vmem:[%s1142 + $0x540] sm:$0xff]
        %v3421 = vld [vmem:[%s1142 + $0x548] sm:$0xff]
        %v3422 = vld [vmem:[%s1142 + $0x550] sm:$0xff]
        %v3423 = vld [vmem:[%s1142 + $0x558] sm:$0xff]
        %v3424 = vld [vmem:[%s1142 + $0x560] sm:$0xff]
        %v3425 = vld [vmem:[%s1142 + $0x568] sm:$0xff]
        %v3426 = vld [vmem:[%s1142 + $0x570] sm:$0xff]
        %v3427 = vld [vmem:[%s1142 + $0x578] sm:$0xff]
        %v3428 = vld [vmem:[%s1142 + $0x580] sm:$0xff]
        %v3429 = vld [vmem:[%s1142 + $0x588] sm:$0xff]
        %v3430 = vld [vmem:[%s1142 + $0x590] sm:$0xff]
        %v3431 = vld [vmem:[%s1142 + $0x598] sm:$0xff]
        %v3432 = vld [vmem:[%s1142 + $0x5a0] sm:$0xff]
        %v3433 = vld [vmem:[%s1142 + $0x5a8] sm:$0xff]
        %v3434 = vld [vmem:[%s1142 + $0x5b0] sm:$0xff]
        %v3435 = vld [vmem:[%s1142 + $0x5b8] sm:$0xff]
        %v3436 = vld [vmem:[%s1142 + $0x5c0] sm:$0xff]
        %v3437 = vld [vmem:[%s1142 + $0x5c8] sm:$0xff]
        %v3438 = vld [vmem:[%s1142 + $0x5d0] sm:$0xff]
        %v3439 = vld [vmem:[%s1142 + $0x5d8] sm:$0xff]
        %v3440 = vld [vmem:[%s1142 + $0x5e0] sm:$0xff]
        %v3441 = vld [vmem:[%s1142 + $0x5e8] sm:$0xff]
        %v3442 = vld [vmem:[%s1142 + $0x5f0] sm:$0xff]
        %v3443 = vld [vmem:[%s1142 + $0x5f8] sm:$0xff]
        %v3444 = vld [vmem:[%s1142 + $0x600] sm:$0xff]
        %v3445 = vld [vmem:[%s1142 + $0x608] sm:$0xff]
        %v3446 = vld [vmem:[%s1142 + $0x610] sm:$0xff]
        %v3447 = vld [vmem:[%s1142 + $0x618] sm:$0xff]
        %v3448 = vld [vmem:[%s1142 + $0x620] sm:$0xff]
        %v3449 = vld [vmem:[%s1142 + $0x628] sm:$0xff]
        %v3450 = vld [vmem:[%s1142 + $0x630] sm:$0xff]
        %v3451 = vld [vmem:[%s1142 + $0x638] sm:$0xff]
        %v3452 = vld [vmem:[%s1142 + $0x640] sm:$0xff]
        %v3453 = vld [vmem:[%s1142 + $0x648] sm:$0xff]
        %v3454 = vld [vmem:[%s1142 + $0x650] sm:$0xff]
        %v3455 = vld [vmem:[%s1142 + $0x658] sm:$0xff]
        %v3456 = vld [vmem:[%s1142 + $0x660] sm:$0xff]
        %v3457 = vld [vmem:[%s1142 + $0x668] sm:$0xff]
        %v3458 = vld [vmem:[%s1142 + $0x670] sm:$0xff]
        %v3459 = vld [vmem:[%s1142 + $0x678] sm:$0xff]
        %v3460 = vld [vmem:[%s1142 + $0x680] sm:$0xff]
        %v3461 = vld [vmem:[%s1142 + $0x688] sm:$0xff]
        %v3462 = vld [vmem:[%s1142 + $0x690] sm:$0xff]
        %v3463 = vld [vmem:[%s1142 + $0x698] sm:$0xff]
        %v3464 = vld [vmem:[%s1142 + $0x6a0] sm:$0xff]
        %v3465 = vld [vmem:[%s1142 + $0x6a8] sm:$0xff]
        %v3466 = vld [vmem:[%s1142 + $0x6b0] sm:$0xff]
        %v3467 = vld [vmem:[%s1142 + $0x6b8] sm:$0xff]
        %v3468 = vld [vmem:[%s1142 + $0x6c0] sm:$0xff]
        %v3469 = vld [vmem:[%s1142 + $0x6c8] sm:$0xff]
        %v3470 = vld [vmem:[%s1142 + $0x6d0] sm:$0xff]
        %v3471 = vld [vmem:[%s1142 + $0x6d8] sm:$0xff]
        %v3472 = vld [vmem:[%s1142 + $0x6e0] sm:$0xff]
        %v3473 = vld [vmem:[%s1142 + $0x6e8] sm:$0xff]
        %v3474 = vld [vmem:[%s1142 + $0x6f0] sm:$0xff]
        %v3475 = vld [vmem:[%s1142 + $0x6f8] sm:$0xff]
        %v3476 = vld [vmem:[%s1142 + $0x700] sm:$0xff]
        %v3477 = vld [vmem:[%s1142 + $0x708] sm:$0xff]
        %v3478 = vld [vmem:[%s1142 + $0x710] sm:$0xff]
        %v3479 = vld [vmem:[%s1142 + $0x718] sm:$0xff]
        %v3480 = vld [vmem:[%s1142 + $0x720] sm:$0xff]
        %v3481 = vld [vmem:[%s1142 + $0x728] sm:$0xff]
        %v3482 = vld [vmem:[%s1142 + $0x730] sm:$0xff]
        %v3483 = vld [vmem:[%s1142 + $0x738] sm:$0xff]
        %v3484 = vld [vmem:[%s1142 + $0x740] sm:$0xff]
        %v3485 = vld [vmem:[%s1142 + $0x748] sm:$0xff]
        %v3486 = vld [vmem:[%s1142 + $0x750] sm:$0xff]
        %v3487 = vld [vmem:[%s1142 + $0x758] sm:$0xff]
        %v3488 = vld [vmem:[%s1142 + $0x760] sm:$0xff]
        %v3489 = vld [vmem:[%s1142 + $0x768] sm:$0xff]
        %v3490 = vld [vmem:[%s1142 + $0x770] sm:$0xff]
        %v3491 = vld [vmem:[%s1142 + $0x778] sm:$0xff]
        %v3492 = vld [vmem:[%s1142 + $0x780] sm:$0xff]
        %v3493 = vld [vmem:[%s1142 + $0x788] sm:$0xff]
        %v3494 = vld [vmem:[%s1142 + $0x790] sm:$0xff]
        %v3495 = vld [vmem:[%s1142 + $0x798] sm:$0xff]
        %v3496 = vld [vmem:[%s1142 + $0x7a0] sm:$0xff]
        %v3497 = vld [vmem:[%s1142 + $0x7a8] sm:$0xff]
        %v3498 = vld [vmem:[%s1142 + $0x7b0] sm:$0xff]
        %v3499 = vld [vmem:[%s1142 + $0x7b8] sm:$0xff]
        %v3500 = vld [vmem:[%s1142 + $0x7c0] sm:$0xff]
        %v3501 = vld [vmem:[%s1142 + $0x7c8] sm:$0xff]
        %v3502 = vld [vmem:[%s1142 + $0x7d0] sm:$0xff]
        %v3503 = vld [vmem:[%s1142 + $0x7d8] sm:$0xff]
        %v3504 = vld [vmem:[%s1142 + $0x7e0] sm:$0xff]
        %v3505 = vld [vmem:[%s1142 + $0x7e8] sm:$0xff]
        %v3506 = vld [vmem:[%s1142 + $0x7f0] sm:$0xff]
        %v3507 = vld [vmem:[%s1142 + $0x7f8] sm:$0xff]
        %v3508 = vld [vmem:[%s1142 + $0x800] sm:$0xff]
        %v3509 = vld [vmem:[%s1142 + $0x808] sm:$0xff]
        %v3510 = vld [vmem:[%s1142 + $0x810] sm:$0xff]
        %v3511 = vld [vmem:[%s1142 + $0x818] sm:$0xff]
        %v3512 = vld [vmem:[%s1142 + $0x820] sm:$0xff]
        %v3513 = vld [vmem:[%s1142 + $0x828] sm:$0xff]
        %v3514 = vld [vmem:[%s1142 + $0x830] sm:$0xff]
        %v3515 = vld [vmem:[%s1142 + $0x838] sm:$0xff]
        %v3516 = vld [vmem:[%s1142 + $0x840] sm:$0xff]
        %v3517 = vld [vmem:[%s1142 + $0x848] sm:$0xff]
        %v3518 = vld [vmem:[%s1142 + $0x850] sm:$0xff]
        %v3519 = vld [vmem:[%s1142 + $0x858] sm:$0xff]
        %v3520 = vld [vmem:[%s1142 + $0x860] sm:$0xff]
        %v3521 = vld [vmem:[%s1142 + $0x868] sm:$0xff]
        %v3522 = vld [vmem:[%s1142 + $0x870] sm:$0xff]
        %v3523 = vld [vmem:[%s1142 + $0x878] sm:$0xff]
        %v3524 = vld [vmem:[%s1142 + $0x880] sm:$0xff]
        %v3525 = vld [vmem:[%s1142 + $0x888] sm:$0xff]
        %v3526 = vld [vmem:[%s1142 + $0x890] sm:$0xff]
        %v3527 = vld [vmem:[%s1142 + $0x898] sm:$0xff]
        %v3528 = vld [vmem:[%s1142 + $0x8a0] sm:$0xff]
        %v3529 = vld [vmem:[%s1142 + $0x8a8] sm:$0xff]
        %v3530 = vld [vmem:[%s1142 + $0x8b0] sm:$0xff]
        %v3531 = vld [vmem:[%s1142 + $0x8b8] sm:$0xff]
        %v3532 = vld [vmem:[%s1142 + $0x8c0] sm:$0xff]
        %v3533 = vld [vmem:[%s1142 + $0x8c8] sm:$0xff]
        %v3534 = vld [vmem:[%s1142 + $0x8d0] sm:$0xff]
        %v3535 = vld [vmem:[%s1142 + $0x8d8] sm:$0xff]
        %v3536 = vld [vmem:[%s1142 + $0x8e0] sm:$0xff]
        %v3537 = vld [vmem:[%s1142 + $0x8e8] sm:$0xff]
        %v3538 = vld [vmem:[%s1142 + $0x8f0] sm:$0xff]
        %v3539 = vld [vmem:[%s1142 + $0x8f8] sm:$0xff]
        %v3540 = vld [vmem:[%s1142 + $0x900] sm:$0xff]
        %v3541 = vld [vmem:[%s1142 + $0x908] sm:$0xff]
        %v3542 = vld [vmem:[%s1142 + $0x910] sm:$0xff]
        %v3543 = vld [vmem:[%s1142 + $0x918] sm:$0xff]
        %v3544 = vld [vmem:[%s1142 + $0x920] sm:$0xff]
        %v3545 = vld [vmem:[%s1142 + $0x928] sm:$0xff]
        %v3546 = vld [vmem:[%s1142 + $0x930] sm:$0xff]
        %v3547 = vld [vmem:[%s1142 + $0x938] sm:$0xff]
        %v3548 = vld [vmem:[%s1142 + $0x940] sm:$0xff]
        %v3549 = vld [vmem:[%s1142 + $0x948] sm:$0xff]
        %v3550 = vld [vmem:[%s1142 + $0x950] sm:$0xff]
        %v3551 = vld [vmem:[%s1142 + $0x958] sm:$0xff]
        %v3552 = vld [vmem:[%s1142 + $0x960] sm:$0xff]
        %v3553 = vld [vmem:[%s1142 + $0x968] sm:$0xff]
        %v3554 = vld [vmem:[%s1142 + $0x970] sm:$0xff]
        %v3555 = vld [vmem:[%s1142 + $0x978] sm:$0xff]
        %v3556 = vld [vmem:[%s1142 + $0x980] sm:$0xff]
        %v3557 = vld [vmem:[%s1142 + $0x988] sm:$0xff]
        %v3558 = vld [vmem:[%s1142 + $0x990] sm:$0xff]
        %v3559 = vld [vmem:[%s1142 + $0x998] sm:$0xff]
        %v3560 = vld [vmem:[%s1142 + $0x9a0] sm:$0xff]
        %v3561 = vld [vmem:[%s1142 + $0x9a8] sm:$0xff]
        %v3562 = vld [vmem:[%s1142 + $0x9b0] sm:$0xff]
        %v3563 = vld [vmem:[%s1142 + $0x9b8] sm:$0xff]
        %v3564 = vld [vmem:[%s1142 + $0x9c0] sm:$0xff]
        %v3565 = vld [vmem:[%s1142 + $0x9c8] sm:$0xff]
        %v3566 = vld [vmem:[%s1142 + $0x9d0] sm:$0xff]
        %v3567 = vld [vmem:[%s1142 + $0x9d8] sm:$0xff]
        %v3568 = vld [vmem:[%s1142 + $0x9e0] sm:$0xff]
        %v3569 = vld [vmem:[%s1142 + $0x9e8] sm:$0xff]
        %v3570 = vld [vmem:[%s1142 + $0x9f0] sm:$0xff]
        %v3571 = vld [vmem:[%s1142 + $0x9f8] sm:$0xff]
        %v3572 = vld [vmem:[%s1142 + $0xa00] sm:$0xff]
        %v3573 = vld [vmem:[%s1142 + $0xa08] sm:$0xff]
        %v3574 = vld [vmem:[%s1142 + $0xa10] sm:$0xff]
        %v3575 = vld [vmem:[%s1142 + $0xa18] sm:$0xff]
        %v3576 = vld [vmem:[%s1142 + $0xa20] sm:$0xff]
        %v3577 = vld [vmem:[%s1142 + $0xa28] sm:$0xff]
        %v3578 = vld [vmem:[%s1142 + $0xa30] sm:$0xff]
        %v3579 = vld [vmem:[%s1142 + $0xa38] sm:$0xff]
        %v3580 = vld [vmem:[%s1142 + $0xa40] sm:$0xff]
        %v3581 = vld [vmem:[%s1142 + $0xa48] sm:$0xff]
        %v3582 = vld [vmem:[%s1142 + $0xa50] sm:$0xff]
        %v3583 = vld [vmem:[%s1142 + $0xa58] sm:$0xff]
        %v3584 = vld [vmem:[%s1142 + $0xa60] sm:$0xff]
        %v3585 = vld [vmem:[%s1142 + $0xa68] sm:$0xff]
        %v3586 = vld [vmem:[%s1142 + $0xa70] sm:$0xff]
        %v3587 = vld [vmem:[%s1142 + $0xa78] sm:$0xff]
        %v3588 = vld [vmem:[%s1142 + $0xa80] sm:$0xff]
        %v3589 = vld [vmem:[%s1142 + $0xa88] sm:$0xff]
        %v3590 = vld [vmem:[%s1142 + $0xa90] sm:$0xff]
        %v3591 = vld [vmem:[%s1142 + $0xa98] sm:$0xff]
        %v3592 = vld [vmem:[%s1142 + $0xaa0] sm:$0xff]
        %v3593 = vld [vmem:[%s1142 + $0xaa8] sm:$0xff]
        %v3594 = vld [vmem:[%s1142 + $0xab0] sm:$0xff]
        %v3595 = vld [vmem:[%s1142 + $0xab8] sm:$0xff]
        %v3596 = vld [vmem:[%s1142 + $0xac0] sm:$0xff]
        %v3597 = vld [vmem:[%s1142 + $0xac8] sm:$0xff]
        %v3598 = vld [vmem:[%s1142 + $0xad0] sm:$0xff]
        %v3599 = vld [vmem:[%s1142 + $0xad8] sm:$0xff]
        %v3600 = vld [vmem:[%s1142 + $0xae0] sm:$0xff]
        %v3601 = vld [vmem:[%s1142 + $0xae8] sm:$0xff]
        %v3602 = vld [vmem:[%s1142 + $0xaf0] sm:$0xff]
        %v3603 = vld [vmem:[%s1142 + $0xaf8] sm:$0xff]
        %v3604 = vld [vmem:[%s1142 + $0xb00] sm:$0xff]
        %v3605 = vld [vmem:[%s1142 + $0xb08] sm:$0xff]
        %v3606 = vld [vmem:[%s1142 + $0xb10] sm:$0xff]
        %v3607 = vld [vmem:[%s1142 + $0xb18] sm:$0xff]
        %v3608 = vld [vmem:[%s1142 + $0xb20] sm:$0xff]
        %v3609 = vld [vmem:[%s1142 + $0xb28] sm:$0xff]
        %v3610 = vld [vmem:[%s1142 + $0xb30] sm:$0xff]
        %v3611 = vld [vmem:[%s1142 + $0xb38] sm:$0xff]
        %v3612 = vld [vmem:[%s1142 + $0xb40] sm:$0xff]
        %v3613 = vld [vmem:[%s1142 + $0xb48] sm:$0xff]
        %v3614 = vld [vmem:[%s1142 + $0xb50] sm:$0xff]
        %v3615 = vld [vmem:[%s1142 + $0xb58] sm:$0xff]
        %v3616 = vld [vmem:[%s1142 + $0xb60] sm:$0xff]
        %v3617 = vld [vmem:[%s1142 + $0xb68] sm:$0xff]
        %v3618 = vld [vmem:[%s1142 + $0xb70] sm:$0xff]
        %v3619 = vld [vmem:[%s1142 + $0xb78] sm:$0xff]
        %v3620 = vld [vmem:[%s1142 + $0xb80] sm:$0xff]
        %v3621 = vld [vmem:[%s1142 + $0xb88] sm:$0xff]
        %v3622 = vld [vmem:[%s1142 + $0xb90] sm:$0xff]
        %v3623 = vld [vmem:[%s1142 + $0xb98] sm:$0xff]
        %v3624 = vld [vmem:[%s1142 + $0xba0] sm:$0xff]
        %v3625 = vld [vmem:[%s1142 + $0xba8] sm:$0xff]
        %v3626 = vld [vmem:[%s1142 + $0xbb0] sm:$0xff]
        %v3627 = vld [vmem:[%s1142 + $0xbb8] sm:$0xff]
        %v3628 = vld [vmem:[%s1142 + $0xbc0] sm:$0xff]
        %v3629 = vld [vmem:[%s1142 + $0xbc8] sm:$0xff]
        %v3630 = vld [vmem:[%s1142 + $0xbd0] sm:$0xff]
        %v3631 = vld [vmem:[%s1142 + $0xbd8] sm:$0xff]
        %v3632 = vld [vmem:[%s1142 + $0xbe0] sm:$0xff]
        %v3633 = vld [vmem:[%s1142 + $0xbe8] sm:$0xff]
        %v3634 = vld [vmem:[%s1142 + $0xbf0] sm:$0xff]
        %v3635 = vld [vmem:[%s1142 + $0xbf8] sm:$0xff]
        %v3636 = vld [vmem:[%s1142 + $0xc00] sm:$0xff]
        %v3637 = vld [vmem:[%s1142 + $0xc08] sm:$0xff]
        %v3638 = vld [vmem:[%s1142 + $0xc10] sm:$0xff]
        %v3639 = vld [vmem:[%s1142 + $0xc18] sm:$0xff]
        %v3640 = vld [vmem:[%s1142 + $0xc20] sm:$0xff]
        %v3641 = vld [vmem:[%s1142 + $0xc28] sm:$0xff]
        %v3642 = vld [vmem:[%s1142 + $0xc30] sm:$0xff]
        %v3643 = vld [vmem:[%s1142 + $0xc38] sm:$0xff]
        %v3644 = vld [vmem:[%s1142 + $0xc40] sm:$0xff]
        %v3645 = vld [vmem:[%s1142 + $0xc48] sm:$0xff]
        %v3646 = vld [vmem:[%s1142 + $0xc50] sm:$0xff]
        %v3647 = vld [vmem:[%s1142 + $0xc58] sm:$0xff]
        %v3648 = vld [vmem:[%s1142 + $0xc60] sm:$0xff]
        %v3649 = vld [vmem:[%s1142 + $0xc68] sm:$0xff]
        %v3650 = vld [vmem:[%s1142 + $0xc70] sm:$0xff]
        %v3651 = vld [vmem:[%s1142 + $0xc78] sm:$0xff]
        %v3652 = vld [vmem:[%s1142 + $0xc80] sm:$0xff]
        %v3653 = vld [vmem:[%s1142 + $0xc88] sm:$0xff]
        %v3654 = vld [vmem:[%s1142 + $0xc90] sm:$0xff]
        %v3655 = vld [vmem:[%s1142 + $0xc98] sm:$0xff]
        %v3656 = vld [vmem:[%s1142 + $0xca0] sm:$0xff]
        %v3657 = vld [vmem:[%s1142 + $0xca8] sm:$0xff]
        %v3658 = vld [vmem:[%s1142 + $0xcb0] sm:$0xff]
        %v3659 = vld [vmem:[%s1142 + $0xcb8] sm:$0xff]
        %v3660 = vld [vmem:[%s1142 + $0xcc0] sm:$0xff]
        %v3661 = vld [vmem:[%s1142 + $0xcc8] sm:$0xff]
        %v3662 = vld [vmem:[%s1142 + $0xcd0] sm:$0xff]
        %v3663 = vld [vmem:[%s1142 + $0xcd8] sm:$0xff]
        %v3664 = vld [vmem:[%s1142 + $0xce0] sm:$0xff]
        %v3665 = vld [vmem:[%s1142 + $0xce8] sm:$0xff]
        %v3666 = vld [vmem:[%s1142 + $0xcf0] sm:$0xff]
        %v3667 = vld [vmem:[%s1142 + $0xcf8] sm:$0xff]
        %v3668 = vld [vmem:[%s1142 + $0xd00] sm:$0xff]
        %v3669 = vld [vmem:[%s1142 + $0xd08] sm:$0xff]
        %v3670 = vld [vmem:[%s1142 + $0xd10] sm:$0xff]
        %v3671 = vld [vmem:[%s1142 + $0xd18] sm:$0xff]
        %v3672 = vld [vmem:[%s1142 + $0xd20] sm:$0xff]
        %v3673 = vld [vmem:[%s1142 + $0xd28] sm:$0xff]
        %v3674 = vld [vmem:[%s1142 + $0xd30] sm:$0xff]
        %v3675 = vld [vmem:[%s1142 + $0xd38] sm:$0xff]
        %v3676 = vld [vmem:[%s1142 + $0xd40] sm:$0xff]
        %v3677 = vld [vmem:[%s1142 + $0xd48] sm:$0xff]
        %v3678 = vld [vmem:[%s1142 + $0xd50] sm:$0xff]
        %v3679 = vld [vmem:[%s1142 + $0xd58] sm:$0xff]
        %v3680 = vld [vmem:[%s1142 + $0xd60] sm:$0xff]
        %v3681 = vld [vmem:[%s1142 + $0xd68] sm:$0xff]
        %v3682 = vld [vmem:[%s1142 + $0xd70] sm:$0xff]
        %v3683 = vld [vmem:[%s1142 + $0xd78] sm:$0xff]
        %v3684 = vld [vmem:[%s1142 + $0xd80] sm:$0xff]
        %v3685 = vld [vmem:[%s1142 + $0xd88] sm:$0xff]
        %v3686 = vld [vmem:[%s1142 + $0xd90] sm:$0xff]
        %v3687 = vld [vmem:[%s1142 + $0xd98] sm:$0xff]
        %v3688 = vld [vmem:[%s1142 + $0xda0] sm:$0xff]
        %v3689 = vld [vmem:[%s1142 + $0xda8] sm:$0xff]
        %v3690 = vld [vmem:[%s1142 + $0xdb0] sm:$0xff]
        %v3691 = vld [vmem:[%s1142 + $0xdb8] sm:$0xff]
        %v3692 = vld [vmem:[%s1142 + $0xdc0] sm:$0xff]
        %v3693 = vld [vmem:[%s1142 + $0xdc8] sm:$0xff]
        %v3694 = vld [vmem:[%s1142 + $0xdd0] sm:$0xff]
        %v3695 = vld [vmem:[%s1142 + $0xdd8] sm:$0xff]
        %v3696 = vld [vmem:[%s1142 + $0xde0] sm:$0xff]
        %v3697 = vld [vmem:[%s1142 + $0xde8] sm:$0xff]
        %v3698 = vld [vmem:[%s1142 + $0xdf0] sm:$0xff]
        %v3699 = vld [vmem:[%s1142 + $0xdf8] sm:$0xff]
        %v3700 = vld [vmem:[%s1142 + $0xe00] sm:$0xff]
        %v3701 = vld [vmem:[%s1142 + $0xe08] sm:$0xff]
        %v3702 = vld [vmem:[%s1142 + $0xe10] sm:$0xff]
        %v3703 = vld [vmem:[%s1142 + $0xe18] sm:$0xff]
        %v3704 = vld [vmem:[%s1142 + $0xe20] sm:$0xff]
        %v3705 = vld [vmem:[%s1142 + $0xe28] sm:$0xff]
        %v3706 = vld [vmem:[%s1142 + $0xe30] sm:$0xff]
        %v3707 = vld [vmem:[%s1142 + $0xe38] sm:$0xff]
        %v3708 = vld [vmem:[%s1142 + $0xe40] sm:$0xff]
        %v3709 = vld [vmem:[%s1142 + $0xe48] sm:$0xff]
        %v3710 = vld [vmem:[%s1142 + $0xe50] sm:$0xff]
        %v3711 = vld [vmem:[%s1142 + $0xe58] sm:$0xff]
        %v3712 = vld [vmem:[%s1142 + $0xe60] sm:$0xff]
        %v3713 = vld [vmem:[%s1142 + $0xe68] sm:$0xff]
        %v3714 = vld [vmem:[%s1142 + $0xe70] sm:$0xff]
        %v3715 = vld [vmem:[%s1142 + $0xe78] sm:$0xff]
        %v3716 = vld [vmem:[%s1142 + $0xe80] sm:$0xff]
        %v3717 = vld [vmem:[%s1142 + $0xe88] sm:$0xff]
        %v3718 = vld [vmem:[%s1142 + $0xe90] sm:$0xff]
        %v3719 = vld [vmem:[%s1142 + $0xe98] sm:$0xff]
        %v3720 = vld [vmem:[%s1142 + $0xea0] sm:$0xff]
        %v3721 = vld [vmem:[%s1142 + $0xea8] sm:$0xff]
        %v3722 = vld [vmem:[%s1142 + $0xeb0] sm:$0xff]
        %v3723 = vld [vmem:[%s1142 + $0xeb8] sm:$0xff]
        %v3724 = vld [vmem:[%s1142 + $0xec0] sm:$0xff]
        %v3725 = vld [vmem:[%s1142 + $0xec8] sm:$0xff]
        %v3726 = vld [vmem:[%s1142 + $0xed0] sm:$0xff]
        %v3727 = vld [vmem:[%s1142 + $0xed8] sm:$0xff]
        %v3728 = vld [vmem:[%s1142 + $0xee0] sm:$0xff]
        %v3729 = vld [vmem:[%s1142 + $0xee8] sm:$0xff]
        %v3730 = vld [vmem:[%s1142 + $0xef0] sm:$0xff]
        %v3731 = vld [vmem:[%s1142 + $0xef8] sm:$0xff]
        %v3732 = vld [vmem:[%s1142 + $0xf00] sm:$0xff]
        %v3733 = vld [vmem:[%s1142 + $0xf08] sm:$0xff]
        %v3734 = vld [vmem:[%s1142 + $0xf10] sm:$0xff]
        %v3735 = vld [vmem:[%s1142 + $0xf18] sm:$0xff]
        %v3736 = vld [vmem:[%s1142 + $0xf20] sm:$0xff]
        %v3737 = vld [vmem:[%s1142 + $0xf28] sm:$0xff]
        %v3738 = vld [vmem:[%s1142 + $0xf30] sm:$0xff]
        %v3739 = vld [vmem:[%s1142 + $0xf38] sm:$0xff]
        %v3740 = vld [vmem:[%s1142 + $0xf40] sm:$0xff]
        %v3741 = vld [vmem:[%s1142 + $0xf48] sm:$0xff]
        %v3742 = vld [vmem:[%s1142 + $0xf50] sm:$0xff]
        %v3743 = vld [vmem:[%s1142 + $0xf58] sm:$0xff]
        %v3744 = vld [vmem:[%s1142 + $0xf60] sm:$0xff]
        %v3745 = vld [vmem:[%s1142 + $0xf68] sm:$0xff]
        %v3746 = vld [vmem:[%s1142 + $0xf70] sm:$0xff]
        %v3747 = vld [vmem:[%s1142 + $0xf78] sm:$0xff]
        %v3748 = vld [vmem:[%s1142 + $0xf80] sm:$0xff]
        %v3749 = vld [vmem:[%s1142 + $0xf88] sm:$0xff]
        %v3750 = vld [vmem:[%s1142 + $0xf90] sm:$0xff]
        %v3751 = vld [vmem:[%s1142 + $0xf98] sm:$0xff]
        %v3752 = vld [vmem:[%s1142 + $0xfa0] sm:$0xff]
        %v3753 = vld [vmem:[%s1142 + $0xfa8] sm:$0xff]
        %v3754 = vld [vmem:[%s1142 + $0xfb0] sm:$0xff]
        %v3755 = vld [vmem:[%s1142 + $0xfb8] sm:$0xff]
        %v3756 = vld [vmem:[%s1142 + $0xfc0] sm:$0xff]
        %v3757 = vld [vmem:[%s1142 + $0xfc8] sm:$0xff]
        %v3758 = vld [vmem:[%s1142 + $0xfd0] sm:$0xff]
        %v3759 = vld [vmem:[%s1142 + $0xfd8] sm:$0xff]
        %v3760 = vld [vmem:[%s1142 + $0xfe0] sm:$0xff]
        %v3761 = vld [vmem:[%s1142 + $0xfe8] sm:$0xff]
        %v3762 = vld [vmem:[%s1142 + $0xff0] sm:$0xff]
        %v3763 = vld [vmem:[%s1142 + $0xff8] sm:$0xff]
        %v3764 = vld [vmem:[%s1146] sm:$0xff]
        %v3765 = vld [vmem:[%s1146 + $0x8] sm:$0xff]
        %v3768 = vlaneseq
        %v3769 = vshrl.u32 %v3768, 7
        %v3770 = vsub.s32 0, %v3769
        %v3771 = vrot.slane %v3764, %v3770
        %v3772 = vlaneseq
        %v3773 = vshrl.u32 %v3772, 7
        %v3774 = vsub.s32 1, %v3773
        %v3775 = vrot.slane %v3764, %v3774
        %v3776 = vlaneseq
        %v3777 = vshrl.u32 %v3776, 7
        %v3778 = vsub.s32 2, %v3777
        %v3779 = vrot.slane %v3764, %v3778
        %v3780 = vlaneseq
        %v3781 = vshrl.u32 %v3780, 7
        %v3782 = vsub.s32 3, %v3781
        %v3783 = vrot.slane %v3764, %v3782
        %v3784 = vlaneseq
        %v3785 = vshrl.u32 %v3784, 7
        %v3786 = vsub.s32 4, %v3785
        %v3787 = vrot.slane %v3764, %v3786
        %v3788 = vlaneseq
        %v3789 = vshrl.u32 %v3788, 7
        %v3790 = vsub.s32 5, %v3789
        %v3791 = vrot.slane %v3764, %v3790
        %v3792 = vlaneseq
        %v3793 = vshrl.u32 %v3792, 7
        %v3794 = vsub.s32 6, %v3793
        %v3795 = vrot.slane %v3764, %v3794
        %v3796 = vlaneseq
        %v3797 = vshrl.u32 %v3796, 7
        %v3798 = vsub.s32 7, %v3797
        %v3799 = vrot.slane %v3764, %v3798
        %v3800 = vlaneseq
        %v3801 = vshrl.u32 %v3800, 7
        %v3802 = vsub.s32 0, %v3801
        %v3803 = vrot.slane %v3765, %v3802
        %v3804 = vlaneseq
        %v3805 = vshrl.u32 %v3804, 7
        %v3806 = vsub.s32 1, %v3805
        %v3807 = vrot.slane %v3765, %v3806
        %v3808 = vlaneseq
        %v3809 = vshrl.u32 %v3808, 7
        %v3810 = vsub.s32 2, %v3809
        %v3811 = vrot.slane %v3765, %v3810
        %v3812 = vlaneseq
        %v3813 = vshrl.u32 %v3812, 7
        %v3814 = vsub.s32 3, %v3813
        %v3815 = vrot.slane %v3765, %v3814
        %v3816 = vlaneseq
        %v3817 = vshrl.u32 %v3816, 7
        %v3818 = vsub.s32 4, %v3817
        %v3819 = vrot.slane %v3765, %v3818
        %v3820 = vlaneseq
        %v3821 = vshrl.u32 %v3820, 7
        %v3822 = vsub.s32 5, %v3821
        %v3823 = vrot.slane %v3765, %v3822
        %v3824 = vlaneseq
        %v3825 = vshrl.u32 %v3824, 7
        %v3826 = vsub.s32 6, %v3825
        %v3827 = vrot.slane %v3765, %v3826
        %v3828 = vlaneseq
        %v3829 = vshrl.u32 %v3828, 7
        %v3830 = vsub.s32 7, %v3829
        %v3831 = vrot.slane %v3765, %v3830
        %3848 = vmatprep.subr.mxu0 %v3253
        %3849 = vmatpush1.xpose.msra.mxu0 %v3252
        %3850 = vmatprep.subr.mxu0 %v3255
        %3851 = vmatpush1.xpose.msra.mxu0 %v3254
        %3852 = vmatprep.subr.mxu0 %v3257
        %3853 = vmatpush1.xpose.msra.mxu0 %v3256
        %3854 = vmatprep.subr.mxu0 %v3259
        %3855 = vmatpush1.xpose.msra.mxu0 %v3258
        %3856 = vmatprep.subr.mxu0 %v3261
        %3857 = vmatpush1.xpose.msra.mxu0 %v3260
        %3858 = vmatprep.subr.mxu0 %v3263
        %3859 = vmatpush1.xpose.msra.mxu0 %v3262
        %3860 = vmatprep.subr.mxu0 %v3265
        %3861 = vmatpush1.xpose.msra.mxu0 %v3264
        %3862 = vmatprep.subr.mxu0 %v3267
        %3863 = vmatpush1.xpose.msra.mxu0 %v3266
        %3864 = vmatprep.subr.mxu0 %v3269
        %3865 = vmatpush1.xpose.msra.mxu0 %v3268
        %3866 = vmatprep.subr.mxu0 %v3271
        %3867 = vmatpush1.xpose.msra.mxu0 %v3270
        %3868 = vmatprep.subr.mxu0 %v3273
        %3869 = vmatpush1.xpose.msra.mxu0 %v3272
        %3870 = vmatprep.subr.mxu0 %v3275
        %3871 = vmatpush1.xpose.msra.mxu0 %v3274
        %3872 = vmatprep.subr.mxu0 %v3277
        %3873 = vmatpush1.xpose.msra.mxu0 %v3276
        %3874 = vmatprep.subr.mxu0 %v3279
        %3875 = vmatpush1.xpose.msra.mxu0 %v3278
        %3876 = vmatprep.subr.mxu0 %v3281
        %3877 = vmatpush1.xpose.msra.mxu0 %v3280
        %3878 = vmatprep.subr.mxu0 %v3283
        %3879 = vmatpush1.xpose.msra.mxu0 %v3282
        %3880 = vmatprep.subr.mxu0 %v3285
        %3881 = vmatpush1.xpose.msra.mxu0 %v3284
        %3882 = vmatprep.subr.mxu0 %v3287
        %3883 = vmatpush1.xpose.msra.mxu0 %v3286
        %3884 = vmatprep.subr.mxu0 %v3289
        %3885 = vmatpush1.xpose.msra.mxu0 %v3288
        %3886 = vmatprep.subr.mxu0 %v3291
        %3887 = vmatpush1.xpose.msra.mxu0 %v3290
        %3888 = vmatprep.subr.mxu0 %v3293
        %3889 = vmatpush1.xpose.msra.mxu0 %v3292
        %3890 = vmatprep.subr.mxu0 %v3295
        %3891 = vmatpush1.xpose.msra.mxu0 %v3294
        %3892 = vmatprep.subr.mxu0 %v3297
        %3893 = vmatpush1.xpose.msra.mxu0 %v3296
        %3894 = vmatprep.subr.mxu0 %v3299
        %3895 = vmatpush1.xpose.msra.mxu0 %v3298
        %3896 = vmatprep.subr.mxu0 %v3301
        %3897 = vmatpush1.xpose.msra.mxu0 %v3300
        %3898 = vmatprep.subr.mxu0 %v3303
        %3899 = vmatpush1.xpose.msra.mxu0 %v3302
        %3900 = vmatprep.subr.mxu0 %v3305
        %3901 = vmatpush1.xpose.msra.mxu0 %v3304
        %3902 = vmatprep.subr.mxu0 %v3307
        %3903 = vmatpush1.xpose.msra.mxu0 %v3306
        %3904 = vmatprep.subr.mxu0 %v3309
        %3905 = vmatpush1.xpose.msra.mxu0 %v3308
        %3906 = vmatprep.subr.mxu0 %v3311
        %3907 = vmatpush1.xpose.msra.mxu0 %v3310
        %3908 = vmatprep.subr.mxu0 %v3313
        %3909 = vmatpush1.xpose.msra.mxu0 %v3312
        %3910 = vmatprep.subr.mxu0 %v3315
        %3911 = vmatpush1.xpose.msra.mxu0 %v3314
        %3912 = vmatprep.mubr.f32.mxu0 %v3249
        %3913 = vmatmul.mubr.f32.gmra.mrb[0].mxu0 %v3248
        %v3914 = vpop.f32.mrb[0].mxu0
        %v3915 = vadd.f32 %v3771, %v3914
        %v3916 = vpop.f32.mrb[0].mxu0
        %v3917 = vadd.f32 %v3775, %v3916
        %3918 = vmatprep.mubr.f32.mxu0 %v3251
        %3919 = vmatmul.mubr.f32.gmra.mrb[0].mxu0 %v3250
        %v3920 = vpop.f32.mrb[0].mxu0
        %v3921 = vadd.f32 %v3771, %v3920
        %v3922 = vpop.f32.mrb[0].mxu0
        %v3923 = vadd.f32 %v3775, %v3922
        %3924 = vdwg.mxu0
        %3925 = vmatprep.subr.mxu0 %v3317
        %3926 = vmatpush1.xpose.msra.mxu0 %v3316
        %3927 = vmatprep.subr.mxu0 %v3319
        %3928 = vmatpush1.xpose.msra.mxu0 %v3318
        %3929 = vmatprep.subr.mxu0 %v3321
        %3930 = vmatpush1.xpose.msra.mxu0 %v3320
        %3931 = vmatprep.subr.mxu0 %v3323
        %3932 = vmatpush1.xpose.msra.mxu0 %v3322
        %3933 = vmatprep.subr.mxu0 %v3325
        %3934 = vmatpush1.xpose.msra.mxu0 %v3324
        %3935 = vmatprep.subr.mxu0 %v3327
        %3936 = vmatpush1.xpose.msra.mxu0 %v3326
        %3937 = vmatprep.subr.mxu0 %v3329
        %3938 = vmatpush1.xpose.msra.mxu0 %v3328
        %3939 = vmatprep.subr.mxu0 %v3331
        %3940 = vmatpush1.xpose.msra.mxu0 %v3330
        %3941 = vmatprep.subr.mxu0 %v3333
        %3942 = vmatpush1.xpose.msra.mxu0 %v3332
        %3943 = vmatprep.subr.mxu0 %v3335
        %3944 = vmatpush1.xpose.msra.mxu0 %v3334
        %3945 = vmatprep.subr.mxu0 %v3337
        %3946 = vmatpush1.xpose.msra.mxu0 %v3336
        %3947 = vmatprep.subr.mxu0 %v3339
        %3948 = vmatpush1.xpose.msra.mxu0 %v3338
        %3949 = vmatprep.subr.mxu0 %v3341
        %3950 = vmatpush1.xpose.msra.mxu0 %v3340
        %3951 = vmatprep.subr.mxu0 %v3343
        %3952 = vmatpush1.xpose.msra.mxu0 %v3342
        %3953 = vmatprep.subr.mxu0 %v3345
        %3954 = vmatpush1.xpose.msra.mxu0 %v3344
        %3955 = vmatprep.subr.mxu0 %v3347
        %3956 = vmatpush1.xpose.msra.mxu0 %v3346
        %3957 = vmatprep.subr.mxu0 %v3349
        %3958 = vmatpush1.xpose.msra.mxu0 %v3348
        %3959 = vmatprep.subr.mxu0 %v3351
        %3960 = vmatpush1.xpose.msra.mxu0 %v3350
        %3961 = vmatprep.subr.mxu0 %v3353
        %3962 = vmatpush1.xpose.msra.mxu0 %v3352
        %3963 = vmatprep.subr.mxu0 %v3355
        %3964 = vmatpush1.xpose.msra.mxu0 %v3354
        %3965 = vmatprep.subr.mxu0 %v3357
        %3966 = vmatpush1.xpose.msra.mxu0 %v3356
        %3967 = vmatprep.subr.mxu0 %v3359
        %3968 = vmatpush1.xpose.msra.mxu0 %v3358
        %3969 = vmatprep.subr.mxu0 %v3361
        %3970 = vmatpush1.xpose.msra.mxu0 %v3360
        %3971 = vmatprep.subr.mxu0 %v3363
        %3972 = vmatpush1.xpose.msra.mxu0 %v3362
        %3973 = vmatprep.subr.mxu0 %v3365
        %3974 = vmatpush1.xpose.msra.mxu0 %v3364
        %3975 = vmatprep.subr.mxu0 %v3367
        %3976 = vmatpush1.xpose.msra.mxu0 %v3366
        %3977 = vmatprep.subr.mxu0 %v3369
        %3978 = vmatpush1.xpose.msra.mxu0 %v3368
        %3979 = vmatprep.subr.mxu0 %v3371
        %3980 = vmatpush1.xpose.msra.mxu0 %v3370
        %3981 = vmatprep.subr.mxu0 %v3373
        %3982 = vmatpush1.xpose.msra.mxu0 %v3372
        %3983 = vmatprep.subr.mxu0 %v3375
        %3984 = vmatpush1.xpose.msra.mxu0 %v3374
        %3985 = vmatprep.subr.mxu0 %v3377
        %3986 = vmatpush1.xpose.msra.mxu0 %v3376
        %3987 = vmatprep.subr.mxu0 %v3379
        %3988 = vmatpush1.xpose.msra.mxu0 %v3378
        %3989 = vmatprep.mubr.f32.mxu0 %v3249
        %3990 = vmatmul.mubr.f32.gmra.mrb[0].mxu0 %v3248
        %v3991 = vpop.f32.mrb[0].mxu0
        %v3992 = vadd.f32 %v3779, %v3991
        %v3993 = vpop.f32.mrb[0].mxu0
        %v3994 = vadd.f32 %v3783, %v3993
        %3995 = vmatprep.mubr.f32.mxu0 %v3251
        %3996 = vmatmul.mubr.f32.gmra.mrb[0].mxu0 %v3250
        %v3997 = vpop.f32.mrb[0].mxu0
        %v3998 = vadd.f32 %v3779, %v3997
        %v3999 = vpop.f32.mrb[0].mxu0
        %v4000 = vadd.f32 %v3783, %v3999
        %4001 = vdwg.mxu0
        %4002 = vmatprep.subr.mxu0 %v3381
        %4003 = vmatpush1.xpose.msra.mxu0 %v3380
        %4004 = vmatprep.subr.mxu0 %v3383
        %4005 = vmatpush1.xpose.msra.mxu0 %v3382
        %4006 = vmatprep.subr.mxu0 %v3385
        %4007 = vmatpush1.xpose.msra.mxu0 %v3384
        %4008 = vmatprep.subr.mxu0 %v3387
        %4009 = vmatpush1.xpose.msra.mxu0 %v3386
        %4010 = vmatprep.subr.mxu0 %v3389
        %4011 = vmatpush1.xpose.msra.mxu0 %v3388
        %4012 = vmatprep.subr.mxu0 %v3391
        %4013 = vmatpush1.xpose.msra.mxu0 %v3390
        %4014 = vmatprep.subr.mxu0 %v3393
        %4015 = vmatpush1.xpose.msra.mxu0 %v3392
        %4016 = vmatprep.subr.mxu0 %v3395
        %4017 = vmatpush1.xpose.msra.mxu0 %v3394
        %4018 = vmatprep.subr.mxu0 %v3397
        %4019 = vmatpush1.xpose.msra.mxu0 %v3396
        %4020 = vmatprep.subr.mxu0 %v3399
        %4021 = vmatpush1.xpose.msra.mxu0 %v3398
        %4022 = vmatprep.subr.mxu0 %v3401
        %4023 = vmatpush1.xpose.msra.mxu0 %v3400
        %4024 = vmatprep.subr.mxu0 %v3403
        %4025 = vmatpush1.xpose.msra.mxu0 %v3402
        %4026 = vmatprep.subr.mxu0 %v3405
        %4027 = vmatpush1.xpose.msra.mxu0 %v3404
        %4028 = vmatprep.subr.mxu0 %v3407
        %4029 = vmatpush1.xpose.msra.mxu0 %v3406
        %4030 = vmatprep.subr.mxu0 %v3409
        %4031 = vmatpush1.xpose.msra.mxu0 %v3408
        %4032 = vmatprep.subr.mxu0 %v3411
        %4033 = vmatpush1.xpose.msra.mxu0 %v3410
        %4034 = vmatprep.subr.mxu0 %v3413
        %4035 = vmatpush1.xpose.msra.mxu0 %v3412
        %4036 = vmatprep.subr.mxu0 %v3415
        %4037 = vmatpush1.xpose.msra.mxu0 %v3414
        %4038 = vmatprep.subr.mxu0 %v3417
        %4039 = vmatpush1.xpose.msra.mxu0 %v3416
        %4040 = vmatprep.subr.mxu0 %v3419
        %4041 = vmatpush1.xpose.msra.mxu0 %v3418
        %4042 = vmatprep.subr.mxu0 %v3421
        %4043 = vmatpush1.xpose.msra.mxu0 %v3420
        %4044 = vmatprep.subr.mxu0 %v3423
        %4045 = vmatpush1.xpose.msra.mxu0 %v3422
        %4046 = vmatprep.subr.mxu0 %v3425
        %4047 = vmatpush1.xpose.msra.mxu0 %v3424
        %4048 = vmatprep.subr.mxu0 %v3427
        %4049 = vmatpush1.xpose.msra.mxu0 %v3426
        %4050 = vmatprep.subr.mxu0 %v3429
        %4051 = vmatpush1.xpose.msra.mxu0 %v3428
        %4052 = vmatprep.subr.mxu0 %v3431
        %4053 = vmatpush1.xpose.msra.mxu0 %v3430
        %4054 = vmatprep.subr.mxu0 %v3433
        %4055 = vmatpush1.xpose.msra.mxu0 %v3432
        %4056 = vmatprep.subr.mxu0 %v3435
        %4057 = vmatpush1.xpose.msra.mxu0 %v3434
        %4058 = vmatprep.subr.mxu0 %v3437
        %4059 = vmatpush1.xpose.msra.mxu0 %v3436
        %4060 = vmatprep.subr.mxu0 %v3439
        %4061 = vmatpush1.xpose.msra.mxu0 %v3438
        %4062 = vmatprep.subr.mxu0 %v3441
        %4063 = vmatpush1.xpose.msra.mxu0 %v3440
        %4064 = vmatprep.subr.mxu0 %v3443
        %4065 = vmatpush1.xpose.msra.mxu0 %v3442
        %4066 = vmatprep.mubr.f32.mxu0 %v3249
        %4067 = vmatmul.mubr.f32.gmra.mrb[0].mxu0 %v3248
        %v4068 = vpop.f32.mrb[0].mxu0
        %v4069 = vadd.f32 %v3787, %v4068
        %v4070 = vpop.f32.mrb[0].mxu0
        %v4071 = vadd.f32 %v3791, %v4070
        %4072 = vmatprep.mubr.f32.mxu0 %v3251
        %4073 = vmatmul.mubr.f32.gmra.mrb[0].mxu0 %v3250
        %v4074 = vpop.f32.mrb[0].mxu0
        %v4075 = vadd.f32 %v3787, %v4074
        %v4076 = vpop.f32.mrb[0].mxu0
        %v4077 = vadd.f32 %v3791, %v4076
        %4078 = vdwg.mxu0
        %4079 = vmatprep.subr.mxu0 %v3445
        %4080 = vmatpush1.xpose.msra.mxu0 %v3444
        %4081 = vmatprep.subr.mxu0 %v3447
        %4082 = vmatpush1.xpose.msra.mxu0 %v3446
        %4083 = vmatprep.subr.mxu0 %v3449
        %4084 = vmatpush1.xpose.msra.mxu0 %v3448
        %4085 = vmatprep.subr.mxu0 %v3451
        %4086 = vmatpush1.xpose.msra.mxu0 %v3450
        %4087 = vmatprep.subr.mxu0 %v3453
        %4088 = vmatpush1.xpose.msra.mxu0 %v3452
        %4089 = vmatprep.subr.mxu0 %v3455
        %4090 = vmatpush1.xpose.msra.mxu0 %v3454
        %4091 = vmatprep.subr.mxu0 %v3457
        %4092 = vmatpush1.xpose.msra.mxu0 %v3456
        %4093 = vmatprep.subr.mxu0 %v3459
        %4094 = vmatpush1.xpose.msra.mxu0 %v3458
        %4095 = vmatprep.subr.mxu0 %v3461
        %4096 = vmatpush1.xpose.msra.mxu0 %v3460
        %4097 = vmatprep.subr.mxu0 %v3463
        %4098 = vmatpush1.xpose.msra.mxu0 %v3462
        %4099 = vmatprep.subr.mxu0 %v3465
        %4100 = vmatpush1.xpose.msra.mxu0 %v3464
        %4101 = vmatprep.subr.mxu0 %v3467
        %4102 = vmatpush1.xpose.msra.mxu0 %v3466
        %4103 = vmatprep.subr.mxu0 %v3469
        %4104 = vmatpush1.xpose.msra.mxu0 %v3468
        %4105 = vmatprep.subr.mxu0 %v3471
        %4106 = vmatpush1.xpose.msra.mxu0 %v3470
        %4107 = vmatprep.subr.mxu0 %v3473
        %4108 = vmatpush1.xpose.msra.mxu0 %v3472
        %4109 = vmatprep.subr.mxu0 %v3475
        %4110 = vmatpush1.xpose.msra.mxu0 %v3474
        %4111 = vmatprep.subr.mxu0 %v3477
        %4112 = vmatpush1.xpose.msra.mxu0 %v3476
        %4113 = vmatprep.subr.mxu0 %v3479
        %4114 = vmatpush1.xpose.msra.mxu0 %v3478
        %4115 = vmatprep.subr.mxu0 %v3481
        %4116 = vmatpush1.xpose.msra.mxu0 %v3480
        %4117 = vmatprep.subr.mxu0 %v3483
        %4118 = vmatpush1.xpose.msra.mxu0 %v3482
        %4119 = vmatprep.subr.mxu0 %v3485
        %4120 = vmatpush1.xpose.msra.mxu0 %v3484
        %4121 = vmatprep.subr.mxu0 %v3487
        %4122 = vmatpush1.xpose.msra.mxu0 %v3486
        %4123 = vmatprep.subr.mxu0 %v3489
        %4124 = vmatpush1.xpose.msra.mxu0 %v3488
        %4125 = vmatprep.subr.mxu0 %v3491
        %4126 = vmatpush1.xpose.msra.mxu0 %v3490
        %4127 = vmatprep.subr.mxu0 %v3493
        %4128 = vmatpush1.xpose.msra.mxu0 %v3492
        %4129 = vmatprep.subr.mxu0 %v3495
        %4130 = vmatpush1.xpose.msra.mxu0 %v3494
        %4131 = vmatprep.subr.mxu0 %v3497
        %4132 = vmatpush1.xpose.msra.mxu0 %v3496
        %4133 = vmatprep.subr.mxu0 %v3499
        %4134 = vmatpush1.xpose.msra.mxu0 %v3498
        %4135 = vmatprep.subr.mxu0 %v3501
        %4136 = vmatpush1.xpose.msra.mxu0 %v3500
        %4137 = vmatprep.subr.mxu0 %v3503
        %4138 = vmatpush1.xpose.msra.mxu0 %v3502
        %4139 = vmatprep.subr.mxu0 %v3505
        %4140 = vmatpush1.xpose.msra.mxu0 %v3504
        %4141 = vmatprep.subr.mxu0 %v3507
        %4142 = vmatpush1.xpose.msra.mxu0 %v3506
        %4143 = vmatprep.mubr.f32.mxu0 %v3249
        %4144 = vmatmul.mubr.f32.gmra.mrb[0].mxu0 %v3248
        %v4145 = vpop.f32.mrb[0].mxu0
        %v4146 = vadd.f32 %v3795, %v4145
        %v4147 = vpop.f32.mrb[0].mxu0
        %v4148 = vadd.f32 %v3799, %v4147
        %4149 = vmatprep.mubr.f32.mxu0 %v3251
        %4150 = vmatmul.mubr.f32.gmra.mrb[0].mxu0 %v3250
        %v4151 = vpop.f32.mrb[0].mxu0
        %v4152 = vadd.f32 %v3795, %v4151
        %v4153 = vpop.f32.mrb[0].mxu0
        %v4154 = vadd.f32 %v3799, %v4153
        %4155 = vdwg.mxu0
        %4156 = vmatprep.subr.mxu0 %v3509
        %4157 = vmatpush1.xpose.msra.mxu0 %v3508
        %4158 = vmatprep.subr.mxu0 %v3511
        %4159 = vmatpush1.xpose.msra.mxu0 %v3510
        %4160 = vmatprep.subr.mxu0 %v3513
        %4161 = vmatpush1.xpose.msra.mxu0 %v3512
        %4162 = vmatprep.subr.mxu0 %v3515
        %4163 = vmatpush1.xpose.msra.mxu0 %v3514
        %4164 = vmatprep.subr.mxu0 %v3517
        %4165 = vmatpush1.xpose.msra.mxu0 %v3516
        %4166 = vmatprep.subr.mxu0 %v3519
        %4167 = vmatpush1.xpose.msra.mxu0 %v3518
        %4168 = vmatprep.subr.mxu0 %v3521
        %4169 = vmatpush1.xpose.msra.mxu0 %v3520
        %4170 = vmatprep.subr.mxu0 %v3523
        %4171 = vmatpush1.xpose.msra.mxu0 %v3522
        %4172 = vmatprep.subr.mxu0 %v3525
        %4173 = vmatpush1.xpose.msra.mxu0 %v3524
        %4174 = vmatprep.subr.mxu0 %v3527
        %4175 = vmatpush1.xpose.msra.mxu0 %v3526
        %4176 = vmatprep.subr.mxu0 %v3529
        %4177 = vmatpush1.xpose.msra.mxu0 %v3528
        %4178 = vmatprep.subr.mxu0 %v3531
        %4179 = vmatpush1.xpose.msra.mxu0 %v3530
        %4180 = vmatprep.subr.mxu0 %v3533
        %4181 = vmatpush1.xpose.msra.mxu0 %v3532
        %4182 = vmatprep.subr.mxu0 %v3535
        %4183 = vmatpush1.xpose.msra.mxu0 %v3534
        %4184 = vmatprep.subr.mxu0 %v3537
        %4185 = vmatpush1.xpose.msra.mxu0 %v3536
        %4186 = vmatprep.subr.mxu0 %v3539
        %4187 = vmatpush1.xpose.msra.mxu0 %v3538
        %4188 = vmatprep.subr.mxu0 %v3541
        %4189 = vmatpush1.xpose.msra.mxu0 %v3540
        %4190 = vmatprep.subr.mxu0 %v3543
        %4191 = vmatpush1.xpose.msra.mxu0 %v3542
        %4192 = vmatprep.subr.mxu0 %v3545
        %4193 = vmatpush1.xpose.msra.mxu0 %v3544
        %4194 = vmatprep.subr.mxu0 %v3547
        %4195 = vmatpush1.xpose.msra.mxu0 %v3546
        %4196 = vmatprep.subr.mxu0 %v3549
        %4197 = vmatpush1.xpose.msra.mxu0 %v3548
        %4198 = vmatprep.subr.mxu0 %v3551
        %4199 = vmatpush1.xpose.msra.mxu0 %v3550
        %4200 = vmatprep.subr.mxu0 %v3553
        %4201 = vmatpush1.xpose.msra.mxu0 %v3552
        %4202 = vmatprep.subr.mxu0 %v3555
        %4203 = vmatpush1.xpose.msra.mxu0 %v3554
        %4204 = vmatprep.subr.mxu0 %v3557
        %4205 = vmatpush1.xpose.msra.mxu0 %v3556
        %4206 = vmatprep.subr.mxu0 %v3559
        %4207 = vmatpush1.xpose.msra.mxu0 %v3558
        %4208 = vmatprep.subr.mxu0 %v3561
        %4209 = vmatpush1.xpose.msra.mxu0 %v3560
        %4210 = vmatprep.subr.mxu0 %v3563
        %4211 = vmatpush1.xpose.msra.mxu0 %v3562
        %4212 = vmatprep.subr.mxu0 %v3565
        %4213 = vmatpush1.xpose.msra.mxu0 %v3564
        %4214 = vmatprep.subr.mxu0 %v3567
        %4215 = vmatpush1.xpose.msra.mxu0 %v3566
        %4216 = vmatprep.subr.mxu0 %v3569
        %4217 = vmatpush1.xpose.msra.mxu0 %v3568
        %4218 = vmatprep.subr.mxu0 %v3571
        %4219 = vmatpush1.xpose.msra.mxu0 %v3570
        %4220 = vmatprep.mubr.f32.mxu0 %v3249
        %4221 = vmatmul.mubr.f32.gmra.mrb[0].mxu0 %v3248
        %v4222 = vpop.f32.mrb[0].mxu0
        %v4223 = vadd.f32 %v3803, %v4222
        %v4224 = vpop.f32.mrb[0].mxu0
        %v4225 = vadd.f32 %v3807, %v4224
        %4226 = vmatprep.mubr.f32.mxu0 %v3251
        %4227 = vmatmul.mubr.f32.gmra.mrb[0].mxu0 %v3250
        %v4228 = vpop.f32.mrb[0].mxu0
        %v4229 = vadd.f32 %v3803, %v4228
        %v4230 = vpop.f32.mrb[0].mxu0
        %v4231 = vadd.f32 %v3807, %v4230
        %4232 = vdwg.mxu0
        %4233 = vmatprep.subr.mxu0 %v3573
        %4234 = vmatpush1.xpose.msra.mxu0 %v3572
        %4235 = vmatprep.subr.mxu0 %v3575
        %4236 = vmatpush1.xpose.msra.mxu0 %v3574
        %4237 = vmatprep.subr.mxu0 %v3577
        %4238 = vmatpush1.xpose.msra.mxu0 %v3576
        %4239 = vmatprep.subr.mxu0 %v3579
        %4240 = vmatpush1.xpose.msra.mxu0 %v3578
        %4241 = vmatprep.subr.mxu0 %v3581
        %4242 = vmatpush1.xpose.msra.mxu0 %v3580
        %4243 = vmatprep.subr.mxu0 %v3583
        %4244 = vmatpush1.xpose.msra.mxu0 %v3582
        %4245 = vmatprep.subr.mxu0 %v3585
        %4246 = vmatpush1.xpose.msra.mxu0 %v3584
        %4247 = vmatprep.subr.mxu0 %v3587
        %4248 = vmatpush1.xpose.msra.mxu0 %v3586
        %4249 = vmatprep.subr.mxu0 %v3589
        %4250 = vmatpush1.xpose.msra.mxu0 %v3588
        %4251 = vmatprep.subr.mxu0 %v3591
        %4252 = vmatpush1.xpose.msra.mxu0 %v3590
        %4253 = vmatprep.subr.mxu0 %v3593
        %4254 = vmatpush1.xpose.msra.mxu0 %v3592
        %4255 = vmatprep.subr.mxu0 %v3595
        %4256 = vmatpush1.xpose.msra.mxu0 %v3594
        %4257 = vmatprep.subr.mxu0 %v3597
        %4258 = vmatpush1.xpose.msra.mxu0 %v3596
        %4259 = vmatprep.subr.mxu0 %v3599
        %4260 = vmatpush1.xpose.msra.mxu0 %v3598
        %4261 = vmatprep.subr.mxu0 %v3601
        %4262 = vmatpush1.xpose.msra.mxu0 %v3600
        %4263 = vmatprep.subr.mxu0 %v3603
        %4264 = vmatpush1.xpose.msra.mxu0 %v3602
        %4265 = vmatprep.subr.mxu0 %v3605
        %4266 = vmatpush1.xpose.msra.mxu0 %v3604
        %4267 = vmatprep.subr.mxu0 %v3607
        %4268 = vmatpush1.xpose.msra.mxu0 %v3606
        %4269 = vmatprep.subr.mxu0 %v3609
        %4270 = vmatpush1.xpose.msra.mxu0 %v3608
        %4271 = vmatprep.subr.mxu0 %v3611
        %4272 = vmatpush1.xpose.msra.mxu0 %v3610
        %4273 = vmatprep.subr.mxu0 %v3613
        %4274 = vmatpush1.xpose.msra.mxu0 %v3612
        %4275 = vmatprep.subr.mxu0 %v3615
        %4276 = vmatpush1.xpose.msra.mxu0 %v3614
        %4277 = vmatprep.subr.mxu0 %v3617
        %4278 = vmatpush1.xpose.msra.mxu0 %v3616
        %4279 = vmatprep.subr.mxu0 %v3619
        %4280 = vmatpush1.xpose.msra.mxu0 %v3618
        %4281 = vmatprep.subr.mxu0 %v3621
        %4282 = vmatpush1.xpose.msra.mxu0 %v3620
        %4283 = vmatprep.subr.mxu0 %v3623
        %4284 = vmatpush1.xpose.msra.mxu0 %v3622
        %4285 = vmatprep.subr.mxu0 %v3625
        %4286 = vmatpush1.xpose.msra.mxu0 %v3624
        %4287 = vmatprep.subr.mxu0 %v3627
        %4288 = vmatpush1.xpose.msra.mxu0 %v3626
        %4289 = vmatprep.subr.mxu0 %v3629
        %4290 = vmatpush1.xpose.msra.mxu0 %v3628
        %4291 = vmatprep.subr.mxu0 %v3631
        %4292 = vmatpush1.xpose.msra.mxu0 %v3630
        %4293 = vmatprep.subr.mxu0 %v3633
        %4294 = vmatpush1.xpose.msra.mxu0 %v3632
        %4295 = vmatprep.subr.mxu0 %v3635
        %4296 = vmatpush1.xpose.msra.mxu0 %v3634
        %4297 = vmatprep.mubr.f32.mxu0 %v3249
        %4298 = vmatmul.mubr.f32.gmra.mrb[0].mxu0 %v3248
        %v4299 = vpop.f32.mrb[0].mxu0
        %v4300 = vadd.f32 %v3811, %v4299
        %v4301 = vpop.f32.mrb[0].mxu0
        %v4302 = vadd.f32 %v3815, %v4301
        %4303 = vmatprep.mubr.f32.mxu0 %v3251
        %4304 = vmatmul.mubr.f32.gmra.mrb[0].mxu0 %v3250
        %v4305 = vpop.f32.mrb[0].mxu0
        %v4306 = vadd.f32 %v3811, %v4305
        %v4307 = vpop.f32.mrb[0].mxu0
        %v4308 = vadd.f32 %v3815, %v4307
        %4309 = vdwg.mxu0
        %4310 = vmatprep.subr.mxu0 %v3637
        %4311 = vmatpush1.xpose.msra.mxu0 %v3636
        %4312 = vmatprep.subr.mxu0 %v3639
        %4313 = vmatpush1.xpose.msra.mxu0 %v3638
        %4314 = vmatprep.subr.mxu0 %v3641
        %4315 = vmatpush1.xpose.msra.mxu0 %v3640
        %4316 = vmatprep.subr.mxu0 %v3643
        %4317 = vmatpush1.xpose.msra.mxu0 %v3642
        %4318 = vmatprep.subr.mxu0 %v3645
        %4319 = vmatpush1.xpose.msra.mxu0 %v3644
        %4320 = vmatprep.subr.mxu0 %v3647
        %4321 = vmatpush1.xpose.msra.mxu0 %v3646
        %4322 = vmatprep.subr.mxu0 %v3649
        %4323 = vmatpush1.xpose.msra.mxu0 %v3648
        %4324 = vmatprep.subr.mxu0 %v3651
        %4325 = vmatpush1.xpose.msra.mxu0 %v3650
        %4326 = vmatprep.subr.mxu0 %v3653
        %4327 = vmatpush1.xpose.msra.mxu0 %v3652
        %4328 = vmatprep.subr.mxu0 %v3655
        %4329 = vmatpush1.xpose.msra.mxu0 %v3654
        %4330 = vmatprep.subr.mxu0 %v3657
        %4331 = vmatpush1.xpose.msra.mxu0 %v3656
        %4332 = vmatprep.subr.mxu0 %v3659
        %4333 = vmatpush1.xpose.msra.mxu0 %v3658
        %4334 = vmatprep.subr.mxu0 %v3661
        %4335 = vmatpush1.xpose.msra.mxu0 %v3660
        %4336 = vmatprep.subr.mxu0 %v3663
        %4337 = vmatpush1.xpose.msra.mxu0 %v3662
        %4338 = vmatprep.subr.mxu0 %v3665
        %4339 = vmatpush1.xpose.msra.mxu0 %v3664
        %4340 = vmatprep.subr.mxu0 %v3667
        %4341 = vmatpush1.xpose.msra.mxu0 %v3666
        %4342 = vmatprep.subr.mxu0 %v3669
        %4343 = vmatpush1.xpose.msra.mxu0 %v3668
        %4344 = vmatprep.subr.mxu0 %v3671
        %4345 = vmatpush1.xpose.msra.mxu0 %v3670
        %4346 = vmatprep.subr.mxu0 %v3673
        %4347 = vmatpush1.xpose.msra.mxu0 %v3672
        %4348 = vmatprep.subr.mxu0 %v3675
        %4349 = vmatpush1.xpose.msra.mxu0 %v3674
        %4350 = vmatprep.subr.mxu0 %v3677
        %4351 = vmatpush1.xpose.msra.mxu0 %v3676
        %4352 = vmatprep.subr.mxu0 %v3679
        %4353 = vmatpush1.xpose.msra.mxu0 %v3678
        %4354 = vmatprep.subr.mxu0 %v3681
        %4355 = vmatpush1.xpose.msra.mxu0 %v3680
        %4356 = vmatprep.subr.mxu0 %v3683
        %4357 = vmatpush1.xpose.msra.mxu0 %v3682
        %4358 = vmatprep.subr.mxu0 %v3685
        %4359 = vmatpush1.xpose.msra.mxu0 %v3684
        %4360 = vmatprep.subr.mxu0 %v3687
        %4361 = vmatpush1.xpose.msra.mxu0 %v3686
        %4362 = vmatprep.subr.mxu0 %v3689
        %4363 = vmatpush1.xpose.msra.mxu0 %v3688
        %4364 = vmatprep.subr.mxu0 %v3691
        %4365 = vmatpush1.xpose.msra.mxu0 %v3690
        %4366 = vmatprep.subr.mxu0 %v3693
        %4367 = vmatpush1.xpose.msra.mxu0 %v3692
        %4368 = vmatprep.subr.mxu0 %v3695
        %4369 = vmatpush1.xpose.msra.mxu0 %v3694
        %4370 = vmatprep.subr.mxu0 %v3697
        %4371 = vmatpush1.xpose.msra.mxu0 %v3696
        %4372 = vmatprep.subr.mxu0 %v3699
        %4373 = vmatpush1.xpose.msra.mxu0 %v3698
        %4374 = vmatprep.mubr.f32.mxu0 %v3249
        %4375 = vmatmul.mubr.f32.gmra.mrb[0].mxu0 %v3248
        %v4376 = vpop.f32.mrb[0].mxu0
        %v4377 = vadd.f32 %v3819, %v4376
        %v4378 = vpop.f32.mrb[0].mxu0
        %v4379 = vadd.f32 %v3823, %v4378
        %4380 = vmatprep.mubr.f32.mxu0 %v3251
        %4381 = vmatmul.mubr.f32.gmra.mrb[0].mxu0 %v3250
        %v4382 = vpop.f32.mrb[0].mxu0
        %v4383 = vadd.f32 %v3819, %v4382
        %v4384 = vpop.f32.mrb[0].mxu0
        %v4385 = vadd.f32 %v3823, %v4384
        %4386 = vdwg.mxu0
        %4387 = vmatprep.subr.mxu0 %v3701
        %4388 = vmatpush1.xpose.msra.mxu0 %v3700
        %4389 = vmatprep.subr.mxu0 %v3703
        %4390 = vmatpush1.xpose.msra.mxu0 %v3702
        %4391 = vmatprep.subr.mxu0 %v3705
        %4392 = vmatpush1.xpose.msra.mxu0 %v3704
        %4393 = vmatprep.subr.mxu0 %v3707
        %4394 = vmatpush1.xpose.msra.mxu0 %v3706
        %4395 = vmatprep.subr.mxu0 %v3709
        %4396 = vmatpush1.xpose.msra.mxu0 %v3708
        %4397 = vmatprep.subr.mxu0 %v3711
        %4398 = vmatpush1.xpose.msra.mxu0 %v3710
        %4399 = vmatprep.subr.mxu0 %v3713
        %4400 = vmatpush1.xpose.msra.mxu0 %v3712
        %4401 = vmatprep.subr.mxu0 %v3715
        %4402 = vmatpush1.xpose.msra.mxu0 %v3714
        %4403 = vmatprep.subr.mxu0 %v3717
        %4404 = vmatpush1.xpose.msra.mxu0 %v3716
        %4405 = vmatprep.subr.mxu0 %v3719
        %4406 = vmatpush1.xpose.msra.mxu0 %v3718
        %4407 = vmatprep.subr.mxu0 %v3721
        %4408 = vmatpush1.xpose.msra.mxu0 %v3720
        %4409 = vmatprep.subr.mxu0 %v3723
        %4410 = vmatpush1.xpose.msra.mxu0 %v3722
        %4411 = vmatprep.subr.mxu0 %v3725
        %4412 = vmatpush1.xpose.msra.mxu0 %v3724
        %4413 = vmatprep.subr.mxu0 %v3727
        %4414 = vmatpush1.xpose.msra.mxu0 %v3726
        %4415 = vmatprep.subr.mxu0 %v3729
        %4416 = vmatpush1.xpose.msra.mxu0 %v3728
        %4417 = vmatprep.subr.mxu0 %v3731
        %4418 = vmatpush1.xpose.msra.mxu0 %v3730
        %4419 = vmatprep.subr.mxu0 %v3733
        %4420 = vmatpush1.xpose.msra.mxu0 %v3732
        %4421 = vmatprep.subr.mxu0 %v3735
        %4422 = vmatpush1.xpose.msra.mxu0 %v3734
        %4423 = vmatprep.subr.mxu0 %v3737
        %4424 = vmatpush1.xpose.msra.mxu0 %v3736
        %4425 = vmatprep.subr.mxu0 %v3739
        %4426 = vmatpush1.xpose.msra.mxu0 %v3738
        %4427 = vmatprep.subr.mxu0 %v3741
        %4428 = vmatpush1.xpose.msra.mxu0 %v3740
        %4429 = vmatprep.subr.mxu0 %v3743
        %4430 = vmatpush1.xpose.msra.mxu0 %v3742
        %4431 = vmatprep.subr.mxu0 %v3745
        %4432 = vmatpush1.xpose.msra.mxu0 %v3744
        %4433 = vmatprep.subr.mxu0 %v3747
        %4434 = vmatpush1.xpose.msra.mxu0 %v3746
        %4435 = vmatprep.subr.mxu0 %v3749
        %4436 = vmatpush1.xpose.msra.mxu0 %v3748
        %4437 = vmatprep.subr.mxu0 %v3751
        %4438 = vmatpush1.xpose.msra.mxu0 %v3750
        %4439 = vmatprep.subr.mxu0 %v3753
        %4440 = vmatpush1.xpose.msra.mxu0 %v3752
        %4441 = vmatprep.subr.mxu0 %v3755
        %4442 = vmatpush1.xpose.msra.mxu0 %v3754
        %4443 = vmatprep.subr.mxu0 %v3757
        %4444 = vmatpush1.xpose.msra.mxu0 %v3756
        %4445 = vmatprep.subr.mxu0 %v3759
        %4446 = vmatpush1.xpose.msra.mxu0 %v3758
        %4447 = vmatprep.subr.mxu0 %v3761
        %4448 = vmatpush1.xpose.msra.mxu0 %v3760
        %4449 = vmatprep.subr.mxu0 %v3763
        %4450 = vmatpush1.xpose.msra.mxu0 %v3762
        %4451 = vmatprep.mubr.f32.mxu0 %v3249
        %4452 = vmatmul.mubr.f32.gmra.mrb[0].mxu0 %v3248
        %v4453 = vpop.f32.mrb[0].mxu0
        %v4454 = vadd.f32 %v3827, %v4453
        %v4455 = vpop.f32.mrb[0].mxu0
        %v4456 = vadd.f32 %v3831, %v4455
        %4457 = vmatprep.mubr.f32.mxu0 %v3251
        %4458 = vmatmul.mubr.f32.gmra.mrb[0].mxu0 %v3250
        %v4459 = vpop.f32.mrb[0].mxu0
        %v4460 = vadd.f32 %v3827, %v4459
        %v4461 = vpop.f32.mrb[0].mxu0
        %v4462 = vadd.f32 %v3831, %v4461
        %4463 = vdwg.mxu0
        %v4464 = vmax.f32 %v3915, 0.0
        %v4465 = vmax.f32 %v3917, 0.0
        %v4466 = vmax.f32 %v3992, 0.0
        %v4467 = vmax.f32 %v3994, 0.0
        %v4468 = vmax.f32 %v4069, 0.0
        %v4469 = vmax.f32 %v4071, 0.0
        %v4470 = vmax.f32 %v4146, 0.0
        %v4471 = vmax.f32 %v4148, 0.0
        %v4472 = vmax.f32 %v4223, 0.0
        %v4473 = vmax.f32 %v4225, 0.0
        %v4474 = vmax.f32 %v4300, 0.0
        %v4475 = vmax.f32 %v4302, 0.0
        %v4476 = vmax.f32 %v4377, 0.0
        %v4477 = vmax.f32 %v4379, 0.0
        %v4478 = vmax.f32 %v4454, 0.0
        %v4479 = vmax.f32 %v4456, 0.0
        %v4480 = vmax.f32 %v3921, 0.0
        %v4481 = vmax.f32 %v3923, 0.0
        %v4482 = vmax.f32 %v3998, 0.0
        %v4483 = vmax.f32 %v4000, 0.0
        %v4484 = vmax.f32 %v4075, 0.0
        %v4485 = vmax.f32 %v4077, 0.0
        %v4486 = vmax.f32 %v4152, 0.0
        %v4487 = vmax.f32 %v4154, 0.0
        %v4488 = vmax.f32 %v4229, 0.0
        %v4489 = vmax.f32 %v4231, 0.0
        %v4490 = vmax.f32 %v4306, 0.0
        %v4491 = vmax.f32 %v4308, 0.0
        %v4492 = vmax.f32 %v4383, 0.0
        %v4493 = vmax.f32 %v4385, 0.0
        %v4494 = vmax.f32 %v4460, 0.0
        %v4495 = vmax.f32 %v4462, 0.0
        %v4496 = vld [vmem:[%s1151] sm:$0xff]
        %v4497 = vld [vmem:[%s1151 + $0x8] sm:$0xff]
        %v4498 = vld [vmem:[%s1151 + $0x10] sm:$0xff]
        %v4499 = vld [vmem:[%s1151 + $0x18] sm:$0xff]
        %v4500 = vld [vmem:[%s1151 + $0x20] sm:$0xff]
        %v4501 = vld [vmem:[%s1151 + $0x28] sm:$0xff]
        %v4502 = vld [vmem:[%s1151 + $0x30] sm:$0xff]
        %v4503 = vld [vmem:[%s1151 + $0x38] sm:$0xff]
        %v4504 = vld [vmem:[%s1151 + $0x40] sm:$0xff]
        %v4505 = vld [vmem:[%s1151 + $0x48] sm:$0xff]
        %v4506 = vld [vmem:[%s1151 + $0x50] sm:$0xff]
        %v4507 = vld [vmem:[%s1151 + $0x58] sm:$0xff]
        %v4508 = vld [vmem:[%s1151 + $0x60] sm:$0xff]
        %v4509 = vld [vmem:[%s1151 + $0x68] sm:$0xff]
        %v4510 = vld [vmem:[%s1151 + $0x70] sm:$0xff]
        %v4511 = vld [vmem:[%s1151 + $0x78] sm:$0xff]
        %v4512 = vld [vmem:[%s1151 + $0x80] sm:$0xff]
        %v4513 = vld [vmem:[%s1151 + $0x88] sm:$0xff]
        %v4514 = vld [vmem:[%s1151 + $0x90] sm:$0xff]
        %v4515 = vld [vmem:[%s1151 + $0x98] sm:$0xff]
        %v4516 = vld [vmem:[%s1151 + $0xa0] sm:$0xff]
        %v4517 = vld [vmem:[%s1151 + $0xa8] sm:$0xff]
        %v4518 = vld [vmem:[%s1151 + $0xb0] sm:$0xff]
        %v4519 = vld [vmem:[%s1151 + $0xb8] sm:$0xff]
        %v4520 = vld [vmem:[%s1151 + $0xc0] sm:$0xff]
        %v4521 = vld [vmem:[%s1151 + $0xc8] sm:$0xff]
        %v4522 = vld [vmem:[%s1151 + $0xd0] sm:$0xff]
        %v4523 = vld [vmem:[%s1151 + $0xd8] sm:$0xff]
        %v4524 = vld [vmem:[%s1151 + $0xe0] sm:$0xff]
        %v4525 = vld [vmem:[%s1151 + $0xe8] sm:$0xff]
        %v4526 = vld [vmem:[%s1151 + $0xf0] sm:$0xff]
        %v4527 = vld [vmem:[%s1151 + $0xf8] sm:$0xff]
        %v4528 = vld [vmem:[%s1151 + $0x100] sm:$0xff]
        %v4529 = vld [vmem:[%s1151 + $0x108] sm:$0xff]
        %v4530 = vld [vmem:[%s1151 + $0x110] sm:$0xff]
        %v4531 = vld [vmem:[%s1151 + $0x118] sm:$0xff]
        %v4532 = vld [vmem:[%s1151 + $0x120] sm:$0xff]
        %v4533 = vld [vmem:[%s1151 + $0x128] sm:$0xff]
        %v4534 = vld [vmem:[%s1151 + $0x130] sm:$0xff]
        %v4535 = vld [vmem:[%s1151 + $0x138] sm:$0xff]
        %v4536 = vld [vmem:[%s1151 + $0x140] sm:$0xff]
        %v4537 = vld [vmem:[%s1151 + $0x148] sm:$0xff]
        %v4538 = vld [vmem:[%s1151 + $0x150] sm:$0xff]
        %v4539 = vld [vmem:[%s1151 + $0x158] sm:$0xff]
        %v4540 = vld [vmem:[%s1151 + $0x160] sm:$0xff]
        %v4541 = vld [vmem:[%s1151 + $0x168] sm:$0xff]
        %v4542 = vld [vmem:[%s1151 + $0x170] sm:$0xff]
        %v4543 = vld [vmem:[%s1151 + $0x178] sm:$0xff]
        %v4544 = vld [vmem:[%s1151 + $0x180] sm:$0xff]
        %v4545 = vld [vmem:[%s1151 + $0x188] sm:$0xff]
        %v4546 = vld [vmem:[%s1151 + $0x190] sm:$0xff]
        %v4547 = vld [vmem:[%s1151 + $0x198] sm:$0xff]
        %v4548 = vld [vmem:[%s1151 + $0x1a0] sm:$0xff]
        %v4549 = vld [vmem:[%s1151 + $0x1a8] sm:$0xff]
        %v4550 = vld [vmem:[%s1151 + $0x1b0] sm:$0xff]
        %v4551 = vld [vmem:[%s1151 + $0x1b8] sm:$0xff]
        %v4552 = vld [vmem:[%s1151 + $0x1c0] sm:$0xff]
        %v4553 = vld [vmem:[%s1151 + $0x1c8] sm:$0xff]
        %v4554 = vld [vmem:[%s1151 + $0x1d0] sm:$0xff]
        %v4555 = vld [vmem:[%s1151 + $0x1d8] sm:$0xff]
        %v4556 = vld [vmem:[%s1151 + $0x1e0] sm:$0xff]
        %v4557 = vld [vmem:[%s1151 + $0x1e8] sm:$0xff]
        %v4558 = vld [vmem:[%s1151 + $0x1f0] sm:$0xff]
        %v4559 = vld [vmem:[%s1151 + $0x1f8] sm:$0xff]
        %v4560 = vld [vmem:[%s1151 + $0x200] sm:$0xff]
        %v4561 = vld [vmem:[%s1151 + $0x208] sm:$0xff]
        %v4562 = vld [vmem:[%s1151 + $0x210] sm:$0xff]
        %v4563 = vld [vmem:[%s1151 + $0x218] sm:$0xff]
        %v4564 = vld [vmem:[%s1151 + $0x220] sm:$0xff]
        %v4565 = vld [vmem:[%s1151 + $0x228] sm:$0xff]
        %v4566 = vld [vmem:[%s1151 + $0x230] sm:$0xff]
        %v4567 = vld [vmem:[%s1151 + $0x238] sm:$0xff]
        %v4568 = vld [vmem:[%s1151 + $0x240] sm:$0xff]
        %v4569 = vld [vmem:[%s1151 + $0x248] sm:$0xff]
        %v4570 = vld [vmem:[%s1151 + $0x250] sm:$0xff]
        %v4571 = vld [vmem:[%s1151 + $0x258] sm:$0xff]
        %v4572 = vld [vmem:[%s1151 + $0x260] sm:$0xff]
        %v4573 = vld [vmem:[%s1151 + $0x268] sm:$0xff]
        %v4574 = vld [vmem:[%s1151 + $0x270] sm:$0xff]
        %v4575 = vld [vmem:[%s1151 + $0x278] sm:$0xff]
        %v4576 = vld [vmem:[%s1151 + $0x280] sm:$0xff]
        %v4577 = vld [vmem:[%s1151 + $0x288] sm:$0xff]
        %v4578 = vld [vmem:[%s1151 + $0x290] sm:$0xff]
        %v4579 = vld [vmem:[%s1151 + $0x298] sm:$0xff]
        %v4580 = vld [vmem:[%s1151 + $0x2a0] sm:$0xff]
        %v4581 = vld [vmem:[%s1151 + $0x2a8] sm:$0xff]
        %v4582 = vld [vmem:[%s1151 + $0x2b0] sm:$0xff]
        %v4583 = vld [vmem:[%s1151 + $0x2b8] sm:$0xff]
        %v4584 = vld [vmem:[%s1151 + $0x2c0] sm:$0xff]
        %v4585 = vld [vmem:[%s1151 + $0x2c8] sm:$0xff]
        %v4586 = vld [vmem:[%s1151 + $0x2d0] sm:$0xff]
        %v4587 = vld [vmem:[%s1151 + $0x2d8] sm:$0xff]
        %v4588 = vld [vmem:[%s1151 + $0x2e0] sm:$0xff]
        %v4589 = vld [vmem:[%s1151 + $0x2e8] sm:$0xff]
        %v4590 = vld [vmem:[%s1151 + $0x2f0] sm:$0xff]
        %v4591 = vld [vmem:[%s1151 + $0x2f8] sm:$0xff]
        %v4592 = vld [vmem:[%s1151 + $0x300] sm:$0xff]
        %v4593 = vld [vmem:[%s1151 + $0x308] sm:$0xff]
        %v4594 = vld [vmem:[%s1151 + $0x310] sm:$0xff]
        %v4595 = vld [vmem:[%s1151 + $0x318] sm:$0xff]
        %v4596 = vld [vmem:[%s1151 + $0x320] sm:$0xff]
        %v4597 = vld [vmem:[%s1151 + $0x328] sm:$0xff]
        %v4598 = vld [vmem:[%s1151 + $0x330] sm:$0xff]
        %v4599 = vld [vmem:[%s1151 + $0x338] sm:$0xff]
        %v4600 = vld [vmem:[%s1151 + $0x340] sm:$0xff]
        %v4601 = vld [vmem:[%s1151 + $0x348] sm:$0xff]
        %v4602 = vld [vmem:[%s1151 + $0x350] sm:$0xff]
        %v4603 = vld [vmem:[%s1151 + $0x358] sm:$0xff]
        %v4604 = vld [vmem:[%s1151 + $0x360] sm:$0xff]
        %v4605 = vld [vmem:[%s1151 + $0x368] sm:$0xff]
        %v4606 = vld [vmem:[%s1151 + $0x370] sm:$0xff]
        %v4607 = vld [vmem:[%s1151 + $0x378] sm:$0xff]
        %v4608 = vld [vmem:[%s1151 + $0x380] sm:$0xff]
        %v4609 = vld [vmem:[%s1151 + $0x388] sm:$0xff]
        %v4610 = vld [vmem:[%s1151 + $0x390] sm:$0xff]
        %v4611 = vld [vmem:[%s1151 + $0x398] sm:$0xff]
        %v4612 = vld [vmem:[%s1151 + $0x3a0] sm:$0xff]
        %v4613 = vld [vmem:[%s1151 + $0x3a8] sm:$0xff]
        %v4614 = vld [vmem:[%s1151 + $0x3b0] sm:$0xff]
        %v4615 = vld [vmem:[%s1151 + $0x3b8] sm:$0xff]
        %v4616 = vld [vmem:[%s1151 + $0x3c0] sm:$0xff]
        %v4617 = vld [vmem:[%s1151 + $0x3c8] sm:$0xff]
        %v4618 = vld [vmem:[%s1151 + $0x3d0] sm:$0xff]
        %v4619 = vld [vmem:[%s1151 + $0x3d8] sm:$0xff]
        %v4620 = vld [vmem:[%s1151 + $0x3e0] sm:$0xff]
        %v4621 = vld [vmem:[%s1151 + $0x3e8] sm:$0xff]
        %v4622 = vld [vmem:[%s1151 + $0x3f0] sm:$0xff]
        %v4623 = vld [vmem:[%s1151 + $0x3f8] sm:$0xff]
        %v4624 = vld [vmem:[%s1151 + $0x400] sm:$0xff]
        %v4625 = vld [vmem:[%s1151 + $0x408] sm:$0xff]
        %v4626 = vld [vmem:[%s1151 + $0x410] sm:$0xff]
        %v4627 = vld [vmem:[%s1151 + $0x418] sm:$0xff]
        %v4628 = vld [vmem:[%s1151 + $0x420] sm:$0xff]
        %v4629 = vld [vmem:[%s1151 + $0x428] sm:$0xff]
        %v4630 = vld [vmem:[%s1151 + $0x430] sm:$0xff]
        %v4631 = vld [vmem:[%s1151 + $0x438] sm:$0xff]
        %v4632 = vld [vmem:[%s1151 + $0x440] sm:$0xff]
        %v4633 = vld [vmem:[%s1151 + $0x448] sm:$0xff]
        %v4634 = vld [vmem:[%s1151 + $0x450] sm:$0xff]
        %v4635 = vld [vmem:[%s1151 + $0x458] sm:$0xff]
        %v4636 = vld [vmem:[%s1151 + $0x460] sm:$0xff]
        %v4637 = vld [vmem:[%s1151 + $0x468] sm:$0xff]
        %v4638 = vld [vmem:[%s1151 + $0x470] sm:$0xff]
        %v4639 = vld [vmem:[%s1151 + $0x478] sm:$0xff]
        %v4640 = vld [vmem:[%s1151 + $0x480] sm:$0xff]
        %v4641 = vld [vmem:[%s1151 + $0x488] sm:$0xff]
        %v4642 = vld [vmem:[%s1151 + $0x490] sm:$0xff]
        %v4643 = vld [vmem:[%s1151 + $0x498] sm:$0xff]
        %v4644 = vld [vmem:[%s1151 + $0x4a0] sm:$0xff]
        %v4645 = vld [vmem:[%s1151 + $0x4a8] sm:$0xff]
        %v4646 = vld [vmem:[%s1151 + $0x4b0] sm:$0xff]
        %v4647 = vld [vmem:[%s1151 + $0x4b8] sm:$0xff]
        %v4648 = vld [vmem:[%s1151 + $0x4c0] sm:$0xff]
        %v4649 = vld [vmem:[%s1151 + $0x4c8] sm:$0xff]
        %v4650 = vld [vmem:[%s1151 + $0x4d0] sm:$0xff]
        %v4651 = vld [vmem:[%s1151 + $0x4d8] sm:$0xff]
        %v4652 = vld [vmem:[%s1151 + $0x4e0] sm:$0xff]
        %v4653 = vld [vmem:[%s1151 + $0x4e8] sm:$0xff]
        %v4654 = vld [vmem:[%s1151 + $0x4f0] sm:$0xff]
        %v4655 = vld [vmem:[%s1151 + $0x4f8] sm:$0xff]
        %v4656 = vld [vmem:[%s1151 + $0x500] sm:$0xff]
        %v4657 = vld [vmem:[%s1151 + $0x508] sm:$0xff]
        %v4658 = vld [vmem:[%s1151 + $0x510] sm:$0xff]
        %v4659 = vld [vmem:[%s1151 + $0x518] sm:$0xff]
        %v4660 = vld [vmem:[%s1151 + $0x520] sm:$0xff]
        %v4661 = vld [vmem:[%s1151 + $0x528] sm:$0xff]
        %v4662 = vld [vmem:[%s1151 + $0x530] sm:$0xff]
        %v4663 = vld [vmem:[%s1151 + $0x538] sm:$0xff]
        %v4664 = vld [vmem:[%s1151 + $0x540] sm:$0xff]
        %v4665 = vld [vmem:[%s1151 + $0x548] sm:$0xff]
        %v4666 = vld [vmem:[%s1151 + $0x550] sm:$0xff]
        %v4667 = vld [vmem:[%s1151 + $0x558] sm:$0xff]
        %v4668 = vld [vmem:[%s1151 + $0x560] sm:$0xff]
        %v4669 = vld [vmem:[%s1151 + $0x568] sm:$0xff]
        %v4670 = vld [vmem:[%s1151 + $0x570] sm:$0xff]
        %v4671 = vld [vmem:[%s1151 + $0x578] sm:$0xff]
        %v4672 = vld [vmem:[%s1151 + $0x580] sm:$0xff]
        %v4673 = vld [vmem:[%s1151 + $0x588] sm:$0xff]
        %v4674 = vld [vmem:[%s1151 + $0x590] sm:$0xff]
        %v4675 = vld [vmem:[%s1151 + $0x598] sm:$0xff]
        %v4676 = vld [vmem:[%s1151 + $0x5a0] sm:$0xff]
        %v4677 = vld [vmem:[%s1151 + $0x5a8] sm:$0xff]
        %v4678 = vld [vmem:[%s1151 + $0x5b0] sm:$0xff]
        %v4679 = vld [vmem:[%s1151 + $0x5b8] sm:$0xff]
        %v4680 = vld [vmem:[%s1151 + $0x5c0] sm:$0xff]
        %v4681 = vld [vmem:[%s1151 + $0x5c8] sm:$0xff]
        %v4682 = vld [vmem:[%s1151 + $0x5d0] sm:$0xff]
        %v4683 = vld [vmem:[%s1151 + $0x5d8] sm:$0xff]
        %v4684 = vld [vmem:[%s1151 + $0x5e0] sm:$0xff]
        %v4685 = vld [vmem:[%s1151 + $0x5e8] sm:$0xff]
        %v4686 = vld [vmem:[%s1151 + $0x5f0] sm:$0xff]
        %v4687 = vld [vmem:[%s1151 + $0x5f8] sm:$0xff]
        %v4688 = vld [vmem:[%s1151 + $0x600] sm:$0xff]
        %v4689 = vld [vmem:[%s1151 + $0x608] sm:$0xff]
        %v4690 = vld [vmem:[%s1151 + $0x610] sm:$0xff]
        %v4691 = vld [vmem:[%s1151 + $0x618] sm:$0xff]
        %v4692 = vld [vmem:[%s1151 + $0x620] sm:$0xff]
        %v4693 = vld [vmem:[%s1151 + $0x628] sm:$0xff]
        %v4694 = vld [vmem:[%s1151 + $0x630] sm:$0xff]
        %v4695 = vld [vmem:[%s1151 + $0x638] sm:$0xff]
        %v4696 = vld [vmem:[%s1151 + $0x640] sm:$0xff]
        %v4697 = vld [vmem:[%s1151 + $0x648] sm:$0xff]
        %v4698 = vld [vmem:[%s1151 + $0x650] sm:$0xff]
        %v4699 = vld [vmem:[%s1151 + $0x658] sm:$0xff]
        %v4700 = vld [vmem:[%s1151 + $0x660] sm:$0xff]
        %v4701 = vld [vmem:[%s1151 + $0x668] sm:$0xff]
        %v4702 = vld [vmem:[%s1151 + $0x670] sm:$0xff]
        %v4703 = vld [vmem:[%s1151 + $0x678] sm:$0xff]
        %v4704 = vld [vmem:[%s1151 + $0x680] sm:$0xff]
        %v4705 = vld [vmem:[%s1151 + $0x688] sm:$0xff]
        %v4706 = vld [vmem:[%s1151 + $0x690] sm:$0xff]
        %v4707 = vld [vmem:[%s1151 + $0x698] sm:$0xff]
        %v4708 = vld [vmem:[%s1151 + $0x6a0] sm:$0xff]
        %v4709 = vld [vmem:[%s1151 + $0x6a8] sm:$0xff]
        %v4710 = vld [vmem:[%s1151 + $0x6b0] sm:$0xff]
        %v4711 = vld [vmem:[%s1151 + $0x6b8] sm:$0xff]
        %v4712 = vld [vmem:[%s1151 + $0x6c0] sm:$0xff]
        %v4713 = vld [vmem:[%s1151 + $0x6c8] sm:$0xff]
        %v4714 = vld [vmem:[%s1151 + $0x6d0] sm:$0xff]
        %v4715 = vld [vmem:[%s1151 + $0x6d8] sm:$0xff]
        %v4716 = vld [vmem:[%s1151 + $0x6e0] sm:$0xff]
        %v4717 = vld [vmem:[%s1151 + $0x6e8] sm:$0xff]
        %v4718 = vld [vmem:[%s1151 + $0x6f0] sm:$0xff]
        %v4719 = vld [vmem:[%s1151 + $0x6f8] sm:$0xff]
        %v4720 = vld [vmem:[%s1151 + $0x700] sm:$0xff]
        %v4721 = vld [vmem:[%s1151 + $0x708] sm:$0xff]
        %v4722 = vld [vmem:[%s1151 + $0x710] sm:$0xff]
        %v4723 = vld [vmem:[%s1151 + $0x718] sm:$0xff]
        %v4724 = vld [vmem:[%s1151 + $0x720] sm:$0xff]
        %v4725 = vld [vmem:[%s1151 + $0x728] sm:$0xff]
        %v4726 = vld [vmem:[%s1151 + $0x730] sm:$0xff]
        %v4727 = vld [vmem:[%s1151 + $0x738] sm:$0xff]
        %v4728 = vld [vmem:[%s1151 + $0x740] sm:$0xff]
        %v4729 = vld [vmem:[%s1151 + $0x748] sm:$0xff]
        %v4730 = vld [vmem:[%s1151 + $0x750] sm:$0xff]
        %v4731 = vld [vmem:[%s1151 + $0x758] sm:$0xff]
        %v4732 = vld [vmem:[%s1151 + $0x760] sm:$0xff]
        %v4733 = vld [vmem:[%s1151 + $0x768] sm:$0xff]
        %v4734 = vld [vmem:[%s1151 + $0x770] sm:$0xff]
        %v4735 = vld [vmem:[%s1151 + $0x778] sm:$0xff]
        %v4736 = vld [vmem:[%s1151 + $0x780] sm:$0xff]
        %v4737 = vld [vmem:[%s1151 + $0x788] sm:$0xff]
        %v4738 = vld [vmem:[%s1151 + $0x790] sm:$0xff]
        %v4739 = vld [vmem:[%s1151 + $0x798] sm:$0xff]
        %v4740 = vld [vmem:[%s1151 + $0x7a0] sm:$0xff]
        %v4741 = vld [vmem:[%s1151 + $0x7a8] sm:$0xff]
        %v4742 = vld [vmem:[%s1151 + $0x7b0] sm:$0xff]
        %v4743 = vld [vmem:[%s1151 + $0x7b8] sm:$0xff]
        %v4744 = vld [vmem:[%s1151 + $0x7c0] sm:$0xff]
        %v4745 = vld [vmem:[%s1151 + $0x7c8] sm:$0xff]
        %v4746 = vld [vmem:[%s1151 + $0x7d0] sm:$0xff]
        %v4747 = vld [vmem:[%s1151 + $0x7d8] sm:$0xff]
        %v4748 = vld [vmem:[%s1151 + $0x7e0] sm:$0xff]
        %v4749 = vld [vmem:[%s1151 + $0x7e8] sm:$0xff]
        %v4750 = vld [vmem:[%s1151 + $0x7f0] sm:$0xff]
        %v4751 = vld [vmem:[%s1151 + $0x7f8] sm:$0xff]
        %v4752 = vld [vmem:[%s1151 + $0x800] sm:$0xff]
        %v4753 = vld [vmem:[%s1151 + $0x808] sm:$0xff]
        %v4754 = vld [vmem:[%s1151 + $0x810] sm:$0xff]
        %v4755 = vld [vmem:[%s1151 + $0x818] sm:$0xff]
        %v4756 = vld [vmem:[%s1151 + $0x820] sm:$0xff]
        %v4757 = vld [vmem:[%s1151 + $0x828] sm:$0xff]
        %v4758 = vld [vmem:[%s1151 + $0x830] sm:$0xff]
        %v4759 = vld [vmem:[%s1151 + $0x838] sm:$0xff]
        %v4760 = vld [vmem:[%s1151 + $0x840] sm:$0xff]
        %v4761 = vld [vmem:[%s1151 + $0x848] sm:$0xff]
        %v4762 = vld [vmem:[%s1151 + $0x850] sm:$0xff]
        %v4763 = vld [vmem:[%s1151 + $0x858] sm:$0xff]
        %v4764 = vld [vmem:[%s1151 + $0x860] sm:$0xff]
        %v4765 = vld [vmem:[%s1151 + $0x868] sm:$0xff]
        %v4766 = vld [vmem:[%s1151 + $0x870] sm:$0xff]
        %v4767 = vld [vmem:[%s1151 + $0x878] sm:$0xff]
        %v4768 = vld [vmem:[%s1151 + $0x880] sm:$0xff]
        %v4769 = vld [vmem:[%s1151 + $0x888] sm:$0xff]
        %v4770 = vld [vmem:[%s1151 + $0x890] sm:$0xff]
        %v4771 = vld [vmem:[%s1151 + $0x898] sm:$0xff]
        %v4772 = vld [vmem:[%s1151 + $0x8a0] sm:$0xff]
        %v4773 = vld [vmem:[%s1151 + $0x8a8] sm:$0xff]
        %v4774 = vld [vmem:[%s1151 + $0x8b0] sm:$0xff]
        %v4775 = vld [vmem:[%s1151 + $0x8b8] sm:$0xff]
        %v4776 = vld [vmem:[%s1151 + $0x8c0] sm:$0xff]
        %v4777 = vld [vmem:[%s1151 + $0x8c8] sm:$0xff]
        %v4778 = vld [vmem:[%s1151 + $0x8d0] sm:$0xff]
        %v4779 = vld [vmem:[%s1151 + $0x8d8] sm:$0xff]
        %v4780 = vld [vmem:[%s1151 + $0x8e0] sm:$0xff]
        %v4781 = vld [vmem:[%s1151 + $0x8e8] sm:$0xff]
        %v4782 = vld [vmem:[%s1151 + $0x8f0] sm:$0xff]
        %v4783 = vld [vmem:[%s1151 + $0x8f8] sm:$0xff]
        %v4784 = vld [vmem:[%s1151 + $0x900] sm:$0xff]
        %v4785 = vld [vmem:[%s1151 + $0x908] sm:$0xff]
        %v4786 = vld [vmem:[%s1151 + $0x910] sm:$0xff]
        %v4787 = vld [vmem:[%s1151 + $0x918] sm:$0xff]
        %v4788 = vld [vmem:[%s1151 + $0x920] sm:$0xff]
        %v4789 = vld [vmem:[%s1151 + $0x928] sm:$0xff]
        %v4790 = vld [vmem:[%s1151 + $0x930] sm:$0xff]
        %v4791 = vld [vmem:[%s1151 + $0x938] sm:$0xff]
        %v4792 = vld [vmem:[%s1151 + $0x940] sm:$0xff]
        %v4793 = vld [vmem:[%s1151 + $0x948] sm:$0xff]
        %v4794 = vld [vmem:[%s1151 + $0x950] sm:$0xff]
        %v4795 = vld [vmem:[%s1151 + $0x958] sm:$0xff]
        %v4796 = vld [vmem:[%s1151 + $0x960] sm:$0xff]
        %v4797 = vld [vmem:[%s1151 + $0x968] sm:$0xff]
        %v4798 = vld [vmem:[%s1151 + $0x970] sm:$0xff]
        %v4799 = vld [vmem:[%s1151 + $0x978] sm:$0xff]
        %v4800 = vld [vmem:[%s1151 + $0x980] sm:$0xff]
        %v4801 = vld [vmem:[%s1151 + $0x988] sm:$0xff]
        %v4802 = vld [vmem:[%s1151 + $0x990] sm:$0xff]
        %v4803 = vld [vmem:[%s1151 + $0x998] sm:$0xff]
        %v4804 = vld [vmem:[%s1151 + $0x9a0] sm:$0xff]
        %v4805 = vld [vmem:[%s1151 + $0x9a8] sm:$0xff]
        %v4806 = vld [vmem:[%s1151 + $0x9b0] sm:$0xff]
        %v4807 = vld [vmem:[%s1151 + $0x9b8] sm:$0xff]
        %v4808 = vld [vmem:[%s1151 + $0x9c0] sm:$0xff]
        %v4809 = vld [vmem:[%s1151 + $0x9c8] sm:$0xff]
        %v4810 = vld [vmem:[%s1151 + $0x9d0] sm:$0xff]
        %v4811 = vld [vmem:[%s1151 + $0x9d8] sm:$0xff]
        %v4812 = vld [vmem:[%s1151 + $0x9e0] sm:$0xff]
        %v4813 = vld [vmem:[%s1151 + $0x9e8] sm:$0xff]
        %v4814 = vld [vmem:[%s1151 + $0x9f0] sm:$0xff]
        %v4815 = vld [vmem:[%s1151 + $0x9f8] sm:$0xff]
        %v4816 = vld [vmem:[%s1151 + $0xa00] sm:$0xff]
        %v4817 = vld [vmem:[%s1151 + $0xa08] sm:$0xff]
        %v4818 = vld [vmem:[%s1151 + $0xa10] sm:$0xff]
        %v4819 = vld [vmem:[%s1151 + $0xa18] sm:$0xff]
        %v4820 = vld [vmem:[%s1151 + $0xa20] sm:$0xff]
        %v4821 = vld [vmem:[%s1151 + $0xa28] sm:$0xff]
        %v4822 = vld [vmem:[%s1151 + $0xa30] sm:$0xff]
        %v4823 = vld [vmem:[%s1151 + $0xa38] sm:$0xff]
        %v4824 = vld [vmem:[%s1151 + $0xa40] sm:$0xff]
        %v4825 = vld [vmem:[%s1151 + $0xa48] sm:$0xff]
        %v4826 = vld [vmem:[%s1151 + $0xa50] sm:$0xff]
        %v4827 = vld [vmem:[%s1151 + $0xa58] sm:$0xff]
        %v4828 = vld [vmem:[%s1151 + $0xa60] sm:$0xff]
        %v4829 = vld [vmem:[%s1151 + $0xa68] sm:$0xff]
        %v4830 = vld [vmem:[%s1151 + $0xa70] sm:$0xff]
        %v4831 = vld [vmem:[%s1151 + $0xa78] sm:$0xff]
        %v4832 = vld [vmem:[%s1151 + $0xa80] sm:$0xff]
        %v4833 = vld [vmem:[%s1151 + $0xa88] sm:$0xff]
        %v4834 = vld [vmem:[%s1151 + $0xa90] sm:$0xff]
        %v4835 = vld [vmem:[%s1151 + $0xa98] sm:$0xff]
        %v4836 = vld [vmem:[%s1151 + $0xaa0] sm:$0xff]
        %v4837 = vld [vmem:[%s1151 + $0xaa8] sm:$0xff]
        %v4838 = vld [vmem:[%s1151 + $0xab0] sm:$0xff]
        %v4839 = vld [vmem:[%s1151 + $0xab8] sm:$0xff]
        %v4840 = vld [vmem:[%s1151 + $0xac0] sm:$0xff]
        %v4841 = vld [vmem:[%s1151 + $0xac8] sm:$0xff]
        %v4842 = vld [vmem:[%s1151 + $0xad0] sm:$0xff]
        %v4843 = vld [vmem:[%s1151 + $0xad8] sm:$0xff]
        %v4844 = vld [vmem:[%s1151 + $0xae0] sm:$0xff]
        %v4845 = vld [vmem:[%s1151 + $0xae8] sm:$0xff]
        %v4846 = vld [vmem:[%s1151 + $0xaf0] sm:$0xff]
        %v4847 = vld [vmem:[%s1151 + $0xaf8] sm:$0xff]
        %v4848 = vld [vmem:[%s1151 + $0xb00] sm:$0xff]
        %v4849 = vld [vmem:[%s1151 + $0xb08] sm:$0xff]
        %v4850 = vld [vmem:[%s1151 + $0xb10] sm:$0xff]
        %v4851 = vld [vmem:[%s1151 + $0xb18] sm:$0xff]
        %v4852 = vld [vmem:[%s1151 + $0xb20] sm:$0xff]
        %v4853 = vld [vmem:[%s1151 + $0xb28] sm:$0xff]
        %v4854 = vld [vmem:[%s1151 + $0xb30] sm:$0xff]
        %v4855 = vld [vmem:[%s1151 + $0xb38] sm:$0xff]
        %v4856 = vld [vmem:[%s1151 + $0xb40] sm:$0xff]
        %v4857 = vld [vmem:[%s1151 + $0xb48] sm:$0xff]
        %v4858 = vld [vmem:[%s1151 + $0xb50] sm:$0xff]
        %v4859 = vld [vmem:[%s1151 + $0xb58] sm:$0xff]
        %v4860 = vld [vmem:[%s1151 + $0xb60] sm:$0xff]
        %v4861 = vld [vmem:[%s1151 + $0xb68] sm:$0xff]
        %v4862 = vld [vmem:[%s1151 + $0xb70] sm:$0xff]
        %v4863 = vld [vmem:[%s1151 + $0xb78] sm:$0xff]
        %v4864 = vld [vmem:[%s1151 + $0xb80] sm:$0xff]
        %v4865 = vld [vmem:[%s1151 + $0xb88] sm:$0xff]
        %v4866 = vld [vmem:[%s1151 + $0xb90] sm:$0xff]
        %v4867 = vld [vmem:[%s1151 + $0xb98] sm:$0xff]
        %v4868 = vld [vmem:[%s1151 + $0xba0] sm:$0xff]
        %v4869 = vld [vmem:[%s1151 + $0xba8] sm:$0xff]
        %v4870 = vld [vmem:[%s1151 + $0xbb0] sm:$0xff]
        %v4871 = vld [vmem:[%s1151 + $0xbb8] sm:$0xff]
        %v4872 = vld [vmem:[%s1151 + $0xbc0] sm:$0xff]
        %v4873 = vld [vmem:[%s1151 + $0xbc8] sm:$0xff]
        %v4874 = vld [vmem:[%s1151 + $0xbd0] sm:$0xff]
        %v4875 = vld [vmem:[%s1151 + $0xbd8] sm:$0xff]
        %v4876 = vld [vmem:[%s1151 + $0xbe0] sm:$0xff]
        %v4877 = vld [vmem:[%s1151 + $0xbe8] sm:$0xff]
        %v4878 = vld [vmem:[%s1151 + $0xbf0] sm:$0xff]
        %v4879 = vld [vmem:[%s1151 + $0xbf8] sm:$0xff]
        %v4880 = vld [vmem:[%s1151 + $0xc00] sm:$0xff]
        %v4881 = vld [vmem:[%s1151 + $0xc08] sm:$0xff]
        %v4882 = vld [vmem:[%s1151 + $0xc10] sm:$0xff]
        %v4883 = vld [vmem:[%s1151 + $0xc18] sm:$0xff]
        %v4884 = vld [vmem:[%s1151 + $0xc20] sm:$0xff]
        %v4885 = vld [vmem:[%s1151 + $0xc28] sm:$0xff]
        %v4886 = vld [vmem:[%s1151 + $0xc30] sm:$0xff]
        %v4887 = vld [vmem:[%s1151 + $0xc38] sm:$0xff]
        %v4888 = vld [vmem:[%s1151 + $0xc40] sm:$0xff]
        %v4889 = vld [vmem:[%s1151 + $0xc48] sm:$0xff]
        %v4890 = vld [vmem:[%s1151 + $0xc50] sm:$0xff]
        %v4891 = vld [vmem:[%s1151 + $0xc58] sm:$0xff]
        %v4892 = vld [vmem:[%s1151 + $0xc60] sm:$0xff]
        %v4893 = vld [vmem:[%s1151 + $0xc68] sm:$0xff]
        %v4894 = vld [vmem:[%s1151 + $0xc70] sm:$0xff]
        %v4895 = vld [vmem:[%s1151 + $0xc78] sm:$0xff]
        %v4896 = vld [vmem:[%s1151 + $0xc80] sm:$0xff]
        %v4897 = vld [vmem:[%s1151 + $0xc88] sm:$0xff]
        %v4898 = vld [vmem:[%s1151 + $0xc90] sm:$0xff]
        %v4899 = vld [vmem:[%s1151 + $0xc98] sm:$0xff]
        %v4900 = vld [vmem:[%s1151 + $0xca0] sm:$0xff]
        %v4901 = vld [vmem:[%s1151 + $0xca8] sm:$0xff]
        %v4902 = vld [vmem:[%s1151 + $0xcb0] sm:$0xff]
        %v4903 = vld [vmem:[%s1151 + $0xcb8] sm:$0xff]
        %v4904 = vld [vmem:[%s1151 + $0xcc0] sm:$0xff]
        %v4905 = vld [vmem:[%s1151 + $0xcc8] sm:$0xff]
        %v4906 = vld [vmem:[%s1151 + $0xcd0] sm:$0xff]
        %v4907 = vld [vmem:[%s1151 + $0xcd8] sm:$0xff]
        %v4908 = vld [vmem:[%s1151 + $0xce0] sm:$0xff]
        %v4909 = vld [vmem:[%s1151 + $0xce8] sm:$0xff]
        %v4910 = vld [vmem:[%s1151 + $0xcf0] sm:$0xff]
        %v4911 = vld [vmem:[%s1151 + $0xcf8] sm:$0xff]
        %v4912 = vld [vmem:[%s1151 + $0xd00] sm:$0xff]
        %v4913 = vld [vmem:[%s1151 + $0xd08] sm:$0xff]
        %v4914 = vld [vmem:[%s1151 + $0xd10] sm:$0xff]
        %v4915 = vld [vmem:[%s1151 + $0xd18] sm:$0xff]
        %v4916 = vld [vmem:[%s1151 + $0xd20] sm:$0xff]
        %v4917 = vld [vmem:[%s1151 + $0xd28] sm:$0xff]
        %v4918 = vld [vmem:[%s1151 + $0xd30] sm:$0xff]
        %v4919 = vld [vmem:[%s1151 + $0xd38] sm:$0xff]
        %v4920 = vld [vmem:[%s1151 + $0xd40] sm:$0xff]
        %v4921 = vld [vmem:[%s1151 + $0xd48] sm:$0xff]
        %v4922 = vld [vmem:[%s1151 + $0xd50] sm:$0xff]
        %v4923 = vld [vmem:[%s1151 + $0xd58] sm:$0xff]
        %v4924 = vld [vmem:[%s1151 + $0xd60] sm:$0xff]
        %v4925 = vld [vmem:[%s1151 + $0xd68] sm:$0xff]
        %v4926 = vld [vmem:[%s1151 + $0xd70] sm:$0xff]
        %v4927 = vld [vmem:[%s1151 + $0xd78] sm:$0xff]
        %v4928 = vld [vmem:[%s1151 + $0xd80] sm:$0xff]
        %v4929 = vld [vmem:[%s1151 + $0xd88] sm:$0xff]
        %v4930 = vld [vmem:[%s1151 + $0xd90] sm:$0xff]
        %v4931 = vld [vmem:[%s1151 + $0xd98] sm:$0xff]
        %v4932 = vld [vmem:[%s1151 + $0xda0] sm:$0xff]
        %v4933 = vld [vmem:[%s1151 + $0xda8] sm:$0xff]
        %v4934 = vld [vmem:[%s1151 + $0xdb0] sm:$0xff]
        %v4935 = vld [vmem:[%s1151 + $0xdb8] sm:$0xff]
        %v4936 = vld [vmem:[%s1151 + $0xdc0] sm:$0xff]
        %v4937 = vld [vmem:[%s1151 + $0xdc8] sm:$0xff]
        %v4938 = vld [vmem:[%s1151 + $0xdd0] sm:$0xff]
        %v4939 = vld [vmem:[%s1151 + $0xdd8] sm:$0xff]
        %v4940 = vld [vmem:[%s1151 + $0xde0] sm:$0xff]
        %v4941 = vld [vmem:[%s1151 + $0xde8] sm:$0xff]
        %v4942 = vld [vmem:[%s1151 + $0xdf0] sm:$0xff]
        %v4943 = vld [vmem:[%s1151 + $0xdf8] sm:$0xff]
        %v4944 = vld [vmem:[%s1151 + $0xe00] sm:$0xff]
        %v4945 = vld [vmem:[%s1151 + $0xe08] sm:$0xff]
        %v4946 = vld [vmem:[%s1151 + $0xe10] sm:$0xff]
        %v4947 = vld [vmem:[%s1151 + $0xe18] sm:$0xff]
        %v4948 = vld [vmem:[%s1151 + $0xe20] sm:$0xff]
        %v4949 = vld [vmem:[%s1151 + $0xe28] sm:$0xff]
        %v4950 = vld [vmem:[%s1151 + $0xe30] sm:$0xff]
        %v4951 = vld [vmem:[%s1151 + $0xe38] sm:$0xff]
        %v4952 = vld [vmem:[%s1151 + $0xe40] sm:$0xff]
        %v4953 = vld [vmem:[%s1151 + $0xe48] sm:$0xff]
        %v4954 = vld [vmem:[%s1151 + $0xe50] sm:$0xff]
        %v4955 = vld [vmem:[%s1151 + $0xe58] sm:$0xff]
        %v4956 = vld [vmem:[%s1151 + $0xe60] sm:$0xff]
        %v4957 = vld [vmem:[%s1151 + $0xe68] sm:$0xff]
        %v4958 = vld [vmem:[%s1151 + $0xe70] sm:$0xff]
        %v4959 = vld [vmem:[%s1151 + $0xe78] sm:$0xff]
        %v4960 = vld [vmem:[%s1151 + $0xe80] sm:$0xff]
        %v4961 = vld [vmem:[%s1151 + $0xe88] sm:$0xff]
        %v4962 = vld [vmem:[%s1151 + $0xe90] sm:$0xff]
        %v4963 = vld [vmem:[%s1151 + $0xe98] sm:$0xff]
        %v4964 = vld [vmem:[%s1151 + $0xea0] sm:$0xff]
        %v4965 = vld [vmem:[%s1151 + $0xea8] sm:$0xff]
        %v4966 = vld [vmem:[%s1151 + $0xeb0] sm:$0xff]
        %v4967 = vld [vmem:[%s1151 + $0xeb8] sm:$0xff]
        %v4968 = vld [vmem:[%s1151 + $0xec0] sm:$0xff]
        %v4969 = vld [vmem:[%s1151 + $0xec8] sm:$0xff]
        %v4970 = vld [vmem:[%s1151 + $0xed0] sm:$0xff]
        %v4971 = vld [vmem:[%s1151 + $0xed8] sm:$0xff]
        %v4972 = vld [vmem:[%s1151 + $0xee0] sm:$0xff]
        %v4973 = vld [vmem:[%s1151 + $0xee8] sm:$0xff]
        %v4974 = vld [vmem:[%s1151 + $0xef0] sm:$0xff]
        %v4975 = vld [vmem:[%s1151 + $0xef8] sm:$0xff]
        %v4976 = vld [vmem:[%s1151 + $0xf00] sm:$0xff]
        %v4977 = vld [vmem:[%s1151 + $0xf08] sm:$0xff]
        %v4978 = vld [vmem:[%s1151 + $0xf10] sm:$0xff]
        %v4979 = vld [vmem:[%s1151 + $0xf18] sm:$0xff]
        %v4980 = vld [vmem:[%s1151 + $0xf20] sm:$0xff]
        %v4981 = vld [vmem:[%s1151 + $0xf28] sm:$0xff]
        %v4982 = vld [vmem:[%s1151 + $0xf30] sm:$0xff]
        %v4983 = vld [vmem:[%s1151 + $0xf38] sm:$0xff]
        %v4984 = vld [vmem:[%s1151 + $0xf40] sm:$0xff]
        %v4985 = vld [vmem:[%s1151 + $0xf48] sm:$0xff]
        %v4986 = vld [vmem:[%s1151 + $0xf50] sm:$0xff]
        %v4987 = vld [vmem:[%s1151 + $0xf58] sm:$0xff]
        %v4988 = vld [vmem:[%s1151 + $0xf60] sm:$0xff]
        %v4989 = vld [vmem:[%s1151 + $0xf68] sm:$0xff]
        %v4990 = vld [vmem:[%s1151 + $0xf70] sm:$0xff]
        %v4991 = vld [vmem:[%s1151 + $0xf78] sm:$0xff]
        %v4992 = vld [vmem:[%s1151 + $0xf80] sm:$0xff]
        %v4993 = vld [vmem:[%s1151 + $0xf88] sm:$0xff]
        %v4994 = vld [vmem:[%s1151 + $0xf90] sm:$0xff]
        %v4995 = vld [vmem:[%s1151 + $0xf98] sm:$0xff]
        %v4996 = vld [vmem:[%s1151 + $0xfa0] sm:$0xff]
        %v4997 = vld [vmem:[%s1151 + $0xfa8] sm:$0xff]
        %v4998 = vld [vmem:[%s1151 + $0xfb0] sm:$0xff]
        %v4999 = vld [vmem:[%s1151 + $0xfb8] sm:$0xff]
        %v5000 = vld [vmem:[%s1151 + $0xfc0] sm:$0xff]
        %v5001 = vld [vmem:[%s1151 + $0xfc8] sm:$0xff]
        %v5002 = vld [vmem:[%s1151 + $0xfd0] sm:$0xff]
        %v5003 = vld [vmem:[%s1151 + $0xfd8] sm:$0xff]
        %v5004 = vld [vmem:[%s1151 + $0xfe0] sm:$0xff]
        %v5005 = vld [vmem:[%s1151 + $0xfe8] sm:$0xff]
        %v5006 = vld [vmem:[%s1151 + $0xff0] sm:$0xff]
        %v5007 = vld [vmem:[%s1151 + $0xff8] sm:$0xff]
        %v5008 = vld [vmem:[%s906] sm:$0x3]
        %v5010 = vlaneseq
        %v5011 = vshrl.u32 %v5010, 7
        %v5012 = vsub.s32 0, %v5011
        %v5013 = vrot.slane %v5008, %v5012
        %v5014 = vlaneseq
        %v5015 = vshrl.u32 %v5014, 7
        %v5016 = vsub.s32 1, %v5015
        %v5017 = vrot.slane %v5008, %v5016
        %5020 = vmatprep.subr.mxu0 %v4497
        %5021 = vmatpush1.xpose.msra.mxu0 %v4496
        %5022 = vmatprep.subr.mxu0 %v4513
        %5023 = vmatpush1.xpose.msra.mxu0 %v4512
        %5024 = vmatprep.subr.mxu0 %v4529
        %5025 = vmatpush1.xpose.msra.mxu0 %v4528
        %5026 = vmatprep.subr.mxu0 %v4545
        %5027 = vmatpush1.xpose.msra.mxu0 %v4544
        %5028 = vmatprep.subr.mxu0 %v4561
        %5029 = vmatpush1.xpose.msra.mxu0 %v4560
        %5030 = vmatprep.subr.mxu0 %v4577
        %5031 = vmatpush1.xpose.msra.mxu0 %v4576
        %5032 = vmatprep.subr.mxu0 %v4593
        %5033 = vmatpush1.xpose.msra.mxu0 %v4592
        %5034 = vmatprep.subr.mxu0 %v4609
        %5035 = vmatpush1.xpose.msra.mxu0 %v4608
        %5036 = vmatprep.subr.mxu0 %v4625
        %5037 = vmatpush1.xpose.msra.mxu0 %v4624
        %5038 = vmatprep.subr.mxu0 %v4641
        %5039 = vmatpush1.xpose.msra.mxu0 %v4640
        %5040 = vmatprep.subr.mxu0 %v4657
        %5041 = vmatpush1.xpose.msra.mxu0 %v4656
        %5042 = vmatprep.subr.mxu0 %v4673
        %5043 = vmatpush1.xpose.msra.mxu0 %v4672
        %5044 = vmatprep.subr.mxu0 %v4689
        %5045 = vmatpush1.xpose.msra.mxu0 %v4688
        %5046 = vmatprep.subr.mxu0 %v4705
        %5047 = vmatpush1.xpose.msra.mxu0 %v4704
        %5048 = vmatprep.subr.mxu0 %v4721
        %5049 = vmatpush1.xpose.msra.mxu0 %v4720
        %5050 = vmatprep.subr.mxu0 %v4737
        %5051 = vmatpush1.xpose.msra.mxu0 %v4736
        %5052 = vmatprep.subr.mxu0 %v4753
        %5053 = vmatpush1.xpose.msra.mxu0 %v4752
        %5054 = vmatprep.subr.mxu0 %v4769
        %5055 = vmatpush1.xpose.msra.mxu0 %v4768
        %5056 = vmatprep.subr.mxu0 %v4785
        %5057 = vmatpush1.xpose.msra.mxu0 %v4784
        %5058 = vmatprep.subr.mxu0 %v4801
        %5059 = vmatpush1.xpose.msra.mxu0 %v4800
        %5060 = vmatprep.subr.mxu0 %v4817
        %5061 = vmatpush1.xpose.msra.mxu0 %v4816
        %5062 = vmatprep.subr.mxu0 %v4833
        %5063 = vmatpush1.xpose.msra.mxu0 %v4832
        %5064 = vmatprep.subr.mxu0 %v4849
        %5065 = vmatpush1.xpose.msra.mxu0 %v4848
        %5066 = vmatprep.subr.mxu0 %v4865
        %5067 = vmatpush1.xpose.msra.mxu0 %v4864
        %5068 = vmatprep.subr.mxu0 %v4881
        %5069 = vmatpush1.xpose.msra.mxu0 %v4880
        %5070 = vmatprep.subr.mxu0 %v4897
        %5071 = vmatpush1.xpose.msra.mxu0 %v4896
        %5072 = vmatprep.subr.mxu0 %v4913
        %5073 = vmatpush1.xpose.msra.mxu0 %v4912
        %5074 = vmatprep.subr.mxu0 %v4929
        %5075 = vmatpush1.xpose.msra.mxu0 %v4928
        %5076 = vmatprep.subr.mxu0 %v4945
        %5077 = vmatpush1.xpose.msra.mxu0 %v4944
        %5078 = vmatprep.subr.mxu0 %v4961
        %5079 = vmatpush1.xpose.msra.mxu0 %v4960
        %5080 = vmatprep.subr.mxu0 %v4977
        %5081 = vmatpush1.xpose.msra.mxu0 %v4976
        %5082 = vmatprep.subr.mxu0 %v4993
        %5083 = vmatpush1.xpose.msra.mxu0 %v4992
        %5084 = vmatprep.mubr.f32.mxu0 %v4465
        %5085 = vmatmul.mubr.f32.gmra.mrb[0].mxu0 %v4464
        %v5086 = vpop.f32.mrb[0].mxu0
        %v5087 = vadd.f32 %v5013, %v5086
        %v5088 = vpop.f32.mrb[0].mxu0
        %v5089 = vadd.f32 %v5017, %v5088
        %5090 = vmatprep.mubr.f32.mxu0 %v4481
        %5091 = vmatmul.mubr.f32.gmra.mrb[0].mxu0 %v4480
        %v5092 = vpop.f32.mrb[0].mxu0
        %v5093 = vadd.f32 %v5013, %v5092
        %v5094 = vpop.f32.mrb[0].mxu0
        %v5095 = vadd.f32 %v5017, %v5094
        %5096 = vdwg.mxu0
        %5097 = vmatprep.subr.mxu0 %v4499
        %5098 = vmatpush1.xpose.msra.mxu0 %v4498
        %5099 = vmatprep.subr.mxu0 %v4515
        %5100 = vmatpush1.xpose.msra.mxu0 %v4514
        %5101 = vmatprep.subr.mxu0 %v4531
        %5102 = vmatpush1.xpose.msra.mxu0 %v4530
        %5103 = vmatprep.subr.mxu0 %v4547
        %5104 = vmatpush1.xpose.msra.mxu0 %v4546
        %5105 = vmatprep.subr.mxu0 %v4563
        %5106 = vmatpush1.xpose.msra.mxu0 %v4562
        %5107 = vmatprep.subr.mxu0 %v4579
        %5108 = vmatpush1.xpose.msra.mxu0 %v4578
        %5109 = vmatprep.subr.mxu0 %v4595
        %5110 = vmatpush1.xpose.msra.mxu0 %v4594
        %5111 = vmatprep.subr.mxu0 %v4611
        %5112 = vmatpush1.xpose.msra.mxu0 %v4610
        %5113 = vmatprep.subr.mxu0 %v4627
        %5114 = vmatpush1.xpose.msra.mxu0 %v4626
        %5115 = vmatprep.subr.mxu0 %v4643
        %5116 = vmatpush1.xpose.msra.mxu0 %v4642
        %5117 = vmatprep.subr.mxu0 %v4659
        %5118 = vmatpush1.xpose.msra.mxu0 %v4658
        %5119 = vmatprep.subr.mxu0 %v4675
        %5120 = vmatpush1.xpose.msra.mxu0 %v4674
        %5121 = vmatprep.subr.mxu0 %v4691
        %5122 = vmatpush1.xpose.msra.mxu0 %v4690
        %5123 = vmatprep.subr.mxu0 %v4707
        %5124 = vmatpush1.xpose.msra.mxu0 %v4706
        %5125 = vmatprep.subr.mxu0 %v4723
        %5126 = vmatpush1.xpose.msra.mxu0 %v4722
        %5127 = vmatprep.subr.mxu0 %v4739
        %5128 = vmatpush1.xpose.msra.mxu0 %v4738
        %5129 = vmatprep.subr.mxu0 %v4755
        %5130 = vmatpush1.xpose.msra.mxu0 %v4754
        %5131 = vmatprep.subr.mxu0 %v4771
        %5132 = vmatpush1.xpose.msra.mxu0 %v4770
        %5133 = vmatprep.subr.mxu0 %v4787
        %5134 = vmatpush1.xpose.msra.mxu0 %v4786
        %5135 = vmatprep.subr.mxu0 %v4803
        %5136 = vmatpush1.xpose.msra.mxu0 %v4802
        %5137 = vmatprep.subr.mxu0 %v4819
        %5138 = vmatpush1.xpose.msra.mxu0 %v4818
        %5139 = vmatprep.subr.mxu0 %v4835
        %5140 = vmatpush1.xpose.msra.mxu0 %v4834
        %5141 = vmatprep.subr.mxu0 %v4851
        %5142 = vmatpush1.xpose.msra.mxu0 %v4850
        %5143 = vmatprep.subr.mxu0 %v4867
        %5144 = vmatpush1.xpose.msra.mxu0 %v4866
        %5145 = vmatprep.subr.mxu0 %v4883
        %5146 = vmatpush1.xpose.msra.mxu0 %v4882
        %5147 = vmatprep.subr.mxu0 %v4899
        %5148 = vmatpush1.xpose.msra.mxu0 %v4898
        %5149 = vmatprep.subr.mxu0 %v4915
        %5150 = vmatpush1.xpose.msra.mxu0 %v4914
        %5151 = vmatprep.subr.mxu0 %v4931
        %5152 = vmatpush1.xpose.msra.mxu0 %v4930
        %5153 = vmatprep.subr.mxu0 %v4947
        %5154 = vmatpush1.xpose.msra.mxu0 %v4946
        %5155 = vmatprep.subr.mxu0 %v4963
        %5156 = vmatpush1.xpose.msra.mxu0 %v4962
        %5157 = vmatprep.subr.mxu0 %v4979
        %5158 = vmatpush1.xpose.msra.mxu0 %v4978
        %5159 = vmatprep.subr.mxu0 %v4995
        %5160 = vmatpush1.xpose.msra.mxu0 %v4994
        %5161 = vmatprep.mubr.f32.mxu0 %v4467
        %5162 = vmatmul.mubr.f32.gmra.mrb[0].mxu0 %v4466
        %v5163 = vpop.f32.mrb[0].mxu0
        %v5164 = vadd.f32 %v5087, %v5163
        %v5165 = vpop.f32.mrb[0].mxu0
        %v5166 = vadd.f32 %v5089, %v5165
        %5167 = vmatprep.mubr.f32.mxu0 %v4483
        %5168 = vmatmul.mubr.f32.gmra.mrb[0].mxu0 %v4482
        %v5169 = vpop.f32.mrb[0].mxu0
        %v5170 = vadd.f32 %v5093, %v5169
        %v5171 = vpop.f32.mrb[0].mxu0
        %v5172 = vadd.f32 %v5095, %v5171
        %5173 = vdwg.mxu0
        %5174 = vmatprep.subr.mxu0 %v4501
        %5175 = vmatpush1.xpose.msra.mxu0 %v4500
        %5176 = vmatprep.subr.mxu0 %v4517
        %5177 = vmatpush1.xpose.msra.mxu0 %v4516
        %5178 = vmatprep.subr.mxu0 %v4533
        %5179 = vmatpush1.xpose.msra.mxu0 %v4532
        %5180 = vmatprep.subr.mxu0 %v4549
        %5181 = vmatpush1.xpose.msra.mxu0 %v4548
        %5182 = vmatprep.subr.mxu0 %v4565
        %5183 = vmatpush1.xpose.msra.mxu0 %v4564
        %5184 = vmatprep.subr.mxu0 %v4581
        %5185 = vmatpush1.xpose.msra.mxu0 %v4580
        %5186 = vmatprep.subr.mxu0 %v4597
        %5187 = vmatpush1.xpose.msra.mxu0 %v4596
        %5188 = vmatprep.subr.mxu0 %v4613
        %5189 = vmatpush1.xpose.msra.mxu0 %v4612
        %5190 = vmatprep.subr.mxu0 %v4629
        %5191 = vmatpush1.xpose.msra.mxu0 %v4628
        %5192 = vmatprep.subr.mxu0 %v4645
        %5193 = vmatpush1.xpose.msra.mxu0 %v4644
        %5194 = vmatprep.subr.mxu0 %v4661
        %5195 = vmatpush1.xpose.msra.mxu0 %v4660
        %5196 = vmatprep.subr.mxu0 %v4677
        %5197 = vmatpush1.xpose.msra.mxu0 %v4676
        %5198 = vmatprep.subr.mxu0 %v4693
        %5199 = vmatpush1.xpose.msra.mxu0 %v4692
        %5200 = vmatprep.subr.mxu0 %v4709
        %5201 = vmatpush1.xpose.msra.mxu0 %v4708
        %5202 = vmatprep.subr.mxu0 %v4725
        %5203 = vmatpush1.xpose.msra.mxu0 %v4724
        %5204 = vmatprep.subr.mxu0 %v4741
        %5205 = vmatpush1.xpose.msra.mxu0 %v4740
        %5206 = vmatprep.subr.mxu0 %v4757
        %5207 = vmatpush1.xpose.msra.mxu0 %v4756
        %5208 = vmatprep.subr.mxu0 %v4773
        %5209 = vmatpush1.xpose.msra.mxu0 %v4772
        %5210 = vmatprep.subr.mxu0 %v4789
        %5211 = vmatpush1.xpose.msra.mxu0 %v4788
        %5212 = vmatprep.subr.mxu0 %v4805
        %5213 = vmatpush1.xpose.msra.mxu0 %v4804
        %5214 = vmatprep.subr.mxu0 %v4821
        %5215 = vmatpush1.xpose.msra.mxu0 %v4820
        %5216 = vmatprep.subr.mxu0 %v4837
        %5217 = vmatpush1.xpose.msra.mxu0 %v4836
        %5218 = vmatprep.subr.mxu0 %v4853
        %5219 = vmatpush1.xpose.msra.mxu0 %v4852
        %5220 = vmatprep.subr.mxu0 %v4869
        %5221 = vmatpush1.xpose.msra.mxu0 %v4868
        %5222 = vmatprep.subr.mxu0 %v4885
        %5223 = vmatpush1.xpose.msra.mxu0 %v4884
        %5224 = vmatprep.subr.mxu0 %v4901
        %5225 = vmatpush1.xpose.msra.mxu0 %v4900
        %5226 = vmatprep.subr.mxu0 %v4917
        %5227 = vmatpush1.xpose.msra.mxu0 %v4916
        %5228 = vmatprep.subr.mxu0 %v4933
        %5229 = vmatpush1.xpose.msra.mxu0 %v4932
        %5230 = vmatprep.subr.mxu0 %v4949
        %5231 = vmatpush1.xpose.msra.mxu0 %v4948
        %5232 = vmatprep.subr.mxu0 %v4965
        %5233 = vmatpush1.xpose.msra.mxu0 %v4964
        %5234 = vmatprep.subr.mxu0 %v4981
        %5235 = vmatpush1.xpose.msra.mxu0 %v4980
        %5236 = vmatprep.subr.mxu0 %v4997
        %5237 = vmatpush1.xpose.msra.mxu0 %v4996
        %5238 = vmatprep.mubr.f32.mxu0 %v4469
        %5239 = vmatmul.mubr.f32.gmra.mrb[0].mxu0 %v4468
        %v5240 = vpop.f32.mrb[0].mxu0
        %v5241 = vadd.f32 %v5164, %v5240
        %v5242 = vpop.f32.mrb[0].mxu0
        %v5243 = vadd.f32 %v5166, %v5242
        %5244 = vmatprep.mubr.f32.mxu0 %v4485
        %5245 = vmatmul.mubr.f32.gmra.mrb[0].mxu0 %v4484
        %v5246 = vpop.f32.mrb[0].mxu0
        %v5247 = vadd.f32 %v5170, %v5246
        %v5248 = vpop.f32.mrb[0].mxu0
        %v5249 = vadd.f32 %v5172, %v5248
        %5250 = vdwg.mxu0
        %5251 = vmatprep.subr.mxu0 %v4503
        %5252 = vmatpush1.xpose.msra.mxu0 %v4502
        %5253 = vmatprep.subr.mxu0 %v4519
        %5254 = vmatpush1.xpose.msra.mxu0 %v4518
        %5255 = vmatprep.subr.mxu0 %v4535
        %5256 = vmatpush1.xpose.msra.mxu0 %v4534
        %5257 = vmatprep.subr.mxu0 %v4551
        %5258 = vmatpush1.xpose.msra.mxu0 %v4550
        %5259 = vmatprep.subr.mxu0 %v4567
        %5260 = vmatpush1.xpose.msra.mxu0 %v4566
        %5261 = vmatprep.subr.mxu0 %v4583
        %5262 = vmatpush1.xpose.msra.mxu0 %v4582
        %5263 = vmatprep.subr.mxu0 %v4599
        %5264 = vmatpush1.xpose.msra.mxu0 %v4598
        %5265 = vmatprep.subr.mxu0 %v4615
        %5266 = vmatpush1.xpose.msra.mxu0 %v4614
        %5267 = vmatprep.subr.mxu0 %v4631
        %5268 = vmatpush1.xpose.msra.mxu0 %v4630
        %5269 = vmatprep.subr.mxu0 %v4647
        %5270 = vmatpush1.xpose.msra.mxu0 %v4646
        %5271 = vmatprep.subr.mxu0 %v4663
        %5272 = vmatpush1.xpose.msra.mxu0 %v4662
        %5273 = vmatprep.subr.mxu0 %v4679
        %5274 = vmatpush1.xpose.msra.mxu0 %v4678
        %5275 = vmatprep.subr.mxu0 %v4695
        %5276 = vmatpush1.xpose.msra.mxu0 %v4694
        %5277 = vmatprep.subr.mxu0 %v4711
        %5278 = vmatpush1.xpose.msra.mxu0 %v4710
        %5279 = vmatprep.subr.mxu0 %v4727
        %5280 = vmatpush1.xpose.msra.mxu0 %v4726
        %5281 = vmatprep.subr.mxu0 %v4743
        %5282 = vmatpush1.xpose.msra.mxu0 %v4742
        %5283 = vmatprep.subr.mxu0 %v4759
        %5284 = vmatpush1.xpose.msra.mxu0 %v4758
        %5285 = vmatprep.subr.mxu0 %v4775
        %5286 = vmatpush1.xpose.msra.mxu0 %v4774
        %5287 = vmatprep.subr.mxu0 %v4791
        %5288 = vmatpush1.xpose.msra.mxu0 %v4790
        %5289 = vmatprep.subr.mxu0 %v4807
        %5290 = vmatpush1.xpose.msra.mxu0 %v4806
        %5291 = vmatprep.subr.mxu0 %v4823
        %5292 = vmatpush1.xpose.msra.mxu0 %v4822
        %5293 = vmatprep.subr.mxu0 %v4839
        %5294 = vmatpush1.xpose.msra.mxu0 %v4838
        %5295 = vmatprep.subr.mxu0 %v4855
        %5296 = vmatpush1.xpose.msra.mxu0 %v4854
        %5297 = vmatprep.subr.mxu0 %v4871
        %5298 = vmatpush1.xpose.msra.mxu0 %v4870
        %5299 = vmatprep.subr.mxu0 %v4887
        %5300 = vmatpush1.xpose.msra.mxu0 %v4886
        %5301 = vmatprep.subr.mxu0 %v4903
        %5302 = vmatpush1.xpose.msra.mxu0 %v4902
        %5303 = vmatprep.subr.mxu0 %v4919
        %5304 = vmatpush1.xpose.msra.mxu0 %v4918
        %5305 = vmatprep.subr.mxu0 %v4935
        %5306 = vmatpush1.xpose.msra.mxu0 %v4934
        %5307 = vmatprep.subr.mxu0 %v4951
        %5308 = vmatpush1.xpose.msra.mxu0 %v4950
        %5309 = vmatprep.subr.mxu0 %v4967
        %5310 = vmatpush1.xpose.msra.mxu0 %v4966
        %5311 = vmatprep.subr.mxu0 %v4983
        %5312 = vmatpush1.xpose.msra.mxu0 %v4982
        %5313 = vmatprep.subr.mxu0 %v4999
        %5314 = vmatpush1.xpose.msra.mxu0 %v4998
        %5315 = vmatprep.mubr.f32.mxu0 %v4471
        %5316 = vmatmul.mubr.f32.gmra.mrb[0].mxu0 %v4470
        %v5317 = vpop.f32.mrb[0].mxu0
        %v5318 = vadd.f32 %v5241, %v5317
        %v5319 = vpop.f32.mrb[0].mxu0
        %v5320 = vadd.f32 %v5243, %v5319
        %5321 = vmatprep.mubr.f32.mxu0 %v4487
        %5322 = vmatmul.mubr.f32.gmra.mrb[0].mxu0 %v4486
        %v5323 = vpop.f32.mrb[0].mxu0
        %v5324 = vadd.f32 %v5247, %v5323
        %v5325 = vpop.f32.mrb[0].mxu0
        %v5326 = vadd.f32 %v5249, %v5325
        %5327 = vdwg.mxu0
        %5328 = vmatprep.subr.mxu0 %v4505
        %5329 = vmatpush1.xpose.msra.mxu0 %v4504
        %5330 = vmatprep.subr.mxu0 %v4521
        %5331 = vmatpush1.xpose.msra.mxu0 %v4520
        %5332 = vmatprep.subr.mxu0 %v4537
        %5333 = vmatpush1.xpose.msra.mxu0 %v4536
        %5334 = vmatprep.subr.mxu0 %v4553
        %5335 = vmatpush1.xpose.msra.mxu0 %v4552
        %5336 = vmatprep.subr.mxu0 %v4569
        %5337 = vmatpush1.xpose.msra.mxu0 %v4568
        %5338 = vmatprep.subr.mxu0 %v4585
        %5339 = vmatpush1.xpose.msra.mxu0 %v4584
        %5340 = vmatprep.subr.mxu0 %v4601
        %5341 = vmatpush1.xpose.msra.mxu0 %v4600
        %5342 = vmatprep.subr.mxu0 %v4617
        %5343 = vmatpush1.xpose.msra.mxu0 %v4616
        %5344 = vmatprep.subr.mxu0 %v4633
        %5345 = vmatpush1.xpose.msra.mxu0 %v4632
        %5346 = vmatprep.subr.mxu0 %v4649
        %5347 = vmatpush1.xpose.msra.mxu0 %v4648
        %5348 = vmatprep.subr.mxu0 %v4665
        %5349 = vmatpush1.xpose.msra.mxu0 %v4664
        %5350 = vmatprep.subr.mxu0 %v4681
        %5351 = vmatpush1.xpose.msra.mxu0 %v4680
        %5352 = vmatprep.subr.mxu0 %v4697
        %5353 = vmatpush1.xpose.msra.mxu0 %v4696
        %5354 = vmatprep.subr.mxu0 %v4713
        %5355 = vmatpush1.xpose.msra.mxu0 %v4712
        %5356 = vmatprep.subr.mxu0 %v4729
        %5357 = vmatpush1.xpose.msra.mxu0 %v4728
        %5358 = vmatprep.subr.mxu0 %v4745
        %5359 = vmatpush1.xpose.msra.mxu0 %v4744
        %5360 = vmatprep.subr.mxu0 %v4761
        %5361 = vmatpush1.xpose.msra.mxu0 %v4760
        %5362 = vmatprep.subr.mxu0 %v4777
        %5363 = vmatpush1.xpose.msra.mxu0 %v4776
        %5364 = vmatprep.subr.mxu0 %v4793
        %5365 = vmatpush1.xpose.msra.mxu0 %v4792
        %5366 = vmatprep.subr.mxu0 %v4809
        %5367 = vmatpush1.xpose.msra.mxu0 %v4808
        %5368 = vmatprep.subr.mxu0 %v4825
        %5369 = vmatpush1.xpose.msra.mxu0 %v4824
        %5370 = vmatprep.subr.mxu0 %v4841
        %5371 = vmatpush1.xpose.msra.mxu0 %v4840
        %5372 = vmatprep.subr.mxu0 %v4857
        %5373 = vmatpush1.xpose.msra.mxu0 %v4856
        %5374 = vmatprep.subr.mxu0 %v4873
        %5375 = vmatpush1.xpose.msra.mxu0 %v4872
        %5376 = vmatprep.subr.mxu0 %v4889
        %5377 = vmatpush1.xpose.msra.mxu0 %v4888
        %5378 = vmatprep.subr.mxu0 %v4905
        %5379 = vmatpush1.xpose.msra.mxu0 %v4904
        %5380 = vmatprep.subr.mxu0 %v4921
        %5381 = vmatpush1.xpose.msra.mxu0 %v4920
        %5382 = vmatprep.subr.mxu0 %v4937
        %5383 = vmatpush1.xpose.msra.mxu0 %v4936
        %5384 = vmatprep.subr.mxu0 %v4953
        %5385 = vmatpush1.xpose.msra.mxu0 %v4952
        %5386 = vmatprep.subr.mxu0 %v4969
        %5387 = vmatpush1.xpose.msra.mxu0 %v4968
        %5388 = vmatprep.subr.mxu0 %v4985
        %5389 = vmatpush1.xpose.msra.mxu0 %v4984
        %5390 = vmatprep.subr.mxu0 %v5001
        %5391 = vmatpush1.xpose.msra.mxu0 %v5000
        %5392 = vmatprep.mubr.f32.mxu0 %v4473
        %5393 = vmatmul.mubr.f32.gmra.mrb[0].mxu0 %v4472
        %v5394 = vpop.f32.mrb[0].mxu0
        %v5395 = vadd.f32 %v5318, %v5394
        %v5396 = vpop.f32.mrb[0].mxu0
        %v5397 = vadd.f32 %v5320, %v5396
        %5398 = vmatprep.mubr.f32.mxu0 %v4489
        %5399 = vmatmul.mubr.f32.gmra.mrb[0].mxu0 %v4488
        %v5400 = vpop.f32.mrb[0].mxu0
        %v5401 = vadd.f32 %v5324, %v5400
        %v5402 = vpop.f32.mrb[0].mxu0
        %v5403 = vadd.f32 %v5326, %v5402
        %5404 = vdwg.mxu0
        %5405 = vmatprep.subr.mxu0 %v4507
        %5406 = vmatpush1.xpose.msra.mxu0 %v4506
        %5407 = vmatprep.subr.mxu0 %v4523
        %5408 = vmatpush1.xpose.msra.mxu0 %v4522
        %5409 = vmatprep.subr.mxu0 %v4539
        %5410 = vmatpush1.xpose.msra.mxu0 %v4538
        %5411 = vmatprep.subr.mxu0 %v4555
        %5412 = vmatpush1.xpose.msra.mxu0 %v4554
        %5413 = vmatprep.subr.mxu0 %v4571
        %5414 = vmatpush1.xpose.msra.mxu0 %v4570
        %5415 = vmatprep.subr.mxu0 %v4587
        %5416 = vmatpush1.xpose.msra.mxu0 %v4586
        %5417 = vmatprep.subr.mxu0 %v4603
        %5418 = vmatpush1.xpose.msra.mxu0 %v4602
        %5419 = vmatprep.subr.mxu0 %v4619
        %5420 = vmatpush1.xpose.msra.mxu0 %v4618
        %5421 = vmatprep.subr.mxu0 %v4635
        %5422 = vmatpush1.xpose.msra.mxu0 %v4634
        %5423 = vmatprep.subr.mxu0 %v4651
        %5424 = vmatpush1.xpose.msra.mxu0 %v4650
        %5425 = vmatprep.subr.mxu0 %v4667
        %5426 = vmatpush1.xpose.msra.mxu0 %v4666
        %5427 = vmatprep.subr.mxu0 %v4683
        %5428 = vmatpush1.xpose.msra.mxu0 %v4682
        %5429 = vmatprep.subr.mxu0 %v4699
        %5430 = vmatpush1.xpose.msra.mxu0 %v4698
        %5431 = vmatprep.subr.mxu0 %v4715
        %5432 = vmatpush1.xpose.msra.mxu0 %v4714
        %5433 = vmatprep.subr.mxu0 %v4731
        %5434 = vmatpush1.xpose.msra.mxu0 %v4730
        %5435 = vmatprep.subr.mxu0 %v4747
        %5436 = vmatpush1.xpose.msra.mxu0 %v4746
        %5437 = vmatprep.subr.mxu0 %v4763
        %5438 = vmatpush1.xpose.msra.mxu0 %v4762
        %5439 = vmatprep.subr.mxu0 %v4779
        %5440 = vmatpush1.xpose.msra.mxu0 %v4778
        %5441 = vmatprep.subr.mxu0 %v4795
        %5442 = vmatpush1.xpose.msra.mxu0 %v4794
        %5443 = vmatprep.subr.mxu0 %v4811
        %5444 = vmatpush1.xpose.msra.mxu0 %v4810
        %5445 = vmatprep.subr.mxu0 %v4827
        %5446 = vmatpush1.xpose.msra.mxu0 %v4826
        %5447 = vmatprep.subr.mxu0 %v4843
        %5448 = vmatpush1.xpose.msra.mxu0 %v4842
        %5449 = vmatprep.subr.mxu0 %v4859
        %5450 = vmatpush1.xpose.msra.mxu0 %v4858
        %5451 = vmatprep.subr.mxu0 %v4875
        %5452 = vmatpush1.xpose.msra.mxu0 %v4874
        %5453 = vmatprep.subr.mxu0 %v4891
        %5454 = vmatpush1.xpose.msra.mxu0 %v4890
        %5455 = vmatprep.subr.mxu0 %v4907
        %5456 = vmatpush1.xpose.msra.mxu0 %v4906
        %5457 = vmatprep.subr.mxu0 %v4923
        %5458 = vmatpush1.xpose.msra.mxu0 %v4922
        %5459 = vmatprep.subr.mxu0 %v4939
        %5460 = vmatpush1.xpose.msra.mxu0 %v4938
        %5461 = vmatprep.subr.mxu0 %v4955
        %5462 = vmatpush1.xpose.msra.mxu0 %v4954
        %5463 = vmatprep.subr.mxu0 %v4971
        %5464 = vmatpush1.xpose.msra.mxu0 %v4970
        %5465 = vmatprep.subr.mxu0 %v4987
        %5466 = vmatpush1.xpose.msra.mxu0 %v4986
        %5467 = vmatprep.subr.mxu0 %v5003
        %5468 = vmatpush1.xpose.msra.mxu0 %v5002
        %5469 = vmatprep.mubr.f32.mxu0 %v4475
        %5470 = vmatmul.mubr.f32.gmra.mrb[0].mxu0 %v4474
        %v5471 = vpop.f32.mrb[0].mxu0
        %v5472 = vadd.f32 %v5395, %v5471
        %v5473 = vpop.f32.mrb[0].mxu0
        %v5474 = vadd.f32 %v5397, %v5473
        %5475 = vmatprep.mubr.f32.mxu0 %v4491
        %5476 = vmatmul.mubr.f32.gmra.mrb[0].mxu0 %v4490
        %v5477 = vpop.f32.mrb[0].mxu0
        %v5478 = vadd.f32 %v5401, %v5477
        %v5479 = vpop.f32.mrb[0].mxu0
        %v5480 = vadd.f32 %v5403, %v5479
        %5481 = vdwg.mxu0
        %5482 = vmatprep.subr.mxu0 %v4509
        %5483 = vmatpush1.xpose.msra.mxu0 %v4508
        %5484 = vmatprep.subr.mxu0 %v4525
        %5485 = vmatpush1.xpose.msra.mxu0 %v4524
        %5486 = vmatprep.subr.mxu0 %v4541
        %5487 = vmatpush1.xpose.msra.mxu0 %v4540
        %5488 = vmatprep.subr.mxu0 %v4557
        %5489 = vmatpush1.xpose.msra.mxu0 %v4556
        %5490 = vmatprep.subr.mxu0 %v4573
        %5491 = vmatpush1.xpose.msra.mxu0 %v4572
        %5492 = vmatprep.subr.mxu0 %v4589
        %5493 = vmatpush1.xpose.msra.mxu0 %v4588
        %5494 = vmatprep.subr.mxu0 %v4605
        %5495 = vmatpush1.xpose.msra.mxu0 %v4604
        %5496 = vmatprep.subr.mxu0 %v4621
        %5497 = vmatpush1.xpose.msra.mxu0 %v4620
        %5498 = vmatprep.subr.mxu0 %v4637
        %5499 = vmatpush1.xpose.msra.mxu0 %v4636
        %5500 = vmatprep.subr.mxu0 %v4653
        %5501 = vmatpush1.xpose.msra.mxu0 %v4652
        %5502 = vmatprep.subr.mxu0 %v4669
        %5503 = vmatpush1.xpose.msra.mxu0 %v4668
        %5504 = vmatprep.subr.mxu0 %v4685
        %5505 = vmatpush1.xpose.msra.mxu0 %v4684
        %5506 = vmatprep.subr.mxu0 %v4701
        %5507 = vmatpush1.xpose.msra.mxu0 %v4700
        %5508 = vmatprep.subr.mxu0 %v4717
        %5509 = vmatpush1.xpose.msra.mxu0 %v4716
        %5510 = vmatprep.subr.mxu0 %v4733
        %5511 = vmatpush1.xpose.msra.mxu0 %v4732
        %5512 = vmatprep.subr.mxu0 %v4749
        %5513 = vmatpush1.xpose.msra.mxu0 %v4748
        %5514 = vmatprep.subr.mxu0 %v4765
        %5515 = vmatpush1.xpose.msra.mxu0 %v4764
        %5516 = vmatprep.subr.mxu0 %v4781
        %5517 = vmatpush1.xpose.msra.mxu0 %v4780
        %5518 = vmatprep.subr.mxu0 %v4797
        %5519 = vmatpush1.xpose.msra.mxu0 %v4796
        %5520 = vmatprep.subr.mxu0 %v4813
        %5521 = vmatpush1.xpose.msra.mxu0 %v4812
        %5522 = vmatprep.subr.mxu0 %v4829
        %5523 = vmatpush1.xpose.msra.mxu0 %v4828
        %5524 = vmatprep.subr.mxu0 %v4845
        %5525 = vmatpush1.xpose.msra.mxu0 %v4844
        %5526 = vmatprep.subr.mxu0 %v4861
        %5527 = vmatpush1.xpose.msra.mxu0 %v4860
        %5528 = vmatprep.subr.mxu0 %v4877
        %5529 = vmatpush1.xpose.msra.mxu0 %v4876
        %5530 = vmatprep.subr.mxu0 %v4893
        %5531 = vmatpush1.xpose.msra.mxu0 %v4892
        %5532 = vmatprep.subr.mxu0 %v4909
        %5533 = vmatpush1.xpose.msra.mxu0 %v4908
        %5534 = vmatprep.subr.mxu0 %v4925
        %5535 = vmatpush1.xpose.msra.mxu0 %v4924
        %5536 = vmatprep.subr.mxu0 %v4941
        %5537 = vmatpush1.xpose.msra.mxu0 %v4940
        %5538 = vmatprep.subr.mxu0 %v4957
        %5539 = vmatpush1.xpose.msra.mxu0 %v4956
        %5540 = vmatprep.subr.mxu0 %v4973
        %5541 = vmatpush1.xpose.msra.mxu0 %v4972
        %5542 = vmatprep.subr.mxu0 %v4989
        %5543 = vmatpush1.xpose.msra.mxu0 %v4988
        %5544 = vmatprep.subr.mxu0 %v5005
        %5545 = vmatpush1.xpose.msra.mxu0 %v5004
        %5546 = vmatprep.mubr.f32.mxu0 %v4477
        %5547 = vmatmul.mubr.f32.gmra.mrb[0].mxu0 %v4476
        %v5548 = vpop.f32.mrb[0].mxu0
        %v5549 = vadd.f32 %v5472, %v5548
        %v5550 = vpop.f32.mrb[0].mxu0
        %v5551 = vadd.f32 %v5474, %v5550
        %5552 = vmatprep.mubr.f32.mxu0 %v4493
        %5553 = vmatmul.mubr.f32.gmra.mrb[0].mxu0 %v4492
        %v5554 = vpop.f32.mrb[0].mxu0
        %v5555 = vadd.f32 %v5478, %v5554
        %v5556 = vpop.f32.mrb[0].mxu0
        %v5557 = vadd.f32 %v5480, %v5556
        %5558 = vdwg.mxu0
        %5559 = vmatprep.subr.mxu0 %v4511
        %5560 = vmatpush1.xpose.msra.mxu0 %v4510
        %5561 = vmatprep.subr.mxu0 %v4527
        %5562 = vmatpush1.xpose.msra.mxu0 %v4526
        %5563 = vmatprep.subr.mxu0 %v4543
        %5564 = vmatpush1.xpose.msra.mxu0 %v4542
        %5565 = vmatprep.subr.mxu0 %v4559
        %5566 = vmatpush1.xpose.msra.mxu0 %v4558
        %5567 = vmatprep.subr.mxu0 %v4575
        %5568 = vmatpush1.xpose.msra.mxu0 %v4574
        %5569 = vmatprep.subr.mxu0 %v4591
        %5570 = vmatpush1.xpose.msra.mxu0 %v4590
        %5571 = vmatprep.subr.mxu0 %v4607
        %5572 = vmatpush1.xpose.msra.mxu0 %v4606
        %5573 = vmatprep.subr.mxu0 %v4623
        %5574 = vmatpush1.xpose.msra.mxu0 %v4622
        %5575 = vmatprep.subr.mxu0 %v4639
        %5576 = vmatpush1.xpose.msra.mxu0 %v4638
        %5577 = vmatprep.subr.mxu0 %v4655
        %5578 = vmatpush1.xpose.msra.mxu0 %v4654
        %5579 = vmatprep.subr.mxu0 %v4671
        %5580 = vmatpush1.xpose.msra.mxu0 %v4670
        %5581 = vmatprep.subr.mxu0 %v4687
        %5582 = vmatpush1.xpose.msra.mxu0 %v4686
        %5583 = vmatprep.subr.mxu0 %v4703
        %5584 = vmatpush1.xpose.msra.mxu0 %v4702
        %5585 = vmatprep.subr.mxu0 %v4719
        %5586 = vmatpush1.xpose.msra.mxu0 %v4718
        %5587 = vmatprep.subr.mxu0 %v4735
        %5588 = vmatpush1.xpose.msra.mxu0 %v4734
        %5589 = vmatprep.subr.mxu0 %v4751
        %5590 = vmatpush1.xpose.msra.mxu0 %v4750
        %5591 = vmatprep.subr.mxu0 %v4767
        %5592 = vmatpush1.xpose.msra.mxu0 %v4766
        %5593 = vmatprep.subr.mxu0 %v4783
        %5594 = vmatpush1.xpose.msra.mxu0 %v4782
        %5595 = vmatprep.subr.mxu0 %v4799
        %5596 = vmatpush1.xpose.msra.mxu0 %v4798
        %5597 = vmatprep.subr.mxu0 %v4815
        %5598 = vmatpush1.xpose.msra.mxu0 %v4814
        %5599 = vmatprep.subr.mxu0 %v4831
        %5600 = vmatpush1.xpose.msra.mxu0 %v4830
        %5601 = vmatprep.subr.mxu0 %v4847
        %5602 = vmatpush1.xpose.msra.mxu0 %v4846
        %5603 = vmatprep.subr.mxu0 %v4863
        %5604 = vmatpush1.xpose.msra.mxu0 %v4862
        %5605 = vmatprep.subr.mxu0 %v4879
        %5606 = vmatpush1.xpose.msra.mxu0 %v4878
        %5607 = vmatprep.subr.mxu0 %v4895
        %5608 = vmatpush1.xpose.msra.mxu0 %v4894
        %5609 = vmatprep.subr.mxu0 %v4911
        %5610 = vmatpush1.xpose.msra.mxu0 %v4910
        %5611 = vmatprep.subr.mxu0 %v4927
        %5612 = vmatpush1.xpose.msra.mxu0 %v4926
        %5613 = vmatprep.subr.mxu0 %v4943
        %5614 = vmatpush1.xpose.msra.mxu0 %v4942
        %5615 = vmatprep.subr.mxu0 %v4959
        %5616 = vmatpush1.xpose.msra.mxu0 %v4958
        %5617 = vmatprep.subr.mxu0 %v4975
        %5618 = vmatpush1.xpose.msra.mxu0 %v4974
        %5619 = vmatprep.subr.mxu0 %v4991
        %5620 = vmatpush1.xpose.msra.mxu0 %v4990
        %5621 = vmatprep.subr.mxu0 %v5007
        %5622 = vmatpush1.xpose.msra.mxu0 %v5006
        %5623 = vmatprep.mubr.f32.mxu0 %v4479
        %5624 = vmatmul.mubr.f32.gmra.mrb[0].mxu0 %v4478
        %v5625 = vpop.f32.mrb[0].mxu0
        %v5626 = vadd.f32 %v5549, %v5625
        %v5627 = vpop.f32.mrb[0].mxu0
        %v5628 = vadd.f32 %v5551, %v5627
        %5629 = vmatprep.mubr.f32.mxu0 %v4495
        %5630 = vmatmul.mubr.f32.gmra.mrb[0].mxu0 %v4494
        %v5631 = vpop.f32.mrb[0].mxu0
        %v5632 = vadd.f32 %v5555, %v5631
        %v5633 = vpop.f32.mrb[0].mxu0
        %v5634 = vadd.f32 %v5557, %v5633
        %5635 = vdwg.mxu0
        %v5636 = vadd.f32 %v3248, %v5626
        %v5637 = vadd.f32 %v3249, %v5628
        %v5638 = vadd.f32 %v3250, %v5632
        %v5639 = vadd.f32 %v3251, %v5634
        %v5640 = vld [vmem:[%s951] sm:$0x3]
        %v5641 = vld [vmem:[%s960] sm:$0x3]
        %v5642 = vadd.f32 %v5636, %v5637
        %5643 = vadd.xlane.f32.xlu0 %v5642
        %v5644 = vpop.xlane.xlu0 %5643
        %v5645 = vadd.f32 %v5638, %v5639
        %5646 = vadd.xlane.f32.xlu0 %v5645
        %v5647 = vpop.xlane.xlu0 %5646
        %v5648 = vmul.f32 %v5644, %v2776
        %v5649 = vmul.f32 %v5647, %v2776
        %v5650 = vsub.f32 %v5636, %v5648
        %v5651 = vsub.f32 %v5637, %v5648
        %v5652 = vsub.f32 %v5638, %v5649
        %v5653 = vsub.f32 %v5639, %v5649
        %v5654 = vmul.f32 %v5650, %v5650
        %v5655 = vmul.f32 %v5651, %v5651
        %v5656 = vmul.f32 %v5652, %v5652
        %v5657 = vmul.f32 %v5653, %v5653
        %v5658 = vadd.f32 %v5654, %v5655
        %5659 = vadd.xlane.f32.xlu0 %v5658
        %v5660 = vpop.xlane.xlu0 %5659
        %v5661 = vadd.f32 %v5656, %v5657
        %5662 = vadd.xlane.f32.xlu0 %v5661
        %v5663 = vpop.xlane.xlu0 %5662
        %v5664 = vmul.f32 %v5660, %v2776
        %v5665 = vmul.f32 %v5663, %v2776
        %v5666 = vadd.f32 %v5664, 1e-05
        %v5667 = vadd.f32 %v5665, 1e-05
        %v5668 = vrsqrt.pop %v5666
        %v5669 = vrsqrt.pop %v5667
        %v5670 = vmul.f32 %v5650, %v5668
        %v5671 = vmul.f32 %v5651, %v5668
        %v5672 = vmul.f32 %v5652, %v5669
        %v5673 = vmul.f32 %v5653, %v5669
        %v5675 = vlaneseq
        %v5676 = vshrl.u32 %v5675, 7
        %v5677 = vsub.s32 0, %v5676
        %v5678 = vrot.slane %v5640, %v5677
        %v5679 = vlaneseq
        %v5680 = vshrl.u32 %v5679, 7
        %v5681 = vsub.s32 1, %v5680
        %v5682 = vrot.slane %v5640, %v5681
        %v5685 = vmul.f32 %v5670, %v5678
        %v5686 = vmul.f32 %v5671, %v5682
        %v5687 = vmul.f32 %v5672, %v5678
        %v5688 = vmul.f32 %v5673, %v5682
        %v5690 = vlaneseq
        %v5691 = vshrl.u32 %v5690, 7
        %v5692 = vsub.s32 0, %v5691
        %v5693 = vrot.slane %v5641, %v5692
        %v5694 = vlaneseq
        %v5695 = vshrl.u32 %v5694, 7
        %v5696 = vsub.s32 1, %v5695
        %v5697 = vrot.slane %v5641, %v5696
        %v5700 = vadd.f32 %v5685, %v5693
        %v5701 = vadd.f32 %v5686, %v5697
        %v5702 = vadd.f32 %v5687, %v5693
        %v5703 = vadd.f32 %v5688, %v5697
        %5704 = vst [vmem:[#allocation2] sm:$0xff] %v5700
        %5705 = vst [vmem:[#allocation2 + $0x8] sm:$0xff] %v5701
        %5706 = vst [vmem:[#allocation2 + $0x10] sm:$0xff] %v5702
        %5707 = vst [vmem:[#allocation2 + $0x18] sm:$0xff] %v5703
        %p5708 = scmp.eq.s32.totalorder %s48, 1
        // Predicated region
        $region149: #{ghost_forward.7} parent=111 // pred_check
          %p5709 = pneg %p5708
        $region150: #{ghost_forward.7} parent=111 // pred_check_branch
          %5711 = sbr.rel (%p5709) target = $region152
        $region151: #{ghost_forward.7} parent=111 // pred_region
          %v5712 = vld [vmem:[%s21] sm:$0xff]
          %v5713 = vld [vmem:[%s21 + $0x8] sm:$0xff]
          %v5714 = vld [vmem:[%s21 + $0x10] sm:$0xff]
          %v5715 = vld [vmem:[%s21 + $0x18] sm:$0xff]
          %v5716 = vld [vmem:[%s21 + $0x20] sm:$0xff]
          %v5717 = vld [vmem:[%s21 + $0x28] sm:$0xff]
          %v5718 = vld [vmem:[%s21 + $0x30] sm:$0xff]
          %v5719 = vld [vmem:[%s21 + $0x38] sm:$0xff]
          %v5720 = vld [vmem:[%s21 + $0x40] sm:$0xff]
          %v5721 = vld [vmem:[%s21 + $0x48] sm:$0xff]
          %v5722 = vld [vmem:[%s21 + $0x50] sm:$0xff]
          %v5723 = vld [vmem:[%s21 + $0x58] sm:$0xff]
          %v5724 = vld [vmem:[%s21 + $0x60] sm:$0xff]
          %v5725 = vld [vmem:[%s21 + $0x68] sm:$0xff]
          %v5726 = vld [vmem:[%s21 + $0x70] sm:$0xff]
          %v5727 = vld [vmem:[%s21 + $0x78] sm:$0xff]
          %v5728 = vld [vmem:[%s21 + $0x80] sm:$0xff]
          %v5729 = vld [vmem:[%s21 + $0x88] sm:$0xff]
          %v5730 = vld [vmem:[%s21 + $0x90] sm:$0xff]
          %v5731 = vld [vmem:[%s21 + $0x98] sm:$0xff]
          %v5732 = vld [vmem:[%s21 + $0xa0] sm:$0xff]
          %v5733 = vld [vmem:[%s21 + $0xa8] sm:$0xff]
          %v5734 = vld [vmem:[%s21 + $0xb0] sm:$0xff]
          %v5735 = vld [vmem:[%s21 + $0xb8] sm:$0xff]
          %v5736 = vld [vmem:[%s21 + $0xc0] sm:$0xff]
          %v5737 = vld [vmem:[%s21 + $0xc8] sm:$0xff]
          %v5738 = vld [vmem:[%s21 + $0xd0] sm:$0xff]
          %v5739 = vld [vmem:[%s21 + $0xd8] sm:$0xff]
          %v5740 = vld [vmem:[%s21 + $0xe0] sm:$0xff]
          %v5741 = vld [vmem:[%s21 + $0xe8] sm:$0xff]
          %v5742 = vld [vmem:[%s21 + $0xf0] sm:$0xff]
          %v5743 = vld [vmem:[%s21 + $0xf8] sm:$0xff]
          %v5744 = vld [vmem:[#allocation15] sm:$0x1]
          %v5746 = vlaneseq
          %v5747 = vshrl.u32 %v5746, 7
          %v5748 = vsub.s32 0, %v5747
          %v5749 = vrot.slane %v5744, %v5748
          %5751 = vmatprep.subr.mxu0 %v5713
          %5752 = vmatpush1.xpose.msra.mxu0 %v5712
          %5753 = vmatprep.subr.mxu0 %v5715
          %5754 = vmatpush1.xpose.msra.mxu0 %v5714
          %5755 = vmatprep.subr.mxu0 %v5717
          %5756 = vmatpush1.xpose.msra.mxu0 %v5716
          %5757 = vmatprep.subr.mxu0 %v5719
          %5758 = vmatpush1.xpose.msra.mxu0 %v5718
          %5759 = vmatprep.subr.mxu0 %v5721
          %5760 = vmatpush1.xpose.msra.mxu0 %v5720
          %5761 = vmatprep.subr.mxu0 %v5723
          %5762 = vmatpush1.xpose.msra.mxu0 %v5722
          %5763 = vmatprep.subr.mxu0 %v5725
          %5764 = vmatpush1.xpose.msra.mxu0 %v5724
          %5765 = vmatprep.subr.mxu0 %v5727
          %5766 = vmatpush1.xpose.msra.mxu0 %v5726
          %5767 = vmatprep.subr.mxu0 %v5729
          %5768 = vmatpush1.xpose.msra.mxu0 %v5728
          %5769 = vmatprep.subr.mxu0 %v5731
          %5770 = vmatpush1.xpose.msra.mxu0 %v5730
          %5771 = vmatprep.subr.mxu0 %v5733
          %5772 = vmatpush1.xpose.msra.mxu0 %v5732
          %5773 = vmatprep.subr.mxu0 %v5735
          %5774 = vmatpush1.xpose.msra.mxu0 %v5734
          %5775 = vmatprep.subr.mxu0 %v5737
          %5776 = vmatpush1.xpose.msra.mxu0 %v5736
          %5777 = vmatprep.subr.mxu0 %v5739
          %5778 = vmatpush1.xpose.msra.mxu0 %v5738
          %5779 = vmatprep.subr.mxu0 %v5741
          %5780 = vmatpush1.xpose.msra.mxu0 %v5740
          %5781 = vmatprep.subr.mxu0 %v5743
          %5782 = vmatpush1.xpose.msra.mxu0 %v5742
          %5783 = vmatprep.subr.mxu0 0.0
          %5784 = vmatpush1.xpose.msra.mxu0 0.0
          %5785 = vmatprep.subr.mxu0 0.0
          %5786 = vmatpush1.xpose.msra.mxu0 0.0
          %5787 = vmatprep.subr.mxu0 0.0
          %5788 = vmatpush1.xpose.msra.mxu0 0.0
          %5789 = vmatprep.subr.mxu0 0.0
          %5790 = vmatpush1.xpose.msra.mxu0 0.0
          %5791 = vmatprep.subr.mxu0 0.0
          %5792 = vmatpush1.xpose.msra.mxu0 0.0
          %5793 = vmatprep.subr.mxu0 0.0
          %5794 = vmatpush1.xpose.msra.mxu0 0.0
          %5795 = vmatprep.subr.mxu0 0.0
          %5796 = vmatpush1.xpose.msra.mxu0 0.0
          %5797 = vmatprep.subr.mxu0 0.0
          %5798 = vmatpush1.xpose.msra.mxu0 0.0
          %5799 = vmatprep.subr.mxu0 0.0
          %5800 = vmatpush1.xpose.msra.mxu0 0.0
          %5801 = vmatprep.subr.mxu0 0.0
          %5802 = vmatpush1.xpose.msra.mxu0 0.0
          %5803 = vmatprep.subr.mxu0 0.0
          %5804 = vmatpush1.xpose.msra.mxu0 0.0
          %5805 = vmatprep.subr.mxu0 0.0
          %5806 = vmatpush1.xpose.msra.mxu0 0.0
          %5807 = vmatprep.subr.mxu0 0.0
          %5808 = vmatpush1.xpose.msra.mxu0 0.0
          %5809 = vmatprep.subr.mxu0 0.0
          %5810 = vmatpush1.xpose.msra.mxu0 0.0
          %5811 = vmatprep.subr.mxu0 0.0
          %5812 = vmatpush1.xpose.msra.mxu0 0.0
          %5813 = vmatprep.subr.mxu0 0.0
          %5814 = vmatpush1.xpose.msra.mxu0 0.0
          %5815 = vmatprep.mubr.f32.mxu0 %v5701
          %5816 = vmatmul.mubr.f32.gmra.mrb[0].mxu0 %v5700
          %v5817 = vpop.f32.mrb[0].mxu0
          %v5818 = vadd.f32 %v5749, %v5817
          %v5819 = vpop.f32.mrb[0].mxu0
          %5820 = vmatprep.mubr.f32.mxu0 %v5703
          %5821 = vmatmul.mubr.f32.gmra.mrb[0].mxu0 %v5702
          %v5822 = vpop.f32.mrb[0].mxu0
          %v5823 = vadd.f32 %v5749, %v5822
          %v5824 = vpop.f32.mrb[0].mxu0
          %5825 = vdwg.mxu0
          %5826 = vst [vmem:[#allocation17] sm:$0xff] %v5818
          %5827 = vst [vmem:[#allocation17 + $0x8] sm:$0xff] %v5823
        $region152: #{ghost_forward.7} parent=111 // pred_fallthru
          _
        // Predicated region
        $region153: #{ghost_forward.7} parent=111 // pred_check
          %p5828 = pneg %p634
        $region154: #{ghost_forward.7} parent=111 // pred_check_branch
          %5830 = sbr.rel (%p5828) target = $region156
        $region155: #{ghost_forward.7} parent=111 // pred_region
          %s5832 = ssub.s32 256, 256
          %5833 = vsyncadd [#allocation5], %s5832
          %s5834 = sshll.u32 [#allocation17], 4
          %s5835 = int_to_ptr.vmem [resolvable:$true] %s5834
          %5840 = dma.vmem_to_hbm [thread:$0]  %s5835, 256, %s23, [#allocation5], 128, 128, 8
        $region156: #{ghost_forward.7} parent=111 // pred_fallthru
          _
        // Predicated region
        $region157: #{ghost_forward.7} parent=111 // pred_check
          %p5841 = pneg %p634
        $region158: #{ghost_forward.7} parent=111 // pred_check_branch
          %5843 = sbr.rel (%p5841) target = $region160
        $region159: #{ghost_forward.7} parent=111 // pred_region
          %5844 = dma.done [#allocation5], 256
        $region160: #{ghost_forward.7} parent=111 // pred_fallthru
          _
      $region112: #{ghost_forward.7} parent=5 // pred_fallthru
        _
      %p5845 = scmp.le.s32.totalorder 2, %s43
      // Predicated region
      $region161: #{ghost_forward.7} parent=5 // pred_check
        %p5846 = pneg %p5845
      $region162: #{ghost_forward.7} parent=5 // pred_check_branch
        %5848 = sbr.rel (%p5846) target = $region164
      $region163: #{ghost_forward.7} parent=5 // pred_region
        %s5849 = ssub.s32 %s43, 2
      $region164: #{ghost_forward.7} parent=5 // pred_fallthru
        _
    $region6: #{ghost_forward.7} parent=1 // loop_footer
      %s47 = sadd.s32 1, %s43
    $region7: #{ghost_forward.7} parent=1 // loop_footer_branch
      %42 = sbr.rel target = $region3
    $region8: #{ghost_forward.7} parent=1 // loop_exit
      _
    %5850 = vsyncpa [#allocation4], 1
    %s5851 = scalar_lea.sflag [#allocation4], 1
    %5852 = vsyncpa %s5851, 1
    %5853 = vsyncpa [#allocation7], 1
    %s5854 = scalar_lea.sflag [#allocation7], 1
    %5855 = vsyncpa %s5854, 1
    %5856 = vsyncpa [#allocation10], 1
    %s5857 = scalar_lea.sflag [#allocation10], 1
    %5858 = vsyncpa %s5857, 1
    %5859 = vsyncpa [#allocation13], 1
    %s5860 = scalar_lea.sflag [#allocation13], 1
    %5861 = vsyncpa %s5860, 1
    %5862 = vsyncpa [#allocation16], 1
    %5863 = vsyncpa [#allocation5], 1
    %s5864 = scalar_lea.sflag [#allocation5], 1
    %5865 = vsyncpa %s5864, 1

</llo_original>
